<compile_context>
chip_gen: v6e
topology: v6e:2x2x1
jax: 0.10.0
libtpu: 0.0.40
codegen_flags: <defaults>
</compile_context>

<pallas_src>
import functools
import math

import jax
import jax.numpy as jnp
from jax.experimental import pallas as pl
from jax.experimental.pallas import tpu as pltpu

_BN_EPS = 1e-5


# ----------------------------------------------------------------------------
# In-kernel GELU: tanh approximation (one EUP tanh, a few VPU ops).
# Max abs error vs exact erf-GELU ~1e-3, covered by the test tolerance.
# ----------------------------------------------------------------------------
def _gelu_tanh(x):
    c0 = 0.7978845608028654   # sqrt(2/pi)
    c1 = 0.044715
    return 0.5 * x * (1.0 + jnp.tanh(c0 * (x + c1 * x * x * x)))


# ----------------------------------------------------------------------------
# Pallas kernel: B_blk images, fully fused fc -> dw(ks1) -> GELU -> dw(ks2)
# ----------------------------------------------------------------------------
def _token_mixer_kernel(B, C, H, W, ks1, ks2,
                        x_ref, wfc_ref, bfc_ref, wm1_ref, b1_ref,
                        wm2_ref, b2_ref, o_ref):
    HW = H * W
    wfc = wfc_ref[...]            # (C, C)   hoisted loads (re-used every image)
    bfc = bfc_ref[...]            # (C, 1)
    b1 = b1_ref[...]              # (C, 1)
    b2 = b2_ref[...]              # (C, 1)

    def dwconv(z, wm_ref, b_vec, ks):
        # z: (C, HW) f32.  wm_ref: (ks*ks, C, HW) pre-masked per-tap weights.
        pad = ks // 2
        kk = ks * ks
        n_acc = 4 if kk >= 16 else 2          # break the serial add chain (ILP)
        accs = [jnp.zeros((C, HW), jnp.float32) for _ in range(n_acc)]
        for tap in range(kk):
            dy, dx = tap // ks, tap % ks
            src_shift = (dy - pad) * W + (dx - pad)   # out[i] reads in[i+shift]
            if src_shift == 0:
                shifted = z
            else:
                shifted = pltpu.roll(z, shift=(-src_shift) % HW, axis=1)
            # wm already zeroes image-boundary (and roll-wrapped) positions.
            accs[tap % n_acc] = accs[tap % n_acc] + wm_ref[tap] * shifted
        acc = accs[0]
        for a in accs[1:]:
            acc = acc + a
        return acc + b_vec

    for b in range(B):                         # static unrolled; B is small
        x = x_ref[b]                           # (C, HW) f32
        # fc: fused 1x1 conv + BN (channel mixing on the MXU, f32 accumulate)
        y = jnp.dot(wfc, x, preferred_element_type=jnp.float32) + bfc
        y = dwconv(y, wm1_ref, b1, ks1)        # fused RepVGGDW(ks1)
        y = _gelu_tanh(y)                      # torch.nn.GELU()
        y = dwconv(y, wm2_ref, b2, ks2)        # fused RepVGGDW(ks2)
        o_ref[b] = y.astype(o_ref.dtype)


# ----------------------------------------------------------------------------
# Wrapper helpers
# ----------------------------------------------------------------------------
def _masked_weight_planes(w, H, W):
    """w: (C, ks, ks) fused depthwise weights -> (ks*ks, C, H*W) masked planes.

    wmask[tap, c, pos] = w[c, dy, dx] * valid(dy, dx, pos), so the in-kernel
    tap loop needs no boundary compares, no select, and no (C,1) lane
    broadcast; roll wrap-around at image edges is neutralized by the zeros.
    """
    C, ks, _ = w.shape
    pad = ks // 2
    r = jnp.arange(H, dtype=jnp.int32).reshape(H, 1)
    c = jnp.arange(W, dtype=jnp.int32).reshape(1, W)
    planes = []
    for dy in range(ks):
        for dx in range(ks):
            dyo, dxo = dy - pad, dx - pad
            valid = ((r + dyo >= 0) & (r + dyo < H) &
                     (c + dxo >= 0) & (c + dxo < W))
            valid = valid.reshape(1, H * W).astype(w.dtype)
            planes.append(w[:, dy, dx].reshape(C, 1) * valid)     # (C, HW)
    return jnp.stack(planes, axis=0)                              # (ks*ks, C, HW)


def _pick_batch_block(N, C, HW):
    """Images per grid step: amortize per-step overhead, bound VMEM, and keep
    grid length >= 2 when the batch allows (v7x megacore)."""
    budget = 8 << 20                       # conservative slice of scoped VMEM
    per_image = 6 * C * HW * 4             # ~live f32 (C,HW) temporaries/image
    max_b = max(1, budget // max(per_image, 1))
    best = 1
    for cand in range(1, N + 1):
        if N % cand != 0 or cand > max_b:
            continue
        if N >= 4 and (N // cand) < 2:
            continue
        best = cand
    return best


@jax.jit
def token_mixer_pallas(x, wfc, bfc, w1, b1, w2, b2):
    """x: (N,C,H,W) f32.  wfc:(C,C) bfc:(C,)  w1:(C,ks1,ks1) b1:(C,)  w2:(C,ks2,ks2) b2:(C,)."""
    N, C, H, W = x.shape
    HW = H * W
    ks1 = int(w1.shape[-1])
    ks2 = int(w2.shape[-1])
    kk1, kk2 = ks1 * ks1, ks2 * ks2

    B_blk = _pick_batch_block(N, C, HW)
    grid_n = N // B_blk

    # Pre-masked per-tap weight planes (tap-major so wm[tap] is a contiguous
    # (C, HW) slab in VMEM). ~1.9 MiB at C=32, HW=256 -- DMA'd once.
    wm1 = _masked_weight_planes(w1, H, W)      # (kk1, C, HW)
    wm2 = _masked_weight_planes(w2, H, W)      # (kk2, C, HW)

    kernel = functools.partial(_token_mixer_kernel, B_blk, C, H, W, ks1, ks2)

    flops = 2 * N * C * HW * (C + kk1 + kk2)
    bytes_accessed = 4 * (2 * N * C * HW + C * C +
                          (kk1 + kk2) * C * HW + 3 * C)

    out = pl.pallas_call(
        kernel,
        out_shape=jax.ShapeDtypeStruct((N, C, HW), x.dtype),
        grid_spec=pltpu.PrefetchScalarGridSpec(
            num_scalar_prefetch=0,
            grid=(grid_n,),
            in_specs=[
                pl.BlockSpec((B_blk, C, HW), lambda b: (b, 0, 0)),
                pl.BlockSpec((C, C), lambda b: (0, 0)),
                pl.BlockSpec((C, 1), lambda b: (0, 0)),
                pl.BlockSpec((kk1, C, HW), lambda b: (0, 0, 0)),
                pl.BlockSpec((C, 1), lambda b: (0, 0)),
                pl.BlockSpec((kk2, C, HW), lambda b: (0, 0, 0)),
                pl.BlockSpec((C, 1), lambda b: (0, 0)),
            ],
            out_specs=pl.BlockSpec((B_blk, C, HW), lambda b: (b, 0, 0)),
        ),
        compiler_params=pltpu.CompilerParams(
            dimension_semantics=("parallel",)),
        cost_estimate=pl.CostEstimate(
            flops=flops, transcendentals=N * C * HW,
            bytes_accessed=bytes_accessed),
    )(
        x.reshape(N, C, HW),
        wfc,
        bfc.reshape(C, 1),
        wm1,
        b1.reshape(C, 1),
        wm2,
        b2.reshape(C, 1),
    )
    return out.reshape(N, C, H, W)


# ----------------------------------------------------------------------------
# Parameter construction + fusion glue (mirrors Conv2d_BN.fuse / RepVGGDW.fuse)
# ----------------------------------------------------------------------------
def _make_conv_bn(key, w_shape, c_out, w_scale):
    kw, kg, kb, km, kv = jax.random.split(key, 5)
    return dict(
        w=jax.random.normal(kw, w_shape, jnp.float32) * w_scale,
        gamma=1.0 + 0.1 * jax.random.normal(kg, (c_out,), jnp.float32),
        beta=0.1 * jax.random.normal(kb, (c_out,), jnp.float32),
        mean=0.1 * jax.random.normal(km, (c_out,), jnp.float32),
        var=jax.random.uniform(kv, (c_out,), jnp.float32, minval=0.5, maxval=1.5),
    )


def _make_repvggdw_params(key, dim, ks):
    k1, k2, k3, k4 = jax.random.split(key, 4)
    p = dict(
        conv1=_make_conv_bn(k1, (dim, ks, ks), dim, 1.0 / ks),
        strip1=_make_conv_bn(k3, (dim, 1, ks), dim, 1.0 / math.sqrt(ks)),
        strip2=_make_conv_bn(k4, (dim, ks, 1), dim, 1.0 / math.sqrt(ks)),
    )
    if ks > 3:
        ks_ = ks - 4
        p['conv2'] = _make_conv_bn(k2, (dim, ks_, ks_), dim, 1.0 / ks_)
    return p


def make_token_mixer_params(key, dim, ks1, ks2):
    k_fc, k1, k2 = jax.random.split(key, 3)
    return dict(
        fc=_make_conv_bn(k_fc, (dim, dim), dim, 1.0 / math.sqrt(dim)),
        conv1=_make_repvggdw_params(k1, dim, ks1),
        conv2=_make_repvggdw_params(k2, dim, ks2),
    )


def _fuse_conv_bn(p):
    scale = p['gamma'] * jax.lax.rsqrt(p['var'] + _BN_EPS)
    w = p['w'] * scale.reshape((-1,) + (1,) * (p['w'].ndim - 1))
    b = p['beta'] - p['mean'] * scale
    return w, b


def _fuse_repvggdw(p, ks):
    w_sum, b_sum = _fuse_conv_bn(p['conv1'])                       # (C,ks,ks)
    if ks > 3:
        w2, b2 = _fuse_conv_bn(p['conv2'])                         # (C,ks-4,ks-4)
        w_sum = w_sum + jnp.pad(w2, ((0, 0), (2, 2), (2, 2)))
        b_sum = b_sum + b2
    ws1, bs1 = _fuse_conv_bn(p['strip1'])                          # (C,1,ks)
    w_sum = w_sum + jnp.pad(ws1, ((0, 0), (ks // 2, ks // 2), (0, 0)))
    b_sum = b_sum + bs1
    ws2, bs2 = _fuse_conv_bn(p['strip2'])                          # (C,ks,1)
    w_sum = w_sum + jnp.pad(ws2, ((0, 0), (0, 0), (ks // 2, ks // 2)))
    b_sum = b_sum + bs2
    return w_sum, b_sum


# ----------------------------------------------------------------------------
# Plain-JAX reference: mirrors the UNFUSED PyTorch forward (eval-mode BN,
# exact erf GELU).
# ----------------------------------------------------------------------------
def _bn_eval_ref(y, p):
    scale = p['gamma'] * jax.lax.rsqrt(p['var'] + _BN_EPS)
    shift = p['beta'] - p['mean'] * scale
    return y * scale[None, :, None, None] + shift[None, :, None, None]


def _dwconv_ref(x, w, pad_h, pad_w):
    N, C, H, W = x.shape
    kh, kw = w.shape[1], w.shape[2]
    xp = jnp.pad(x, ((0, 0), (0, 0), (pad_h, pad_h), (pad_w, pad_w)))
    out = jnp.zeros_like(x)
    for dy in range(kh):
        for dx in range(kw):
            out = out + w[:, dy, dx][None, :, None, None] * xp[:, :, dy:dy + H, dx:dx + W]
    return out


def _repvggdw_ref(x, p, ks):
    out = _bn_eval_ref(_dwconv_ref(x, p['conv1']['w'], ks // 2, ks // 2), p['conv1'])
    if ks > 3:
        ks_ = ks - 4
        out = out + _bn_eval_ref(_dwconv_ref(x, p['conv2']['w'], ks_ // 2, ks_ // 2), p['conv2'])
    out = out + _bn_eval_ref(_dwconv_ref(x, p['strip1']['w'], 0, ks // 2), p['strip1'])
    out = out + _bn_eval_ref(_dwconv_ref(x, p['strip2']['w'], ks // 2, 0), p['strip2'])
    return out


def token_mixer_ref(x, p, ks1, ks2):
    y = jnp.einsum('oc,nchw->nohw', p['fc']['w'], x,
                   precision=jax.lax.Precision.HIGHEST)
    y = _bn_eval_ref(y, p['fc'])
    y = _repvggdw_ref(y, p['conv1'], ks1)
    y = 0.5 * y * (1.0 + jax.scipy.special.erf(y * (1.0 / math.sqrt(2.0))))
    y = _repvggdw_ref(y, p['conv2'], ks2)
    return y


# ----------------------------------------------------------------------------
if __name__ == "__main__":
    root = jax.random.PRNGKey(0)
    k_x, k_p = jax.random.split(root)

    N, DIM, H, W = 2, 32, 16, 16
    KS1, KS2 = 7, 3          # Token_Mixer(dim=32, ks1=7, ks2=3)

    x = jax.random.normal(k_x, (N, DIM, H, W), jnp.float32)
    params = make_token_mixer_params(k_p, DIM, KS1, KS2)

    wfc, bfc = _fuse_conv_bn(params['fc'])
    w1, b1 = _fuse_repvggdw(params['conv1'], KS1)
    w2, b2 = _fuse_repvggdw(params['conv2'], KS2)

    out = token_mixer_pallas(x, wfc, bfc, w1, b1, w2, b2)
    jax.block_until_ready(out)
    assert out.shape == (N, DIM, H, W), out.shape

    ref = token_mixer_ref(x, params, KS1, KS2)
    max_err = float(jnp.max(jnp.abs(out - ref)))
    assert jnp.allclose(out, ref, atol=2e-2, rtol=2e-2), f"max abs err {max_err}"

    print("KERNEL_OK")
</pallas_src>

<mosaic_0001>
module attributes {stable_mosaic.version = 11 : i64} {
  func.func @_token_mixer_kernel(%arg0: i32, %arg1: memref<2x32x256xf32, #tpu.memory_space<vmem>>, %arg2: memref<32x32xf32, #tpu.memory_space<vmem>>, %arg3: memref<32x1xf32, #tpu.memory_space<vmem>>, %arg4: memref<49x32x256xf32, #tpu.memory_space<vmem>>, %arg5: memref<32x1xf32, #tpu.memory_space<vmem>>, %arg6: memref<9x32x256xf32, #tpu.memory_space<vmem>>, %arg7: memref<32x1xf32, #tpu.memory_space<vmem>>, %arg8: memref<2x32x256xf32, #tpu.memory_space<vmem>>) attributes {dimension_semantics = [#tpu.dimension_semantics<parallel>], iteration_bounds = array<i64: 1>, scalar_prefetch = 0 : i64, scratch_operands = 0 : i64, tpu.core_type = #tpu.core_type<tc>, window_params = [{transform_indices = @transform_0, window_bounds = array<i64: 2, 32, 256>}, {pipeline_mode = #tpu.pipeline_mode<synchronous>, transform_indices = @transform_1, window_bounds = array<i64: 32, 32>}, {pipeline_mode = #tpu.pipeline_mode<synchronous>, transform_indices = @transform_2, window_bounds = array<i64: 32, 1>}, {pipeline_mode = #tpu.pipeline_mode<synchronous>, transform_indices = @transform_3, window_bounds = array<i64: 49, 32, 256>}, {pipeline_mode = #tpu.pipeline_mode<synchronous>, transform_indices = @transform_4, window_bounds = array<i64: 32, 1>}, {pipeline_mode = #tpu.pipeline_mode<synchronous>, transform_indices = @transform_5, window_bounds = array<i64: 9, 32, 256>}, {pipeline_mode = #tpu.pipeline_mode<synchronous>, transform_indices = @transform_6, window_bounds = array<i64: 32, 1>}, {transform_indices = @transform_7, window_bounds = array<i64: 2, 32, 256>}]} {
    %c0 = arith.constant 0 : index
    %c0_0 = arith.constant 0 : index
    %0 = vector.load %arg2[%c0, %c0_0] : memref<32x32xf32, #tpu.memory_space<vmem>>, vector<32x32xf32>
    %c0_1 = arith.constant 0 : index
    %c0_2 = arith.constant 0 : index
    %1 = vector.load %arg3[%c0_1, %c0_2] : memref<32x1xf32, #tpu.memory_space<vmem>>, vector<32x1xf32>
    %c0_3 = arith.constant 0 : index
    %c0_4 = arith.constant 0 : index
    %2 = vector.load %arg5[%c0_3, %c0_4] : memref<32x1xf32, #tpu.memory_space<vmem>>, vector<32x1xf32>
    %c0_5 = arith.constant 0 : index
    %c0_6 = arith.constant 0 : index
    %3 = vector.load %arg7[%c0_5, %c0_6] : memref<32x1xf32, #tpu.memory_space<vmem>>, vector<32x1xf32>
    %c0_7 = arith.constant 0 : index
    %c0_8 = arith.constant 0 : index
    %c0_9 = arith.constant 0 : index
    %4 = vector.load %arg1[%c0_7, %c0_8, %c0_9] : memref<2x32x256xf32, #tpu.memory_space<vmem>>, vector<1x32x256xf32>
    %5 = vector.shape_cast %4 : vector<1x32x256xf32> to vector<32x256xf32>
    %cst = arith.constant dense<0.000000e+00> : vector<32x256xf32>
    %6 = tpu.matmul %0, %5, %cst {dimension_numbers = #tpu.dot_dimension_numbers<[1], [0], [0], [1], [0, 0, 1, 1], [], []>} : vector<32x32xf32>, vector<32x256xf32>, vector<32x256xf32> -> vector<32x256xf32>
    %7 = vector.broadcast %1 : vector<32x1xf32> to vector<32x256xf32>
    %8 = arith.addf %6, %7 : vector<32x256xf32>
    %cst_10 = arith.constant 0.000000e+00 : f32
    %9 = vector.broadcast %cst_10 : f32 to vector<32x256xf32>
    %cst_11 = arith.constant 0.000000e+00 : f32
    %10 = vector.broadcast %cst_11 : f32 to vector<32x256xf32>
    %cst_12 = arith.constant 0.000000e+00 : f32
    %11 = vector.broadcast %cst_12 : f32 to vector<32x256xf32>
    %cst_13 = arith.constant 0.000000e+00 : f32
    %12 = vector.broadcast %cst_13 : f32 to vector<32x256xf32>
    %c51_i32 = arith.constant 51 : i32
    %13 = tpu.dynamic_rotate %8 by %c51_i32 dim 1 : vector<32x256xf32>, i32 -> vector<32x256xf32>
    %c0_14 = arith.constant 0 : index
    %c0_15 = arith.constant 0 : index
    %c0_16 = arith.constant 0 : index
    %14 = vector.load %arg4[%c0_14, %c0_15, %c0_16] : memref<49x32x256xf32, #tpu.memory_space<vmem>>, vector<1x32x256xf32>
    %15 = vector.shape_cast %14 : vector<1x32x256xf32> to vector<32x256xf32>
    %16 = arith.mulf %15, %13 : vector<32x256xf32>
    %17 = arith.addf %9, %16 : vector<32x256xf32>
    %c50_i32 = arith.constant 50 : i32
    %18 = tpu.dynamic_rotate %8 by %c50_i32 dim 1 : vector<32x256xf32>, i32 -> vector<32x256xf32>
    %c1 = arith.constant 1 : index
    %c0_17 = arith.constant 0 : index
    %c0_18 = arith.constant 0 : index
    %19 = vector.load %arg4[%c1, %c0_17, %c0_18] : memref<49x32x256xf32, #tpu.memory_space<vmem>>, vector<1x32x256xf32>
    %20 = vector.shape_cast %19 : vector<1x32x256xf32> to vector<32x256xf32>
    %21 = arith.mulf %20, %18 : vector<32x256xf32>
    %22 = arith.addf %10, %21 : vector<32x256xf32>
    %c49_i32 = arith.constant 49 : i32
    %23 = tpu.dynamic_rotate %8 by %c49_i32 dim 1 : vector<32x256xf32>, i32 -> vector<32x256xf32>
    %c2 = arith.constant 2 : index
    %c0_19 = arith.constant 0 : index
    %c0_20 = arith.constant 0 : index
    %24 = vector.load %arg4[%c2, %c0_19, %c0_20] : memref<49x32x256xf32, #tpu.memory_space<vmem>>, vector<1x32x256xf32>
    %25 = vector.shape_cast %24 : vector<1x32x256xf32> to vector<32x256xf32>
    %26 = arith.mulf %25, %23 : vector<32x256xf32>
    %27 = arith.addf %11, %26 : vector<32x256xf32>
    %c48_i32 = arith.constant 48 : i32
    %28 = tpu.dynamic_rotate %8 by %c48_i32 dim 1 : vector<32x256xf32>, i32 -> vector<32x256xf32>
    %c3 = arith.constant 3 : index
    %c0_21 = arith.constant 0 : index
    %c0_22 = arith.constant 0 : index
    %29 = vector.load %arg4[%c3, %c0_21, %c0_22] : memref<49x32x256xf32, #tpu.memory_space<vmem>>, vector<1x32x256xf32>
    %30 = vector.shape_cast %29 : vector<1x32x256xf32> to vector<32x256xf32>
    %31 = arith.mulf %30, %28 : vector<32x256xf32>
    %32 = arith.addf %12, %31 : vector<32x256xf32>
    %c47_i32 = arith.constant 47 : i32
    %33 = tpu.dynamic_rotate %8 by %c47_i32 dim 1 : vector<32x256xf32>, i32 -> vector<32x256xf32>
    %c4 = arith.constant 4 : index
    %c0_23 = arith.constant 0 : index
    %c0_24 = arith.constant 0 : index
    %34 = vector.load %arg4[%c4, %c0_23, %c0_24] : memref<49x32x256xf32, #tpu.memory_space<vmem>>, vector<1x32x256xf32>
    %35 = vector.shape_cast %34 : vector<1x32x256xf32> to vector<32x256xf32>
    %36 = arith.mulf %35, %33 : vector<32x256xf32>
    %37 = arith.addf %17, %36 : vector<32x256xf32>
    %c46_i32 = arith.constant 46 : i32
    %38 = tpu.dynamic_rotate %8 by %c46_i32 dim 1 : vector<32x256xf32>, i32 -> vector<32x256xf32>
    %c5 = arith.constant 5 : index
    %c0_25 = arith.constant 0 : index
    %c0_26 = arith.constant 0 : index
    %39 = vector.load %arg4[%c5, %c0_25, %c0_26] : memref<49x32x256xf32, #tpu.memory_space<vmem>>, vector<1x32x256xf32>
    %40 = vector.shape_cast %39 : vector<1x32x256xf32> to vector<32x256xf32>
    %41 = arith.mulf %40, %38 : vector<32x256xf32>
    %42 = arith.addf %22, %41 : vector<32x256xf32>
    %c45_i32 = arith.constant 45 : i32
    %43 = tpu.dynamic_rotate %8 by %c45_i32 dim 1 : vector<32x256xf32>, i32 -> vector<32x256xf32>
    %c6 = arith.constant 6 : index
    %c0_27 = arith.constant 0 : index
    %c0_28 = arith.constant 0 : index
    %44 = vector.load %arg4[%c6, %c0_27, %c0_28] : memref<49x32x256xf32, #tpu.memory_space<vmem>>, vector<1x32x256xf32>
    %45 = vector.shape_cast %44 : vector<1x32x256xf32> to vector<32x256xf32>
    %46 = arith.mulf %45, %43 : vector<32x256xf32>
    %47 = arith.addf %27, %46 : vector<32x256xf32>
    %c35_i32 = arith.constant 35 : i32
    %48 = tpu.dynamic_rotate %8 by %c35_i32 dim 1 : vector<32x256xf32>, i32 -> vector<32x256xf32>
    %c7 = arith.constant 7 : index
    %c0_29 = arith.constant 0 : index
    %c0_30 = arith.constant 0 : index
    %49 = vector.load %arg4[%c7, %c0_29, %c0_30] : memref<49x32x256xf32, #tpu.memory_space<vmem>>, vector<1x32x256xf32>
    %50 = vector.shape_cast %49 : vector<1x32x256xf32> to vector<32x256xf32>
    %51 = arith.mulf %50, %48 : vector<32x256xf32>
    %52 = arith.addf %32, %51 : vector<32x256xf32>
    %c34_i32 = arith.constant 34 : i32
    %53 = tpu.dynamic_rotate %8 by %c34_i32 dim 1 : vector<32x256xf32>, i32 -> vector<32x256xf32>
    %c8 = arith.constant 8 : index
    %c0_31 = arith.constant 0 : index
    %c0_32 = arith.constant 0 : index
    %54 = vector.load %arg4[%c8, %c0_31, %c0_32] : memref<49x32x256xf32, #tpu.memory_space<vmem>>, vector<1x32x256xf32>
    %55 = vector.shape_cast %54 : vector<1x32x256xf32> to vector<32x256xf32>
    %56 = arith.mulf %55, %53 : vector<32x256xf32>
    %57 = arith.addf %37, %56 : vector<32x256xf32>
    %c33_i32 = arith.constant 33 : i32
    %58 = tpu.dynamic_rotate %8 by %c33_i32 dim 1 : vector<32x256xf32>, i32 -> vector<32x256xf32>
    %c9 = arith.constant 9 : index
    %c0_33 = arith.constant 0 : index
    %c0_34 = arith.constant 0 : index
    %59 = vector.load %arg4[%c9, %c0_33, %c0_34] : memref<49x32x256xf32, #tpu.memory_space<vmem>>, vector<1x32x256xf32>
    %60 = vector.shape_cast %59 : vector<1x32x256xf32> to vector<32x256xf32>
    %61 = arith.mulf %60, %58 : vector<32x256xf32>
    %62 = arith.addf %42, %61 : vector<32x256xf32>
    %c32_i32 = arith.constant 32 : i32
    %63 = tpu.dynamic_rotate %8 by %c32_i32 dim 1 : vector<32x256xf32>, i32 -> vector<32x256xf32>
    %c10 = arith.constant 10 : index
    %c0_35 = arith.constant 0 : index
    %c0_36 = arith.constant 0 : index
    %64 = vector.load %arg4[%c10, %c0_35, %c0_36] : memref<49x32x256xf32, #tpu.memory_space<vmem>>, vector<1x32x256xf32>
    %65 = vector.shape_cast %64 : vector<1x32x256xf32> to vector<32x256xf32>
    %66 = arith.mulf %65, %63 : vector<32x256xf32>
    %67 = arith.addf %47, %66 : vector<32x256xf32>
    %c31_i32 = arith.constant 31 : i32
    %68 = tpu.dynamic_rotate %8 by %c31_i32 dim 1 : vector<32x256xf32>, i32 -> vector<32x256xf32>
    %c11 = arith.constant 11 : index
    %c0_37 = arith.constant 0 : index
    %c0_38 = arith.constant 0 : index
    %69 = vector.load %arg4[%c11, %c0_37, %c0_38] : memref<49x32x256xf32, #tpu.memory_space<vmem>>, vector<1x32x256xf32>
    %70 = vector.shape_cast %69 : vector<1x32x256xf32> to vector<32x256xf32>
    %71 = arith.mulf %70, %68 : vector<32x256xf32>
    %72 = arith.addf %52, %71 : vector<32x256xf32>
    %c30_i32 = arith.constant 30 : i32
    %73 = tpu.dynamic_rotate %8 by %c30_i32 dim 1 : vector<32x256xf32>, i32 -> vector<32x256xf32>
    %c12 = arith.constant 12 : index
    %c0_39 = arith.constant 0 : index
    %c0_40 = arith.constant 0 : index
    %74 = vector.load %arg4[%c12, %c0_39, %c0_40] : memref<49x32x256xf32, #tpu.memory_space<vmem>>, vector<1x32x256xf32>
    %75 = vector.shape_cast %74 : vector<1x32x256xf32> to vector<32x256xf32>
    %76 = arith.mulf %75, %73 : vector<32x256xf32>
    %77 = arith.addf %57, %76 : vector<32x256xf32>
    %c29_i32 = arith.constant 29 : i32
    %78 = tpu.dynamic_rotate %8 by %c29_i32 dim 1 : vector<32x256xf32>, i32 -> vector<32x256xf32>
    %c13 = arith.constant 13 : index
    %c0_41 = arith.constant 0 : index
    %c0_42 = arith.constant 0 : index
    %79 = vector.load %arg4[%c13, %c0_41, %c0_42] : memref<49x32x256xf32, #tpu.memory_space<vmem>>, vector<1x32x256xf32>
    %80 = vector.shape_cast %79 : vector<1x32x256xf32> to vector<32x256xf32>
    %81 = arith.mulf %80, %78 : vector<32x256xf32>
    %82 = arith.addf %62, %81 : vector<32x256xf32>
    %c19_i32 = arith.constant 19 : i32
    %83 = tpu.dynamic_rotate %8 by %c19_i32 dim 1 : vector<32x256xf32>, i32 -> vector<32x256xf32>
    %c14 = arith.constant 14 : index
    %c0_43 = arith.constant 0 : index
    %c0_44 = arith.constant 0 : index
    %84 = vector.load %arg4[%c14, %c0_43, %c0_44] : memref<49x32x256xf32, #tpu.memory_space<vmem>>, vector<1x32x256xf32>
    %85 = vector.shape_cast %84 : vector<1x32x256xf32> to vector<32x256xf32>
    %86 = arith.mulf %85, %83 : vector<32x256xf32>
    %87 = arith.addf %67, %86 : vector<32x256xf32>
    %c18_i32 = arith.constant 18 : i32
    %88 = tpu.dynamic_rotate %8 by %c18_i32 dim 1 : vector<32x256xf32>, i32 -> vector<32x256xf32>
    %c15 = arith.constant 15 : index
    %c0_45 = arith.constant 0 : index
    %c0_46 = arith.constant 0 : index
    %89 = vector.load %arg4[%c15, %c0_45, %c0_46] : memref<49x32x256xf32, #tpu.memory_space<vmem>>, vector<1x32x256xf32>
    %90 = vector.shape_cast %89 : vector<1x32x256xf32> to vector<32x256xf32>
    %91 = arith.mulf %90, %88 : vector<32x256xf32>
    %92 = arith.addf %72, %91 : vector<32x256xf32>
    %c17_i32 = arith.constant 17 : i32
    %93 = tpu.dynamic_rotate %8 by %c17_i32 dim 1 : vector<32x256xf32>, i32 -> vector<32x256xf32>
    %c16 = arith.constant 16 : index
    %c0_47 = arith.constant 0 : index
    %c0_48 = arith.constant 0 : index
    %94 = vector.load %arg4[%c16, %c0_47, %c0_48] : memref<49x32x256xf32, #tpu.memory_space<vmem>>, vector<1x32x256xf32>
    %95 = vector.shape_cast %94 : vector<1x32x256xf32> to vector<32x256xf32>
    %96 = arith.mulf %95, %93 : vector<32x256xf32>
    %97 = arith.addf %77, %96 : vector<32x256xf32>
    %c16_i32 = arith.constant 16 : i32
    %98 = tpu.dynamic_rotate %8 by %c16_i32 dim 1 : vector<32x256xf32>, i32 -> vector<32x256xf32>
    %c17 = arith.constant 17 : index
    %c0_49 = arith.constant 0 : index
    %c0_50 = arith.constant 0 : index
    %99 = vector.load %arg4[%c17, %c0_49, %c0_50] : memref<49x32x256xf32, #tpu.memory_space<vmem>>, vector<1x32x256xf32>
    %100 = vector.shape_cast %99 : vector<1x32x256xf32> to vector<32x256xf32>
    %101 = arith.mulf %100, %98 : vector<32x256xf32>
    %102 = arith.addf %82, %101 : vector<32x256xf32>
    %c15_i32 = arith.constant 15 : i32
    %103 = tpu.dynamic_rotate %8 by %c15_i32 dim 1 : vector<32x256xf32>, i32 -> vector<32x256xf32>
    %c18 = arith.constant 18 : index
    %c0_51 = arith.constant 0 : index
    %c0_52 = arith.constant 0 : index
    %104 = vector.load %arg4[%c18, %c0_51, %c0_52] : memref<49x32x256xf32, #tpu.memory_space<vmem>>, vector<1x32x256xf32>
    %105 = vector.shape_cast %104 : vector<1x32x256xf32> to vector<32x256xf32>
    %106 = arith.mulf %105, %103 : vector<32x256xf32>
    %107 = arith.addf %87, %106 : vector<32x256xf32>
    %c14_i32 = arith.constant 14 : i32
    %108 = tpu.dynamic_rotate %8 by %c14_i32 dim 1 : vector<32x256xf32>, i32 -> vector<32x256xf32>
    %c19 = arith.constant 19 : index
    %c0_53 = arith.constant 0 : index
    %c0_54 = arith.constant 0 : index
    %109 = vector.load %arg4[%c19, %c0_53, %c0_54] : memref<49x32x256xf32, #tpu.memory_space<vmem>>, vector<1x32x256xf32>
    %110 = vector.shape_cast %109 : vector<1x32x256xf32> to vector<32x256xf32>
    %111 = arith.mulf %110, %108 : vector<32x256xf32>
    %112 = arith.addf %92, %111 : vector<32x256xf32>
    %c13_i32 = arith.constant 13 : i32
    %113 = tpu.dynamic_rotate %8 by %c13_i32 dim 1 : vector<32x256xf32>, i32 -> vector<32x256xf32>
    %c20 = arith.constant 20 : index
    %c0_55 = arith.constant 0 : index
    %c0_56 = arith.constant 0 : index
    %114 = vector.load %arg4[%c20, %c0_55, %c0_56] : memref<49x32x256xf32, #tpu.memory_space<vmem>>, vector<1x32x256xf32>
    %115 = vector.shape_cast %114 : vector<1x32x256xf32> to vector<32x256xf32>
    %116 = arith.mulf %115, %113 : vector<32x256xf32>
    %117 = arith.addf %97, %116 : vector<32x256xf32>
    %c3_i32 = arith.constant 3 : i32
    %118 = tpu.dynamic_rotate %8 by %c3_i32 dim 1 : vector<32x256xf32>, i32 -> vector<32x256xf32>
    %c21 = arith.constant 21 : index
    %c0_57 = arith.constant 0 : index
    %c0_58 = arith.constant 0 : index
    %119 = vector.load %arg4[%c21, %c0_57, %c0_58] : memref<49x32x256xf32, #tpu.memory_space<vmem>>, vector<1x32x256xf32>
    %120 = vector.shape_cast %119 : vector<1x32x256xf32> to vector<32x256xf32>
    %121 = arith.mulf %120, %118 : vector<32x256xf32>
    %122 = arith.addf %102, %121 : vector<32x256xf32>
    %c2_i32 = arith.constant 2 : i32
    %123 = tpu.dynamic_rotate %8 by %c2_i32 dim 1 : vector<32x256xf32>, i32 -> vector<32x256xf32>
    %c22 = arith.constant 22 : index
    %c0_59 = arith.constant 0 : index
    %c0_60 = arith.constant 0 : index
    %124 = vector.load %arg4[%c22, %c0_59, %c0_60] : memref<49x32x256xf32, #tpu.memory_space<vmem>>, vector<1x32x256xf32>
    %125 = vector.shape_cast %124 : vector<1x32x256xf32> to vector<32x256xf32>
    %126 = arith.mulf %125, %123 : vector<32x256xf32>
    %127 = arith.addf %107, %126 : vector<32x256xf32>
    %c1_i32 = arith.constant 1 : i32
    %128 = tpu.dynamic_rotate %8 by %c1_i32 dim 1 : vector<32x256xf32>, i32 -> vector<32x256xf32>
    %c23 = arith.constant 23 : index
    %c0_61 = arith.constant 0 : index
    %c0_62 = arith.constant 0 : index
    %129 = vector.load %arg4[%c23, %c0_61, %c0_62] : memref<49x32x256xf32, #tpu.memory_space<vmem>>, vector<1x32x256xf32>
    %130 = vector.shape_cast %129 : vector<1x32x256xf32> to vector<32x256xf32>
    %131 = arith.mulf %130, %128 : vector<32x256xf32>
    %132 = arith.addf %112, %131 : vector<32x256xf32>
    %c24 = arith.constant 24 : index
    %c0_63 = arith.constant 0 : index
    %c0_64 = arith.constant 0 : index
    %133 = vector.load %arg4[%c24, %c0_63, %c0_64] : memref<49x32x256xf32, #tpu.memory_space<vmem>>, vector<1x32x256xf32>
    %134 = vector.shape_cast %133 : vector<1x32x256xf32> to vector<32x256xf32>
    %135 = arith.mulf %134, %8 : vector<32x256xf32>
    %136 = arith.addf %117, %135 : vector<32x256xf32>
    %c255_i32 = arith.constant 255 : i32
    %137 = tpu.dynamic_rotate %8 by %c255_i32 dim 1 : vector<32x256xf32>, i32 -> vector<32x256xf32>
    %c25 = arith.constant 25 : index
    %c0_65 = arith.constant 0 : index
    %c0_66 = arith.constant 0 : index
    %138 = vector.load %arg4[%c25, %c0_65, %c0_66] : memref<49x32x256xf32, #tpu.memory_space<vmem>>, vector<1x32x256xf32>
    %139 = vector.shape_cast %138 : vector<1x32x256xf32> to vector<32x256xf32>
    %140 = arith.mulf %139, %137 : vector<32x256xf32>
    %141 = arith.addf %122, %140 : vector<32x256xf32>
    %c254_i32 = arith.constant 254 : i32
    %142 = tpu.dynamic_rotate %8 by %c254_i32 dim 1 : vector<32x256xf32>, i32 -> vector<32x256xf32>
    %c26 = arith.constant 26 : index
    %c0_67 = arith.constant 0 : index
    %c0_68 = arith.constant 0 : index
    %143 = vector.load %arg4[%c26, %c0_67, %c0_68] : memref<49x32x256xf32, #tpu.memory_space<vmem>>, vector<1x32x256xf32>
    %144 = vector.shape_cast %143 : vector<1x32x256xf32> to vector<32x256xf32>
    %145 = arith.mulf %144, %142 : vector<32x256xf32>
    %146 = arith.addf %127, %145 : vector<32x256xf32>
    %c253_i32 = arith.constant 253 : i32
    %147 = tpu.dynamic_rotate %8 by %c253_i32 dim 1 : vector<32x256xf32>, i32 -> vector<32x256xf32>
    %c27 = arith.constant 27 : index
    %c0_69 = arith.constant 0 : index
    %c0_70 = arith.constant 0 : index
    %148 = vector.load %arg4[%c27, %c0_69, %c0_70] : memref<49x32x256xf32, #tpu.memory_space<vmem>>, vector<1x32x256xf32>
    %149 = vector.shape_cast %148 : vector<1x32x256xf32> to vector<32x256xf32>
    %150 = arith.mulf %149, %147 : vector<32x256xf32>
    %151 = arith.addf %132, %150 : vector<32x256xf32>
    %c243_i32 = arith.constant 243 : i32
    %152 = tpu.dynamic_rotate %8 by %c243_i32 dim 1 : vector<32x256xf32>, i32 -> vector<32x256xf32>
    %c28 = arith.constant 28 : index
    %c0_71 = arith.constant 0 : index
    %c0_72 = arith.constant 0 : index
    %153 = vector.load %arg4[%c28, %c0_71, %c0_72] : memref<49x32x256xf32, #tpu.memory_space<vmem>>, vector<1x32x256xf32>
    %154 = vector.shape_cast %153 : vector<1x32x256xf32> to vector<32x256xf32>
    %155 = arith.mulf %154, %152 : vector<32x256xf32>
    %156 = arith.addf %136, %155 : vector<32x256xf32>
    %c242_i32 = arith.constant 242 : i32
    %157 = tpu.dynamic_rotate %8 by %c242_i32 dim 1 : vector<32x256xf32>, i32 -> vector<32x256xf32>
    %c29 = arith.constant 29 : index
    %c0_73 = arith.constant 0 : index
    %c0_74 = arith.constant 0 : index
    %158 = vector.load %arg4[%c29, %c0_73, %c0_74] : memref<49x32x256xf32, #tpu.memory_space<vmem>>, vector<1x32x256xf32>
    %159 = vector.shape_cast %158 : vector<1x32x256xf32> to vector<32x256xf32>
    %160 = arith.mulf %159, %157 : vector<32x256xf32>
    %161 = arith.addf %141, %160 : vector<32x256xf32>
    %c241_i32 = arith.constant 241 : i32
    %162 = tpu.dynamic_rotate %8 by %c241_i32 dim 1 : vector<32x256xf32>, i32 -> vector<32x256xf32>
    %c30 = arith.constant 30 : index
    %c0_75 = arith.constant 0 : index
    %c0_76 = arith.constant 0 : index
    %163 = vector.load %arg4[%c30, %c0_75, %c0_76] : memref<49x32x256xf32, #tpu.memory_space<vmem>>, vector<1x32x256xf32>
    %164 = vector.shape_cast %163 : vector<1x32x256xf32> to vector<32x256xf32>
    %165 = arith.mulf %164, %162 : vector<32x256xf32>
    %166 = arith.addf %146, %165 : vector<32x256xf32>
    %c240_i32 = arith.constant 240 : i32
    %167 = tpu.dynamic_rotate %8 by %c240_i32 dim 1 : vector<32x256xf32>, i32 -> vector<32x256xf32>
    %c31 = arith.constant 31 : index
    %c0_77 = arith.constant 0 : index
    %c0_78 = arith.constant 0 : index
    %168 = vector.load %arg4[%c31, %c0_77, %c0_78] : memref<49x32x256xf32, #tpu.memory_space<vmem>>, vector<1x32x256xf32>
    %169 = vector.shape_cast %168 : vector<1x32x256xf32> to vector<32x256xf32>
    %170 = arith.mulf %169, %167 : vector<32x256xf32>
    %171 = arith.addf %151, %170 : vector<32x256xf32>
    %c239_i32 = arith.constant 239 : i32
    %172 = tpu.dynamic_rotate %8 by %c239_i32 dim 1 : vector<32x256xf32>, i32 -> vector<32x256xf32>
    %c32 = arith.constant 32 : index
    %c0_79 = arith.constant 0 : index
    %c0_80 = arith.constant 0 : index
    %173 = vector.load %arg4[%c32, %c0_79, %c0_80] : memref<49x32x256xf32, #tpu.memory_space<vmem>>, vector<1x32x256xf32>
    %174 = vector.shape_cast %173 : vector<1x32x256xf32> to vector<32x256xf32>
    %175 = arith.mulf %174, %172 : vector<32x256xf32>
    %176 = arith.addf %156, %175 : vector<32x256xf32>
    %c238_i32 = arith.constant 238 : i32
    %177 = tpu.dynamic_rotate %8 by %c238_i32 dim 1 : vector<32x256xf32>, i32 -> vector<32x256xf32>
    %c33 = arith.constant 33 : index
    %c0_81 = arith.constant 0 : index
    %c0_82 = arith.constant 0 : index
    %178 = vector.load %arg4[%c33, %c0_81, %c0_82] : memref<49x32x256xf32, #tpu.memory_space<vmem>>, vector<1x32x256xf32>
    %179 = vector.shape_cast %178 : vector<1x32x256xf32> to vector<32x256xf32>
    %180 = arith.mulf %179, %177 : vector<32x256xf32>
    %181 = arith.addf %161, %180 : vector<32x256xf32>
    %c237_i32 = arith.constant 237 : i32
    %182 = tpu.dynamic_rotate %8 by %c237_i32 dim 1 : vector<32x256xf32>, i32 -> vector<32x256xf32>
    %c34 = arith.constant 34 : index
    %c0_83 = arith.constant 0 : index
    %c0_84 = arith.constant 0 : index
    %183 = vector.load %arg4[%c34, %c0_83, %c0_84] : memref<49x32x256xf32, #tpu.memory_space<vmem>>, vector<1x32x256xf32>
    %184 = vector.shape_cast %183 : vector<1x32x256xf32> to vector<32x256xf32>
    %185 = arith.mulf %184, %182 : vector<32x256xf32>
    %186 = arith.addf %166, %185 : vector<32x256xf32>
    %c227_i32 = arith.constant 227 : i32
    %187 = tpu.dynamic_rotate %8 by %c227_i32 dim 1 : vector<32x256xf32>, i32 -> vector<32x256xf32>
    %c35 = arith.constant 35 : index
    %c0_85 = arith.constant 0 : index
    %c0_86 = arith.constant 0 : index
    %188 = vector.load %arg4[%c35, %c0_85, %c0_86] : memref<49x32x256xf32, #tpu.memory_space<vmem>>, vector<1x32x256xf32>
    %189 = vector.shape_cast %188 : vector<1x32x256xf32> to vector<32x256xf32>
    %190 = arith.mulf %189, %187 : vector<32x256xf32>
    %191 = arith.addf %171, %190 : vector<32x256xf32>
    %c226_i32 = arith.constant 226 : i32
    %192 = tpu.dynamic_rotate %8 by %c226_i32 dim 1 : vector<32x256xf32>, i32 -> vector<32x256xf32>
    %c36 = arith.constant 36 : index
    %c0_87 = arith.constant 0 : index
    %c0_88 = arith.constant 0 : index
    %193 = vector.load %arg4[%c36, %c0_87, %c0_88] : memref<49x32x256xf32, #tpu.memory_space<vmem>>, vector<1x32x256xf32>
    %194 = vector.shape_cast %193 : vector<1x32x256xf32> to vector<32x256xf32>
    %195 = arith.mulf %194, %192 : vector<32x256xf32>
    %196 = arith.addf %176, %195 : vector<32x256xf32>
    %c225_i32 = arith.constant 225 : i32
    %197 = tpu.dynamic_rotate %8 by %c225_i32 dim 1 : vector<32x256xf32>, i32 -> vector<32x256xf32>
    %c37 = arith.constant 37 : index
    %c0_89 = arith.constant 0 : index
    %c0_90 = arith.constant 0 : index
    %198 = vector.load %arg4[%c37, %c0_89, %c0_90] : memref<49x32x256xf32, #tpu.memory_space<vmem>>, vector<1x32x256xf32>
    %199 = vector.shape_cast %198 : vector<1x32x256xf32> to vector<32x256xf32>
    %200 = arith.mulf %199, %197 : vector<32x256xf32>
    %201 = arith.addf %181, %200 : vector<32x256xf32>
    %c224_i32 = arith.constant 224 : i32
    %202 = tpu.dynamic_rotate %8 by %c224_i32 dim 1 : vector<32x256xf32>, i32 -> vector<32x256xf32>
    %c38 = arith.constant 38 : index
    %c0_91 = arith.constant 0 : index
    %c0_92 = arith.constant 0 : index
    %203 = vector.load %arg4[%c38, %c0_91, %c0_92] : memref<49x32x256xf32, #tpu.memory_space<vmem>>, vector<1x32x256xf32>
    %204 = vector.shape_cast %203 : vector<1x32x256xf32> to vector<32x256xf32>
    %205 = arith.mulf %204, %202 : vector<32x256xf32>
    %206 = arith.addf %186, %205 : vector<32x256xf32>
    %c223_i32 = arith.constant 223 : i32
    %207 = tpu.dynamic_rotate %8 by %c223_i32 dim 1 : vector<32x256xf32>, i32 -> vector<32x256xf32>
    %c39 = arith.constant 39 : index
    %c0_93 = arith.constant 0 : index
    %c0_94 = arith.constant 0 : index
    %208 = vector.load %arg4[%c39, %c0_93, %c0_94] : memref<49x32x256xf32, #tpu.memory_space<vmem>>, vector<1x32x256xf32>
    %209 = vector.shape_cast %208 : vector<1x32x256xf32> to vector<32x256xf32>
    %210 = arith.mulf %209, %207 : vector<32x256xf32>
    %211 = arith.addf %191, %210 : vector<32x256xf32>
    %c222_i32 = arith.constant 222 : i32
    %212 = tpu.dynamic_rotate %8 by %c222_i32 dim 1 : vector<32x256xf32>, i32 -> vector<32x256xf32>
    %c40 = arith.constant 40 : index
    %c0_95 = arith.constant 0 : index
    %c0_96 = arith.constant 0 : index
    %213 = vector.load %arg4[%c40, %c0_95, %c0_96] : memref<49x32x256xf32, #tpu.memory_space<vmem>>, vector<1x32x256xf32>
    %214 = vector.shape_cast %213 : vector<1x32x256xf32> to vector<32x256xf32>
    %215 = arith.mulf %214, %212 : vector<32x256xf32>
    %216 = arith.addf %196, %215 : vector<32x256xf32>
    %c221_i32 = arith.constant 221 : i32
    %217 = tpu.dynamic_rotate %8 by %c221_i32 dim 1 : vector<32x256xf32>, i32 -> vector<32x256xf32>
    %c41 = arith.constant 41 : index
    %c0_97 = arith.constant 0 : index
    %c0_98 = arith.constant 0 : index
    %218 = vector.load %arg4[%c41, %c0_97, %c0_98] : memref<49x32x256xf32, #tpu.memory_space<vmem>>, vector<1x32x256xf32>
    %219 = vector.shape_cast %218 : vector<1x32x256xf32> to vector<32x256xf32>
    %220 = arith.mulf %219, %217 : vector<32x256xf32>
    %221 = arith.addf %201, %220 : vector<32x256xf32>
    %c211_i32 = arith.constant 211 : i32
    %222 = tpu.dynamic_rotate %8 by %c211_i32 dim 1 : vector<32x256xf32>, i32 -> vector<32x256xf32>
    %c42 = arith.constant 42 : index
    %c0_99 = arith.constant 0 : index
    %c0_100 = arith.constant 0 : index
    %223 = vector.load %arg4[%c42, %c0_99, %c0_100] : memref<49x32x256xf32, #tpu.memory_space<vmem>>, vector<1x32x256xf32>
    %224 = vector.shape_cast %223 : vector<1x32x256xf32> to vector<32x256xf32>
    %225 = arith.mulf %224, %222 : vector<32x256xf32>
    %226 = arith.addf %206, %225 : vector<32x256xf32>
    %c210_i32 = arith.constant 210 : i32
    %227 = tpu.dynamic_rotate %8 by %c210_i32 dim 1 : vector<32x256xf32>, i32 -> vector<32x256xf32>
    %c43 = arith.constant 43 : index
    %c0_101 = arith.constant 0 : index
    %c0_102 = arith.constant 0 : index
    %228 = vector.load %arg4[%c43, %c0_101, %c0_102] : memref<49x32x256xf32, #tpu.memory_space<vmem>>, vector<1x32x256xf32>
    %229 = vector.shape_cast %228 : vector<1x32x256xf32> to vector<32x256xf32>
    %230 = arith.mulf %229, %227 : vector<32x256xf32>
    %231 = arith.addf %211, %230 : vector<32x256xf32>
    %c209_i32 = arith.constant 209 : i32
    %232 = tpu.dynamic_rotate %8 by %c209_i32 dim 1 : vector<32x256xf32>, i32 -> vector<32x256xf32>
    %c44 = arith.constant 44 : index
    %c0_103 = arith.constant 0 : index
    %c0_104 = arith.constant 0 : index
    %233 = vector.load %arg4[%c44, %c0_103, %c0_104] : memref<49x32x256xf32, #tpu.memory_space<vmem>>, vector<1x32x256xf32>
    %234 = vector.shape_cast %233 : vector<1x32x256xf32> to vector<32x256xf32>
    %235 = arith.mulf %234, %232 : vector<32x256xf32>
    %236 = arith.addf %216, %235 : vector<32x256xf32>
    %c208_i32 = arith.constant 208 : i32
    %237 = tpu.dynamic_rotate %8 by %c208_i32 dim 1 : vector<32x256xf32>, i32 -> vector<32x256xf32>
    %c45 = arith.constant 45 : index
    %c0_105 = arith.constant 0 : index
    %c0_106 = arith.constant 0 : index
    %238 = vector.load %arg4[%c45, %c0_105, %c0_106] : memref<49x32x256xf32, #tpu.memory_space<vmem>>, vector<1x32x256xf32>
    %239 = vector.shape_cast %238 : vector<1x32x256xf32> to vector<32x256xf32>
    %240 = arith.mulf %239, %237 : vector<32x256xf32>
    %241 = arith.addf %221, %240 : vector<32x256xf32>
    %c207_i32 = arith.constant 207 : i32
    %242 = tpu.dynamic_rotate %8 by %c207_i32 dim 1 : vector<32x256xf32>, i32 -> vector<32x256xf32>
    %c46 = arith.constant 46 : index
    %c0_107 = arith.constant 0 : index
    %c0_108 = arith.constant 0 : index
    %243 = vector.load %arg4[%c46, %c0_107, %c0_108] : memref<49x32x256xf32, #tpu.memory_space<vmem>>, vector<1x32x256xf32>
    %244 = vector.shape_cast %243 : vector<1x32x256xf32> to vector<32x256xf32>
    %245 = arith.mulf %244, %242 : vector<32x256xf32>
    %246 = arith.addf %226, %245 : vector<32x256xf32>
    %c206_i32 = arith.constant 206 : i32
    %247 = tpu.dynamic_rotate %8 by %c206_i32 dim 1 : vector<32x256xf32>, i32 -> vector<32x256xf32>
    %c47 = arith.constant 47 : index
    %c0_109 = arith.constant 0 : index
    %c0_110 = arith.constant 0 : index
    %248 = vector.load %arg4[%c47, %c0_109, %c0_110] : memref<49x32x256xf32, #tpu.memory_space<vmem>>, vector<1x32x256xf32>
    %249 = vector.shape_cast %248 : vector<1x32x256xf32> to vector<32x256xf32>
    %250 = arith.mulf %249, %247 : vector<32x256xf32>
    %251 = arith.addf %231, %250 : vector<32x256xf32>
    %c205_i32 = arith.constant 205 : i32
    %252 = tpu.dynamic_rotate %8 by %c205_i32 dim 1 : vector<32x256xf32>, i32 -> vector<32x256xf32>
    %c48 = arith.constant 48 : index
    %c0_111 = arith.constant 0 : index
    %c0_112 = arith.constant 0 : index
    %253 = vector.load %arg4[%c48, %c0_111, %c0_112] : memref<49x32x256xf32, #tpu.memory_space<vmem>>, vector<1x32x256xf32>
    %254 = vector.shape_cast %253 : vector<1x32x256xf32> to vector<32x256xf32>
    %255 = arith.mulf %254, %252 : vector<32x256xf32>
    %256 = arith.addf %236, %255 : vector<32x256xf32>
    %257 = arith.addf %256, %241 : vector<32x256xf32>
    %258 = arith.addf %257, %246 : vector<32x256xf32>
    %259 = arith.addf %258, %251 : vector<32x256xf32>
    %260 = vector.broadcast %2 : vector<32x1xf32> to vector<32x256xf32>
    %261 = arith.addf %259, %260 : vector<32x256xf32>
    %cst_113 = arith.constant 5.000000e-01 : f32
    %262 = vector.broadcast %cst_113 : f32 to vector<32x256xf32>
    %263 = arith.mulf %262, %261 : vector<32x256xf32>
    %cst_114 = arith.constant 4.471500e-02 : f32
    %264 = vector.broadcast %cst_114 : f32 to vector<32x256xf32>
    %265 = arith.mulf %264, %261 : vector<32x256xf32>
    %266 = arith.mulf %265, %261 : vector<32x256xf32>
    %267 = arith.mulf %266, %261 : vector<32x256xf32>
    %268 = arith.addf %261, %267 : vector<32x256xf32>
    %cst_115 = arith.constant 0.797884583 : f32
    %269 = vector.broadcast %cst_115 : f32 to vector<32x256xf32>
    %270 = arith.mulf %269, %268 : vector<32x256xf32>
    %271 = math.tanh %270 : vector<32x256xf32>
    %cst_116 = arith.constant 1.000000e+00 : f32
    %272 = vector.broadcast %cst_116 : f32 to vector<32x256xf32>
    %273 = arith.addf %272, %271 : vector<32x256xf32>
    %274 = arith.mulf %263, %273 : vector<32x256xf32>
    %cst_117 = arith.constant 0.000000e+00 : f32
    %275 = vector.broadcast %cst_117 : f32 to vector<32x256xf32>
    %cst_118 = arith.constant 0.000000e+00 : f32
    %276 = vector.broadcast %cst_118 : f32 to vector<32x256xf32>
    %c17_i32_119 = arith.constant 17 : i32
    %277 = tpu.dynamic_rotate %274 by %c17_i32_119 dim 1 : vector<32x256xf32>, i32 -> vector<32x256xf32>
    %c0_120 = arith.constant 0 : index
    %c0_121 = arith.constant 0 : index
    %c0_122 = arith.constant 0 : index
    %278 = vector.load %arg6[%c0_120, %c0_121, %c0_122] : memref<9x32x256xf32, #tpu.memory_space<vmem>>, vector<1x32x256xf32>
    %279 = vector.shape_cast %278 : vector<1x32x256xf32> to vector<32x256xf32>
    %280 = arith.mulf %279, %277 : vector<32x256xf32>
    %281 = arith.addf %275, %280 : vector<32x256xf32>
    %c16_i32_123 = arith.constant 16 : i32
    %282 = tpu.dynamic_rotate %274 by %c16_i32_123 dim 1 : vector<32x256xf32>, i32 -> vector<32x256xf32>
    %c1_124 = arith.constant 1 : index
    %c0_125 = arith.constant 0 : index
    %c0_126 = arith.constant 0 : index
    %283 = vector.load %arg6[%c1_124, %c0_125, %c0_126] : memref<9x32x256xf32, #tpu.memory_space<vmem>>, vector<1x32x256xf32>
    %284 = vector.shape_cast %283 : vector<1x32x256xf32> to vector<32x256xf32>
    %285 = arith.mulf %284, %282 : vector<32x256xf32>
    %286 = arith.addf %276, %285 : vector<32x256xf32>
    %c15_i32_127 = arith.constant 15 : i32
    %287 = tpu.dynamic_rotate %274 by %c15_i32_127 dim 1 : vector<32x256xf32>, i32 -> vector<32x256xf32>
    %c2_128 = arith.constant 2 : index
    %c0_129 = arith.constant 0 : index
    %c0_130 = arith.constant 0 : index
    %288 = vector.load %arg6[%c2_128, %c0_129, %c0_130] : memref<9x32x256xf32, #tpu.memory_space<vmem>>, vector<1x32x256xf32>
    %289 = vector.shape_cast %288 : vector<1x32x256xf32> to vector<32x256xf32>
    %290 = arith.mulf %289, %287 : vector<32x256xf32>
    %291 = arith.addf %281, %290 : vector<32x256xf32>
    %c1_i32_131 = arith.constant 1 : i32
    %292 = tpu.dynamic_rotate %274 by %c1_i32_131 dim 1 : vector<32x256xf32>, i32 -> vector<32x256xf32>
    %c3_132 = arith.constant 3 : index
    %c0_133 = arith.constant 0 : index
    %c0_134 = arith.constant 0 : index
    %293 = vector.load %arg6[%c3_132, %c0_133, %c0_134] : memref<9x32x256xf32, #tpu.memory_space<vmem>>, vector<1x32x256xf32>
    %294 = vector.shape_cast %293 : vector<1x32x256xf32> to vector<32x256xf32>
    %295 = arith.mulf %294, %292 : vector<32x256xf32>
    %296 = arith.addf %286, %295 : vector<32x256xf32>
    %c4_135 = arith.constant 4 : index
    %c0_136 = arith.constant 0 : index
    %c0_137 = arith.constant 0 : index
    %297 = vector.load %arg6[%c4_135, %c0_136, %c0_137] : memref<9x32x256xf32, #tpu.memory_space<vmem>>, vector<1x32x256xf32>
    %298 = vector.shape_cast %297 : vector<1x32x256xf32> to vector<32x256xf32>
    %299 = arith.mulf %298, %274 : vector<32x256xf32>
    %300 = arith.addf %291, %299 : vector<32x256xf32>
    %c255_i32_138 = arith.constant 255 : i32
    %301 = tpu.dynamic_rotate %274 by %c255_i32_138 dim 1 : vector<32x256xf32>, i32 -> vector<32x256xf32>
    %c5_139 = arith.constant 5 : index
    %c0_140 = arith.constant 0 : index
    %c0_141 = arith.constant 0 : index
    %302 = vector.load %arg6[%c5_139, %c0_140, %c0_141] : memref<9x32x256xf32, #tpu.memory_space<vmem>>, vector<1x32x256xf32>
    %303 = vector.shape_cast %302 : vector<1x32x256xf32> to vector<32x256xf32>
    %304 = arith.mulf %303, %301 : vector<32x256xf32>
    %305 = arith.addf %296, %304 : vector<32x256xf32>
    %c241_i32_142 = arith.constant 241 : i32
    %306 = tpu.dynamic_rotate %274 by %c241_i32_142 dim 1 : vector<32x256xf32>, i32 -> vector<32x256xf32>
    %c6_143 = arith.constant 6 : index
    %c0_144 = arith.constant 0 : index
    %c0_145 = arith.constant 0 : index
    %307 = vector.load %arg6[%c6_143, %c0_144, %c0_145] : memref<9x32x256xf32, #tpu.memory_space<vmem>>, vector<1x32x256xf32>
    %308 = vector.shape_cast %307 : vector<1x32x256xf32> to vector<32x256xf32>
    %309 = arith.mulf %308, %306 : vector<32x256xf32>
    %310 = arith.addf %300, %309 : vector<32x256xf32>
    %c240_i32_146 = arith.constant 240 : i32
    %311 = tpu.dynamic_rotate %274 by %c240_i32_146 dim 1 : vector<32x256xf32>, i32 -> vector<32x256xf32>
    %c7_147 = arith.constant 7 : index
    %c0_148 = arith.constant 0 : index
    %c0_149 = arith.constant 0 : index
    %312 = vector.load %arg6[%c7_147, %c0_148, %c0_149] : memref<9x32x256xf32, #tpu.memory_space<vmem>>, vector<1x32x256xf32>
    %313 = vector.shape_cast %312 : vector<1x32x256xf32> to vector<32x256xf32>
    %314 = arith.mulf %313, %311 : vector<32x256xf32>
    %315 = arith.addf %305, %314 : vector<32x256xf32>
    %c239_i32_150 = arith.constant 239 : i32
    %316 = tpu.dynamic_rotate %274 by %c239_i32_150 dim 1 : vector<32x256xf32>, i32 -> vector<32x256xf32>
    %c8_151 = arith.constant 8 : index
    %c0_152 = arith.constant 0 : index
    %c0_153 = arith.constant 0 : index
    %317 = vector.load %arg6[%c8_151, %c0_152, %c0_153] : memref<9x32x256xf32, #tpu.memory_space<vmem>>, vector<1x32x256xf32>
    %318 = vector.shape_cast %317 : vector<1x32x256xf32> to vector<32x256xf32>
    %319 = arith.mulf %318, %316 : vector<32x256xf32>
    %320 = arith.addf %310, %319 : vector<32x256xf32>
    %321 = arith.addf %320, %315 : vector<32x256xf32>
    %322 = vector.broadcast %3 : vector<32x1xf32> to vector<32x256xf32>
    %323 = arith.addf %321, %322 : vector<32x256xf32>
    %c0_154 = arith.constant 0 : index
    %c0_155 = arith.constant 0 : index
    %c0_156 = arith.constant 0 : index
    %324 = vector.load %arg8[%c0_154, %c0_155, %c0_156] : memref<2x32x256xf32, #tpu.memory_space<vmem>>, vector<1x32x256xf32>
    %325 = vector.shape_cast %324 : vector<1x32x256xf32> to vector<32x256xf32>
    %326 = vector.shape_cast %323 : vector<32x256xf32> to vector<1x32x256xf32>
    tpu.vector_store %arg8[%c0_154, %c0_155, %c0_156], %326 {strides = array<i32>} : memref<2x32x256xf32, #tpu.memory_space<vmem>>, vector<1x32x256xf32>,
    %c1_157 = arith.constant 1 : index
    %c0_158 = arith.constant 0 : index
    %c0_159 = arith.constant 0 : index
    %327 = vector.load %arg1[%c1_157, %c0_158, %c0_159] : memref<2x32x256xf32, #tpu.memory_space<vmem>>, vector<1x32x256xf32>
    %328 = vector.shape_cast %327 : vector<1x32x256xf32> to vector<32x256xf32>
    %cst_160 = arith.constant dense<0.000000e+00> : vector<32x256xf32>
    %329 = tpu.matmul %0, %328, %cst_160 {dimension_numbers = #tpu.dot_dimension_numbers<[1], [0], [0], [1], [0, 0, 1, 1], [], []>} : vector<32x32xf32>, vector<32x256xf32>, vector<32x256xf32> -> vector<32x256xf32>
    %330 = vector.broadcast %1 : vector<32x1xf32> to vector<32x256xf32>
    %331 = arith.addf %329, %330 : vector<32x256xf32>
    %cst_161 = arith.constant 0.000000e+00 : f32
    %332 = vector.broadcast %cst_161 : f32 to vector<32x256xf32>
    %cst_162 = arith.constant 0.000000e+00 : f32
    %333 = vector.broadcast %cst_162 : f32 to vector<32x256xf32>
    %cst_163 = arith.constant 0.000000e+00 : f32
    %334 = vector.broadcast %cst_163 : f32 to vector<32x256xf32>
    %cst_164 = arith.constant 0.000000e+00 : f32
    %335 = vector.broadcast %cst_164 : f32 to vector<32x256xf32>
    %c51_i32_165 = arith.constant 51 : i32
    %336 = tpu.dynamic_rotate %331 by %c51_i32_165 dim 1 : vector<32x256xf32>, i32 -> vector<32x256xf32>
    %c0_166 = arith.constant 0 : index
    %c0_167 = arith.constant 0 : index
    %c0_168 = arith.constant 0 : index
    %337 = vector.load %arg4[%c0_166, %c0_167, %c0_168] : memref<49x32x256xf32, #tpu.memory_space<vmem>>, vector<1x32x256xf32>
    %338 = vector.shape_cast %337 : vector<1x32x256xf32> to vector<32x256xf32>
    %339 = arith.mulf %338, %336 : vector<32x256xf32>
    %340 = arith.addf %332, %339 : vector<32x256xf32>
    %c50_i32_169 = arith.constant 50 : i32
    %341 = tpu.dynamic_rotate %331 by %c50_i32_169 dim 1 : vector<32x256xf32>, i32 -> vector<32x256xf32>
    %c1_170 = arith.constant 1 : index
    %c0_171 = arith.constant 0 : index
    %c0_172 = arith.constant 0 : index
    %342 = vector.load %arg4[%c1_170, %c0_171, %c0_172] : memref<49x32x256xf32, #tpu.memory_space<vmem>>, vector<1x32x256xf32>
    %343 = vector.shape_cast %342 : vector<1x32x256xf32> to vector<32x256xf32>
    %344 = arith.mulf %343, %341 : vector<32x256xf32>
    %345 = arith.addf %333, %344 : vector<32x256xf32>
    %c49_i32_173 = arith.constant 49 : i32
    %346 = tpu.dynamic_rotate %331 by %c49_i32_173 dim 1 : vector<32x256xf32>, i32 -> vector<32x256xf32>
    %c2_174 = arith.constant 2 : index
    %c0_175 = arith.constant 0 : index
    %c0_176 = arith.constant 0 : index
    %347 = vector.load %arg4[%c2_174, %c0_175, %c0_176] : memref<49x32x256xf32, #tpu.memory_space<vmem>>, vector<1x32x256xf32>
    %348 = vector.shape_cast %347 : vector<1x32x256xf32> to vector<32x256xf32>
    %349 = arith.mulf %348, %346 : vector<32x256xf32>
    %350 = arith.addf %334, %349 : vector<32x256xf32>
    %c48_i32_177 = arith.constant 48 : i32
    %351 = tpu.dynamic_rotate %331 by %c48_i32_177 dim 1 : vector<32x256xf32>, i32 -> vector<32x256xf32>
    %c3_178 = arith.constant 3 : index
    %c0_179 = arith.constant 0 : index
    %c0_180 = arith.constant 0 : index
    %352 = vector.load %arg4[%c3_178, %c0_179, %c0_180] : memref<49x32x256xf32, #tpu.memory_space<vmem>>, vector<1x32x256xf32>
    %353 = vector.shape_cast %352 : vector<1x32x256xf32> to vector<32x256xf32>
    %354 = arith.mulf %353, %351 : vector<32x256xf32>
    %355 = arith.addf %335, %354 : vector<32x256xf32>
    %c47_i32_181 = arith.constant 47 : i32
    %356 = tpu.dynamic_rotate %331 by %c47_i32_181 dim 1 : vector<32x256xf32>, i32 -> vector<32x256xf32>
    %c4_182 = arith.constant 4 : index
    %c0_183 = arith.constant 0 : index
    %c0_184 = arith.constant 0 : index
    %357 = vector.load %arg4[%c4_182, %c0_183, %c0_184] : memref<49x32x256xf32, #tpu.memory_space<vmem>>, vector<1x32x256xf32>
    %358 = vector.shape_cast %357 : vector<1x32x256xf32> to vector<32x256xf32>
    %359 = arith.mulf %358, %356 : vector<32x256xf32>
    %360 = arith.addf %340, %359 : vector<32x256xf32>
    %c46_i32_185 = arith.constant 46 : i32
    %361 = tpu.dynamic_rotate %331 by %c46_i32_185 dim 1 : vector<32x256xf32>, i32 -> vector<32x256xf32>
    %c5_186 = arith.constant 5 : index
    %c0_187 = arith.constant 0 : index
    %c0_188 = arith.constant 0 : index
    %362 = vector.load %arg4[%c5_186, %c0_187, %c0_188] : memref<49x32x256xf32, #tpu.memory_space<vmem>>, vector<1x32x256xf32>
    %363 = vector.shape_cast %362 : vector<1x32x256xf32> to vector<32x256xf32>
    %364 = arith.mulf %363, %361 : vector<32x256xf32>
    %365 = arith.addf %345, %364 : vector<32x256xf32>
    %c45_i32_189 = arith.constant 45 : i32
    %366 = tpu.dynamic_rotate %331 by %c45_i32_189 dim 1 : vector<32x256xf32>, i32 -> vector<32x256xf32>
    %c6_190 = arith.constant 6 : index
    %c0_191 = arith.constant 0 : index
    %c0_192 = arith.constant 0 : index
    %367 = vector.load %arg4[%c6_190, %c0_191, %c0_192] : memref<49x32x256xf32, #tpu.memory_space<vmem>>, vector<1x32x256xf32>
    %368 = vector.shape_cast %367 : vector<1x32x256xf32> to vector<32x256xf32>
    %369 = arith.mulf %368, %366 : vector<32x256xf32>
    %370 = arith.addf %350, %369 : vector<32x256xf32>
    %c35_i32_193 = arith.constant 35 : i32
    %371 = tpu.dynamic_rotate %331 by %c35_i32_193 dim 1 : vector<32x256xf32>, i32 -> vector<32x256xf32>
    %c7_194 = arith.constant 7 : index
    %c0_195 = arith.constant 0 : index
    %c0_196 = arith.constant 0 : index
    %372 = vector.load %arg4[%c7_194, %c0_195, %c0_196] : memref<49x32x256xf32, #tpu.memory_space<vmem>>, vector<1x32x256xf32>
    %373 = vector.shape_cast %372 : vector<1x32x256xf32> to vector<32x256xf32>
    %374 = arith.mulf %373, %371 : vector<32x256xf32>
    %375 = arith.addf %355, %374 : vector<32x256xf32>
    %c34_i32_197 = arith.constant 34 : i32
    %376 = tpu.dynamic_rotate %331 by %c34_i32_197 dim 1 : vector<32x256xf32>, i32 -> vector<32x256xf32>
    %c8_198 = arith.constant 8 : index
    %c0_199 = arith.constant 0 : index
    %c0_200 = arith.constant 0 : index
    %377 = vector.load %arg4[%c8_198, %c0_199, %c0_200] : memref<49x32x256xf32, #tpu.memory_space<vmem>>, vector<1x32x256xf32>
    %378 = vector.shape_cast %377 : vector<1x32x256xf32> to vector<32x256xf32>
    %379 = arith.mulf %378, %376 : vector<32x256xf32>
    %380 = arith.addf %360, %379 : vector<32x256xf32>
    %c33_i32_201 = arith.constant 33 : i32
    %381 = tpu.dynamic_rotate %331 by %c33_i32_201 dim 1 : vector<32x256xf32>, i32 -> vector<32x256xf32>
    %c9_202 = arith.constant 9 : index
    %c0_203 = arith.constant 0 : index
    %c0_204 = arith.constant 0 : index
    %382 = vector.load %arg4[%c9_202, %c0_203, %c0_204] : memref<49x32x256xf32, #tpu.memory_space<vmem>>, vector<1x32x256xf32>
    %383 = vector.shape_cast %382 : vector<1x32x256xf32> to vector<32x256xf32>
    %384 = arith.mulf %383, %381 : vector<32x256xf32>
    %385 = arith.addf %365, %384 : vector<32x256xf32>
    %c32_i32_205 = arith.constant 32 : i32
    %386 = tpu.dynamic_rotate %331 by %c32_i32_205 dim 1 : vector<32x256xf32>, i32 -> vector<32x256xf32>
    %c10_206 = arith.constant 10 : index
    %c0_207 = arith.constant 0 : index
    %c0_208 = arith.constant 0 : index
    %387 = vector.load %arg4[%c10_206, %c0_207, %c0_208] : memref<49x32x256xf32, #tpu.memory_space<vmem>>, vector<1x32x256xf32>
    %388 = vector.shape_cast %387 : vector<1x32x256xf32> to vector<32x256xf32>
    %389 = arith.mulf %388, %386 : vector<32x256xf32>
    %390 = arith.addf %370, %389 : vector<32x256xf32>
    %c31_i32_209 = arith.constant 31 : i32
    %391 = tpu.dynamic_rotate %331 by %c31_i32_209 dim 1 : vector<32x256xf32>, i32 -> vector<32x256xf32>
    %c11_210 = arith.constant 11 : index
    %c0_211 = arith.constant 0 : index
    %c0_212 = arith.constant 0 : index
    %392 = vector.load %arg4[%c11_210, %c0_211, %c0_212] : memref<49x32x256xf32, #tpu.memory_space<vmem>>, vector<1x32x256xf32>
    %393 = vector.shape_cast %392 : vector<1x32x256xf32> to vector<32x256xf32>
    %394 = arith.mulf %393, %391 : vector<32x256xf32>
    %395 = arith.addf %375, %394 : vector<32x256xf32>
    %c30_i32_213 = arith.constant 30 : i32
    %396 = tpu.dynamic_rotate %331 by %c30_i32_213 dim 1 : vector<32x256xf32>, i32 -> vector<32x256xf32>
    %c12_214 = arith.constant 12 : index
    %c0_215 = arith.constant 0 : index
    %c0_216 = arith.constant 0 : index
    %397 = vector.load %arg4[%c12_214, %c0_215, %c0_216] : memref<49x32x256xf32, #tpu.memory_space<vmem>>, vector<1x32x256xf32>
    %398 = vector.shape_cast %397 : vector<1x32x256xf32> to vector<32x256xf32>
    %399 = arith.mulf %398, %396 : vector<32x256xf32>
    %400 = arith.addf %380, %399 : vector<32x256xf32>
    %c29_i32_217 = arith.constant 29 : i32
    %401 = tpu.dynamic_rotate %331 by %c29_i32_217 dim 1 : vector<32x256xf32>, i32 -> vector<32x256xf32>
    %c13_218 = arith.constant 13 : index
    %c0_219 = arith.constant 0 : index
    %c0_220 = arith.constant 0 : index
    %402 = vector.load %arg4[%c13_218, %c0_219, %c0_220] : memref<49x32x256xf32, #tpu.memory_space<vmem>>, vector<1x32x256xf32>
    %403 = vector.shape_cast %402 : vector<1x32x256xf32> to vector<32x256xf32>
    %404 = arith.mulf %403, %401 : vector<32x256xf32>
    %405 = arith.addf %385, %404 : vector<32x256xf32>
    %c19_i32_221 = arith.constant 19 : i32
    %406 = tpu.dynamic_rotate %331 by %c19_i32_221 dim 1 : vector<32x256xf32>, i32 -> vector<32x256xf32>
    %c14_222 = arith.constant 14 : index
    %c0_223 = arith.constant 0 : index
    %c0_224 = arith.constant 0 : index
    %407 = vector.load %arg4[%c14_222, %c0_223, %c0_224] : memref<49x32x256xf32, #tpu.memory_space<vmem>>, vector<1x32x256xf32>
    %408 = vector.shape_cast %407 : vector<1x32x256xf32> to vector<32x256xf32>
    %409 = arith.mulf %408, %406 : vector<32x256xf32>
    %410 = arith.addf %390, %409 : vector<32x256xf32>
    %c18_i32_225 = arith.constant 18 : i32
    %411 = tpu.dynamic_rotate %331 by %c18_i32_225 dim 1 : vector<32x256xf32>, i32 -> vector<32x256xf32>
    %c15_226 = arith.constant 15 : index
    %c0_227 = arith.constant 0 : index
    %c0_228 = arith.constant 0 : index
    %412 = vector.load %arg4[%c15_226, %c0_227, %c0_228] : memref<49x32x256xf32, #tpu.memory_space<vmem>>, vector<1x32x256xf32>
    %413 = vector.shape_cast %412 : vector<1x32x256xf32> to vector<32x256xf32>
    %414 = arith.mulf %413, %411 : vector<32x256xf32>
    %415 = arith.addf %395, %414 : vector<32x256xf32>
    %c17_i32_229 = arith.constant 17 : i32
    %416 = tpu.dynamic_rotate %331 by %c17_i32_229 dim 1 : vector<32x256xf32>, i32 -> vector<32x256xf32>
    %c16_230 = arith.constant 16 : index
    %c0_231 = arith.constant 0 : index
    %c0_232 = arith.constant 0 : index
    %417 = vector.load %arg4[%c16_230, %c0_231, %c0_232] : memref<49x32x256xf32, #tpu.memory_space<vmem>>, vector<1x32x256xf32>
    %418 = vector.shape_cast %417 : vector<1x32x256xf32> to vector<32x256xf32>
    %419 = arith.mulf %418, %416 : vector<32x256xf32>
    %420 = arith.addf %400, %419 : vector<32x256xf32>
    %c16_i32_233 = arith.constant 16 : i32
    %421 = tpu.dynamic_rotate %331 by %c16_i32_233 dim 1 : vector<32x256xf32>, i32 -> vector<32x256xf32>
    %c17_234 = arith.constant 17 : index
    %c0_235 = arith.constant 0 : index
    %c0_236 = arith.constant 0 : index
    %422 = vector.load %arg4[%c17_234, %c0_235, %c0_236] : memref<49x32x256xf32, #tpu.memory_space<vmem>>, vector<1x32x256xf32>
    %423 = vector.shape_cast %422 : vector<1x32x256xf32> to vector<32x256xf32>
    %424 = arith.mulf %423, %421 : vector<32x256xf32>
    %425 = arith.addf %405, %424 : vector<32x256xf32>
    %c15_i32_237 = arith.constant 15 : i32
    %426 = tpu.dynamic_rotate %331 by %c15_i32_237 dim 1 : vector<32x256xf32>, i32 -> vector<32x256xf32>
    %c18_238 = arith.constant 18 : index
    %c0_239 = arith.constant 0 : index
    %c0_240 = arith.constant 0 : index
    %427 = vector.load %arg4[%c18_238, %c0_239, %c0_240] : memref<49x32x256xf32, #tpu.memory_space<vmem>>, vector<1x32x256xf32>
    %428 = vector.shape_cast %427 : vector<1x32x256xf32> to vector<32x256xf32>
    %429 = arith.mulf %428, %426 : vector<32x256xf32>
    %430 = arith.addf %410, %429 : vector<32x256xf32>
    %c14_i32_241 = arith.constant 14 : i32
    %431 = tpu.dynamic_rotate %331 by %c14_i32_241 dim 1 : vector<32x256xf32>, i32 -> vector<32x256xf32>
    %c19_242 = arith.constant 19 : index
    %c0_243 = arith.constant 0 : index
    %c0_244 = arith.constant 0 : index
    %432 = vector.load %arg4[%c19_242, %c0_243, %c0_244] : memref<49x32x256xf32, #tpu.memory_space<vmem>>, vector<1x32x256xf32>
    %433 = vector.shape_cast %432 : vector<1x32x256xf32> to vector<32x256xf32>
    %434 = arith.mulf %433, %431 : vector<32x256xf32>
    %435 = arith.addf %415, %434 : vector<32x256xf32>
    %c13_i32_245 = arith.constant 13 : i32
    %436 = tpu.dynamic_rotate %331 by %c13_i32_245 dim 1 : vector<32x256xf32>, i32 -> vector<32x256xf32>
    %c20_246 = arith.constant 20 : index
    %c0_247 = arith.constant 0 : index
    %c0_248 = arith.constant 0 : index
    %437 = vector.load %arg4[%c20_246, %c0_247, %c0_248] : memref<49x32x256xf32, #tpu.memory_space<vmem>>, vector<1x32x256xf32>
    %438 = vector.shape_cast %437 : vector<1x32x256xf32> to vector<32x256xf32>
    %439 = arith.mulf %438, %436 : vector<32x256xf32>
    %440 = arith.addf %420, %439 : vector<32x256xf32>
    %c3_i32_249 = arith.constant 3 : i32
    %441 = tpu.dynamic_rotate %331 by %c3_i32_249 dim 1 : vector<32x256xf32>, i32 -> vector<32x256xf32>
    %c21_250 = arith.constant 21 : index
    %c0_251 = arith.constant 0 : index
    %c0_252 = arith.constant 0 : index
    %442 = vector.load %arg4[%c21_250, %c0_251, %c0_252] : memref<49x32x256xf32, #tpu.memory_space<vmem>>, vector<1x32x256xf32>
    %443 = vector.shape_cast %442 : vector<1x32x256xf32> to vector<32x256xf32>
    %444 = arith.mulf %443, %441 : vector<32x256xf32>
    %445 = arith.addf %425, %444 : vector<32x256xf32>
    %c2_i32_253 = arith.constant 2 : i32
    %446 = tpu.dynamic_rotate %331 by %c2_i32_253 dim 1 : vector<32x256xf32>, i32 -> vector<32x256xf32>
    %c22_254 = arith.constant 22 : index
    %c0_255 = arith.constant 0 : index
    %c0_256 = arith.constant 0 : index
    %447 = vector.load %arg4[%c22_254, %c0_255, %c0_256] : memref<49x32x256xf32, #tpu.memory_space<vmem>>, vector<1x32x256xf32>
    %448 = vector.shape_cast %447 : vector<1x32x256xf32> to vector<32x256xf32>
    %449 = arith.mulf %448, %446 : vector<32x256xf32>
    %450 = arith.addf %430, %449 : vector<32x256xf32>
    %c1_i32_257 = arith.constant 1 : i32
    %451 = tpu.dynamic_rotate %331 by %c1_i32_257 dim 1 : vector<32x256xf32>, i32 -> vector<32x256xf32>
    %c23_258 = arith.constant 23 : index
    %c0_259 = arith.constant 0 : index
    %c0_260 = arith.constant 0 : index
    %452 = vector.load %arg4[%c23_258, %c0_259, %c0_260] : memref<49x32x256xf32, #tpu.memory_space<vmem>>, vector<1x32x256xf32>
    %453 = vector.shape_cast %452 : vector<1x32x256xf32> to vector<32x256xf32>
    %454 = arith.mulf %453, %451 : vector<32x256xf32>
    %455 = arith.addf %435, %454 : vector<32x256xf32>
    %c24_261 = arith.constant 24 : index
    %c0_262 = arith.constant 0 : index
    %c0_263 = arith.constant 0 : index
    %456 = vector.load %arg4[%c24_261, %c0_262, %c0_263] : memref<49x32x256xf32, #tpu.memory_space<vmem>>, vector<1x32x256xf32>
    %457 = vector.shape_cast %456 : vector<1x32x256xf32> to vector<32x256xf32>
    %458 = arith.mulf %457, %331 : vector<32x256xf32>
    %459 = arith.addf %440, %458 : vector<32x256xf32>
    %c255_i32_264 = arith.constant 255 : i32
    %460 = tpu.dynamic_rotate %331 by %c255_i32_264 dim 1 : vector<32x256xf32>, i32 -> vector<32x256xf32>
    %c25_265 = arith.constant 25 : index
    %c0_266 = arith.constant 0 : index
    %c0_267 = arith.constant 0 : index
    %461 = vector.load %arg4[%c25_265, %c0_266, %c0_267] : memref<49x32x256xf32, #tpu.memory_space<vmem>>, vector<1x32x256xf32>
    %462 = vector.shape_cast %461 : vector<1x32x256xf32> to vector<32x256xf32>
    %463 = arith.mulf %462, %460 : vector<32x256xf32>
    %464 = arith.addf %445, %463 : vector<32x256xf32>
    %c254_i32_268 = arith.constant 254 : i32
    %465 = tpu.dynamic_rotate %331 by %c254_i32_268 dim 1 : vector<32x256xf32>, i32 -> vector<32x256xf32>
    %c26_269 = arith.constant 26 : index
    %c0_270 = arith.constant 0 : index
    %c0_271 = arith.constant 0 : index
    %466 = vector.load %arg4[%c26_269, %c0_270, %c0_271] : memref<49x32x256xf32, #tpu.memory_space<vmem>>, vector<1x32x256xf32>
    %467 = vector.shape_cast %466 : vector<1x32x256xf32> to vector<32x256xf32>
    %468 = arith.mulf %467, %465 : vector<32x256xf32>
    %469 = arith.addf %450, %468 : vector<32x256xf32>
    %c253_i32_272 = arith.constant 253 : i32
    %470 = tpu.dynamic_rotate %331 by %c253_i32_272 dim 1 : vector<32x256xf32>, i32 -> vector<32x256xf32>
    %c27_273 = arith.constant 27 : index
    %c0_274 = arith.constant 0 : index
    %c0_275 = arith.constant 0 : index
    %471 = vector.load %arg4[%c27_273, %c0_274, %c0_275] : memref<49x32x256xf32, #tpu.memory_space<vmem>>, vector<1x32x256xf32>
    %472 = vector.shape_cast %471 : vector<1x32x256xf32> to vector<32x256xf32>
    %473 = arith.mulf %472, %470 : vector<32x256xf32>
    %474 = arith.addf %455, %473 : vector<32x256xf32>
    %c243_i32_276 = arith.constant 243 : i32
    %475 = tpu.dynamic_rotate %331 by %c243_i32_276 dim 1 : vector<32x256xf32>, i32 -> vector<32x256xf32>
    %c28_277 = arith.constant 28 : index
    %c0_278 = arith.constant 0 : index
    %c0_279 = arith.constant 0 : index
    %476 = vector.load %arg4[%c28_277, %c0_278, %c0_279] : memref<49x32x256xf32, #tpu.memory_space<vmem>>, vector<1x32x256xf32>
    %477 = vector.shape_cast %476 : vector<1x32x256xf32> to vector<32x256xf32>
    %478 = arith.mulf %477, %475 : vector<32x256xf32>
    %479 = arith.addf %459, %478 : vector<32x256xf32>
    %c242_i32_280 = arith.constant 242 : i32
    %480 = tpu.dynamic_rotate %331 by %c242_i32_280 dim 1 : vector<32x256xf32>, i32 -> vector<32x256xf32>
    %c29_281 = arith.constant 29 : index
    %c0_282 = arith.constant 0 : index
    %c0_283 = arith.constant 0 : index
    %481 = vector.load %arg4[%c29_281, %c0_282, %c0_283] : memref<49x32x256xf32, #tpu.memory_space<vmem>>, vector<1x32x256xf32>
    %482 = vector.shape_cast %481 : vector<1x32x256xf32> to vector<32x256xf32>
    %483 = arith.mulf %482, %480 : vector<32x256xf32>
    %484 = arith.addf %464, %483 : vector<32x256xf32>
    %c241_i32_284 = arith.constant 241 : i32
    %485 = tpu.dynamic_rotate %331 by %c241_i32_284 dim 1 : vector<32x256xf32>, i32 -> vector<32x256xf32>
    %c30_285 = arith.constant 30 : index
    %c0_286 = arith.constant 0 : index
    %c0_287 = arith.constant 0 : index
    %486 = vector.load %arg4[%c30_285, %c0_286, %c0_287] : memref<49x32x256xf32, #tpu.memory_space<vmem>>, vector<1x32x256xf32>
    %487 = vector.shape_cast %486 : vector<1x32x256xf32> to vector<32x256xf32>
    %488 = arith.mulf %487, %485 : vector<32x256xf32>
    %489 = arith.addf %469, %488 : vector<32x256xf32>
    %c240_i32_288 = arith.constant 240 : i32
    %490 = tpu.dynamic_rotate %331 by %c240_i32_288 dim 1 : vector<32x256xf32>, i32 -> vector<32x256xf32>
    %c31_289 = arith.constant 31 : index
    %c0_290 = arith.constant 0 : index
    %c0_291 = arith.constant 0 : index
    %491 = vector.load %arg4[%c31_289, %c0_290, %c0_291] : memref<49x32x256xf32, #tpu.memory_space<vmem>>, vector<1x32x256xf32>
    %492 = vector.shape_cast %491 : vector<1x32x256xf32> to vector<32x256xf32>
    %493 = arith.mulf %492, %490 : vector<32x256xf32>
    %494 = arith.addf %474, %493 : vector<32x256xf32>
    %c239_i32_292 = arith.constant 239 : i32
    %495 = tpu.dynamic_rotate %331 by %c239_i32_292 dim 1 : vector<32x256xf32>, i32 -> vector<32x256xf32>
    %c32_293 = arith.constant 32 : index
    %c0_294 = arith.constant 0 : index
    %c0_295 = arith.constant 0 : index
    %496 = vector.load %arg4[%c32_293, %c0_294, %c0_295] : memref<49x32x256xf32, #tpu.memory_space<vmem>>, vector<1x32x256xf32>
    %497 = vector.shape_cast %496 : vector<1x32x256xf32> to vector<32x256xf32>
    %498 = arith.mulf %497, %495 : vector<32x256xf32>
    %499 = arith.addf %479, %498 : vector<32x256xf32>
    %c238_i32_296 = arith.constant 238 : i32
    %500 = tpu.dynamic_rotate %331 by %c238_i32_296 dim 1 : vector<32x256xf32>, i32 -> vector<32x256xf32>
    %c33_297 = arith.constant 33 : index
    %c0_298 = arith.constant 0 : index
    %c0_299 = arith.constant 0 : index
    %501 = vector.load %arg4[%c33_297, %c0_298, %c0_299] : memref<49x32x256xf32, #tpu.memory_space<vmem>>, vector<1x32x256xf32>
    %502 = vector.shape_cast %501 : vector<1x32x256xf32> to vector<32x256xf32>
    %503 = arith.mulf %502, %500 : vector<32x256xf32>
    %504 = arith.addf %484, %503 : vector<32x256xf32>
    %c237_i32_300 = arith.constant 237 : i32
    %505 = tpu.dynamic_rotate %331 by %c237_i32_300 dim 1 : vector<32x256xf32>, i32 -> vector<32x256xf32>
    %c34_301 = arith.constant 34 : index
    %c0_302 = arith.constant 0 : index
    %c0_303 = arith.constant 0 : index
    %506 = vector.load %arg4[%c34_301, %c0_302, %c0_303] : memref<49x32x256xf32, #tpu.memory_space<vmem>>, vector<1x32x256xf32>
    %507 = vector.shape_cast %506 : vector<1x32x256xf32> to vector<32x256xf32>
    %508 = arith.mulf %507, %505 : vector<32x256xf32>
    %509 = arith.addf %489, %508 : vector<32x256xf32>
    %c227_i32_304 = arith.constant 227 : i32
    %510 = tpu.dynamic_rotate %331 by %c227_i32_304 dim 1 : vector<32x256xf32>, i32 -> vector<32x256xf32>
    %c35_305 = arith.constant 35 : index
    %c0_306 = arith.constant 0 : index
    %c0_307 = arith.constant 0 : index
    %511 = vector.load %arg4[%c35_305, %c0_306, %c0_307] : memref<49x32x256xf32, #tpu.memory_space<vmem>>, vector<1x32x256xf32>
    %512 = vector.shape_cast %511 : vector<1x32x256xf32> to vector<32x256xf32>
    %513 = arith.mulf %512, %510 : vector<32x256xf32>
    %514 = arith.addf %494, %513 : vector<32x256xf32>
    %c226_i32_308 = arith.constant 226 : i32
    %515 = tpu.dynamic_rotate %331 by %c226_i32_308 dim 1 : vector<32x256xf32>, i32 -> vector<32x256xf32>
    %c36_309 = arith.constant 36 : index
    %c0_310 = arith.constant 0 : index
    %c0_311 = arith.constant 0 : index
    %516 = vector.load %arg4[%c36_309, %c0_310, %c0_311] : memref<49x32x256xf32, #tpu.memory_space<vmem>>, vector<1x32x256xf32>
    %517 = vector.shape_cast %516 : vector<1x32x256xf32> to vector<32x256xf32>
    %518 = arith.mulf %517, %515 : vector<32x256xf32>
    %519 = arith.addf %499, %518 : vector<32x256xf32>
    %c225_i32_312 = arith.constant 225 : i32
    %520 = tpu.dynamic_rotate %331 by %c225_i32_312 dim 1 : vector<32x256xf32>, i32 -> vector<32x256xf32>
    %c37_313 = arith.constant 37 : index
    %c0_314 = arith.constant 0 : index
    %c0_315 = arith.constant 0 : index
    %521 = vector.load %arg4[%c37_313, %c0_314, %c0_315] : memref<49x32x256xf32, #tpu.memory_space<vmem>>, vector<1x32x256xf32>
    %522 = vector.shape_cast %521 : vector<1x32x256xf32> to vector<32x256xf32>
    %523 = arith.mulf %522, %520 : vector<32x256xf32>
    %524 = arith.addf %504, %523 : vector<32x256xf32>
    %c224_i32_316 = arith.constant 224 : i32
    %525 = tpu.dynamic_rotate %331 by %c224_i32_316 dim 1 : vector<32x256xf32>, i32 -> vector<32x256xf32>
    %c38_317 = arith.constant 38 : index
    %c0_318 = arith.constant 0 : index
    %c0_319 = arith.constant 0 : index
    %526 = vector.load %arg4[%c38_317, %c0_318, %c0_319] : memref<49x32x256xf32, #tpu.memory_space<vmem>>, vector<1x32x256xf32>
    %527 = vector.shape_cast %526 : vector<1x32x256xf32> to vector<32x256xf32>
    %528 = arith.mulf %527, %525 : vector<32x256xf32>
    %529 = arith.addf %509, %528 : vector<32x256xf32>
    %c223_i32_320 = arith.constant 223 : i32
    %530 = tpu.dynamic_rotate %331 by %c223_i32_320 dim 1 : vector<32x256xf32>, i32 -> vector<32x256xf32>
    %c39_321 = arith.constant 39 : index
    %c0_322 = arith.constant 0 : index
    %c0_323 = arith.constant 0 : index
    %531 = vector.load %arg4[%c39_321, %c0_322, %c0_323] : memref<49x32x256xf32, #tpu.memory_space<vmem>>, vector<1x32x256xf32>
    %532 = vector.shape_cast %531 : vector<1x32x256xf32> to vector<32x256xf32>
    %533 = arith.mulf %532, %530 : vector<32x256xf32>
    %534 = arith.addf %514, %533 : vector<32x256xf32>
    %c222_i32_324 = arith.constant 222 : i32
    %535 = tpu.dynamic_rotate %331 by %c222_i32_324 dim 1 : vector<32x256xf32>, i32 -> vector<32x256xf32>
    %c40_325 = arith.constant 40 : index
    %c0_326 = arith.constant 0 : index
    %c0_327 = arith.constant 0 : index
    %536 = vector.load %arg4[%c40_325, %c0_326, %c0_327] : memref<49x32x256xf32, #tpu.memory_space<vmem>>, vector<1x32x256xf32>
    %537 = vector.shape_cast %536 : vector<1x32x256xf32> to vector<32x256xf32>
    %538 = arith.mulf %537, %535 : vector<32x256xf32>
    %539 = arith.addf %519, %538 : vector<32x256xf32>
    %c221_i32_328 = arith.constant 221 : i32
    %540 = tpu.dynamic_rotate %331 by %c221_i32_328 dim 1 : vector<32x256xf32>, i32 -> vector<32x256xf32>
    %c41_329 = arith.constant 41 : index
    %c0_330 = arith.constant 0 : index
    %c0_331 = arith.constant 0 : index
    %541 = vector.load %arg4[%c41_329, %c0_330, %c0_331] : memref<49x32x256xf32, #tpu.memory_space<vmem>>, vector<1x32x256xf32>
    %542 = vector.shape_cast %541 : vector<1x32x256xf32> to vector<32x256xf32>
    %543 = arith.mulf %542, %540 : vector<32x256xf32>
    %544 = arith.addf %524, %543 : vector<32x256xf32>
    %c211_i32_332 = arith.constant 211 : i32
    %545 = tpu.dynamic_rotate %331 by %c211_i32_332 dim 1 : vector<32x256xf32>, i32 -> vector<32x256xf32>
    %c42_333 = arith.constant 42 : index
    %c0_334 = arith.constant 0 : index
    %c0_335 = arith.constant 0 : index
    %546 = vector.load %arg4[%c42_333, %c0_334, %c0_335] : memref<49x32x256xf32, #tpu.memory_space<vmem>>, vector<1x32x256xf32>
    %547 = vector.shape_cast %546 : vector<1x32x256xf32> to vector<32x256xf32>
    %548 = arith.mulf %547, %545 : vector<32x256xf32>
    %549 = arith.addf %529, %548 : vector<32x256xf32>
    %c210_i32_336 = arith.constant 210 : i32
    %550 = tpu.dynamic_rotate %331 by %c210_i32_336 dim 1 : vector<32x256xf32>, i32 -> vector<32x256xf32>
    %c43_337 = arith.constant 43 : index
    %c0_338 = arith.constant 0 : index
    %c0_339 = arith.constant 0 : index
    %551 = vector.load %arg4[%c43_337, %c0_338, %c0_339] : memref<49x32x256xf32, #tpu.memory_space<vmem>>, vector<1x32x256xf32>
    %552 = vector.shape_cast %551 : vector<1x32x256xf32> to vector<32x256xf32>
    %553 = arith.mulf %552, %550 : vector<32x256xf32>
    %554 = arith.addf %534, %553 : vector<32x256xf32>
    %c209_i32_340 = arith.constant 209 : i32
    %555 = tpu.dynamic_rotate %331 by %c209_i32_340 dim 1 : vector<32x256xf32>, i32 -> vector<32x256xf32>
    %c44_341 = arith.constant 44 : index
    %c0_342 = arith.constant 0 : index
    %c0_343 = arith.constant 0 : index
    %556 = vector.load %arg4[%c44_341, %c0_342, %c0_343] : memref<49x32x256xf32, #tpu.memory_space<vmem>>, vector<1x32x256xf32>
    %557 = vector.shape_cast %556 : vector<1x32x256xf32> to vector<32x256xf32>
    %558 = arith.mulf %557, %555 : vector<32x256xf32>
    %559 = arith.addf %539, %558 : vector<32x256xf32>
    %c208_i32_344 = arith.constant 208 : i32
    %560 = tpu.dynamic_rotate %331 by %c208_i32_344 dim 1 : vector<32x256xf32>, i32 -> vector<32x256xf32>
    %c45_345 = arith.constant 45 : index
    %c0_346 = arith.constant 0 : index
    %c0_347 = arith.constant 0 : index
    %561 = vector.load %arg4[%c45_345, %c0_346, %c0_347] : memref<49x32x256xf32, #tpu.memory_space<vmem>>, vector<1x32x256xf32>
    %562 = vector.shape_cast %561 : vector<1x32x256xf32> to vector<32x256xf32>
    %563 = arith.mulf %562, %560 : vector<32x256xf32>
    %564 = arith.addf %544, %563 : vector<32x256xf32>
    %c207_i32_348 = arith.constant 207 : i32
    %565 = tpu.dynamic_rotate %331 by %c207_i32_348 dim 1 : vector<32x256xf32>, i32 -> vector<32x256xf32>
    %c46_349 = arith.constant 46 : index
    %c0_350 = arith.constant 0 : index
    %c0_351 = arith.constant 0 : index
    %566 = vector.load %arg4[%c46_349, %c0_350, %c0_351] : memref<49x32x256xf32, #tpu.memory_space<vmem>>, vector<1x32x256xf32>
    %567 = vector.shape_cast %566 : vector<1x32x256xf32> to vector<32x256xf32>
    %568 = arith.mulf %567, %565 : vector<32x256xf32>
    %569 = arith.addf %549, %568 : vector<32x256xf32>
    %c206_i32_352 = arith.constant 206 : i32
    %570 = tpu.dynamic_rotate %331 by %c206_i32_352 dim 1 : vector<32x256xf32>, i32 -> vector<32x256xf32>
    %c47_353 = arith.constant 47 : index
    %c0_354 = arith.constant 0 : index
    %c0_355 = arith.constant 0 : index
    %571 = vector.load %arg4[%c47_353, %c0_354, %c0_355] : memref<49x32x256xf32, #tpu.memory_space<vmem>>, vector<1x32x256xf32>
    %572 = vector.shape_cast %571 : vector<1x32x256xf32> to vector<32x256xf32>
    %573 = arith.mulf %572, %570 : vector<32x256xf32>
    %574 = arith.addf %554, %573 : vector<32x256xf32>
    %c205_i32_356 = arith.constant 205 : i32
    %575 = tpu.dynamic_rotate %331 by %c205_i32_356 dim 1 : vector<32x256xf32>, i32 -> vector<32x256xf32>
    %c48_357 = arith.constant 48 : index
    %c0_358 = arith.constant 0 : index
    %c0_359 = arith.constant 0 : index
    %576 = vector.load %arg4[%c48_357, %c0_358, %c0_359] : memref<49x32x256xf32, #tpu.memory_space<vmem>>, vector<1x32x256xf32>
    %577 = vector.shape_cast %576 : vector<1x32x256xf32> to vector<32x256xf32>
    %578 = arith.mulf %577, %575 : vector<32x256xf32>
    %579 = arith.addf %559, %578 : vector<32x256xf32>
    %580 = arith.addf %579, %564 : vector<32x256xf32>
    %581 = arith.addf %580, %569 : vector<32x256xf32>
    %582 = arith.addf %581, %574 : vector<32x256xf32>
    %583 = vector.broadcast %2 : vector<32x1xf32> to vector<32x256xf32>
    %584 = arith.addf %582, %583 : vector<32x256xf32>
    %cst_360 = arith.constant 5.000000e-01 : f32
    %585 = vector.broadcast %cst_360 : f32 to vector<32x256xf32>
    %586 = arith.mulf %585, %584 : vector<32x256xf32>
    %cst_361 = arith.constant 4.471500e-02 : f32
    %587 = vector.broadcast %cst_361 : f32 to vector<32x256xf32>
    %588 = arith.mulf %587, %584 : vector<32x256xf32>
    %589 = arith.mulf %588, %584 : vector<32x256xf32>
    %590 = arith.mulf %589, %584 : vector<32x256xf32>
    %591 = arith.addf %584, %590 : vector<32x256xf32>
    %cst_362 = arith.constant 0.797884583 : f32
    %592 = vector.broadcast %cst_362 : f32 to vector<32x256xf32>
    %593 = arith.mulf %592, %591 : vector<32x256xf32>
    %594 = math.tanh %593 : vector<32x256xf32>
    %cst_363 = arith.constant 1.000000e+00 : f32
    %595 = vector.broadcast %cst_363 : f32 to vector<32x256xf32>
    %596 = arith.addf %595, %594 : vector<32x256xf32>
    %597 = arith.mulf %586, %596 : vector<32x256xf32>
    %cst_364 = arith.constant 0.000000e+00 : f32
    %598 = vector.broadcast %cst_364 : f32 to vector<32x256xf32>
    %cst_365 = arith.constant 0.000000e+00 : f32
    %599 = vector.broadcast %cst_365 : f32 to vector<32x256xf32>
    %c17_i32_366 = arith.constant 17 : i32
    %600 = tpu.dynamic_rotate %597 by %c17_i32_366 dim 1 : vector<32x256xf32>, i32 -> vector<32x256xf32>
    %c0_367 = arith.constant 0 : index
    %c0_368 = arith.constant 0 : index
    %c0_369 = arith.constant 0 : index
    %601 = vector.load %arg6[%c0_367, %c0_368, %c0_369] : memref<9x32x256xf32, #tpu.memory_space<vmem>>, vector<1x32x256xf32>
    %602 = vector.shape_cast %601 : vector<1x32x256xf32> to vector<32x256xf32>
    %603 = arith.mulf %602, %600 : vector<32x256xf32>
    %604 = arith.addf %598, %603 : vector<32x256xf32>
    %c16_i32_370 = arith.constant 16 : i32
    %605 = tpu.dynamic_rotate %597 by %c16_i32_370 dim 1 : vector<32x256xf32>, i32 -> vector<32x256xf32>
    %c1_371 = arith.constant 1 : index
    %c0_372 = arith.constant 0 : index
    %c0_373 = arith.constant 0 : index
    %606 = vector.load %arg6[%c1_371, %c0_372, %c0_373] : memref<9x32x256xf32, #tpu.memory_space<vmem>>, vector<1x32x256xf32>
    %607 = vector.shape_cast %606 : vector<1x32x256xf32> to vector<32x256xf32>
    %608 = arith.mulf %607, %605 : vector<32x256xf32>
    %609 = arith.addf %599, %608 : vector<32x256xf32>
    %c15_i32_374 = arith.constant 15 : i32
    %610 = tpu.dynamic_rotate %597 by %c15_i32_374 dim 1 : vector<32x256xf32>, i32 -> vector<32x256xf32>
    %c2_375 = arith.constant 2 : index
    %c0_376 = arith.constant 0 : index
    %c0_377 = arith.constant 0 : index
    %611 = vector.load %arg6[%c2_375, %c0_376, %c0_377] : memref<9x32x256xf32, #tpu.memory_space<vmem>>, vector<1x32x256xf32>
    %612 = vector.shape_cast %611 : vector<1x32x256xf32> to vector<32x256xf32>
    %613 = arith.mulf %612, %610 : vector<32x256xf32>
    %614 = arith.addf %604, %613 : vector<32x256xf32>
    %c1_i32_378 = arith.constant 1 : i32
    %615 = tpu.dynamic_rotate %597 by %c1_i32_378 dim 1 : vector<32x256xf32>, i32 -> vector<32x256xf32>
    %c3_379 = arith.constant 3 : index
    %c0_380 = arith.constant 0 : index
    %c0_381 = arith.constant 0 : index
    %616 = vector.load %arg6[%c3_379, %c0_380, %c0_381] : memref<9x32x256xf32, #tpu.memory_space<vmem>>, vector<1x32x256xf32>
    %617 = vector.shape_cast %616 : vector<1x32x256xf32> to vector<32x256xf32>
    %618 = arith.mulf %617, %615 : vector<32x256xf32>
    %619 = arith.addf %609, %618 : vector<32x256xf32>
    %c4_382 = arith.constant 4 : index
    %c0_383 = arith.constant 0 : index
    %c0_384 = arith.constant 0 : index
    %620 = vector.load %arg6[%c4_382, %c0_383, %c0_384] : memref<9x32x256xf32, #tpu.memory_space<vmem>>, vector<1x32x256xf32>
    %621 = vector.shape_cast %620 : vector<1x32x256xf32> to vector<32x256xf32>
    %622 = arith.mulf %621, %597 : vector<32x256xf32>
    %623 = arith.addf %614, %622 : vector<32x256xf32>
    %c255_i32_385 = arith.constant 255 : i32
    %624 = tpu.dynamic_rotate %597 by %c255_i32_385 dim 1 : vector<32x256xf32>, i32 -> vector<32x256xf32>
    %c5_386 = arith.constant 5 : index
    %c0_387 = arith.constant 0 : index
    %c0_388 = arith.constant 0 : index
    %625 = vector.load %arg6[%c5_386, %c0_387, %c0_388] : memref<9x32x256xf32, #tpu.memory_space<vmem>>, vector<1x32x256xf32>
    %626 = vector.shape_cast %625 : vector<1x32x256xf32> to vector<32x256xf32>
    %627 = arith.mulf %626, %624 : vector<32x256xf32>
    %628 = arith.addf %619, %627 : vector<32x256xf32>
    %c241_i32_389 = arith.constant 241 : i32
    %629 = tpu.dynamic_rotate %597 by %c241_i32_389 dim 1 : vector<32x256xf32>, i32 -> vector<32x256xf32>
    %c6_390 = arith.constant 6 : index
    %c0_391 = arith.constant 0 : index
    %c0_392 = arith.constant 0 : index
    %630 = vector.load %arg6[%c6_390, %c0_391, %c0_392] : memref<9x32x256xf32, #tpu.memory_space<vmem>>, vector<1x32x256xf32>
    %631 = vector.shape_cast %630 : vector<1x32x256xf32> to vector<32x256xf32>
    %632 = arith.mulf %631, %629 : vector<32x256xf32>
    %633 = arith.addf %623, %632 : vector<32x256xf32>
    %c240_i32_393 = arith.constant 240 : i32
    %634 = tpu.dynamic_rotate %597 by %c240_i32_393 dim 1 : vector<32x256xf32>, i32 -> vector<32x256xf32>
    %c7_394 = arith.constant 7 : index
    %c0_395 = arith.constant 0 : index
    %c0_396 = arith.constant 0 : index
    %635 = vector.load %arg6[%c7_394, %c0_395, %c0_396] : memref<9x32x256xf32, #tpu.memory_space<vmem>>, vector<1x32x256xf32>
    %636 = vector.shape_cast %635 : vector<1x32x256xf32> to vector<32x256xf32>
    %637 = arith.mulf %636, %634 : vector<32x256xf32>
    %638 = arith.addf %628, %637 : vector<32x256xf32>
    %c239_i32_397 = arith.constant 239 : i32
    %639 = tpu.dynamic_rotate %597 by %c239_i32_397 dim 1 : vector<32x256xf32>, i32 -> vector<32x256xf32>
    %c8_398 = arith.constant 8 : index
    %c0_399 = arith.constant 0 : index
    %c0_400 = arith.constant 0 : index
    %640 = vector.load %arg6[%c8_398, %c0_399, %c0_400] : memref<9x32x256xf32, #tpu.memory_space<vmem>>, vector<1x32x256xf32>
    %641 = vector.shape_cast %640 : vector<1x32x256xf32> to vector<32x256xf32>
    %642 = arith.mulf %641, %639 : vector<32x256xf32>
    %643 = arith.addf %633, %642 : vector<32x256xf32>
    %644 = arith.addf %643, %638 : vector<32x256xf32>
    %645 = vector.broadcast %3 : vector<32x1xf32> to vector<32x256xf32>
    %646 = arith.addf %644, %645 : vector<32x256xf32>
    %c1_401 = arith.constant 1 : index
    %c0_402 = arith.constant 0 : index
    %c0_403 = arith.constant 0 : index
    %647 = vector.load %arg8[%c1_401, %c0_402, %c0_403] : memref<2x32x256xf32, #tpu.memory_space<vmem>>, vector<1x32x256xf32>
    %648 = vector.shape_cast %647 : vector<1x32x256xf32> to vector<32x256xf32>
    %649 = vector.shape_cast %646 : vector<32x256xf32> to vector<1x32x256xf32>
    tpu.vector_store %arg8[%c1_401, %c0_402, %c0_403], %649 {strides = array<i32>} : memref<2x32x256xf32, #tpu.memory_space<vmem>>, vector<1x32x256xf32>,
    return
  }
  func.func @transform_0(%arg0: i32) -> (i32, i32, i32) {
    %c0_i32 = arith.constant 0 : i32
    %c0_i32_0 = arith.constant 0 : i32
    %c0_i32_1 = arith.constant 0 : i32
    return %arg0, %c0_i32, %c0_i32_0 : i32, i32, i32
  }
  func.func @transform_1(%arg0: i32) -> (i32, i32) {
    %c0_i32 = arith.constant 0 : i32
    %c0_i32_0 = arith.constant 0 : i32
    %c0_i32_1 = arith.constant 0 : i32
    return %c0_i32, %c0_i32_0 : i32, i32
  }
  func.func @transform_2(%arg0: i32) -> (i32, i32) {
    %c0_i32 = arith.constant 0 : i32
    %c0_i32_0 = arith.constant 0 : i32
    %c0_i32_1 = arith.constant 0 : i32
    return %c0_i32, %c0_i32_0 : i32, i32
  }
  func.func @transform_3(%arg0: i32) -> (i32, i32, i32) {
    %c0_i32 = arith.constant 0 : i32
    %c0_i32_0 = arith.constant 0 : i32
    %c0_i32_1 = arith.constant 0 : i32
    %c0_i32_2 = arith.constant 0 : i32
    return %c0_i32, %c0_i32_0, %c0_i32_1 : i32, i32, i32
  }
  func.func @transform_4(%arg0: i32) -> (i32, i32) {
    %c0_i32 = arith.constant 0 : i32
    %c0_i32_0 = arith.constant 0 : i32
    %c0_i32_1 = arith.constant 0 : i32
    return %c0_i32, %c0_i32_0 : i32, i32
  }
  func.func @transform_5(%arg0: i32) -> (i32, i32, i32) {
    %c0_i32 = arith.constant 0 : i32
    %c0_i32_0 = arith.constant 0 : i32
    %c0_i32_1 = arith.constant 0 : i32
    %c0_i32_2 = arith.constant 0 : i32
    return %c0_i32, %c0_i32_0, %c0_i32_1 : i32, i32, i32
  }
  func.func @transform_6(%arg0: i32) -> (i32, i32) {
    %c0_i32 = arith.constant 0 : i32
    %c0_i32_0 = arith.constant 0 : i32
    %c0_i32_1 = arith.constant 0 : i32
    return %c0_i32, %c0_i32_0 : i32, i32
  }
  func.func @transform_7(%arg0: i32) -> (i32, i32, i32) {
    %c0_i32 = arith.constant 0 : i32
    %c0_i32_0 = arith.constant 0 : i32
    %c0_i32_1 = arith.constant 0 : i32
    return %arg0, %c0_i32, %c0_i32_0 : i32, i32, i32
  }
}

</mosaic_0001>

<llo_original>
// kernel: token_mixer_pallas.1
$region0: #{token_mixer_pallas.1}
  #allocation0 [shape = 'u32[]', space=smem, size = 0x4, offset = 0x4, fixed_abs, tag = 'smem constant byte address 0x4 - core index']
  #allocation1 [shape = 'u32[144,128]{1,0:T(1,128)}', space=vmem, size = 0x12000, scoped, tag = 'internal scratch']
  %s0 = inlined_call_operand.vmem [shape: f32[2,32,256], index: 0, kind: input, shape index: {}]
  %s1 = inlined_call_operand.vmem [shape: f32[32,32], index: 1, kind: input, shape index: {}]
  %s2 = inlined_call_operand.vmem [shape: f32[32,1], index: 2, kind: input, shape index: {}]
  %s3 = inlined_call_operand.vmem [shape: f32[49,32,256], index: 3, kind: input, shape index: {}]
  %s4 = inlined_call_operand.vmem [shape: f32[32,1], index: 4, kind: input, shape index: {}]
  %s5 = inlined_call_operand.vmem [shape: f32[9,32,256], index: 5, kind: input, shape index: {}]
  %s6 = inlined_call_operand.vmem [shape: f32[32,1], index: 6, kind: input, shape index: {}]
  %s7 = inlined_call_operand.vmem [shape: f32[2,32,256], index: 7, kind: output, shape index: {}]
  %s8 = sld [smem:[#allocation0]]
  $region38: #{token_mixer_pallas.1} parent=0
    _
  %s10 = ssub.s32 1, %s8
  %s11 = scalar_select 0, %s10, %s8
  // Predicated region
  $region2: #{token_mixer_pallas.1} parent=0 // pred_check
    _
  $region3: #{token_mixer_pallas.1} parent=0 // pred_check_branch
    %13 = sbr.rel (0) target = $region5
  $region4: #{token_mixer_pallas.1} parent=0 // pred_region
    _
  $region5: #{token_mixer_pallas.1} parent=0 // pred_fallthru
    _
  // Predicated region
  $region6: #{token_mixer_pallas.1} parent=0 // pred_check
    _
  $region7: #{token_mixer_pallas.1} parent=0 // pred_check_branch
    %15 = sbr.rel (0) target = $region9
  $region8: #{token_mixer_pallas.1} parent=0 // pred_region
    _
  $region9: #{token_mixer_pallas.1} parent=0 // pred_fallthru
    _
  // Predicated region
  $region10: #{token_mixer_pallas.1} parent=0 // pred_check
    _
  $region11: #{token_mixer_pallas.1} parent=0 // pred_check_branch
    %17 = sbr.rel (0) target = $region13
  $region12: #{token_mixer_pallas.1} parent=0 // pred_region
    _
  $region13: #{token_mixer_pallas.1} parent=0 // pred_fallthru
    _
  // Predicated region
  $region14: #{token_mixer_pallas.1} parent=0 // pred_check
    _
  $region15: #{token_mixer_pallas.1} parent=0 // pred_check_branch
    %19 = sbr.rel (0) target = $region17
  $region16: #{token_mixer_pallas.1} parent=0 // pred_region
    _
  $region17: #{token_mixer_pallas.1} parent=0 // pred_fallthru
    _
  // Predicated region
  $region18: #{token_mixer_pallas.1} parent=0 // pred_check
    _
  $region19: #{token_mixer_pallas.1} parent=0 // pred_check_branch
    %21 = sbr.rel (0) target = $region21
  $region20: #{token_mixer_pallas.1} parent=0 // pred_region
    _
  $region21: #{token_mixer_pallas.1} parent=0 // pred_fallthru
    _
  // Predicated region
  $region22: #{token_mixer_pallas.1} parent=0 // pred_check
    _
  $region23: #{token_mixer_pallas.1} parent=0 // pred_check_branch
    %23 = sbr.rel (0) target = $region25
  $region24: #{token_mixer_pallas.1} parent=0 // pred_region
    _
  $region25: #{token_mixer_pallas.1} parent=0 // pred_fallthru
    _
  // Predicated region
  $region26: #{token_mixer_pallas.1} parent=0 // pred_check
    _
  $region27: #{token_mixer_pallas.1} parent=0 // pred_check_branch
    %25 = sbr.rel (0) target = $region29
  $region28: #{token_mixer_pallas.1} parent=0 // pred_region
    _
  $region29: #{token_mixer_pallas.1} parent=0 // pred_fallthru
    _
  %v26 = vld [vmem:[%s1] sm:$0xff]
  %v27 = vld [vmem:[%s1 + $0x8] sm:$0xff]
  %v28 = vld [vmem:[%s1 + $0x10] sm:$0xff]
  %v29 = vld [vmem:[%s1 + $0x18] sm:$0xff]
  %v30 = vld [vmem:[%s2] sm:$0xff]
  %v31 = vld [vmem:[%s2 + $0x8] sm:$0xff]
  %v32 = vld [vmem:[%s2 + $0x10] sm:$0xff]
  %v33 = vld [vmem:[%s2 + $0x18] sm:$0xff]
  %v34 = vld [vmem:[%s4] sm:$0xff]
  %v35 = vld [vmem:[%s4 + $0x8] sm:$0xff]
  %v36 = vld [vmem:[%s4 + $0x10] sm:$0xff]
  %v37 = vld [vmem:[%s4 + $0x18] sm:$0xff]
  %v38 = vld [vmem:[%s6] sm:$0xff]
  %v39 = vld [vmem:[%s6 + $0x8] sm:$0xff]
  %v40 = vld [vmem:[%s6 + $0x10] sm:$0xff]
  %v41 = vld [vmem:[%s6 + $0x18] sm:$0xff]
  %v42 = vld [vmem:[%s0] sm:$0xff]
  %v43 = vld [vmem:[%s0 + $0x8] sm:$0xff]
  %v44 = vld [vmem:[%s0 + $0x10] sm:$0xff]
  %v45 = vld [vmem:[%s0 + $0x18] sm:$0xff]
  %v46 = vld [vmem:[%s0 + $0x20] sm:$0xff]
  %v47 = vld [vmem:[%s0 + $0x28] sm:$0xff]
  %v48 = vld [vmem:[%s0 + $0x30] sm:$0xff]
  %v49 = vld [vmem:[%s0 + $0x38] sm:$0xff]
  %51 = vset.pattern.permute.xlu0 0
  %52 = vperm.xlu0 %51, %v30
  %v53 = vpop.permute.xlu0 %52
  %56 = vset.pattern.permute.xlu0 0
  %57 = vperm.xlu0 %56, %v31
  %v58 = vpop.permute.xlu0 %57
  %61 = vset.pattern.permute.xlu0 0
  %62 = vperm.xlu0 %61, %v32
  %v63 = vpop.permute.xlu0 %62
  %66 = vset.pattern.permute.xlu0 0
  %67 = vperm.xlu0 %66, %v33
  %v68 = vpop.permute.xlu0 %67
  %vm70 = vcmask 261120
  %v72 = vsel %vm70, %v26, 0
  %v75 = vsel %vm70, %v27, 0
  %v78 = vsel %vm70, %v28, 0
  %v81 = vsel %vm70, %v29, 0
  %83 = vmatprep.subr.mxu0 0.0
  %84 = vmatpush1.msra.mxu0 0.0
  %85 = vmatprep.subr.mxu0 0.0
  %86 = vmatpush1.msra.mxu0 0.0
  %87 = vmatprep.subr.mxu0 0.0
  %88 = vmatpush1.msra.mxu0 0.0
  %89 = vmatprep.subr.mxu0 0.0
  %90 = vmatpush1.msra.mxu0 0.0
  %91 = vmatprep.subr.mxu0 0.0
  %92 = vmatpush1.msra.mxu0 0.0
  %93 = vmatprep.subr.mxu0 0.0
  %94 = vmatpush1.msra.mxu0 0.0
  %95 = vmatprep.subr.mxu0 0.0
  %96 = vmatpush1.msra.mxu0 0.0
  %97 = vmatprep.subr.mxu0 0.0
  %98 = vmatpush1.msra.mxu0 0.0
  %99 = vmatprep.subr.mxu0 0.0
  %100 = vmatpush1.msra.mxu0 0.0
  %101 = vmatprep.subr.mxu0 0.0
  %102 = vmatpush1.msra.mxu0 0.0
  %103 = vmatprep.subr.mxu0 0.0
  %104 = vmatpush1.msra.mxu0 0.0
  %105 = vmatprep.subr.mxu0 0.0
  %106 = vmatpush1.msra.mxu0 0.0
  %107 = vmatprep.subr.mxu0 %v49
  %108 = vmatpush1.msra.mxu0 %v48
  %109 = vmatprep.subr.mxu0 %v47
  %110 = vmatpush1.msra.mxu0 %v46
  %111 = vmatprep.subr.mxu0 %v45
  %112 = vmatpush1.msra.mxu0 %v44
  %113 = vmatprep.subr.mxu0 %v43
  %114 = vmatpush1.msra.mxu0 %v42
  %115 = vmatprep.subr.mxu0 0.0
  %116 = vmatpush2.msra.mxu0 0.0
  %117 = vmatprep.subr.mxu0 0.0
  %118 = vmatpush2.msra.mxu0 0.0
  %119 = vmatprep.subr.mxu0 0.0
  %120 = vmatpush2.msra.mxu0 0.0
  %121 = vmatprep.subr.mxu0 0.0
  %122 = vmatpush2.msra.mxu0 0.0
  %123 = vmatprep.subr.mxu0 0.0
  %124 = vmatpush2.msra.mxu0 0.0
  %125 = vmatprep.subr.mxu0 0.0
  %126 = vmatpush2.msra.mxu0 0.0
  %127 = vmatprep.subr.mxu0 0.0
  %128 = vmatpush2.msra.mxu0 0.0
  %129 = vmatprep.subr.mxu0 0.0
  %130 = vmatpush2.msra.mxu0 0.0
  %131 = vmatprep.subr.mxu0 0.0
  %132 = vmatpush2.msra.mxu0 0.0
  %133 = vmatprep.subr.mxu0 0.0
  %134 = vmatpush2.msra.mxu0 0.0
  %135 = vmatprep.subr.mxu0 0.0
  %136 = vmatpush2.msra.mxu0 0.0
  %137 = vmatprep.subr.mxu0 0.0
  %138 = vmatpush2.msra.mxu0 0.0
  %139 = vmatprep.subr.mxu0 0.0
  %140 = vmatpush2.msra.mxu0 0.0
  %141 = vmatprep.subr.mxu0 0.0
  %142 = vmatpush2.msra.mxu0 0.0
  %143 = vmatprep.subr.mxu0 0.0
  %144 = vmatpush2.msra.mxu0 0.0
  %145 = vmatprep.subr.mxu0 0.0
  %146 = vmatpush2.msra.mxu0 0.0
  %147 = vmatprep.mubr.f32.mxu0 0.0
  %148 = vmatmul.mubr.f32.gmra.mxu0 %v72
  %v149 = vpop.f32.mrf.mxu0
  %v150 = vadd.f32 %v53, %v149
  %v151 = vpop.f32.mrf.mxu0
  %v152 = vadd.f32 %v53, %v151
  %153 = vmatprep.mubr.f32.mxu0 0.0
  %154 = vmatmul.mubr.f32.gmra.mxu0 %v75
  %v155 = vpop.f32.mrf.mxu0
  %v156 = vadd.f32 %v58, %v155
  %v157 = vpop.f32.mrf.mxu0
  %v158 = vadd.f32 %v58, %v157
  %159 = vmatprep.mubr.f32.mxu0 0.0
  %160 = vmatmul.mubr.f32.gmra.mxu0 %v78
  %v161 = vpop.f32.mrf.mxu0
  %v162 = vadd.f32 %v63, %v161
  %v163 = vpop.f32.mrf.mxu0
  %v164 = vadd.f32 %v63, %v163
  %165 = vmatprep.mubr.f32.mxu0 0.0
  %166 = vmatmul.mubr.f32.gmra.mxu0 %v81
  %v167 = vpop.f32.mrf.mxu0
  %v168 = vadd.f32 %v68, %v167
  %v169 = vpop.f32.mrf.mxu0
  %v170 = vadd.f32 %v68, %v169
  %171 = vdwg.mxu0
  %172 = vrot.lane.b32.xlu0 %v150, 51
  %v173 = vpop.permute.xlu0 %172
  %174 = vrot.lane.b32.xlu0 %v156, 51
  %v175 = vpop.permute.xlu0 %174
  %176 = vrot.lane.b32.xlu0 %v162, 51
  %v177 = vpop.permute.xlu0 %176
  %178 = vrot.lane.b32.xlu0 %v168, 51
  %v179 = vpop.permute.xlu0 %178
  %180 = vrot.lane.b32.xlu0 %v152, 51
  %v181 = vpop.permute.xlu0 %180
  %182 = vrot.lane.b32.xlu0 %v158, 51
  %v183 = vpop.permute.xlu0 %182
  %184 = vrot.lane.b32.xlu0 %v164, 51
  %v185 = vpop.permute.xlu0 %184
  %186 = vrot.lane.b32.xlu0 %v170, 51
  %v187 = vpop.permute.xlu0 %186
  %v188 = vlaneseq
  %v189 = vand.u32 %v188, 127
  %vm190 = vcmp.lt.s32.totalorder %v189, 51
  %v191 = vsel %vm190, %v173, %v181
  %v192 = vsel %vm190, %v175, %v183
  %v193 = vsel %vm190, %v177, %v185
  %v194 = vsel %vm190, %v179, %v187
  %v195 = vsel %vm190, %v181, %v173
  %v196 = vsel %vm190, %v183, %v175
  %v197 = vsel %vm190, %v185, %v177
  %v198 = vsel %vm190, %v187, %v179
  %v199 = vld [vmem:[%s3] sm:$0xff]
  %v200 = vld [vmem:[%s3 + $0x8] sm:$0xff]
  %v201 = vld [vmem:[%s3 + $0x10] sm:$0xff]
  %v202 = vld [vmem:[%s3 + $0x18] sm:$0xff]
  %v203 = vld [vmem:[%s3 + $0x20] sm:$0xff]
  %v204 = vld [vmem:[%s3 + $0x28] sm:$0xff]
  %v205 = vld [vmem:[%s3 + $0x30] sm:$0xff]
  %v206 = vld [vmem:[%s3 + $0x38] sm:$0xff]
  %v207 = vmul.f32 %v199, %v195
  %v208 = vmul.f32 %v200, %v191
  %v209 = vmul.f32 %v201, %v196
  %v210 = vmul.f32 %v202, %v192
  %v211 = vmul.f32 %v203, %v197
  %v212 = vmul.f32 %v204, %v193
  %v213 = vmul.f32 %v205, %v198
  %v214 = vmul.f32 %v206, %v194
  %v215 = vadd.f32 %v207, 0.0
  %v216 = vadd.f32 %v208, 0.0
  %v217 = vadd.f32 %v209, 0.0
  %v218 = vadd.f32 %v210, 0.0
  %v219 = vadd.f32 %v211, 0.0
  %v220 = vadd.f32 %v212, 0.0
  %v221 = vadd.f32 %v213, 0.0
  %v222 = vadd.f32 %v214, 0.0
  %223 = vrot.lane.b32.xlu0 %v150, 50
  %v224 = vpop.permute.xlu0 %223
  %225 = vrot.lane.b32.xlu0 %v156, 50
  %v226 = vpop.permute.xlu0 %225
  %227 = vrot.lane.b32.xlu0 %v162, 50
  %v228 = vpop.permute.xlu0 %227
  %229 = vrot.lane.b32.xlu0 %v168, 50
  %v230 = vpop.permute.xlu0 %229
  %231 = vrot.lane.b32.xlu0 %v152, 50
  %v232 = vpop.permute.xlu0 %231
  %233 = vrot.lane.b32.xlu0 %v158, 50
  %v234 = vpop.permute.xlu0 %233
  %235 = vrot.lane.b32.xlu0 %v164, 50
  %v236 = vpop.permute.xlu0 %235
  %237 = vrot.lane.b32.xlu0 %v170, 50
  %v238 = vpop.permute.xlu0 %237
  %vm239 = vcmp.lt.s32.totalorder %v189, 50
  %v240 = vsel %vm239, %v224, %v232
  %v241 = vsel %vm239, %v226, %v234
  %v242 = vsel %vm239, %v228, %v236
  %v243 = vsel %vm239, %v230, %v238
  %v244 = vsel %vm239, %v232, %v224
  %v245 = vsel %vm239, %v234, %v226
  %v246 = vsel %vm239, %v236, %v228
  %v247 = vsel %vm239, %v238, %v230
  %s248 = scalar_lea.vmem %s3, 64
  %v249 = vld [vmem:[%s248] sm:$0xff]
  %v250 = vld [vmem:[%s248 + $0x8] sm:$0xff]
  %v251 = vld [vmem:[%s248 + $0x10] sm:$0xff]
  %v252 = vld [vmem:[%s248 + $0x18] sm:$0xff]
  %v253 = vld [vmem:[%s248 + $0x20] sm:$0xff]
  %v254 = vld [vmem:[%s248 + $0x28] sm:$0xff]
  %v255 = vld [vmem:[%s248 + $0x30] sm:$0xff]
  %v256 = vld [vmem:[%s248 + $0x38] sm:$0xff]
  %v257 = vmul.f32 %v249, %v244
  %v258 = vmul.f32 %v250, %v240
  %v259 = vmul.f32 %v251, %v245
  %v260 = vmul.f32 %v252, %v241
  %v261 = vmul.f32 %v253, %v246
  %v262 = vmul.f32 %v254, %v242
  %v263 = vmul.f32 %v255, %v247
  %v264 = vmul.f32 %v256, %v243
  %v265 = vadd.f32 %v257, 0.0
  %v266 = vadd.f32 %v258, 0.0
  %v267 = vadd.f32 %v259, 0.0
  %v268 = vadd.f32 %v260, 0.0
  %v269 = vadd.f32 %v261, 0.0
  %v270 = vadd.f32 %v262, 0.0
  %v271 = vadd.f32 %v263, 0.0
  %v272 = vadd.f32 %v264, 0.0
  %273 = vrot.lane.b32.xlu0 %v150, 49
  %v274 = vpop.permute.xlu0 %273
  %275 = vrot.lane.b32.xlu0 %v156, 49
  %v276 = vpop.permute.xlu0 %275
  %277 = vrot.lane.b32.xlu0 %v162, 49
  %v278 = vpop.permute.xlu0 %277
  %279 = vrot.lane.b32.xlu0 %v168, 49
  %v280 = vpop.permute.xlu0 %279
  %281 = vrot.lane.b32.xlu0 %v152, 49
  %v282 = vpop.permute.xlu0 %281
  %283 = vrot.lane.b32.xlu0 %v158, 49
  %v284 = vpop.permute.xlu0 %283
  %285 = vrot.lane.b32.xlu0 %v164, 49
  %v286 = vpop.permute.xlu0 %285
  %287 = vrot.lane.b32.xlu0 %v170, 49
  %v288 = vpop.permute.xlu0 %287
  %vm289 = vcmp.lt.s32.totalorder %v189, 49
  %v290 = vsel %vm289, %v274, %v282
  %v291 = vsel %vm289, %v276, %v284
  %v292 = vsel %vm289, %v278, %v286
  %v293 = vsel %vm289, %v280, %v288
  %v294 = vsel %vm289, %v282, %v274
  %v295 = vsel %vm289, %v284, %v276
  %v296 = vsel %vm289, %v286, %v278
  %v297 = vsel %vm289, %v288, %v280
  %s298 = scalar_lea.vmem %s3, 128
  %v299 = vld [vmem:[%s298] sm:$0xff]
  %v300 = vld [vmem:[%s298 + $0x8] sm:$0xff]
  %v301 = vld [vmem:[%s298 + $0x10] sm:$0xff]
  %v302 = vld [vmem:[%s298 + $0x18] sm:$0xff]
  %v303 = vld [vmem:[%s298 + $0x20] sm:$0xff]
  %v304 = vld [vmem:[%s298 + $0x28] sm:$0xff]
  %v305 = vld [vmem:[%s298 + $0x30] sm:$0xff]
  %v306 = vld [vmem:[%s298 + $0x38] sm:$0xff]
  %v307 = vmul.f32 %v299, %v294
  %v308 = vmul.f32 %v300, %v290
  %v309 = vmul.f32 %v301, %v295
  %v310 = vmul.f32 %v302, %v291
  %v311 = vmul.f32 %v303, %v296
  %v312 = vmul.f32 %v304, %v292
  %v313 = vmul.f32 %v305, %v297
  %v314 = vmul.f32 %v306, %v293
  %v315 = vadd.f32 %v307, 0.0
  %v316 = vadd.f32 %v308, 0.0
  %v317 = vadd.f32 %v309, 0.0
  %v318 = vadd.f32 %v310, 0.0
  %v319 = vadd.f32 %v311, 0.0
  %v320 = vadd.f32 %v312, 0.0
  %v321 = vadd.f32 %v313, 0.0
  %v322 = vadd.f32 %v314, 0.0
  %323 = vrot.lane.b32.xlu0 %v150, 48
  %v324 = vpop.permute.xlu0 %323
  %325 = vrot.lane.b32.xlu0 %v156, 48
  %v326 = vpop.permute.xlu0 %325
  %327 = vrot.lane.b32.xlu0 %v162, 48
  %v328 = vpop.permute.xlu0 %327
  %329 = vrot.lane.b32.xlu0 %v168, 48
  %v330 = vpop.permute.xlu0 %329
  %331 = vrot.lane.b32.xlu0 %v152, 48
  %v332 = vpop.permute.xlu0 %331
  %333 = vrot.lane.b32.xlu0 %v158, 48
  %v334 = vpop.permute.xlu0 %333
  %335 = vrot.lane.b32.xlu0 %v164, 48
  %v336 = vpop.permute.xlu0 %335
  %337 = vrot.lane.b32.xlu0 %v170, 48
  %v338 = vpop.permute.xlu0 %337
  %vm339 = vcmp.lt.s32.totalorder %v189, 48
  %v340 = vsel %vm339, %v324, %v332
  %v341 = vsel %vm339, %v326, %v334
  %v342 = vsel %vm339, %v328, %v336
  %v343 = vsel %vm339, %v330, %v338
  %v344 = vsel %vm339, %v332, %v324
  %v345 = vsel %vm339, %v334, %v326
  %v346 = vsel %vm339, %v336, %v328
  %v347 = vsel %vm339, %v338, %v330
  %s348 = scalar_lea.vmem %s3, 192
  %v349 = vld [vmem:[%s348] sm:$0xff]
  %v350 = vld [vmem:[%s348 + $0x8] sm:$0xff]
  %v351 = vld [vmem:[%s348 + $0x10] sm:$0xff]
  %v352 = vld [vmem:[%s348 + $0x18] sm:$0xff]
  %v353 = vld [vmem:[%s348 + $0x20] sm:$0xff]
  %v354 = vld [vmem:[%s348 + $0x28] sm:$0xff]
  %v355 = vld [vmem:[%s348 + $0x30] sm:$0xff]
  %v356 = vld [vmem:[%s348 + $0x38] sm:$0xff]
  %v357 = vmul.f32 %v349, %v344
  %v358 = vmul.f32 %v350, %v340
  %v359 = vmul.f32 %v351, %v345
  %v360 = vmul.f32 %v352, %v341
  %v361 = vmul.f32 %v353, %v346
  %v362 = vmul.f32 %v354, %v342
  %v363 = vmul.f32 %v355, %v347
  %v364 = vmul.f32 %v356, %v343
  %v365 = vadd.f32 %v357, 0.0
  %v366 = vadd.f32 %v358, 0.0
  %v367 = vadd.f32 %v359, 0.0
  %v368 = vadd.f32 %v360, 0.0
  %v369 = vadd.f32 %v361, 0.0
  %v370 = vadd.f32 %v362, 0.0
  %v371 = vadd.f32 %v363, 0.0
  %v372 = vadd.f32 %v364, 0.0
  %373 = vrot.lane.b32.xlu0 %v150, 47
  %v374 = vpop.permute.xlu0 %373
  %375 = vrot.lane.b32.xlu0 %v156, 47
  %v376 = vpop.permute.xlu0 %375
  %377 = vrot.lane.b32.xlu0 %v162, 47
  %v378 = vpop.permute.xlu0 %377
  %379 = vrot.lane.b32.xlu0 %v168, 47
  %v380 = vpop.permute.xlu0 %379
  %381 = vrot.lane.b32.xlu0 %v152, 47
  %v382 = vpop.permute.xlu0 %381
  %383 = vrot.lane.b32.xlu0 %v158, 47
  %v384 = vpop.permute.xlu0 %383
  %385 = vrot.lane.b32.xlu0 %v164, 47
  %v386 = vpop.permute.xlu0 %385
  %387 = vrot.lane.b32.xlu0 %v170, 47
  %v388 = vpop.permute.xlu0 %387
  %vm389 = vcmp.lt.s32.totalorder %v189, 47
  %v390 = vsel %vm389, %v374, %v382
  %v391 = vsel %vm389, %v376, %v384
  %v392 = vsel %vm389, %v378, %v386
  %v393 = vsel %vm389, %v380, %v388
  %v394 = vsel %vm389, %v382, %v374
  %v395 = vsel %vm389, %v384, %v376
  %v396 = vsel %vm389, %v386, %v378
  %v397 = vsel %vm389, %v388, %v380
  %s398 = scalar_lea.vmem %s3, 256
  %v399 = vld [vmem:[%s398] sm:$0xff]
  %v400 = vld [vmem:[%s398 + $0x8] sm:$0xff]
  %v401 = vld [vmem:[%s398 + $0x10] sm:$0xff]
  %v402 = vld [vmem:[%s398 + $0x18] sm:$0xff]
  %v403 = vld [vmem:[%s398 + $0x20] sm:$0xff]
  %v404 = vld [vmem:[%s398 + $0x28] sm:$0xff]
  %v405 = vld [vmem:[%s398 + $0x30] sm:$0xff]
  %v406 = vld [vmem:[%s398 + $0x38] sm:$0xff]
  %v407 = vmul.f32 %v399, %v394
  %v408 = vmul.f32 %v400, %v390
  %v409 = vmul.f32 %v401, %v395
  %v410 = vmul.f32 %v402, %v391
  %v411 = vmul.f32 %v403, %v396
  %v412 = vmul.f32 %v404, %v392
  %v413 = vmul.f32 %v405, %v397
  %v414 = vmul.f32 %v406, %v393
  %v415 = vadd.f32 %v215, %v407
  %v416 = vadd.f32 %v216, %v408
  %v417 = vadd.f32 %v217, %v409
  %v418 = vadd.f32 %v218, %v410
  %v419 = vadd.f32 %v219, %v411
  %v420 = vadd.f32 %v220, %v412
  %v421 = vadd.f32 %v221, %v413
  %v422 = vadd.f32 %v222, %v414
  %423 = vrot.lane.b32.xlu0 %v150, 46
  %v424 = vpop.permute.xlu0 %423
  %425 = vrot.lane.b32.xlu0 %v156, 46
  %v426 = vpop.permute.xlu0 %425
  %427 = vrot.lane.b32.xlu0 %v162, 46
  %v428 = vpop.permute.xlu0 %427
  %429 = vrot.lane.b32.xlu0 %v168, 46
  %v430 = vpop.permute.xlu0 %429
  %431 = vrot.lane.b32.xlu0 %v152, 46
  %v432 = vpop.permute.xlu0 %431
  %433 = vrot.lane.b32.xlu0 %v158, 46
  %v434 = vpop.permute.xlu0 %433
  %435 = vrot.lane.b32.xlu0 %v164, 46
  %v436 = vpop.permute.xlu0 %435
  %437 = vrot.lane.b32.xlu0 %v170, 46
  %v438 = vpop.permute.xlu0 %437
  %vm439 = vcmp.lt.s32.totalorder %v189, 46
  %v440 = vsel %vm439, %v424, %v432
  %v441 = vsel %vm439, %v426, %v434
  %v442 = vsel %vm439, %v428, %v436
  %v443 = vsel %vm439, %v430, %v438
  %v444 = vsel %vm439, %v432, %v424
  %v445 = vsel %vm439, %v434, %v426
  %v446 = vsel %vm439, %v436, %v428
  %v447 = vsel %vm439, %v438, %v430
  %s448 = scalar_lea.vmem %s3, 320
  %v449 = vld [vmem:[%s448] sm:$0xff]
  %v450 = vld [vmem:[%s448 + $0x8] sm:$0xff]
  %v451 = vld [vmem:[%s448 + $0x10] sm:$0xff]
  %v452 = vld [vmem:[%s448 + $0x18] sm:$0xff]
  %v453 = vld [vmem:[%s448 + $0x20] sm:$0xff]
  %v454 = vld [vmem:[%s448 + $0x28] sm:$0xff]
  %v455 = vld [vmem:[%s448 + $0x30] sm:$0xff]
  %v456 = vld [vmem:[%s448 + $0x38] sm:$0xff]
  %v457 = vmul.f32 %v449, %v444
  %v458 = vmul.f32 %v450, %v440
  %v459 = vmul.f32 %v451, %v445
  %v460 = vmul.f32 %v452, %v441
  %v461 = vmul.f32 %v453, %v446
  %v462 = vmul.f32 %v454, %v442
  %v463 = vmul.f32 %v455, %v447
  %v464 = vmul.f32 %v456, %v443
  %v465 = vadd.f32 %v265, %v457
  %v466 = vadd.f32 %v266, %v458
  %v467 = vadd.f32 %v267, %v459
  %v468 = vadd.f32 %v268, %v460
  %v469 = vadd.f32 %v269, %v461
  %v470 = vadd.f32 %v270, %v462
  %v471 = vadd.f32 %v271, %v463
  %v472 = vadd.f32 %v272, %v464
  %473 = vrot.lane.b32.xlu0 %v150, 45
  %v474 = vpop.permute.xlu0 %473
  %475 = vrot.lane.b32.xlu0 %v156, 45
  %v476 = vpop.permute.xlu0 %475
  %477 = vrot.lane.b32.xlu0 %v162, 45
  %v478 = vpop.permute.xlu0 %477
  %479 = vrot.lane.b32.xlu0 %v168, 45
  %v480 = vpop.permute.xlu0 %479
  %481 = vrot.lane.b32.xlu0 %v152, 45
  %v482 = vpop.permute.xlu0 %481
  %483 = vrot.lane.b32.xlu0 %v158, 45
  %v484 = vpop.permute.xlu0 %483
  %485 = vrot.lane.b32.xlu0 %v164, 45
  %v486 = vpop.permute.xlu0 %485
  %487 = vrot.lane.b32.xlu0 %v170, 45
  %v488 = vpop.permute.xlu0 %487
  %vm489 = vcmp.lt.s32.totalorder %v189, 45
  %v490 = vsel %vm489, %v474, %v482
  %v491 = vsel %vm489, %v476, %v484
  %v492 = vsel %vm489, %v478, %v486
  %v493 = vsel %vm489, %v480, %v488
  %v494 = vsel %vm489, %v482, %v474
  %v495 = vsel %vm489, %v484, %v476
  %v496 = vsel %vm489, %v486, %v478
  %v497 = vsel %vm489, %v488, %v480
  %s498 = scalar_lea.vmem %s3, 384
  %v499 = vld [vmem:[%s498] sm:$0xff]
  %v500 = vld [vmem:[%s498 + $0x8] sm:$0xff]
  %v501 = vld [vmem:[%s498 + $0x10] sm:$0xff]
  %v502 = vld [vmem:[%s498 + $0x18] sm:$0xff]
  %v503 = vld [vmem:[%s498 + $0x20] sm:$0xff]
  %v504 = vld [vmem:[%s498 + $0x28] sm:$0xff]
  %v505 = vld [vmem:[%s498 + $0x30] sm:$0xff]
  %v506 = vld [vmem:[%s498 + $0x38] sm:$0xff]
  %v507 = vmul.f32 %v499, %v494
  %v508 = vmul.f32 %v500, %v490
  %v509 = vmul.f32 %v501, %v495
  %v510 = vmul.f32 %v502, %v491
  %v511 = vmul.f32 %v503, %v496
  %v512 = vmul.f32 %v504, %v492
  %v513 = vmul.f32 %v505, %v497
  %v514 = vmul.f32 %v506, %v493
  %v515 = vadd.f32 %v315, %v507
  %v516 = vadd.f32 %v316, %v508
  %v517 = vadd.f32 %v317, %v509
  %v518 = vadd.f32 %v318, %v510
  %v519 = vadd.f32 %v319, %v511
  %v520 = vadd.f32 %v320, %v512
  %v521 = vadd.f32 %v321, %v513
  %v522 = vadd.f32 %v322, %v514
  %523 = vrot.lane.b32.xlu0 %v150, 35
  %v524 = vpop.permute.xlu0 %523
  %525 = vrot.lane.b32.xlu0 %v156, 35
  %v526 = vpop.permute.xlu0 %525
  %527 = vrot.lane.b32.xlu0 %v162, 35
  %v528 = vpop.permute.xlu0 %527
  %529 = vrot.lane.b32.xlu0 %v168, 35
  %v530 = vpop.permute.xlu0 %529
  %531 = vrot.lane.b32.xlu0 %v152, 35
  %v532 = vpop.permute.xlu0 %531
  %533 = vrot.lane.b32.xlu0 %v158, 35
  %v534 = vpop.permute.xlu0 %533
  %535 = vrot.lane.b32.xlu0 %v164, 35
  %v536 = vpop.permute.xlu0 %535
  %537 = vrot.lane.b32.xlu0 %v170, 35
  %v538 = vpop.permute.xlu0 %537
  %vm539 = vcmp.lt.s32.totalorder %v189, 35
  %v540 = vsel %vm539, %v524, %v532
  %v541 = vsel %vm539, %v526, %v534
  %v542 = vsel %vm539, %v528, %v536
  %v543 = vsel %vm539, %v530, %v538
  %v544 = vsel %vm539, %v532, %v524
  %v545 = vsel %vm539, %v534, %v526
  %v546 = vsel %vm539, %v536, %v528
  %v547 = vsel %vm539, %v538, %v530
  %s548 = scalar_lea.vmem %s3, 448
  %v549 = vld [vmem:[%s548] sm:$0xff]
  %v550 = vld [vmem:[%s548 + $0x8] sm:$0xff]
  %v551 = vld [vmem:[%s548 + $0x10] sm:$0xff]
  %v552 = vld [vmem:[%s548 + $0x18] sm:$0xff]
  %v553 = vld [vmem:[%s548 + $0x20] sm:$0xff]
  %v554 = vld [vmem:[%s548 + $0x28] sm:$0xff]
  %v555 = vld [vmem:[%s548 + $0x30] sm:$0xff]
  %v556 = vld [vmem:[%s548 + $0x38] sm:$0xff]
  %v557 = vmul.f32 %v549, %v544
  %v558 = vmul.f32 %v550, %v540
  %v559 = vmul.f32 %v551, %v545
  %v560 = vmul.f32 %v552, %v541
  %v561 = vmul.f32 %v553, %v546
  %v562 = vmul.f32 %v554, %v542
  %v563 = vmul.f32 %v555, %v547
  %v564 = vmul.f32 %v556, %v543
  %v565 = vadd.f32 %v365, %v557
  %v566 = vadd.f32 %v366, %v558
  %v567 = vadd.f32 %v367, %v559
  %v568 = vadd.f32 %v368, %v560
  %v569 = vadd.f32 %v369, %v561
  %v570 = vadd.f32 %v370, %v562
  %v571 = vadd.f32 %v371, %v563
  %v572 = vadd.f32 %v372, %v564
  %573 = vrot.lane.b32.xlu0 %v150, 34
  %v574 = vpop.permute.xlu0 %573
  %575 = vrot.lane.b32.xlu0 %v156, 34
  %v576 = vpop.permute.xlu0 %575
  %577 = vrot.lane.b32.xlu0 %v162, 34
  %v578 = vpop.permute.xlu0 %577
  %579 = vrot.lane.b32.xlu0 %v168, 34
  %v580 = vpop.permute.xlu0 %579
  %581 = vrot.lane.b32.xlu0 %v152, 34
  %v582 = vpop.permute.xlu0 %581
  %583 = vrot.lane.b32.xlu0 %v158, 34
  %v584 = vpop.permute.xlu0 %583
  %585 = vrot.lane.b32.xlu0 %v164, 34
  %v586 = vpop.permute.xlu0 %585
  %587 = vrot.lane.b32.xlu0 %v170, 34
  %v588 = vpop.permute.xlu0 %587
  %vm589 = vcmp.lt.s32.totalorder %v189, 34
  %v590 = vsel %vm589, %v574, %v582
  %v591 = vsel %vm589, %v576, %v584
  %v592 = vsel %vm589, %v578, %v586
  %v593 = vsel %vm589, %v580, %v588
  %v594 = vsel %vm589, %v582, %v574
  %v595 = vsel %vm589, %v584, %v576
  %v596 = vsel %vm589, %v586, %v578
  %v597 = vsel %vm589, %v588, %v580
  %s598 = scalar_lea.vmem %s3, 512
  %v599 = vld [vmem:[%s598] sm:$0xff]
  %v600 = vld [vmem:[%s598 + $0x8] sm:$0xff]
  %v601 = vld [vmem:[%s598 + $0x10] sm:$0xff]
  %v602 = vld [vmem:[%s598 + $0x18] sm:$0xff]
  %v603 = vld [vmem:[%s598 + $0x20] sm:$0xff]
  %v604 = vld [vmem:[%s598 + $0x28] sm:$0xff]
  %v605 = vld [vmem:[%s598 + $0x30] sm:$0xff]
  %v606 = vld [vmem:[%s598 + $0x38] sm:$0xff]
  %v607 = vmul.f32 %v599, %v594
  %v608 = vmul.f32 %v600, %v590
  %v609 = vmul.f32 %v601, %v595
  %v610 = vmul.f32 %v602, %v591
  %v611 = vmul.f32 %v603, %v596
  %v612 = vmul.f32 %v604, %v592
  %v613 = vmul.f32 %v605, %v597
  %v614 = vmul.f32 %v606, %v593
  %v615 = vadd.f32 %v415, %v607
  %v616 = vadd.f32 %v416, %v608
  %v617 = vadd.f32 %v417, %v609
  %v618 = vadd.f32 %v418, %v610
  %v619 = vadd.f32 %v419, %v611
  %v620 = vadd.f32 %v420, %v612
  %v621 = vadd.f32 %v421, %v613
  %v622 = vadd.f32 %v422, %v614
  %623 = vrot.lane.b32.xlu0 %v150, 33
  %v624 = vpop.permute.xlu0 %623
  %625 = vrot.lane.b32.xlu0 %v156, 33
  %v626 = vpop.permute.xlu0 %625
  %627 = vrot.lane.b32.xlu0 %v162, 33
  %v628 = vpop.permute.xlu0 %627
  %629 = vrot.lane.b32.xlu0 %v168, 33
  %v630 = vpop.permute.xlu0 %629
  %631 = vrot.lane.b32.xlu0 %v152, 33
  %v632 = vpop.permute.xlu0 %631
  %633 = vrot.lane.b32.xlu0 %v158, 33
  %v634 = vpop.permute.xlu0 %633
  %635 = vrot.lane.b32.xlu0 %v164, 33
  %v636 = vpop.permute.xlu0 %635
  %637 = vrot.lane.b32.xlu0 %v170, 33
  %v638 = vpop.permute.xlu0 %637
  %vm639 = vcmp.lt.s32.totalorder %v189, 33
  %v640 = vsel %vm639, %v624, %v632
  %v641 = vsel %vm639, %v626, %v634
  %v642 = vsel %vm639, %v628, %v636
  %v643 = vsel %vm639, %v630, %v638
  %v644 = vsel %vm639, %v632, %v624
  %v645 = vsel %vm639, %v634, %v626
  %v646 = vsel %vm639, %v636, %v628
  %v647 = vsel %vm639, %v638, %v630
  %s648 = scalar_lea.vmem %s3, 576
  %v649 = vld [vmem:[%s648] sm:$0xff]
  %v650 = vld [vmem:[%s648 + $0x8] sm:$0xff]
  %v651 = vld [vmem:[%s648 + $0x10] sm:$0xff]
  %v652 = vld [vmem:[%s648 + $0x18] sm:$0xff]
  %v653 = vld [vmem:[%s648 + $0x20] sm:$0xff]
  %v654 = vld [vmem:[%s648 + $0x28] sm:$0xff]
  %v655 = vld [vmem:[%s648 + $0x30] sm:$0xff]
  %v656 = vld [vmem:[%s648 + $0x38] sm:$0xff]
  %v657 = vmul.f32 %v649, %v644
  %v658 = vmul.f32 %v650, %v640
  %v659 = vmul.f32 %v651, %v645
  %v660 = vmul.f32 %v652, %v641
  %v661 = vmul.f32 %v653, %v646
  %v662 = vmul.f32 %v654, %v642
  %v663 = vmul.f32 %v655, %v647
  %v664 = vmul.f32 %v656, %v643
  %v665 = vadd.f32 %v465, %v657
  %v666 = vadd.f32 %v466, %v658
  %v667 = vadd.f32 %v467, %v659
  %v668 = vadd.f32 %v468, %v660
  %v669 = vadd.f32 %v469, %v661
  %v670 = vadd.f32 %v470, %v662
  %v671 = vadd.f32 %v471, %v663
  %v672 = vadd.f32 %v472, %v664
  %673 = vrot.lane.b32.xlu0 %v150, 32
  %v674 = vpop.permute.xlu0 %673
  %675 = vrot.lane.b32.xlu0 %v156, 32
  %v676 = vpop.permute.xlu0 %675
  %677 = vrot.lane.b32.xlu0 %v162, 32
  %v678 = vpop.permute.xlu0 %677
  %679 = vrot.lane.b32.xlu0 %v168, 32
  %v680 = vpop.permute.xlu0 %679
  %681 = vrot.lane.b32.xlu0 %v152, 32
  %v682 = vpop.permute.xlu0 %681
  %683 = vrot.lane.b32.xlu0 %v158, 32
  %v684 = vpop.permute.xlu0 %683
  %685 = vrot.lane.b32.xlu0 %v164, 32
  %v686 = vpop.permute.xlu0 %685
  %687 = vrot.lane.b32.xlu0 %v170, 32
  %v688 = vpop.permute.xlu0 %687
  %vm689 = vcmp.lt.s32.totalorder %v189, 32
  %v690 = vsel %vm689, %v674, %v682
  %v691 = vsel %vm689, %v676, %v684
  %v692 = vsel %vm689, %v678, %v686
  %v693 = vsel %vm689, %v680, %v688
  %v694 = vsel %vm689, %v682, %v674
  %v695 = vsel %vm689, %v684, %v676
  %v696 = vsel %vm689, %v686, %v678
  %v697 = vsel %vm689, %v688, %v680
  %s698 = scalar_lea.vmem %s3, 640
  %v699 = vld [vmem:[%s698] sm:$0xff]
  %v700 = vld [vmem:[%s698 + $0x8] sm:$0xff]
  %v701 = vld [vmem:[%s698 + $0x10] sm:$0xff]
  %v702 = vld [vmem:[%s698 + $0x18] sm:$0xff]
  %v703 = vld [vmem:[%s698 + $0x20] sm:$0xff]
  %v704 = vld [vmem:[%s698 + $0x28] sm:$0xff]
  %v705 = vld [vmem:[%s698 + $0x30] sm:$0xff]
  %v706 = vld [vmem:[%s698 + $0x38] sm:$0xff]
  %v707 = vmul.f32 %v699, %v694
  %v708 = vmul.f32 %v700, %v690
  %v709 = vmul.f32 %v701, %v695
  %v710 = vmul.f32 %v702, %v691
  %v711 = vmul.f32 %v703, %v696
  %v712 = vmul.f32 %v704, %v692
  %v713 = vmul.f32 %v705, %v697
  %v714 = vmul.f32 %v706, %v693
  %v715 = vadd.f32 %v515, %v707
  %v716 = vadd.f32 %v516, %v708
  %v717 = vadd.f32 %v517, %v709
  %v718 = vadd.f32 %v518, %v710
  %v719 = vadd.f32 %v519, %v711
  %v720 = vadd.f32 %v520, %v712
  %v721 = vadd.f32 %v521, %v713
  %v722 = vadd.f32 %v522, %v714
  %723 = vrot.lane.b32.xlu0 %v150, 31
  %v724 = vpop.permute.xlu0 %723
  %725 = vrot.lane.b32.xlu0 %v156, 31
  %v726 = vpop.permute.xlu0 %725
  %727 = vrot.lane.b32.xlu0 %v162, 31
  %v728 = vpop.permute.xlu0 %727
  %729 = vrot.lane.b32.xlu0 %v168, 31
  %v730 = vpop.permute.xlu0 %729
  %731 = vrot.lane.b32.xlu0 %v152, 31
  %v732 = vpop.permute.xlu0 %731
  %733 = vrot.lane.b32.xlu0 %v158, 31
  %v734 = vpop.permute.xlu0 %733
  %735 = vrot.lane.b32.xlu0 %v164, 31
  %v736 = vpop.permute.xlu0 %735
  %737 = vrot.lane.b32.xlu0 %v170, 31
  %v738 = vpop.permute.xlu0 %737
  %vm739 = vcmp.lt.s32.totalorder %v189, 31
  %v740 = vsel %vm739, %v724, %v732
  %v741 = vsel %vm739, %v726, %v734
  %v742 = vsel %vm739, %v728, %v736
  %v743 = vsel %vm739, %v730, %v738
  %v744 = vsel %vm739, %v732, %v724
  %v745 = vsel %vm739, %v734, %v726
  %v746 = vsel %vm739, %v736, %v728
  %v747 = vsel %vm739, %v738, %v730
  %s748 = scalar_lea.vmem %s3, 704
  %v749 = vld [vmem:[%s748] sm:$0xff]
  %v750 = vld [vmem:[%s748 + $0x8] sm:$0xff]
  %v751 = vld [vmem:[%s748 + $0x10] sm:$0xff]
  %v752 = vld [vmem:[%s748 + $0x18] sm:$0xff]
  %v753 = vld [vmem:[%s748 + $0x20] sm:$0xff]
  %v754 = vld [vmem:[%s748 + $0x28] sm:$0xff]
  %v755 = vld [vmem:[%s748 + $0x30] sm:$0xff]
  %v756 = vld [vmem:[%s748 + $0x38] sm:$0xff]
  %v757 = vmul.f32 %v749, %v744
  %v758 = vmul.f32 %v750, %v740
  %v759 = vmul.f32 %v751, %v745
  %v760 = vmul.f32 %v752, %v741
  %v761 = vmul.f32 %v753, %v746
  %v762 = vmul.f32 %v754, %v742
  %v763 = vmul.f32 %v755, %v747
  %v764 = vmul.f32 %v756, %v743
  %v765 = vadd.f32 %v565, %v757
  %v766 = vadd.f32 %v566, %v758
  %v767 = vadd.f32 %v567, %v759
  %v768 = vadd.f32 %v568, %v760
  %v769 = vadd.f32 %v569, %v761
  %v770 = vadd.f32 %v570, %v762
  %v771 = vadd.f32 %v571, %v763
  %v772 = vadd.f32 %v572, %v764
  %773 = vrot.lane.b32.xlu0 %v150, 30
  %v774 = vpop.permute.xlu0 %773
  %775 = vrot.lane.b32.xlu0 %v156, 30
  %v776 = vpop.permute.xlu0 %775
  %777 = vrot.lane.b32.xlu0 %v162, 30
  %v778 = vpop.permute.xlu0 %777
  %779 = vrot.lane.b32.xlu0 %v168, 30
  %v780 = vpop.permute.xlu0 %779
  %781 = vrot.lane.b32.xlu0 %v152, 30
  %v782 = vpop.permute.xlu0 %781
  %783 = vrot.lane.b32.xlu0 %v158, 30
  %v784 = vpop.permute.xlu0 %783
  %785 = vrot.lane.b32.xlu0 %v164, 30
  %v786 = vpop.permute.xlu0 %785
  %787 = vrot.lane.b32.xlu0 %v170, 30
  %v788 = vpop.permute.xlu0 %787
  %vm789 = vcmp.lt.s32.totalorder %v189, 30
  %v790 = vsel %vm789, %v774, %v782
  %v791 = vsel %vm789, %v776, %v784
  %v792 = vsel %vm789, %v778, %v786
  %v793 = vsel %vm789, %v780, %v788
  %v794 = vsel %vm789, %v782, %v774
  %v795 = vsel %vm789, %v784, %v776
  %v796 = vsel %vm789, %v786, %v778
  %v797 = vsel %vm789, %v788, %v780
  %s798 = scalar_lea.vmem %s3, 768
  %v799 = vld [vmem:[%s798] sm:$0xff]
  %v800 = vld [vmem:[%s798 + $0x8] sm:$0xff]
  %v801 = vld [vmem:[%s798 + $0x10] sm:$0xff]
  %v802 = vld [vmem:[%s798 + $0x18] sm:$0xff]
  %v803 = vld [vmem:[%s798 + $0x20] sm:$0xff]
  %v804 = vld [vmem:[%s798 + $0x28] sm:$0xff]
  %v805 = vld [vmem:[%s798 + $0x30] sm:$0xff]
  %v806 = vld [vmem:[%s798 + $0x38] sm:$0xff]
  %v807 = vmul.f32 %v799, %v794
  %v808 = vmul.f32 %v800, %v790
  %v809 = vmul.f32 %v801, %v795
  %v810 = vmul.f32 %v802, %v791
  %v811 = vmul.f32 %v803, %v796
  %v812 = vmul.f32 %v804, %v792
  %v813 = vmul.f32 %v805, %v797
  %v814 = vmul.f32 %v806, %v793
  %v815 = vadd.f32 %v615, %v807
  %v816 = vadd.f32 %v616, %v808
  %v817 = vadd.f32 %v617, %v809
  %v818 = vadd.f32 %v618, %v810
  %v819 = vadd.f32 %v619, %v811
  %v820 = vadd.f32 %v620, %v812
  %v821 = vadd.f32 %v621, %v813
  %v822 = vadd.f32 %v622, %v814
  %823 = vrot.lane.b32.xlu0 %v150, 29
  %v824 = vpop.permute.xlu0 %823
  %825 = vrot.lane.b32.xlu0 %v156, 29
  %v826 = vpop.permute.xlu0 %825
  %827 = vrot.lane.b32.xlu0 %v162, 29
  %v828 = vpop.permute.xlu0 %827
  %829 = vrot.lane.b32.xlu0 %v168, 29
  %v830 = vpop.permute.xlu0 %829
  %831 = vrot.lane.b32.xlu0 %v152, 29
  %v832 = vpop.permute.xlu0 %831
  %833 = vrot.lane.b32.xlu0 %v158, 29
  %v834 = vpop.permute.xlu0 %833
  %835 = vrot.lane.b32.xlu0 %v164, 29
  %v836 = vpop.permute.xlu0 %835
  %837 = vrot.lane.b32.xlu0 %v170, 29
  %v838 = vpop.permute.xlu0 %837
  %vm839 = vcmp.lt.s32.totalorder %v189, 29
  %v840 = vsel %vm839, %v824, %v832
  %v841 = vsel %vm839, %v826, %v834
  %v842 = vsel %vm839, %v828, %v836
  %v843 = vsel %vm839, %v830, %v838
  %v844 = vsel %vm839, %v832, %v824
  %v845 = vsel %vm839, %v834, %v826
  %v846 = vsel %vm839, %v836, %v828
  %v847 = vsel %vm839, %v838, %v830
  %s848 = scalar_lea.vmem %s3, 832
  %v849 = vld [vmem:[%s848] sm:$0xff]
  %v850 = vld [vmem:[%s848 + $0x8] sm:$0xff]
  %v851 = vld [vmem:[%s848 + $0x10] sm:$0xff]
  %v852 = vld [vmem:[%s848 + $0x18] sm:$0xff]
  %v853 = vld [vmem:[%s848 + $0x20] sm:$0xff]
  %v854 = vld [vmem:[%s848 + $0x28] sm:$0xff]
  %v855 = vld [vmem:[%s848 + $0x30] sm:$0xff]
  %v856 = vld [vmem:[%s848 + $0x38] sm:$0xff]
  %v857 = vmul.f32 %v849, %v844
  %v858 = vmul.f32 %v850, %v840
  %v859 = vmul.f32 %v851, %v845
  %v860 = vmul.f32 %v852, %v841
  %v861 = vmul.f32 %v853, %v846
  %v862 = vmul.f32 %v854, %v842
  %v863 = vmul.f32 %v855, %v847
  %v864 = vmul.f32 %v856, %v843
  %v865 = vadd.f32 %v665, %v857
  %v866 = vadd.f32 %v666, %v858
  %v867 = vadd.f32 %v667, %v859
  %v868 = vadd.f32 %v668, %v860
  %v869 = vadd.f32 %v669, %v861
  %v870 = vadd.f32 %v670, %v862
  %v871 = vadd.f32 %v671, %v863
  %v872 = vadd.f32 %v672, %v864
  %873 = vrot.lane.b32.xlu0 %v150, 19
  %v874 = vpop.permute.xlu0 %873
  %875 = vrot.lane.b32.xlu0 %v156, 19
  %v876 = vpop.permute.xlu0 %875
  %877 = vrot.lane.b32.xlu0 %v162, 19
  %v878 = vpop.permute.xlu0 %877
  %879 = vrot.lane.b32.xlu0 %v168, 19
  %v880 = vpop.permute.xlu0 %879
  %881 = vrot.lane.b32.xlu0 %v152, 19
  %v882 = vpop.permute.xlu0 %881
  %883 = vrot.lane.b32.xlu0 %v158, 19
  %v884 = vpop.permute.xlu0 %883
  %885 = vrot.lane.b32.xlu0 %v164, 19
  %v886 = vpop.permute.xlu0 %885
  %887 = vrot.lane.b32.xlu0 %v170, 19
  %v888 = vpop.permute.xlu0 %887
  %vm889 = vcmp.lt.s32.totalorder %v189, 19
  %v890 = vsel %vm889, %v874, %v882
  %v891 = vsel %vm889, %v876, %v884
  %v892 = vsel %vm889, %v878, %v886
  %v893 = vsel %vm889, %v880, %v888
  %v894 = vsel %vm889, %v882, %v874
  %v895 = vsel %vm889, %v884, %v876
  %v896 = vsel %vm889, %v886, %v878
  %v897 = vsel %vm889, %v888, %v880
  %s898 = scalar_lea.vmem %s3, 896
  %v899 = vld [vmem:[%s898] sm:$0xff]
  %v900 = vld [vmem:[%s898 + $0x8] sm:$0xff]
  %v901 = vld [vmem:[%s898 + $0x10] sm:$0xff]
  %v902 = vld [vmem:[%s898 + $0x18] sm:$0xff]
  %v903 = vld [vmem:[%s898 + $0x20] sm:$0xff]
  %v904 = vld [vmem:[%s898 + $0x28] sm:$0xff]
  %v905 = vld [vmem:[%s898 + $0x30] sm:$0xff]
  %v906 = vld [vmem:[%s898 + $0x38] sm:$0xff]
  %v907 = vmul.f32 %v899, %v894
  %v908 = vmul.f32 %v900, %v890
  %v909 = vmul.f32 %v901, %v895
  %v910 = vmul.f32 %v902, %v891
  %v911 = vmul.f32 %v903, %v896
  %v912 = vmul.f32 %v904, %v892
  %v913 = vmul.f32 %v905, %v897
  %v914 = vmul.f32 %v906, %v893
  %v915 = vadd.f32 %v715, %v907
  %v916 = vadd.f32 %v716, %v908
  %v917 = vadd.f32 %v717, %v909
  %v918 = vadd.f32 %v718, %v910
  %v919 = vadd.f32 %v719, %v911
  %v920 = vadd.f32 %v720, %v912
  %v921 = vadd.f32 %v721, %v913
  %v922 = vadd.f32 %v722, %v914
  %923 = vrot.lane.b32.xlu0 %v150, 18
  %v924 = vpop.permute.xlu0 %923
  %925 = vrot.lane.b32.xlu0 %v156, 18
  %v926 = vpop.permute.xlu0 %925
  %927 = vrot.lane.b32.xlu0 %v162, 18
  %v928 = vpop.permute.xlu0 %927
  %929 = vrot.lane.b32.xlu0 %v168, 18
  %v930 = vpop.permute.xlu0 %929
  %931 = vrot.lane.b32.xlu0 %v152, 18
  %v932 = vpop.permute.xlu0 %931
  %933 = vrot.lane.b32.xlu0 %v158, 18
  %v934 = vpop.permute.xlu0 %933
  %935 = vrot.lane.b32.xlu0 %v164, 18
  %v936 = vpop.permute.xlu0 %935
  %937 = vrot.lane.b32.xlu0 %v170, 18
  %v938 = vpop.permute.xlu0 %937
  %vm939 = vcmp.lt.s32.totalorder %v189, 18
  %v940 = vsel %vm939, %v924, %v932
  %v941 = vsel %vm939, %v926, %v934
  %v942 = vsel %vm939, %v928, %v936
  %v943 = vsel %vm939, %v930, %v938
  %v944 = vsel %vm939, %v932, %v924
  %v945 = vsel %vm939, %v934, %v926
  %v946 = vsel %vm939, %v936, %v928
  %v947 = vsel %vm939, %v938, %v930
  %s948 = scalar_lea.vmem %s3, 960
  %v949 = vld [vmem:[%s948] sm:$0xff]
  %v950 = vld [vmem:[%s948 + $0x8] sm:$0xff]
  %v951 = vld [vmem:[%s948 + $0x10] sm:$0xff]
  %v952 = vld [vmem:[%s948 + $0x18] sm:$0xff]
  %v953 = vld [vmem:[%s948 + $0x20] sm:$0xff]
  %v954 = vld [vmem:[%s948 + $0x28] sm:$0xff]
  %v955 = vld [vmem:[%s948 + $0x30] sm:$0xff]
  %v956 = vld [vmem:[%s948 + $0x38] sm:$0xff]
  %v957 = vmul.f32 %v949, %v944
  %v958 = vmul.f32 %v950, %v940
  %v959 = vmul.f32 %v951, %v945
  %v960 = vmul.f32 %v952, %v941
  %v961 = vmul.f32 %v953, %v946
  %v962 = vmul.f32 %v954, %v942
  %v963 = vmul.f32 %v955, %v947
  %v964 = vmul.f32 %v956, %v943
  %v965 = vadd.f32 %v765, %v957
  %v966 = vadd.f32 %v766, %v958
  %v967 = vadd.f32 %v767, %v959
  %v968 = vadd.f32 %v768, %v960
  %v969 = vadd.f32 %v769, %v961
  %v970 = vadd.f32 %v770, %v962
  %v971 = vadd.f32 %v771, %v963
  %v972 = vadd.f32 %v772, %v964
  %973 = vrot.lane.b32.xlu0 %v150, 17
  %v974 = vpop.permute.xlu0 %973
  %975 = vrot.lane.b32.xlu0 %v156, 17
  %v976 = vpop.permute.xlu0 %975
  %977 = vrot.lane.b32.xlu0 %v162, 17
  %v978 = vpop.permute.xlu0 %977
  %979 = vrot.lane.b32.xlu0 %v168, 17
  %v980 = vpop.permute.xlu0 %979
  %981 = vrot.lane.b32.xlu0 %v152, 17
  %v982 = vpop.permute.xlu0 %981
  %983 = vrot.lane.b32.xlu0 %v158, 17
  %v984 = vpop.permute.xlu0 %983
  %985 = vrot.lane.b32.xlu0 %v164, 17
  %v986 = vpop.permute.xlu0 %985
  %987 = vrot.lane.b32.xlu0 %v170, 17
  %v988 = vpop.permute.xlu0 %987
  %vm989 = vcmp.lt.s32.totalorder %v189, 17
  %v990 = vsel %vm989, %v974, %v982
  %v991 = vsel %vm989, %v976, %v984
  %v992 = vsel %vm989, %v978, %v986
  %v993 = vsel %vm989, %v980, %v988
  %v994 = vsel %vm989, %v982, %v974
  %v995 = vsel %vm989, %v984, %v976
  %v996 = vsel %vm989, %v986, %v978
  %v997 = vsel %vm989, %v988, %v980
  %s998 = scalar_lea.vmem %s3, 1024
  %v999 = vld [vmem:[%s998] sm:$0xff]
  %v1000 = vld [vmem:[%s998 + $0x8] sm:$0xff]
  %v1001 = vld [vmem:[%s998 + $0x10] sm:$0xff]
  %v1002 = vld [vmem:[%s998 + $0x18] sm:$0xff]
  %v1003 = vld [vmem:[%s998 + $0x20] sm:$0xff]
  %v1004 = vld [vmem:[%s998 + $0x28] sm:$0xff]
  %v1005 = vld [vmem:[%s998 + $0x30] sm:$0xff]
  %v1006 = vld [vmem:[%s998 + $0x38] sm:$0xff]
  %v1007 = vmul.f32 %v999, %v994
  %v1008 = vmul.f32 %v1000, %v990
  %v1009 = vmul.f32 %v1001, %v995
  %v1010 = vmul.f32 %v1002, %v991
  %v1011 = vmul.f32 %v1003, %v996
  %v1012 = vmul.f32 %v1004, %v992
  %v1013 = vmul.f32 %v1005, %v997
  %v1014 = vmul.f32 %v1006, %v993
  %v1015 = vadd.f32 %v815, %v1007
  %v1016 = vadd.f32 %v816, %v1008
  %v1017 = vadd.f32 %v817, %v1009
  %v1018 = vadd.f32 %v818, %v1010
  %v1019 = vadd.f32 %v819, %v1011
  %v1020 = vadd.f32 %v820, %v1012
  %v1021 = vadd.f32 %v821, %v1013
  %v1022 = vadd.f32 %v822, %v1014
  %1023 = vrot.lane.b32.xlu0 %v150, 16
  %v1024 = vpop.permute.xlu0 %1023
  %1025 = vrot.lane.b32.xlu0 %v156, 16
  %v1026 = vpop.permute.xlu0 %1025
  %1027 = vrot.lane.b32.xlu0 %v162, 16
  %v1028 = vpop.permute.xlu0 %1027
  %1029 = vrot.lane.b32.xlu0 %v168, 16
  %v1030 = vpop.permute.xlu0 %1029
  %1031 = vrot.lane.b32.xlu0 %v152, 16
  %v1032 = vpop.permute.xlu0 %1031
  %1033 = vrot.lane.b32.xlu0 %v158, 16
  %v1034 = vpop.permute.xlu0 %1033
  %1035 = vrot.lane.b32.xlu0 %v164, 16
  %v1036 = vpop.permute.xlu0 %1035
  %1037 = vrot.lane.b32.xlu0 %v170, 16
  %v1038 = vpop.permute.xlu0 %1037
  %vm1039 = vcmp.lt.s32.totalorder %v189, 16
  %v1040 = vsel %vm1039, %v1024, %v1032
  %v1041 = vsel %vm1039, %v1026, %v1034
  %v1042 = vsel %vm1039, %v1028, %v1036
  %v1043 = vsel %vm1039, %v1030, %v1038
  %v1044 = vsel %vm1039, %v1032, %v1024
  %v1045 = vsel %vm1039, %v1034, %v1026
  %v1046 = vsel %vm1039, %v1036, %v1028
  %v1047 = vsel %vm1039, %v1038, %v1030
  %s1048 = scalar_lea.vmem %s3, 1088
  %v1049 = vld [vmem:[%s1048] sm:$0xff]
  %v1050 = vld [vmem:[%s1048 + $0x8] sm:$0xff]
  %v1051 = vld [vmem:[%s1048 + $0x10] sm:$0xff]
  %v1052 = vld [vmem:[%s1048 + $0x18] sm:$0xff]
  %v1053 = vld [vmem:[%s1048 + $0x20] sm:$0xff]
  %v1054 = vld [vmem:[%s1048 + $0x28] sm:$0xff]
  %v1055 = vld [vmem:[%s1048 + $0x30] sm:$0xff]
  %v1056 = vld [vmem:[%s1048 + $0x38] sm:$0xff]
  %v1057 = vmul.f32 %v1049, %v1044
  %v1058 = vmul.f32 %v1050, %v1040
  %v1059 = vmul.f32 %v1051, %v1045
  %v1060 = vmul.f32 %v1052, %v1041
  %v1061 = vmul.f32 %v1053, %v1046
  %v1062 = vmul.f32 %v1054, %v1042
  %v1063 = vmul.f32 %v1055, %v1047
  %v1064 = vmul.f32 %v1056, %v1043
  %v1065 = vadd.f32 %v865, %v1057
  %v1066 = vadd.f32 %v866, %v1058
  %v1067 = vadd.f32 %v867, %v1059
  %v1068 = vadd.f32 %v868, %v1060
  %v1069 = vadd.f32 %v869, %v1061
  %v1070 = vadd.f32 %v870, %v1062
  %v1071 = vadd.f32 %v871, %v1063
  %v1072 = vadd.f32 %v872, %v1064
  %1073 = vrot.lane.b32.xlu0 %v150, 15
  %v1074 = vpop.permute.xlu0 %1073
  %1075 = vrot.lane.b32.xlu0 %v156, 15
  %v1076 = vpop.permute.xlu0 %1075
  %1077 = vrot.lane.b32.xlu0 %v162, 15
  %v1078 = vpop.permute.xlu0 %1077
  %1079 = vrot.lane.b32.xlu0 %v168, 15
  %v1080 = vpop.permute.xlu0 %1079
  %1081 = vrot.lane.b32.xlu0 %v152, 15
  %v1082 = vpop.permute.xlu0 %1081
  %1083 = vrot.lane.b32.xlu0 %v158, 15
  %v1084 = vpop.permute.xlu0 %1083
  %1085 = vrot.lane.b32.xlu0 %v164, 15
  %v1086 = vpop.permute.xlu0 %1085
  %1087 = vrot.lane.b32.xlu0 %v170, 15
  %v1088 = vpop.permute.xlu0 %1087
  %vm1089 = vcmp.lt.s32.totalorder %v189, 15
  %v1090 = vsel %vm1089, %v1074, %v1082
  %v1091 = vsel %vm1089, %v1076, %v1084
  %v1092 = vsel %vm1089, %v1078, %v1086
  %v1093 = vsel %vm1089, %v1080, %v1088
  %v1094 = vsel %vm1089, %v1082, %v1074
  %v1095 = vsel %vm1089, %v1084, %v1076
  %v1096 = vsel %vm1089, %v1086, %v1078
  %v1097 = vsel %vm1089, %v1088, %v1080
  %s1098 = scalar_lea.vmem %s3, 1152
  %v1099 = vld [vmem:[%s1098] sm:$0xff]
  %v1100 = vld [vmem:[%s1098 + $0x8] sm:$0xff]
  %v1101 = vld [vmem:[%s1098 + $0x10] sm:$0xff]
  %v1102 = vld [vmem:[%s1098 + $0x18] sm:$0xff]
  %v1103 = vld [vmem:[%s1098 + $0x20] sm:$0xff]
  %v1104 = vld [vmem:[%s1098 + $0x28] sm:$0xff]
  %v1105 = vld [vmem:[%s1098 + $0x30] sm:$0xff]
  %v1106 = vld [vmem:[%s1098 + $0x38] sm:$0xff]
  %v1107 = vmul.f32 %v1099, %v1094
  %v1108 = vmul.f32 %v1100, %v1090
  %v1109 = vmul.f32 %v1101, %v1095
  %v1110 = vmul.f32 %v1102, %v1091
  %v1111 = vmul.f32 %v1103, %v1096
  %v1112 = vmul.f32 %v1104, %v1092
  %v1113 = vmul.f32 %v1105, %v1097
  %v1114 = vmul.f32 %v1106, %v1093
  %v1115 = vadd.f32 %v915, %v1107
  %v1116 = vadd.f32 %v916, %v1108
  %v1117 = vadd.f32 %v917, %v1109
  %v1118 = vadd.f32 %v918, %v1110
  %v1119 = vadd.f32 %v919, %v1111
  %v1120 = vadd.f32 %v920, %v1112
  %v1121 = vadd.f32 %v921, %v1113
  %v1122 = vadd.f32 %v922, %v1114
  %1123 = vrot.lane.b32.xlu0 %v150, 14
  %v1124 = vpop.permute.xlu0 %1123
  %1125 = vrot.lane.b32.xlu0 %v156, 14
  %v1126 = vpop.permute.xlu0 %1125
  %1127 = vrot.lane.b32.xlu0 %v162, 14
  %v1128 = vpop.permute.xlu0 %1127
  %1129 = vrot.lane.b32.xlu0 %v168, 14
  %v1130 = vpop.permute.xlu0 %1129
  %1131 = vrot.lane.b32.xlu0 %v152, 14
  %v1132 = vpop.permute.xlu0 %1131
  %1133 = vrot.lane.b32.xlu0 %v158, 14
  %v1134 = vpop.permute.xlu0 %1133
  %1135 = vrot.lane.b32.xlu0 %v164, 14
  %v1136 = vpop.permute.xlu0 %1135
  %1137 = vrot.lane.b32.xlu0 %v170, 14
  %v1138 = vpop.permute.xlu0 %1137
  %vm1139 = vcmp.lt.s32.totalorder %v189, 14
  %v1140 = vsel %vm1139, %v1124, %v1132
  %v1141 = vsel %vm1139, %v1126, %v1134
  %v1142 = vsel %vm1139, %v1128, %v1136
  %v1143 = vsel %vm1139, %v1130, %v1138
  %v1144 = vsel %vm1139, %v1132, %v1124
  %v1145 = vsel %vm1139, %v1134, %v1126
  %v1146 = vsel %vm1139, %v1136, %v1128
  %v1147 = vsel %vm1139, %v1138, %v1130
  %s1148 = scalar_lea.vmem %s3, 1216
  %v1149 = vld [vmem:[%s1148] sm:$0xff]
  %v1150 = vld [vmem:[%s1148 + $0x8] sm:$0xff]
  %v1151 = vld [vmem:[%s1148 + $0x10] sm:$0xff]
  %v1152 = vld [vmem:[%s1148 + $0x18] sm:$0xff]
  %v1153 = vld [vmem:[%s1148 + $0x20] sm:$0xff]
  %v1154 = vld [vmem:[%s1148 + $0x28] sm:$0xff]
  %v1155 = vld [vmem:[%s1148 + $0x30] sm:$0xff]
  %v1156 = vld [vmem:[%s1148 + $0x38] sm:$0xff]
  %v1157 = vmul.f32 %v1149, %v1144
  %v1158 = vmul.f32 %v1150, %v1140
  %v1159 = vmul.f32 %v1151, %v1145
  %v1160 = vmul.f32 %v1152, %v1141
  %v1161 = vmul.f32 %v1153, %v1146
  %v1162 = vmul.f32 %v1154, %v1142
  %v1163 = vmul.f32 %v1155, %v1147
  %v1164 = vmul.f32 %v1156, %v1143
  %v1165 = vadd.f32 %v965, %v1157
  %v1166 = vadd.f32 %v966, %v1158
  %v1167 = vadd.f32 %v967, %v1159
  %v1168 = vadd.f32 %v968, %v1160
  %v1169 = vadd.f32 %v969, %v1161
  %v1170 = vadd.f32 %v970, %v1162
  %v1171 = vadd.f32 %v971, %v1163
  %v1172 = vadd.f32 %v972, %v1164
  %1173 = vrot.lane.b32.xlu0 %v150, 13
  %v1174 = vpop.permute.xlu0 %1173
  %1175 = vrot.lane.b32.xlu0 %v156, 13
  %v1176 = vpop.permute.xlu0 %1175
  %1177 = vrot.lane.b32.xlu0 %v162, 13
  %v1178 = vpop.permute.xlu0 %1177
  %1179 = vrot.lane.b32.xlu0 %v168, 13
  %v1180 = vpop.permute.xlu0 %1179
  %1181 = vrot.lane.b32.xlu0 %v152, 13
  %v1182 = vpop.permute.xlu0 %1181
  %1183 = vrot.lane.b32.xlu0 %v158, 13
  %v1184 = vpop.permute.xlu0 %1183
  %1185 = vrot.lane.b32.xlu0 %v164, 13
  %v1186 = vpop.permute.xlu0 %1185
  %1187 = vrot.lane.b32.xlu0 %v170, 13
  %v1188 = vpop.permute.xlu0 %1187
  %vm1189 = vcmp.lt.s32.totalorder %v189, 13
  %v1190 = vsel %vm1189, %v1174, %v1182
  %v1191 = vsel %vm1189, %v1176, %v1184
  %v1192 = vsel %vm1189, %v1178, %v1186
  %v1193 = vsel %vm1189, %v1180, %v1188
  %v1194 = vsel %vm1189, %v1182, %v1174
  %v1195 = vsel %vm1189, %v1184, %v1176
  %v1196 = vsel %vm1189, %v1186, %v1178
  %v1197 = vsel %vm1189, %v1188, %v1180
  %s1198 = scalar_lea.vmem %s3, 1280
  %v1199 = vld [vmem:[%s1198] sm:$0xff]
  %v1200 = vld [vmem:[%s1198 + $0x8] sm:$0xff]
  %v1201 = vld [vmem:[%s1198 + $0x10] sm:$0xff]
  %v1202 = vld [vmem:[%s1198 + $0x18] sm:$0xff]
  %v1203 = vld [vmem:[%s1198 + $0x20] sm:$0xff]
  %v1204 = vld [vmem:[%s1198 + $0x28] sm:$0xff]
  %v1205 = vld [vmem:[%s1198 + $0x30] sm:$0xff]
  %v1206 = vld [vmem:[%s1198 + $0x38] sm:$0xff]
  %v1207 = vmul.f32 %v1199, %v1194
  %v1208 = vmul.f32 %v1200, %v1190
  %v1209 = vmul.f32 %v1201, %v1195
  %v1210 = vmul.f32 %v1202, %v1191
  %v1211 = vmul.f32 %v1203, %v1196
  %v1212 = vmul.f32 %v1204, %v1192
  %v1213 = vmul.f32 %v1205, %v1197
  %v1214 = vmul.f32 %v1206, %v1193
  %v1215 = vadd.f32 %v1015, %v1207
  %v1216 = vadd.f32 %v1016, %v1208
  %v1217 = vadd.f32 %v1017, %v1209
  %v1218 = vadd.f32 %v1018, %v1210
  %v1219 = vadd.f32 %v1019, %v1211
  %v1220 = vadd.f32 %v1020, %v1212
  %v1221 = vadd.f32 %v1021, %v1213
  %v1222 = vadd.f32 %v1022, %v1214
  %1223 = vrot.lane.b32.xlu0 %v150, 3
  %v1224 = vpop.permute.xlu0 %1223
  %1225 = vrot.lane.b32.xlu0 %v156, 3
  %v1226 = vpop.permute.xlu0 %1225
  %1227 = vrot.lane.b32.xlu0 %v162, 3
  %v1228 = vpop.permute.xlu0 %1227
  %1229 = vrot.lane.b32.xlu0 %v168, 3
  %v1230 = vpop.permute.xlu0 %1229
  %1231 = vrot.lane.b32.xlu0 %v152, 3
  %v1232 = vpop.permute.xlu0 %1231
  %1233 = vrot.lane.b32.xlu0 %v158, 3
  %v1234 = vpop.permute.xlu0 %1233
  %1235 = vrot.lane.b32.xlu0 %v164, 3
  %v1236 = vpop.permute.xlu0 %1235
  %1237 = vrot.lane.b32.xlu0 %v170, 3
  %v1238 = vpop.permute.xlu0 %1237
  %vm1239 = vcmp.lt.s32.totalorder %v189, 3
  %v1240 = vsel %vm1239, %v1224, %v1232
  %v1241 = vsel %vm1239, %v1226, %v1234
  %v1242 = vsel %vm1239, %v1228, %v1236
  %v1243 = vsel %vm1239, %v1230, %v1238
  %v1244 = vsel %vm1239, %v1232, %v1224
  %v1245 = vsel %vm1239, %v1234, %v1226
  %v1246 = vsel %vm1239, %v1236, %v1228
  %v1247 = vsel %vm1239, %v1238, %v1230
  %s1248 = scalar_lea.vmem %s3, 1344
  %v1249 = vld [vmem:[%s1248] sm:$0xff]
  %v1250 = vld [vmem:[%s1248 + $0x8] sm:$0xff]
  %v1251 = vld [vmem:[%s1248 + $0x10] sm:$0xff]
  %v1252 = vld [vmem:[%s1248 + $0x18] sm:$0xff]
  %v1253 = vld [vmem:[%s1248 + $0x20] sm:$0xff]
  %v1254 = vld [vmem:[%s1248 + $0x28] sm:$0xff]
  %v1255 = vld [vmem:[%s1248 + $0x30] sm:$0xff]
  %v1256 = vld [vmem:[%s1248 + $0x38] sm:$0xff]
  %v1257 = vmul.f32 %v1249, %v1244
  %v1258 = vmul.f32 %v1250, %v1240
  %v1259 = vmul.f32 %v1251, %v1245
  %v1260 = vmul.f32 %v1252, %v1241
  %v1261 = vmul.f32 %v1253, %v1246
  %v1262 = vmul.f32 %v1254, %v1242
  %v1263 = vmul.f32 %v1255, %v1247
  %v1264 = vmul.f32 %v1256, %v1243
  %v1265 = vadd.f32 %v1065, %v1257
  %v1266 = vadd.f32 %v1066, %v1258
  %v1267 = vadd.f32 %v1067, %v1259
  %v1268 = vadd.f32 %v1068, %v1260
  %v1269 = vadd.f32 %v1069, %v1261
  %v1270 = vadd.f32 %v1070, %v1262
  %v1271 = vadd.f32 %v1071, %v1263
  %v1272 = vadd.f32 %v1072, %v1264
  %1273 = vrot.lane.b32.xlu0 %v150, 2
  %v1274 = vpop.permute.xlu0 %1273
  %1275 = vrot.lane.b32.xlu0 %v156, 2
  %v1276 = vpop.permute.xlu0 %1275
  %1277 = vrot.lane.b32.xlu0 %v162, 2
  %v1278 = vpop.permute.xlu0 %1277
  %1279 = vrot.lane.b32.xlu0 %v168, 2
  %v1280 = vpop.permute.xlu0 %1279
  %1281 = vrot.lane.b32.xlu0 %v152, 2
  %v1282 = vpop.permute.xlu0 %1281
  %1283 = vrot.lane.b32.xlu0 %v158, 2
  %v1284 = vpop.permute.xlu0 %1283
  %1285 = vrot.lane.b32.xlu0 %v164, 2
  %v1286 = vpop.permute.xlu0 %1285
  %1287 = vrot.lane.b32.xlu0 %v170, 2
  %v1288 = vpop.permute.xlu0 %1287
  %vm1289 = vcmp.lt.s32.totalorder %v189, 2
  %v1290 = vsel %vm1289, %v1274, %v1282
  %v1291 = vsel %vm1289, %v1276, %v1284
  %v1292 = vsel %vm1289, %v1278, %v1286
  %v1293 = vsel %vm1289, %v1280, %v1288
  %v1294 = vsel %vm1289, %v1282, %v1274
  %v1295 = vsel %vm1289, %v1284, %v1276
  %v1296 = vsel %vm1289, %v1286, %v1278
  %v1297 = vsel %vm1289, %v1288, %v1280
  %s1298 = scalar_lea.vmem %s3, 1408
  %v1299 = vld [vmem:[%s1298] sm:$0xff]
  %v1300 = vld [vmem:[%s1298 + $0x8] sm:$0xff]
  %v1301 = vld [vmem:[%s1298 + $0x10] sm:$0xff]
  %v1302 = vld [vmem:[%s1298 + $0x18] sm:$0xff]
  %v1303 = vld [vmem:[%s1298 + $0x20] sm:$0xff]
  %v1304 = vld [vmem:[%s1298 + $0x28] sm:$0xff]
  %v1305 = vld [vmem:[%s1298 + $0x30] sm:$0xff]
  %v1306 = vld [vmem:[%s1298 + $0x38] sm:$0xff]
  %v1307 = vmul.f32 %v1299, %v1294
  %v1308 = vmul.f32 %v1300, %v1290
  %v1309 = vmul.f32 %v1301, %v1295
  %v1310 = vmul.f32 %v1302, %v1291
  %v1311 = vmul.f32 %v1303, %v1296
  %v1312 = vmul.f32 %v1304, %v1292
  %v1313 = vmul.f32 %v1305, %v1297
  %v1314 = vmul.f32 %v1306, %v1293
  %v1315 = vadd.f32 %v1115, %v1307
  %v1316 = vadd.f32 %v1116, %v1308
  %v1317 = vadd.f32 %v1117, %v1309
  %v1318 = vadd.f32 %v1118, %v1310
  %v1319 = vadd.f32 %v1119, %v1311
  %v1320 = vadd.f32 %v1120, %v1312
  %v1321 = vadd.f32 %v1121, %v1313
  %v1322 = vadd.f32 %v1122, %v1314
  %1323 = vrot.lane.b32.xlu0 %v150, 1
  %v1324 = vpop.permute.xlu0 %1323
  %1325 = vrot.lane.b32.xlu0 %v156, 1
  %v1326 = vpop.permute.xlu0 %1325
  %1327 = vrot.lane.b32.xlu0 %v162, 1
  %v1328 = vpop.permute.xlu0 %1327
  %1329 = vrot.lane.b32.xlu0 %v168, 1
  %v1330 = vpop.permute.xlu0 %1329
  %1331 = vrot.lane.b32.xlu0 %v152, 1
  %v1332 = vpop.permute.xlu0 %1331
  %1333 = vrot.lane.b32.xlu0 %v158, 1
  %v1334 = vpop.permute.xlu0 %1333
  %1335 = vrot.lane.b32.xlu0 %v164, 1
  %v1336 = vpop.permute.xlu0 %1335
  %1337 = vrot.lane.b32.xlu0 %v170, 1
  %v1338 = vpop.permute.xlu0 %1337
  %vm1339 = vcmp.lt.s32.totalorder %v189, 1
  %v1340 = vsel %vm1339, %v1324, %v1332
  %v1341 = vsel %vm1339, %v1326, %v1334
  %v1342 = vsel %vm1339, %v1328, %v1336
  %v1343 = vsel %vm1339, %v1330, %v1338
  %v1344 = vsel %vm1339, %v1332, %v1324
  %v1345 = vsel %vm1339, %v1334, %v1326
  %v1346 = vsel %vm1339, %v1336, %v1328
  %v1347 = vsel %vm1339, %v1338, %v1330
  %s1348 = scalar_lea.vmem %s3, 1472
  %v1349 = vld [vmem:[%s1348] sm:$0xff]
  %v1350 = vld [vmem:[%s1348 + $0x8] sm:$0xff]
  %v1351 = vld [vmem:[%s1348 + $0x10] sm:$0xff]
  %v1352 = vld [vmem:[%s1348 + $0x18] sm:$0xff]
  %v1353 = vld [vmem:[%s1348 + $0x20] sm:$0xff]
  %v1354 = vld [vmem:[%s1348 + $0x28] sm:$0xff]
  %v1355 = vld [vmem:[%s1348 + $0x30] sm:$0xff]
  %v1356 = vld [vmem:[%s1348 + $0x38] sm:$0xff]
  %v1357 = vmul.f32 %v1349, %v1344
  %v1358 = vmul.f32 %v1350, %v1340
  %v1359 = vmul.f32 %v1351, %v1345
  %v1360 = vmul.f32 %v1352, %v1341
  %v1361 = vmul.f32 %v1353, %v1346
  %v1362 = vmul.f32 %v1354, %v1342
  %v1363 = vmul.f32 %v1355, %v1347
  %v1364 = vmul.f32 %v1356, %v1343
  %v1365 = vadd.f32 %v1165, %v1357
  %v1366 = vadd.f32 %v1166, %v1358
  %v1367 = vadd.f32 %v1167, %v1359
  %v1368 = vadd.f32 %v1168, %v1360
  %v1369 = vadd.f32 %v1169, %v1361
  %v1370 = vadd.f32 %v1170, %v1362
  %v1371 = vadd.f32 %v1171, %v1363
  %v1372 = vadd.f32 %v1172, %v1364
  %s1373 = scalar_lea.vmem %s3, 1536
  %v1374 = vld [vmem:[%s1373] sm:$0xff]
  %v1375 = vld [vmem:[%s1373 + $0x8] sm:$0xff]
  %v1376 = vld [vmem:[%s1373 + $0x10] sm:$0xff]
  %v1377 = vld [vmem:[%s1373 + $0x18] sm:$0xff]
  %v1378 = vld [vmem:[%s1373 + $0x20] sm:$0xff]
  %v1379 = vld [vmem:[%s1373 + $0x28] sm:$0xff]
  %v1380 = vld [vmem:[%s1373 + $0x30] sm:$0xff]
  %v1381 = vld [vmem:[%s1373 + $0x38] sm:$0xff]
  %v1382 = vmul.f32 %v1374, %v150
  %v1383 = vmul.f32 %v1375, %v152
  %v1384 = vmul.f32 %v1376, %v156
  %v1385 = vmul.f32 %v1377, %v158
  %v1386 = vmul.f32 %v1378, %v162
  %v1387 = vmul.f32 %v1379, %v164
  %v1388 = vmul.f32 %v1380, %v168
  %v1389 = vmul.f32 %v1381, %v170
  %v1390 = vadd.f32 %v1215, %v1382
  %v1391 = vadd.f32 %v1216, %v1383
  %v1392 = vadd.f32 %v1217, %v1384
  %v1393 = vadd.f32 %v1218, %v1385
  %v1394 = vadd.f32 %v1219, %v1386
  %v1395 = vadd.f32 %v1220, %v1387
  %v1396 = vadd.f32 %v1221, %v1388
  %v1397 = vadd.f32 %v1222, %v1389
  %1398 = vrot.lane.b32.xlu0 %v150, 127
  %v1399 = vpop.permute.xlu0 %1398
  %1400 = vrot.lane.b32.xlu0 %v156, 127
  %v1401 = vpop.permute.xlu0 %1400
  %1402 = vrot.lane.b32.xlu0 %v162, 127
  %v1403 = vpop.permute.xlu0 %1402
  %1404 = vrot.lane.b32.xlu0 %v168, 127
  %v1405 = vpop.permute.xlu0 %1404
  %1406 = vrot.lane.b32.xlu0 %v152, 127
  %v1407 = vpop.permute.xlu0 %1406
  %1408 = vrot.lane.b32.xlu0 %v158, 127
  %v1409 = vpop.permute.xlu0 %1408
  %1410 = vrot.lane.b32.xlu0 %v164, 127
  %v1411 = vpop.permute.xlu0 %1410
  %1412 = vrot.lane.b32.xlu0 %v170, 127
  %v1413 = vpop.permute.xlu0 %1412
  %vm1414 = vcmp.lt.s32.totalorder %v189, 127
  %v1415 = vsel %vm1414, %v1399, %v1407
  %v1416 = vsel %vm1414, %v1401, %v1409
  %v1417 = vsel %vm1414, %v1403, %v1411
  %v1418 = vsel %vm1414, %v1405, %v1413
  %v1419 = vsel %vm1414, %v1407, %v1399
  %v1420 = vsel %vm1414, %v1409, %v1401
  %v1421 = vsel %vm1414, %v1411, %v1403
  %v1422 = vsel %vm1414, %v1413, %v1405
  %s1423 = scalar_lea.vmem %s3, 1600
  %v1424 = vld [vmem:[%s1423] sm:$0xff]
  %v1425 = vld [vmem:[%s1423 + $0x8] sm:$0xff]
  %v1426 = vld [vmem:[%s1423 + $0x10] sm:$0xff]
  %v1427 = vld [vmem:[%s1423 + $0x18] sm:$0xff]
  %v1428 = vld [vmem:[%s1423 + $0x20] sm:$0xff]
  %v1429 = vld [vmem:[%s1423 + $0x28] sm:$0xff]
  %v1430 = vld [vmem:[%s1423 + $0x30] sm:$0xff]
  %v1431 = vld [vmem:[%s1423 + $0x38] sm:$0xff]
  %v1432 = vmul.f32 %v1424, %v1415
  %v1433 = vmul.f32 %v1425, %v1419
  %v1434 = vmul.f32 %v1426, %v1416
  %v1435 = vmul.f32 %v1427, %v1420
  %v1436 = vmul.f32 %v1428, %v1417
  %v1437 = vmul.f32 %v1429, %v1421
  %v1438 = vmul.f32 %v1430, %v1418
  %v1439 = vmul.f32 %v1431, %v1422
  %v1440 = vadd.f32 %v1265, %v1432
  %v1441 = vadd.f32 %v1266, %v1433
  %v1442 = vadd.f32 %v1267, %v1434
  %v1443 = vadd.f32 %v1268, %v1435
  %v1444 = vadd.f32 %v1269, %v1436
  %v1445 = vadd.f32 %v1270, %v1437
  %v1446 = vadd.f32 %v1271, %v1438
  %v1447 = vadd.f32 %v1272, %v1439
  %1448 = vrot.lane.b32.xlu0 %v150, 126
  %v1449 = vpop.permute.xlu0 %1448
  %1450 = vrot.lane.b32.xlu0 %v156, 126
  %v1451 = vpop.permute.xlu0 %1450
  %1452 = vrot.lane.b32.xlu0 %v162, 126
  %v1453 = vpop.permute.xlu0 %1452
  %1454 = vrot.lane.b32.xlu0 %v168, 126
  %v1455 = vpop.permute.xlu0 %1454
  %1456 = vrot.lane.b32.xlu0 %v152, 126
  %v1457 = vpop.permute.xlu0 %1456
  %1458 = vrot.lane.b32.xlu0 %v158, 126
  %v1459 = vpop.permute.xlu0 %1458
  %1460 = vrot.lane.b32.xlu0 %v164, 126
  %v1461 = vpop.permute.xlu0 %1460
  %1462 = vrot.lane.b32.xlu0 %v170, 126
  %v1463 = vpop.permute.xlu0 %1462
  %vm1464 = vcmp.lt.s32.totalorder %v189, 126
  %v1465 = vsel %vm1464, %v1449, %v1457
  %v1466 = vsel %vm1464, %v1451, %v1459
  %v1467 = vsel %vm1464, %v1453, %v1461
  %v1468 = vsel %vm1464, %v1455, %v1463
  %v1469 = vsel %vm1464, %v1457, %v1449
  %v1470 = vsel %vm1464, %v1459, %v1451
  %v1471 = vsel %vm1464, %v1461, %v1453
  %v1472 = vsel %vm1464, %v1463, %v1455
  %s1473 = scalar_lea.vmem %s3, 1664
  %v1474 = vld [vmem:[%s1473] sm:$0xff]
  %v1475 = vld [vmem:[%s1473 + $0x8] sm:$0xff]
  %v1476 = vld [vmem:[%s1473 + $0x10] sm:$0xff]
  %v1477 = vld [vmem:[%s1473 + $0x18] sm:$0xff]
  %v1478 = vld [vmem:[%s1473 + $0x20] sm:$0xff]
  %v1479 = vld [vmem:[%s1473 + $0x28] sm:$0xff]
  %v1480 = vld [vmem:[%s1473 + $0x30] sm:$0xff]
  %v1481 = vld [vmem:[%s1473 + $0x38] sm:$0xff]
  %v1482 = vmul.f32 %v1474, %v1465
  %v1483 = vmul.f32 %v1475, %v1469
  %v1484 = vmul.f32 %v1476, %v1466
  %v1485 = vmul.f32 %v1477, %v1470
  %v1486 = vmul.f32 %v1478, %v1467
  %v1487 = vmul.f32 %v1479, %v1471
  %v1488 = vmul.f32 %v1480, %v1468
  %v1489 = vmul.f32 %v1481, %v1472
  %v1490 = vadd.f32 %v1315, %v1482
  %v1491 = vadd.f32 %v1316, %v1483
  %v1492 = vadd.f32 %v1317, %v1484
  %v1493 = vadd.f32 %v1318, %v1485
  %v1494 = vadd.f32 %v1319, %v1486
  %v1495 = vadd.f32 %v1320, %v1487
  %v1496 = vadd.f32 %v1321, %v1488
  %v1497 = vadd.f32 %v1322, %v1489
  %1498 = vrot.lane.b32.xlu0 %v150, 125
  %v1499 = vpop.permute.xlu0 %1498
  %1500 = vrot.lane.b32.xlu0 %v156, 125
  %v1501 = vpop.permute.xlu0 %1500
  %1502 = vrot.lane.b32.xlu0 %v162, 125
  %v1503 = vpop.permute.xlu0 %1502
  %1504 = vrot.lane.b32.xlu0 %v168, 125
  %v1505 = vpop.permute.xlu0 %1504
  %1506 = vrot.lane.b32.xlu0 %v152, 125
  %v1507 = vpop.permute.xlu0 %1506
  %1508 = vrot.lane.b32.xlu0 %v158, 125
  %v1509 = vpop.permute.xlu0 %1508
  %1510 = vrot.lane.b32.xlu0 %v164, 125
  %v1511 = vpop.permute.xlu0 %1510
  %1512 = vrot.lane.b32.xlu0 %v170, 125
  %v1513 = vpop.permute.xlu0 %1512
  %vm1514 = vcmp.lt.s32.totalorder %v189, 125
  %v1515 = vsel %vm1514, %v1499, %v1507
  %v1516 = vsel %vm1514, %v1501, %v1509
  %v1517 = vsel %vm1514, %v1503, %v1511
  %v1518 = vsel %vm1514, %v1505, %v1513
  %v1519 = vsel %vm1514, %v1507, %v1499
  %v1520 = vsel %vm1514, %v1509, %v1501
  %v1521 = vsel %vm1514, %v1511, %v1503
  %v1522 = vsel %vm1514, %v1513, %v1505
  %s1523 = scalar_lea.vmem %s3, 1728
  %v1524 = vld [vmem:[%s1523] sm:$0xff]
  %v1525 = vld [vmem:[%s1523 + $0x8] sm:$0xff]
  %v1526 = vld [vmem:[%s1523 + $0x10] sm:$0xff]
  %v1527 = vld [vmem:[%s1523 + $0x18] sm:$0xff]
  %v1528 = vld [vmem:[%s1523 + $0x20] sm:$0xff]
  %v1529 = vld [vmem:[%s1523 + $0x28] sm:$0xff]
  %v1530 = vld [vmem:[%s1523 + $0x30] sm:$0xff]
  %v1531 = vld [vmem:[%s1523 + $0x38] sm:$0xff]
  %v1532 = vmul.f32 %v1524, %v1515
  %v1533 = vmul.f32 %v1525, %v1519
  %v1534 = vmul.f32 %v1526, %v1516
  %v1535 = vmul.f32 %v1527, %v1520
  %v1536 = vmul.f32 %v1528, %v1517
  %v1537 = vmul.f32 %v1529, %v1521
  %v1538 = vmul.f32 %v1530, %v1518
  %v1539 = vmul.f32 %v1531, %v1522
  %v1540 = vadd.f32 %v1365, %v1532
  %v1541 = vadd.f32 %v1366, %v1533
  %v1542 = vadd.f32 %v1367, %v1534
  %v1543 = vadd.f32 %v1368, %v1535
  %v1544 = vadd.f32 %v1369, %v1536
  %v1545 = vadd.f32 %v1370, %v1537
  %v1546 = vadd.f32 %v1371, %v1538
  %v1547 = vadd.f32 %v1372, %v1539
  %1548 = vrot.lane.b32.xlu0 %v150, 115
  %v1549 = vpop.permute.xlu0 %1548
  %1550 = vrot.lane.b32.xlu0 %v156, 115
  %v1551 = vpop.permute.xlu0 %1550
  %1552 = vrot.lane.b32.xlu0 %v162, 115
  %v1553 = vpop.permute.xlu0 %1552
  %1554 = vrot.lane.b32.xlu0 %v168, 115
  %v1555 = vpop.permute.xlu0 %1554
  %1556 = vrot.lane.b32.xlu0 %v152, 115
  %v1557 = vpop.permute.xlu0 %1556
  %1558 = vrot.lane.b32.xlu0 %v158, 115
  %v1559 = vpop.permute.xlu0 %1558
  %1560 = vrot.lane.b32.xlu0 %v164, 115
  %v1561 = vpop.permute.xlu0 %1560
  %1562 = vrot.lane.b32.xlu0 %v170, 115
  %v1563 = vpop.permute.xlu0 %1562
  %vm1564 = vcmp.lt.s32.totalorder %v189, 115
  %v1565 = vsel %vm1564, %v1549, %v1557
  %v1566 = vsel %vm1564, %v1551, %v1559
  %v1567 = vsel %vm1564, %v1553, %v1561
  %v1568 = vsel %vm1564, %v1555, %v1563
  %v1569 = vsel %vm1564, %v1557, %v1549
  %v1570 = vsel %vm1564, %v1559, %v1551
  %v1571 = vsel %vm1564, %v1561, %v1553
  %v1572 = vsel %vm1564, %v1563, %v1555
  %s1573 = scalar_lea.vmem %s3, 1792
  %v1574 = vld [vmem:[%s1573] sm:$0xff]
  %v1575 = vld [vmem:[%s1573 + $0x8] sm:$0xff]
  %v1576 = vld [vmem:[%s1573 + $0x10] sm:$0xff]
  %v1577 = vld [vmem:[%s1573 + $0x18] sm:$0xff]
  %v1578 = vld [vmem:[%s1573 + $0x20] sm:$0xff]
  %v1579 = vld [vmem:[%s1573 + $0x28] sm:$0xff]
  %v1580 = vld [vmem:[%s1573 + $0x30] sm:$0xff]
  %v1581 = vld [vmem:[%s1573 + $0x38] sm:$0xff]
  %v1582 = vmul.f32 %v1574, %v1565
  %v1583 = vmul.f32 %v1575, %v1569
  %v1584 = vmul.f32 %v1576, %v1566
  %v1585 = vmul.f32 %v1577, %v1570
  %v1586 = vmul.f32 %v1578, %v1567
  %v1587 = vmul.f32 %v1579, %v1571
  %v1588 = vmul.f32 %v1580, %v1568
  %v1589 = vmul.f32 %v1581, %v1572
  %v1590 = vadd.f32 %v1390, %v1582
  %v1591 = vadd.f32 %v1391, %v1583
  %v1592 = vadd.f32 %v1392, %v1584
  %v1593 = vadd.f32 %v1393, %v1585
  %v1594 = vadd.f32 %v1394, %v1586
  %v1595 = vadd.f32 %v1395, %v1587
  %v1596 = vadd.f32 %v1396, %v1588
  %v1597 = vadd.f32 %v1397, %v1589
  %1598 = vrot.lane.b32.xlu0 %v150, 114
  %v1599 = vpop.permute.xlu0 %1598
  %1600 = vrot.lane.b32.xlu0 %v156, 114
  %v1601 = vpop.permute.xlu0 %1600
  %1602 = vrot.lane.b32.xlu0 %v162, 114
  %v1603 = vpop.permute.xlu0 %1602
  %1604 = vrot.lane.b32.xlu0 %v168, 114
  %v1605 = vpop.permute.xlu0 %1604
  %1606 = vrot.lane.b32.xlu0 %v152, 114
  %v1607 = vpop.permute.xlu0 %1606
  %1608 = vrot.lane.b32.xlu0 %v158, 114
  %v1609 = vpop.permute.xlu0 %1608
  %1610 = vrot.lane.b32.xlu0 %v164, 114
  %v1611 = vpop.permute.xlu0 %1610
  %1612 = vrot.lane.b32.xlu0 %v170, 114
  %v1613 = vpop.permute.xlu0 %1612
  %vm1614 = vcmp.lt.s32.totalorder %v189, 114
  %v1615 = vsel %vm1614, %v1599, %v1607
  %v1616 = vsel %vm1614, %v1601, %v1609
  %v1617 = vsel %vm1614, %v1603, %v1611
  %v1618 = vsel %vm1614, %v1605, %v1613
  %v1619 = vsel %vm1614, %v1607, %v1599
  %v1620 = vsel %vm1614, %v1609, %v1601
  %v1621 = vsel %vm1614, %v1611, %v1603
  %v1622 = vsel %vm1614, %v1613, %v1605
  %s1623 = scalar_lea.vmem %s3, 1856
  %v1624 = vld [vmem:[%s1623] sm:$0xff]
  %v1625 = vld [vmem:[%s1623 + $0x8] sm:$0xff]
  %v1626 = vld [vmem:[%s1623 + $0x10] sm:$0xff]
  %v1627 = vld [vmem:[%s1623 + $0x18] sm:$0xff]
  %v1628 = vld [vmem:[%s1623 + $0x20] sm:$0xff]
  %v1629 = vld [vmem:[%s1623 + $0x28] sm:$0xff]
  %v1630 = vld [vmem:[%s1623 + $0x30] sm:$0xff]
  %v1631 = vld [vmem:[%s1623 + $0x38] sm:$0xff]
  %v1632 = vmul.f32 %v1624, %v1615
  %v1633 = vmul.f32 %v1625, %v1619
  %v1634 = vmul.f32 %v1626, %v1616
  %v1635 = vmul.f32 %v1627, %v1620
  %v1636 = vmul.f32 %v1628, %v1617
  %v1637 = vmul.f32 %v1629, %v1621
  %v1638 = vmul.f32 %v1630, %v1618
  %v1639 = vmul.f32 %v1631, %v1622
  %v1640 = vadd.f32 %v1440, %v1632
  %v1641 = vadd.f32 %v1441, %v1633
  %v1642 = vadd.f32 %v1442, %v1634
  %v1643 = vadd.f32 %v1443, %v1635
  %v1644 = vadd.f32 %v1444, %v1636
  %v1645 = vadd.f32 %v1445, %v1637
  %v1646 = vadd.f32 %v1446, %v1638
  %v1647 = vadd.f32 %v1447, %v1639
  %1648 = vrot.lane.b32.xlu0 %v150, 113
  %v1649 = vpop.permute.xlu0 %1648
  %1650 = vrot.lane.b32.xlu0 %v156, 113
  %v1651 = vpop.permute.xlu0 %1650
  %1652 = vrot.lane.b32.xlu0 %v162, 113
  %v1653 = vpop.permute.xlu0 %1652
  %1654 = vrot.lane.b32.xlu0 %v168, 113
  %v1655 = vpop.permute.xlu0 %1654
  %1656 = vrot.lane.b32.xlu0 %v152, 113
  %v1657 = vpop.permute.xlu0 %1656
  %1658 = vrot.lane.b32.xlu0 %v158, 113
  %v1659 = vpop.permute.xlu0 %1658
  %1660 = vrot.lane.b32.xlu0 %v164, 113
  %v1661 = vpop.permute.xlu0 %1660
  %1662 = vrot.lane.b32.xlu0 %v170, 113
  %v1663 = vpop.permute.xlu0 %1662
  %vm1664 = vcmp.lt.s32.totalorder %v189, 113
  %v1665 = vsel %vm1664, %v1649, %v1657
  %v1666 = vsel %vm1664, %v1651, %v1659
  %v1667 = vsel %vm1664, %v1653, %v1661
  %v1668 = vsel %vm1664, %v1655, %v1663
  %v1669 = vsel %vm1664, %v1657, %v1649
  %v1670 = vsel %vm1664, %v1659, %v1651
  %v1671 = vsel %vm1664, %v1661, %v1653
  %v1672 = vsel %vm1664, %v1663, %v1655
  %s1673 = scalar_lea.vmem %s3, 1920
  %v1674 = vld [vmem:[%s1673] sm:$0xff]
  %v1675 = vld [vmem:[%s1673 + $0x8] sm:$0xff]
  %v1676 = vld [vmem:[%s1673 + $0x10] sm:$0xff]
  %v1677 = vld [vmem:[%s1673 + $0x18] sm:$0xff]
  %v1678 = vld [vmem:[%s1673 + $0x20] sm:$0xff]
  %v1679 = vld [vmem:[%s1673 + $0x28] sm:$0xff]
  %v1680 = vld [vmem:[%s1673 + $0x30] sm:$0xff]
  %v1681 = vld [vmem:[%s1673 + $0x38] sm:$0xff]
  %v1682 = vmul.f32 %v1674, %v1665
  %v1683 = vmul.f32 %v1675, %v1669
  %v1684 = vmul.f32 %v1676, %v1666
  %v1685 = vmul.f32 %v1677, %v1670
  %v1686 = vmul.f32 %v1678, %v1667
  %v1687 = vmul.f32 %v1679, %v1671
  %v1688 = vmul.f32 %v1680, %v1668
  %v1689 = vmul.f32 %v1681, %v1672
  %v1690 = vadd.f32 %v1490, %v1682
  %v1691 = vadd.f32 %v1491, %v1683
  %v1692 = vadd.f32 %v1492, %v1684
  %v1693 = vadd.f32 %v1493, %v1685
  %v1694 = vadd.f32 %v1494, %v1686
  %v1695 = vadd.f32 %v1495, %v1687
  %v1696 = vadd.f32 %v1496, %v1688
  %v1697 = vadd.f32 %v1497, %v1689
  %1698 = vrot.lane.b32.xlu0 %v150, 112
  %v1699 = vpop.permute.xlu0 %1698
  %1700 = vrot.lane.b32.xlu0 %v156, 112
  %v1701 = vpop.permute.xlu0 %1700
  %1702 = vrot.lane.b32.xlu0 %v162, 112
  %v1703 = vpop.permute.xlu0 %1702
  %1704 = vrot.lane.b32.xlu0 %v168, 112
  %v1705 = vpop.permute.xlu0 %1704
  %1706 = vrot.lane.b32.xlu0 %v152, 112
  %v1707 = vpop.permute.xlu0 %1706
  %1708 = vrot.lane.b32.xlu0 %v158, 112
  %v1709 = vpop.permute.xlu0 %1708
  %1710 = vrot.lane.b32.xlu0 %v164, 112
  %v1711 = vpop.permute.xlu0 %1710
  %1712 = vrot.lane.b32.xlu0 %v170, 112
  %v1713 = vpop.permute.xlu0 %1712
  %vm1714 = vcmp.lt.s32.totalorder %v189, 112
  %v1715 = vsel %vm1714, %v1699, %v1707
  %v1716 = vsel %vm1714, %v1701, %v1709
  %v1717 = vsel %vm1714, %v1703, %v1711
  %v1718 = vsel %vm1714, %v1705, %v1713
  %v1719 = vsel %vm1714, %v1707, %v1699
  %v1720 = vsel %vm1714, %v1709, %v1701
  %v1721 = vsel %vm1714, %v1711, %v1703
  %v1722 = vsel %vm1714, %v1713, %v1705
  %s1723 = scalar_lea.vmem %s3, 1984
  %v1724 = vld [vmem:[%s1723] sm:$0xff]
  %v1725 = vld [vmem:[%s1723 + $0x8] sm:$0xff]
  %v1726 = vld [vmem:[%s1723 + $0x10] sm:$0xff]
  %v1727 = vld [vmem:[%s1723 + $0x18] sm:$0xff]
  %v1728 = vld [vmem:[%s1723 + $0x20] sm:$0xff]
  %v1729 = vld [vmem:[%s1723 + $0x28] sm:$0xff]
  %v1730 = vld [vmem:[%s1723 + $0x30] sm:$0xff]
  %v1731 = vld [vmem:[%s1723 + $0x38] sm:$0xff]
  %v1732 = vmul.f32 %v1724, %v1715
  %v1733 = vmul.f32 %v1725, %v1719
  %v1734 = vmul.f32 %v1726, %v1716
  %v1735 = vmul.f32 %v1727, %v1720
  %v1736 = vmul.f32 %v1728, %v1717
  %v1737 = vmul.f32 %v1729, %v1721
  %v1738 = vmul.f32 %v1730, %v1718
  %v1739 = vmul.f32 %v1731, %v1722
  %v1740 = vadd.f32 %v1540, %v1732
  %v1741 = vadd.f32 %v1541, %v1733
  %v1742 = vadd.f32 %v1542, %v1734
  %v1743 = vadd.f32 %v1543, %v1735
  %v1744 = vadd.f32 %v1544, %v1736
  %v1745 = vadd.f32 %v1545, %v1737
  %v1746 = vadd.f32 %v1546, %v1738
  %v1747 = vadd.f32 %v1547, %v1739
  %1748 = vrot.lane.b32.xlu0 %v150, 111
  %v1749 = vpop.permute.xlu0 %1748
  %1750 = vrot.lane.b32.xlu0 %v156, 111
  %v1751 = vpop.permute.xlu0 %1750
  %1752 = vrot.lane.b32.xlu0 %v162, 111
  %v1753 = vpop.permute.xlu0 %1752
  %1754 = vrot.lane.b32.xlu0 %v168, 111
  %v1755 = vpop.permute.xlu0 %1754
  %1756 = vrot.lane.b32.xlu0 %v152, 111
  %v1757 = vpop.permute.xlu0 %1756
  %1758 = vrot.lane.b32.xlu0 %v158, 111
  %v1759 = vpop.permute.xlu0 %1758
  %1760 = vrot.lane.b32.xlu0 %v164, 111
  %v1761 = vpop.permute.xlu0 %1760
  %1762 = vrot.lane.b32.xlu0 %v170, 111
  %v1763 = vpop.permute.xlu0 %1762
  %vm1764 = vcmp.lt.s32.totalorder %v189, 111
  %v1765 = vsel %vm1764, %v1749, %v1757
  %v1766 = vsel %vm1764, %v1751, %v1759
  %v1767 = vsel %vm1764, %v1753, %v1761
  %v1768 = vsel %vm1764, %v1755, %v1763
  %v1769 = vsel %vm1764, %v1757, %v1749
  %v1770 = vsel %vm1764, %v1759, %v1751
  %v1771 = vsel %vm1764, %v1761, %v1753
  %v1772 = vsel %vm1764, %v1763, %v1755
  %s1773 = scalar_lea.vmem %s3, 2048
  %v1774 = vld [vmem:[%s1773] sm:$0xff]
  %v1775 = vld [vmem:[%s1773 + $0x8] sm:$0xff]
  %v1776 = vld [vmem:[%s1773 + $0x10] sm:$0xff]
  %v1777 = vld [vmem:[%s1773 + $0x18] sm:$0xff]
  %v1778 = vld [vmem:[%s1773 + $0x20] sm:$0xff]
  %v1779 = vld [vmem:[%s1773 + $0x28] sm:$0xff]
  %v1780 = vld [vmem:[%s1773 + $0x30] sm:$0xff]
  %v1781 = vld [vmem:[%s1773 + $0x38] sm:$0xff]
  %v1782 = vmul.f32 %v1774, %v1765
  %v1783 = vmul.f32 %v1775, %v1769
  %v1784 = vmul.f32 %v1776, %v1766
  %v1785 = vmul.f32 %v1777, %v1770
  %v1786 = vmul.f32 %v1778, %v1767
  %v1787 = vmul.f32 %v1779, %v1771
  %v1788 = vmul.f32 %v1780, %v1768
  %v1789 = vmul.f32 %v1781, %v1772
  %v1790 = vadd.f32 %v1590, %v1782
  %v1791 = vadd.f32 %v1591, %v1783
  %v1792 = vadd.f32 %v1592, %v1784
  %v1793 = vadd.f32 %v1593, %v1785
  %v1794 = vadd.f32 %v1594, %v1786
  %v1795 = vadd.f32 %v1595, %v1787
  %v1796 = vadd.f32 %v1596, %v1788
  %v1797 = vadd.f32 %v1597, %v1789
  %1798 = vrot.lane.b32.xlu0 %v150, 110
  %v1799 = vpop.permute.xlu0 %1798
  %1800 = vrot.lane.b32.xlu0 %v156, 110
  %v1801 = vpop.permute.xlu0 %1800
  %1802 = vrot.lane.b32.xlu0 %v162, 110
  %v1803 = vpop.permute.xlu0 %1802
  %1804 = vrot.lane.b32.xlu0 %v168, 110
  %v1805 = vpop.permute.xlu0 %1804
  %1806 = vrot.lane.b32.xlu0 %v152, 110
  %v1807 = vpop.permute.xlu0 %1806
  %1808 = vrot.lane.b32.xlu0 %v158, 110
  %v1809 = vpop.permute.xlu0 %1808
  %1810 = vrot.lane.b32.xlu0 %v164, 110
  %v1811 = vpop.permute.xlu0 %1810
  %1812 = vrot.lane.b32.xlu0 %v170, 110
  %v1813 = vpop.permute.xlu0 %1812
  %vm1814 = vcmp.lt.s32.totalorder %v189, 110
  %v1815 = vsel %vm1814, %v1799, %v1807
  %v1816 = vsel %vm1814, %v1801, %v1809
  %v1817 = vsel %vm1814, %v1803, %v1811
  %v1818 = vsel %vm1814, %v1805, %v1813
  %v1819 = vsel %vm1814, %v1807, %v1799
  %v1820 = vsel %vm1814, %v1809, %v1801
  %v1821 = vsel %vm1814, %v1811, %v1803
  %v1822 = vsel %vm1814, %v1813, %v1805
  %s1823 = scalar_lea.vmem %s3, 2112
  %v1824 = vld [vmem:[%s1823] sm:$0xff]
  %v1825 = vld [vmem:[%s1823 + $0x8] sm:$0xff]
  %v1826 = vld [vmem:[%s1823 + $0x10] sm:$0xff]
  %v1827 = vld [vmem:[%s1823 + $0x18] sm:$0xff]
  %v1828 = vld [vmem:[%s1823 + $0x20] sm:$0xff]
  %v1829 = vld [vmem:[%s1823 + $0x28] sm:$0xff]
  %v1830 = vld [vmem:[%s1823 + $0x30] sm:$0xff]
  %v1831 = vld [vmem:[%s1823 + $0x38] sm:$0xff]
  %v1832 = vmul.f32 %v1824, %v1815
  %v1833 = vmul.f32 %v1825, %v1819
  %v1834 = vmul.f32 %v1826, %v1816
  %v1835 = vmul.f32 %v1827, %v1820
  %v1836 = vmul.f32 %v1828, %v1817
  %v1837 = vmul.f32 %v1829, %v1821
  %v1838 = vmul.f32 %v1830, %v1818
  %v1839 = vmul.f32 %v1831, %v1822
  %v1840 = vadd.f32 %v1640, %v1832
  %v1841 = vadd.f32 %v1641, %v1833
  %v1842 = vadd.f32 %v1642, %v1834
  %v1843 = vadd.f32 %v1643, %v1835
  %v1844 = vadd.f32 %v1644, %v1836
  %v1845 = vadd.f32 %v1645, %v1837
  %v1846 = vadd.f32 %v1646, %v1838
  %v1847 = vadd.f32 %v1647, %v1839
  %1848 = vrot.lane.b32.xlu0 %v150, 109
  %v1849 = vpop.permute.xlu0 %1848
  %1850 = vrot.lane.b32.xlu0 %v156, 109
  %v1851 = vpop.permute.xlu0 %1850
  %1852 = vrot.lane.b32.xlu0 %v162, 109
  %v1853 = vpop.permute.xlu0 %1852
  %1854 = vrot.lane.b32.xlu0 %v168, 109
  %v1855 = vpop.permute.xlu0 %1854
  %1856 = vrot.lane.b32.xlu0 %v152, 109
  %v1857 = vpop.permute.xlu0 %1856
  %1858 = vrot.lane.b32.xlu0 %v158, 109
  %v1859 = vpop.permute.xlu0 %1858
  %1860 = vrot.lane.b32.xlu0 %v164, 109
  %v1861 = vpop.permute.xlu0 %1860
  %1862 = vrot.lane.b32.xlu0 %v170, 109
  %v1863 = vpop.permute.xlu0 %1862
  %vm1864 = vcmp.lt.s32.totalorder %v189, 109
  %v1865 = vsel %vm1864, %v1849, %v1857
  %v1866 = vsel %vm1864, %v1851, %v1859
  %v1867 = vsel %vm1864, %v1853, %v1861
  %v1868 = vsel %vm1864, %v1855, %v1863
  %v1869 = vsel %vm1864, %v1857, %v1849
  %v1870 = vsel %vm1864, %v1859, %v1851
  %v1871 = vsel %vm1864, %v1861, %v1853
  %v1872 = vsel %vm1864, %v1863, %v1855
  %s1873 = scalar_lea.vmem %s3, 2176
  %v1874 = vld [vmem:[%s1873] sm:$0xff]
  %v1875 = vld [vmem:[%s1873 + $0x8] sm:$0xff]
  %v1876 = vld [vmem:[%s1873 + $0x10] sm:$0xff]
  %v1877 = vld [vmem:[%s1873 + $0x18] sm:$0xff]
  %v1878 = vld [vmem:[%s1873 + $0x20] sm:$0xff]
  %v1879 = vld [vmem:[%s1873 + $0x28] sm:$0xff]
  %v1880 = vld [vmem:[%s1873 + $0x30] sm:$0xff]
  %v1881 = vld [vmem:[%s1873 + $0x38] sm:$0xff]
  %v1882 = vmul.f32 %v1874, %v1865
  %v1883 = vmul.f32 %v1875, %v1869
  %v1884 = vmul.f32 %v1876, %v1866
  %v1885 = vmul.f32 %v1877, %v1870
  %v1886 = vmul.f32 %v1878, %v1867
  %v1887 = vmul.f32 %v1879, %v1871
  %v1888 = vmul.f32 %v1880, %v1868
  %v1889 = vmul.f32 %v1881, %v1872
  %v1890 = vadd.f32 %v1690, %v1882
  %v1891 = vadd.f32 %v1691, %v1883
  %v1892 = vadd.f32 %v1692, %v1884
  %v1893 = vadd.f32 %v1693, %v1885
  %v1894 = vadd.f32 %v1694, %v1886
  %v1895 = vadd.f32 %v1695, %v1887
  %v1896 = vadd.f32 %v1696, %v1888
  %v1897 = vadd.f32 %v1697, %v1889
  %1898 = vrot.lane.b32.xlu0 %v150, 99
  %v1899 = vpop.permute.xlu0 %1898
  %1900 = vrot.lane.b32.xlu0 %v156, 99
  %v1901 = vpop.permute.xlu0 %1900
  %1902 = vrot.lane.b32.xlu0 %v162, 99
  %v1903 = vpop.permute.xlu0 %1902
  %1904 = vrot.lane.b32.xlu0 %v168, 99
  %v1905 = vpop.permute.xlu0 %1904
  %1906 = vrot.lane.b32.xlu0 %v152, 99
  %v1907 = vpop.permute.xlu0 %1906
  %1908 = vrot.lane.b32.xlu0 %v158, 99
  %v1909 = vpop.permute.xlu0 %1908
  %1910 = vrot.lane.b32.xlu0 %v164, 99
  %v1911 = vpop.permute.xlu0 %1910
  %1912 = vrot.lane.b32.xlu0 %v170, 99
  %v1913 = vpop.permute.xlu0 %1912
  %vm1914 = vcmp.lt.s32.totalorder %v189, 99
  %v1915 = vsel %vm1914, %v1899, %v1907
  %v1916 = vsel %vm1914, %v1901, %v1909
  %v1917 = vsel %vm1914, %v1903, %v1911
  %v1918 = vsel %vm1914, %v1905, %v1913
  %v1919 = vsel %vm1914, %v1907, %v1899
  %v1920 = vsel %vm1914, %v1909, %v1901
  %v1921 = vsel %vm1914, %v1911, %v1903
  %v1922 = vsel %vm1914, %v1913, %v1905
  %s1923 = scalar_lea.vmem %s3, 2240
  %v1924 = vld [vmem:[%s1923] sm:$0xff]
  %v1925 = vld [vmem:[%s1923 + $0x8] sm:$0xff]
  %v1926 = vld [vmem:[%s1923 + $0x10] sm:$0xff]
  %v1927 = vld [vmem:[%s1923 + $0x18] sm:$0xff]
  %v1928 = vld [vmem:[%s1923 + $0x20] sm:$0xff]
  %v1929 = vld [vmem:[%s1923 + $0x28] sm:$0xff]
  %v1930 = vld [vmem:[%s1923 + $0x30] sm:$0xff]
  %v1931 = vld [vmem:[%s1923 + $0x38] sm:$0xff]
  %v1932 = vmul.f32 %v1924, %v1915
  %v1933 = vmul.f32 %v1925, %v1919
  %v1934 = vmul.f32 %v1926, %v1916
  %v1935 = vmul.f32 %v1927, %v1920
  %v1936 = vmul.f32 %v1928, %v1917
  %v1937 = vmul.f32 %v1929, %v1921
  %v1938 = vmul.f32 %v1930, %v1918
  %v1939 = vmul.f32 %v1931, %v1922
  %v1940 = vadd.f32 %v1740, %v1932
  %v1941 = vadd.f32 %v1741, %v1933
  %v1942 = vadd.f32 %v1742, %v1934
  %v1943 = vadd.f32 %v1743, %v1935
  %v1944 = vadd.f32 %v1744, %v1936
  %v1945 = vadd.f32 %v1745, %v1937
  %v1946 = vadd.f32 %v1746, %v1938
  %v1947 = vadd.f32 %v1747, %v1939
  %1948 = vrot.lane.b32.xlu0 %v150, 98
  %v1949 = vpop.permute.xlu0 %1948
  %1950 = vrot.lane.b32.xlu0 %v156, 98
  %v1951 = vpop.permute.xlu0 %1950
  %1952 = vrot.lane.b32.xlu0 %v162, 98
  %v1953 = vpop.permute.xlu0 %1952
  %1954 = vrot.lane.b32.xlu0 %v168, 98
  %v1955 = vpop.permute.xlu0 %1954
  %1956 = vrot.lane.b32.xlu0 %v152, 98
  %v1957 = vpop.permute.xlu0 %1956
  %1958 = vrot.lane.b32.xlu0 %v158, 98
  %v1959 = vpop.permute.xlu0 %1958
  %1960 = vrot.lane.b32.xlu0 %v164, 98
  %v1961 = vpop.permute.xlu0 %1960
  %1962 = vrot.lane.b32.xlu0 %v170, 98
  %v1963 = vpop.permute.xlu0 %1962
  %vm1964 = vcmp.lt.s32.totalorder %v189, 98
  %v1965 = vsel %vm1964, %v1949, %v1957
  %v1966 = vsel %vm1964, %v1951, %v1959
  %v1967 = vsel %vm1964, %v1953, %v1961
  %v1968 = vsel %vm1964, %v1955, %v1963
  %v1969 = vsel %vm1964, %v1957, %v1949
  %v1970 = vsel %vm1964, %v1959, %v1951
  %v1971 = vsel %vm1964, %v1961, %v1953
  %v1972 = vsel %vm1964, %v1963, %v1955
  %s1973 = scalar_lea.vmem %s3, 2304
  %v1974 = vld [vmem:[%s1973] sm:$0xff]
  %v1975 = vld [vmem:[%s1973 + $0x8] sm:$0xff]
  %v1976 = vld [vmem:[%s1973 + $0x10] sm:$0xff]
  %v1977 = vld [vmem:[%s1973 + $0x18] sm:$0xff]
  %v1978 = vld [vmem:[%s1973 + $0x20] sm:$0xff]
  %v1979 = vld [vmem:[%s1973 + $0x28] sm:$0xff]
  %v1980 = vld [vmem:[%s1973 + $0x30] sm:$0xff]
  %v1981 = vld [vmem:[%s1973 + $0x38] sm:$0xff]
  %v1982 = vmul.f32 %v1974, %v1965
  %v1983 = vmul.f32 %v1975, %v1969
  %v1984 = vmul.f32 %v1976, %v1966
  %v1985 = vmul.f32 %v1977, %v1970
  %v1986 = vmul.f32 %v1978, %v1967
  %v1987 = vmul.f32 %v1979, %v1971
  %v1988 = vmul.f32 %v1980, %v1968
  %v1989 = vmul.f32 %v1981, %v1972
  %v1990 = vadd.f32 %v1790, %v1982
  %v1991 = vadd.f32 %v1791, %v1983
  %v1992 = vadd.f32 %v1792, %v1984
  %v1993 = vadd.f32 %v1793, %v1985
  %v1994 = vadd.f32 %v1794, %v1986
  %v1995 = vadd.f32 %v1795, %v1987
  %v1996 = vadd.f32 %v1796, %v1988
  %v1997 = vadd.f32 %v1797, %v1989
  %1998 = vrot.lane.b32.xlu0 %v150, 97
  %v1999 = vpop.permute.xlu0 %1998
  %2000 = vrot.lane.b32.xlu0 %v156, 97
  %v2001 = vpop.permute.xlu0 %2000
  %2002 = vrot.lane.b32.xlu0 %v162, 97
  %v2003 = vpop.permute.xlu0 %2002
  %2004 = vrot.lane.b32.xlu0 %v168, 97
  %v2005 = vpop.permute.xlu0 %2004
  %2006 = vrot.lane.b32.xlu0 %v152, 97
  %v2007 = vpop.permute.xlu0 %2006
  %2008 = vrot.lane.b32.xlu0 %v158, 97
  %v2009 = vpop.permute.xlu0 %2008
  %2010 = vrot.lane.b32.xlu0 %v164, 97
  %v2011 = vpop.permute.xlu0 %2010
  %2012 = vrot.lane.b32.xlu0 %v170, 97
  %v2013 = vpop.permute.xlu0 %2012
  %vm2014 = vcmp.lt.s32.totalorder %v189, 97
  %v2015 = vsel %vm2014, %v1999, %v2007
  %v2016 = vsel %vm2014, %v2001, %v2009
  %v2017 = vsel %vm2014, %v2003, %v2011
  %v2018 = vsel %vm2014, %v2005, %v2013
  %v2019 = vsel %vm2014, %v2007, %v1999
  %v2020 = vsel %vm2014, %v2009, %v2001
  %v2021 = vsel %vm2014, %v2011, %v2003
  %v2022 = vsel %vm2014, %v2013, %v2005
  %s2023 = scalar_lea.vmem %s3, 2368
  %v2024 = vld [vmem:[%s2023] sm:$0xff]
  %v2025 = vld [vmem:[%s2023 + $0x8] sm:$0xff]
  %v2026 = vld [vmem:[%s2023 + $0x10] sm:$0xff]
  %v2027 = vld [vmem:[%s2023 + $0x18] sm:$0xff]
  %v2028 = vld [vmem:[%s2023 + $0x20] sm:$0xff]
  %v2029 = vld [vmem:[%s2023 + $0x28] sm:$0xff]
  %v2030 = vld [vmem:[%s2023 + $0x30] sm:$0xff]
  %v2031 = vld [vmem:[%s2023 + $0x38] sm:$0xff]
  %v2032 = vmul.f32 %v2024, %v2015
  %v2033 = vmul.f32 %v2025, %v2019
  %v2034 = vmul.f32 %v2026, %v2016
  %v2035 = vmul.f32 %v2027, %v2020
  %v2036 = vmul.f32 %v2028, %v2017
  %v2037 = vmul.f32 %v2029, %v2021
  %v2038 = vmul.f32 %v2030, %v2018
  %v2039 = vmul.f32 %v2031, %v2022
  %v2040 = vadd.f32 %v1840, %v2032
  %v2041 = vadd.f32 %v1841, %v2033
  %v2042 = vadd.f32 %v1842, %v2034
  %v2043 = vadd.f32 %v1843, %v2035
  %v2044 = vadd.f32 %v1844, %v2036
  %v2045 = vadd.f32 %v1845, %v2037
  %v2046 = vadd.f32 %v1846, %v2038
  %v2047 = vadd.f32 %v1847, %v2039
  %2048 = vrot.lane.b32.xlu0 %v150, 96
  %v2049 = vpop.permute.xlu0 %2048
  %2050 = vrot.lane.b32.xlu0 %v156, 96
  %v2051 = vpop.permute.xlu0 %2050
  %2052 = vrot.lane.b32.xlu0 %v162, 96
  %v2053 = vpop.permute.xlu0 %2052
  %2054 = vrot.lane.b32.xlu0 %v168, 96
  %v2055 = vpop.permute.xlu0 %2054
  %2056 = vrot.lane.b32.xlu0 %v152, 96
  %v2057 = vpop.permute.xlu0 %2056
  %2058 = vrot.lane.b32.xlu0 %v158, 96
  %v2059 = vpop.permute.xlu0 %2058
  %2060 = vrot.lane.b32.xlu0 %v164, 96
  %v2061 = vpop.permute.xlu0 %2060
  %2062 = vrot.lane.b32.xlu0 %v170, 96
  %v2063 = vpop.permute.xlu0 %2062
  %vm2064 = vcmp.lt.s32.totalorder %v189, 96
  %v2065 = vsel %vm2064, %v2049, %v2057
  %v2066 = vsel %vm2064, %v2051, %v2059
  %v2067 = vsel %vm2064, %v2053, %v2061
  %v2068 = vsel %vm2064, %v2055, %v2063
  %v2069 = vsel %vm2064, %v2057, %v2049
  %v2070 = vsel %vm2064, %v2059, %v2051
  %v2071 = vsel %vm2064, %v2061, %v2053
  %v2072 = vsel %vm2064, %v2063, %v2055
  %s2073 = scalar_lea.vmem %s3, 2432
  %v2074 = vld [vmem:[%s2073] sm:$0xff]
  %v2075 = vld [vmem:[%s2073 + $0x8] sm:$0xff]
  %v2076 = vld [vmem:[%s2073 + $0x10] sm:$0xff]
  %v2077 = vld [vmem:[%s2073 + $0x18] sm:$0xff]
  %v2078 = vld [vmem:[%s2073 + $0x20] sm:$0xff]
  %v2079 = vld [vmem:[%s2073 + $0x28] sm:$0xff]
  %v2080 = vld [vmem:[%s2073 + $0x30] sm:$0xff]
  %v2081 = vld [vmem:[%s2073 + $0x38] sm:$0xff]
  %v2082 = vmul.f32 %v2074, %v2065
  %v2083 = vmul.f32 %v2075, %v2069
  %v2084 = vmul.f32 %v2076, %v2066
  %v2085 = vmul.f32 %v2077, %v2070
  %v2086 = vmul.f32 %v2078, %v2067
  %v2087 = vmul.f32 %v2079, %v2071
  %v2088 = vmul.f32 %v2080, %v2068
  %v2089 = vmul.f32 %v2081, %v2072
  %v2090 = vadd.f32 %v1890, %v2082
  %v2091 = vadd.f32 %v1891, %v2083
  %v2092 = vadd.f32 %v1892, %v2084
  %v2093 = vadd.f32 %v1893, %v2085
  %v2094 = vadd.f32 %v1894, %v2086
  %v2095 = vadd.f32 %v1895, %v2087
  %v2096 = vadd.f32 %v1896, %v2088
  %v2097 = vadd.f32 %v1897, %v2089
  %2098 = vrot.lane.b32.xlu0 %v150, 95
  %v2099 = vpop.permute.xlu0 %2098
  %2100 = vrot.lane.b32.xlu0 %v156, 95
  %v2101 = vpop.permute.xlu0 %2100
  %2102 = vrot.lane.b32.xlu0 %v162, 95
  %v2103 = vpop.permute.xlu0 %2102
  %2104 = vrot.lane.b32.xlu0 %v168, 95
  %v2105 = vpop.permute.xlu0 %2104
  %2106 = vrot.lane.b32.xlu0 %v152, 95
  %v2107 = vpop.permute.xlu0 %2106
  %2108 = vrot.lane.b32.xlu0 %v158, 95
  %v2109 = vpop.permute.xlu0 %2108
  %2110 = vrot.lane.b32.xlu0 %v164, 95
  %v2111 = vpop.permute.xlu0 %2110
  %2112 = vrot.lane.b32.xlu0 %v170, 95
  %v2113 = vpop.permute.xlu0 %2112
  %vm2114 = vcmp.lt.s32.totalorder %v189, 95
  %v2115 = vsel %vm2114, %v2099, %v2107
  %v2116 = vsel %vm2114, %v2101, %v2109
  %v2117 = vsel %vm2114, %v2103, %v2111
  %v2118 = vsel %vm2114, %v2105, %v2113
  %v2119 = vsel %vm2114, %v2107, %v2099
  %v2120 = vsel %vm2114, %v2109, %v2101
  %v2121 = vsel %vm2114, %v2111, %v2103
  %v2122 = vsel %vm2114, %v2113, %v2105
  %s2123 = scalar_lea.vmem %s3, 2496
  %v2124 = vld [vmem:[%s2123] sm:$0xff]
  %v2125 = vld [vmem:[%s2123 + $0x8] sm:$0xff]
  %v2126 = vld [vmem:[%s2123 + $0x10] sm:$0xff]
  %v2127 = vld [vmem:[%s2123 + $0x18] sm:$0xff]
  %v2128 = vld [vmem:[%s2123 + $0x20] sm:$0xff]
  %v2129 = vld [vmem:[%s2123 + $0x28] sm:$0xff]
  %v2130 = vld [vmem:[%s2123 + $0x30] sm:$0xff]
  %v2131 = vld [vmem:[%s2123 + $0x38] sm:$0xff]
  %v2132 = vmul.f32 %v2124, %v2115
  %v2133 = vmul.f32 %v2125, %v2119
  %v2134 = vmul.f32 %v2126, %v2116
  %v2135 = vmul.f32 %v2127, %v2120
  %v2136 = vmul.f32 %v2128, %v2117
  %v2137 = vmul.f32 %v2129, %v2121
  %v2138 = vmul.f32 %v2130, %v2118
  %v2139 = vmul.f32 %v2131, %v2122
  %v2140 = vadd.f32 %v1940, %v2132
  %v2141 = vadd.f32 %v1941, %v2133
  %v2142 = vadd.f32 %v1942, %v2134
  %v2143 = vadd.f32 %v1943, %v2135
  %v2144 = vadd.f32 %v1944, %v2136
  %v2145 = vadd.f32 %v1945, %v2137
  %v2146 = vadd.f32 %v1946, %v2138
  %v2147 = vadd.f32 %v1947, %v2139
  %2148 = vrot.lane.b32.xlu0 %v150, 94
  %v2149 = vpop.permute.xlu0 %2148
  %2150 = vrot.lane.b32.xlu0 %v156, 94
  %v2151 = vpop.permute.xlu0 %2150
  %2152 = vrot.lane.b32.xlu0 %v162, 94
  %v2153 = vpop.permute.xlu0 %2152
  %2154 = vrot.lane.b32.xlu0 %v168, 94
  %v2155 = vpop.permute.xlu0 %2154
  %2156 = vrot.lane.b32.xlu0 %v152, 94
  %v2157 = vpop.permute.xlu0 %2156
  %2158 = vrot.lane.b32.xlu0 %v158, 94
  %v2159 = vpop.permute.xlu0 %2158
  %2160 = vrot.lane.b32.xlu0 %v164, 94
  %v2161 = vpop.permute.xlu0 %2160
  %2162 = vrot.lane.b32.xlu0 %v170, 94
  %v2163 = vpop.permute.xlu0 %2162
  %vm2164 = vcmp.lt.s32.totalorder %v189, 94
  %v2165 = vsel %vm2164, %v2149, %v2157
  %v2166 = vsel %vm2164, %v2151, %v2159
  %v2167 = vsel %vm2164, %v2153, %v2161
  %v2168 = vsel %vm2164, %v2155, %v2163
  %v2169 = vsel %vm2164, %v2157, %v2149
  %v2170 = vsel %vm2164, %v2159, %v2151
  %v2171 = vsel %vm2164, %v2161, %v2153
  %v2172 = vsel %vm2164, %v2163, %v2155
  %s2173 = scalar_lea.vmem %s3, 2560
  %v2174 = vld [vmem:[%s2173] sm:$0xff]
  %v2175 = vld [vmem:[%s2173 + $0x8] sm:$0xff]
  %v2176 = vld [vmem:[%s2173 + $0x10] sm:$0xff]
  %v2177 = vld [vmem:[%s2173 + $0x18] sm:$0xff]
  %v2178 = vld [vmem:[%s2173 + $0x20] sm:$0xff]
  %v2179 = vld [vmem:[%s2173 + $0x28] sm:$0xff]
  %v2180 = vld [vmem:[%s2173 + $0x30] sm:$0xff]
  %v2181 = vld [vmem:[%s2173 + $0x38] sm:$0xff]
  %v2182 = vmul.f32 %v2174, %v2165
  %v2183 = vmul.f32 %v2175, %v2169
  %v2184 = vmul.f32 %v2176, %v2166
  %v2185 = vmul.f32 %v2177, %v2170
  %v2186 = vmul.f32 %v2178, %v2167
  %v2187 = vmul.f32 %v2179, %v2171
  %v2188 = vmul.f32 %v2180, %v2168
  %v2189 = vmul.f32 %v2181, %v2172
  %v2190 = vadd.f32 %v1990, %v2182
  %v2191 = vadd.f32 %v1991, %v2183
  %v2192 = vadd.f32 %v1992, %v2184
  %v2193 = vadd.f32 %v1993, %v2185
  %v2194 = vadd.f32 %v1994, %v2186
  %v2195 = vadd.f32 %v1995, %v2187
  %v2196 = vadd.f32 %v1996, %v2188
  %v2197 = vadd.f32 %v1997, %v2189
  %2198 = vrot.lane.b32.xlu0 %v150, 93
  %v2199 = vpop.permute.xlu0 %2198
  %2200 = vrot.lane.b32.xlu0 %v156, 93
  %v2201 = vpop.permute.xlu0 %2200
  %2202 = vrot.lane.b32.xlu0 %v162, 93
  %v2203 = vpop.permute.xlu0 %2202
  %2204 = vrot.lane.b32.xlu0 %v168, 93
  %v2205 = vpop.permute.xlu0 %2204
  %2206 = vrot.lane.b32.xlu0 %v152, 93
  %v2207 = vpop.permute.xlu0 %2206
  %2208 = vrot.lane.b32.xlu0 %v158, 93
  %v2209 = vpop.permute.xlu0 %2208
  %2210 = vrot.lane.b32.xlu0 %v164, 93
  %v2211 = vpop.permute.xlu0 %2210
  %2212 = vrot.lane.b32.xlu0 %v170, 93
  %v2213 = vpop.permute.xlu0 %2212
  %vm2214 = vcmp.lt.s32.totalorder %v189, 93
  %v2215 = vsel %vm2214, %v2199, %v2207
  %v2216 = vsel %vm2214, %v2201, %v2209
  %v2217 = vsel %vm2214, %v2203, %v2211
  %v2218 = vsel %vm2214, %v2205, %v2213
  %v2219 = vsel %vm2214, %v2207, %v2199
  %v2220 = vsel %vm2214, %v2209, %v2201
  %v2221 = vsel %vm2214, %v2211, %v2203
  %v2222 = vsel %vm2214, %v2213, %v2205
  %s2223 = scalar_lea.vmem %s3, 2624
  %v2224 = vld [vmem:[%s2223] sm:$0xff]
  %v2225 = vld [vmem:[%s2223 + $0x8] sm:$0xff]
  %v2226 = vld [vmem:[%s2223 + $0x10] sm:$0xff]
  %v2227 = vld [vmem:[%s2223 + $0x18] sm:$0xff]
  %v2228 = vld [vmem:[%s2223 + $0x20] sm:$0xff]
  %v2229 = vld [vmem:[%s2223 + $0x28] sm:$0xff]
  %v2230 = vld [vmem:[%s2223 + $0x30] sm:$0xff]
  %v2231 = vld [vmem:[%s2223 + $0x38] sm:$0xff]
  %v2232 = vmul.f32 %v2224, %v2215
  %v2233 = vmul.f32 %v2225, %v2219
  %v2234 = vmul.f32 %v2226, %v2216
  %v2235 = vmul.f32 %v2227, %v2220
  %v2236 = vmul.f32 %v2228, %v2217
  %v2237 = vmul.f32 %v2229, %v2221
  %v2238 = vmul.f32 %v2230, %v2218
  %v2239 = vmul.f32 %v2231, %v2222
  %v2240 = vadd.f32 %v2040, %v2232
  %v2241 = vadd.f32 %v2041, %v2233
  %v2242 = vadd.f32 %v2042, %v2234
  %v2243 = vadd.f32 %v2043, %v2235
  %v2244 = vadd.f32 %v2044, %v2236
  %v2245 = vadd.f32 %v2045, %v2237
  %v2246 = vadd.f32 %v2046, %v2238
  %v2247 = vadd.f32 %v2047, %v2239
  %2248 = vrot.lane.b32.xlu0 %v150, 83
  %v2249 = vpop.permute.xlu0 %2248
  %2250 = vrot.lane.b32.xlu0 %v156, 83
  %v2251 = vpop.permute.xlu0 %2250
  %2252 = vrot.lane.b32.xlu0 %v162, 83
  %v2253 = vpop.permute.xlu0 %2252
  %2254 = vrot.lane.b32.xlu0 %v168, 83
  %v2255 = vpop.permute.xlu0 %2254
  %2256 = vrot.lane.b32.xlu0 %v152, 83
  %v2257 = vpop.permute.xlu0 %2256
  %2258 = vrot.lane.b32.xlu0 %v158, 83
  %v2259 = vpop.permute.xlu0 %2258
  %2260 = vrot.lane.b32.xlu0 %v164, 83
  %v2261 = vpop.permute.xlu0 %2260
  %2262 = vrot.lane.b32.xlu0 %v170, 83
  %v2263 = vpop.permute.xlu0 %2262
  %vm2264 = vcmp.lt.s32.totalorder %v189, 83
  %v2265 = vsel %vm2264, %v2249, %v2257
  %v2266 = vsel %vm2264, %v2251, %v2259
  %v2267 = vsel %vm2264, %v2253, %v2261
  %v2268 = vsel %vm2264, %v2255, %v2263
  %v2269 = vsel %vm2264, %v2257, %v2249
  %v2270 = vsel %vm2264, %v2259, %v2251
  %v2271 = vsel %vm2264, %v2261, %v2253
  %v2272 = vsel %vm2264, %v2263, %v2255
  %s2273 = scalar_lea.vmem %s3, 2688
  %v2274 = vld [vmem:[%s2273] sm:$0xff]
  %v2275 = vld [vmem:[%s2273 + $0x8] sm:$0xff]
  %v2276 = vld [vmem:[%s2273 + $0x10] sm:$0xff]
  %v2277 = vld [vmem:[%s2273 + $0x18] sm:$0xff]
  %v2278 = vld [vmem:[%s2273 + $0x20] sm:$0xff]
  %v2279 = vld [vmem:[%s2273 + $0x28] sm:$0xff]
  %v2280 = vld [vmem:[%s2273 + $0x30] sm:$0xff]
  %v2281 = vld [vmem:[%s2273 + $0x38] sm:$0xff]
  %v2282 = vmul.f32 %v2274, %v2265
  %v2283 = vmul.f32 %v2275, %v2269
  %v2284 = vmul.f32 %v2276, %v2266
  %v2285 = vmul.f32 %v2277, %v2270
  %v2286 = vmul.f32 %v2278, %v2267
  %v2287 = vmul.f32 %v2279, %v2271
  %v2288 = vmul.f32 %v2280, %v2268
  %v2289 = vmul.f32 %v2281, %v2272
  %v2290 = vadd.f32 %v2090, %v2282
  %v2291 = vadd.f32 %v2091, %v2283
  %v2292 = vadd.f32 %v2092, %v2284
  %v2293 = vadd.f32 %v2093, %v2285
  %v2294 = vadd.f32 %v2094, %v2286
  %v2295 = vadd.f32 %v2095, %v2287
  %v2296 = vadd.f32 %v2096, %v2288
  %v2297 = vadd.f32 %v2097, %v2289
  %2298 = vrot.lane.b32.xlu0 %v150, 82
  %v2299 = vpop.permute.xlu0 %2298
  %2300 = vrot.lane.b32.xlu0 %v156, 82
  %v2301 = vpop.permute.xlu0 %2300
  %2302 = vrot.lane.b32.xlu0 %v162, 82
  %v2303 = vpop.permute.xlu0 %2302
  %2304 = vrot.lane.b32.xlu0 %v168, 82
  %v2305 = vpop.permute.xlu0 %2304
  %2306 = vrot.lane.b32.xlu0 %v152, 82
  %v2307 = vpop.permute.xlu0 %2306
  %2308 = vrot.lane.b32.xlu0 %v158, 82
  %v2309 = vpop.permute.xlu0 %2308
  %2310 = vrot.lane.b32.xlu0 %v164, 82
  %v2311 = vpop.permute.xlu0 %2310
  %2312 = vrot.lane.b32.xlu0 %v170, 82
  %v2313 = vpop.permute.xlu0 %2312
  %vm2314 = vcmp.lt.s32.totalorder %v189, 82
  %v2315 = vsel %vm2314, %v2299, %v2307
  %v2316 = vsel %vm2314, %v2301, %v2309
  %v2317 = vsel %vm2314, %v2303, %v2311
  %v2318 = vsel %vm2314, %v2305, %v2313
  %v2319 = vsel %vm2314, %v2307, %v2299
  %v2320 = vsel %vm2314, %v2309, %v2301
  %v2321 = vsel %vm2314, %v2311, %v2303
  %v2322 = vsel %vm2314, %v2313, %v2305
  %s2323 = scalar_lea.vmem %s3, 2752
  %v2324 = vld [vmem:[%s2323] sm:$0xff]
  %v2325 = vld [vmem:[%s2323 + $0x8] sm:$0xff]
  %v2326 = vld [vmem:[%s2323 + $0x10] sm:$0xff]
  %v2327 = vld [vmem:[%s2323 + $0x18] sm:$0xff]
  %v2328 = vld [vmem:[%s2323 + $0x20] sm:$0xff]
  %v2329 = vld [vmem:[%s2323 + $0x28] sm:$0xff]
  %v2330 = vld [vmem:[%s2323 + $0x30] sm:$0xff]
  %v2331 = vld [vmem:[%s2323 + $0x38] sm:$0xff]
  %v2332 = vmul.f32 %v2324, %v2315
  %v2333 = vmul.f32 %v2325, %v2319
  %v2334 = vmul.f32 %v2326, %v2316
  %v2335 = vmul.f32 %v2327, %v2320
  %v2336 = vmul.f32 %v2328, %v2317
  %v2337 = vmul.f32 %v2329, %v2321
  %v2338 = vmul.f32 %v2330, %v2318
  %v2339 = vmul.f32 %v2331, %v2322
  %v2340 = vadd.f32 %v2140, %v2332
  %v2341 = vadd.f32 %v2141, %v2333
  %v2342 = vadd.f32 %v2142, %v2334
  %v2343 = vadd.f32 %v2143, %v2335
  %v2344 = vadd.f32 %v2144, %v2336
  %v2345 = vadd.f32 %v2145, %v2337
  %v2346 = vadd.f32 %v2146, %v2338
  %v2347 = vadd.f32 %v2147, %v2339
  %2348 = vrot.lane.b32.xlu0 %v150, 81
  %v2349 = vpop.permute.xlu0 %2348
  %2350 = vrot.lane.b32.xlu0 %v156, 81
  %v2351 = vpop.permute.xlu0 %2350
  %2352 = vrot.lane.b32.xlu0 %v162, 81
  %v2353 = vpop.permute.xlu0 %2352
  %2354 = vrot.lane.b32.xlu0 %v168, 81
  %v2355 = vpop.permute.xlu0 %2354
  %2356 = vrot.lane.b32.xlu0 %v152, 81
  %v2357 = vpop.permute.xlu0 %2356
  %2358 = vrot.lane.b32.xlu0 %v158, 81
  %v2359 = vpop.permute.xlu0 %2358
  %2360 = vrot.lane.b32.xlu0 %v164, 81
  %v2361 = vpop.permute.xlu0 %2360
  %2362 = vrot.lane.b32.xlu0 %v170, 81
  %v2363 = vpop.permute.xlu0 %2362
  %vm2364 = vcmp.lt.s32.totalorder %v189, 81
  %v2365 = vsel %vm2364, %v2349, %v2357
  %v2366 = vsel %vm2364, %v2351, %v2359
  %v2367 = vsel %vm2364, %v2353, %v2361
  %v2368 = vsel %vm2364, %v2355, %v2363
  %v2369 = vsel %vm2364, %v2357, %v2349
  %v2370 = vsel %vm2364, %v2359, %v2351
  %v2371 = vsel %vm2364, %v2361, %v2353
  %v2372 = vsel %vm2364, %v2363, %v2355
  %s2373 = scalar_lea.vmem %s3, 2816
  %v2374 = vld [vmem:[%s2373] sm:$0xff]
  %v2375 = vld [vmem:[%s2373 + $0x8] sm:$0xff]
  %v2376 = vld [vmem:[%s2373 + $0x10] sm:$0xff]
  %v2377 = vld [vmem:[%s2373 + $0x18] sm:$0xff]
  %v2378 = vld [vmem:[%s2373 + $0x20] sm:$0xff]
  %v2379 = vld [vmem:[%s2373 + $0x28] sm:$0xff]
  %v2380 = vld [vmem:[%s2373 + $0x30] sm:$0xff]
  %v2381 = vld [vmem:[%s2373 + $0x38] sm:$0xff]
  %v2382 = vmul.f32 %v2374, %v2365
  %v2383 = vmul.f32 %v2375, %v2369
  %v2384 = vmul.f32 %v2376, %v2366
  %v2385 = vmul.f32 %v2377, %v2370
  %v2386 = vmul.f32 %v2378, %v2367
  %v2387 = vmul.f32 %v2379, %v2371
  %v2388 = vmul.f32 %v2380, %v2368
  %v2389 = vmul.f32 %v2381, %v2372
  %v2390 = vadd.f32 %v2190, %v2382
  %v2391 = vadd.f32 %v2191, %v2383
  %v2392 = vadd.f32 %v2192, %v2384
  %v2393 = vadd.f32 %v2193, %v2385
  %v2394 = vadd.f32 %v2194, %v2386
  %v2395 = vadd.f32 %v2195, %v2387
  %v2396 = vadd.f32 %v2196, %v2388
  %v2397 = vadd.f32 %v2197, %v2389
  %2398 = vrot.lane.b32.xlu0 %v150, 80
  %v2399 = vpop.permute.xlu0 %2398
  %2400 = vrot.lane.b32.xlu0 %v156, 80
  %v2401 = vpop.permute.xlu0 %2400
  %2402 = vrot.lane.b32.xlu0 %v162, 80
  %v2403 = vpop.permute.xlu0 %2402
  %2404 = vrot.lane.b32.xlu0 %v168, 80
  %v2405 = vpop.permute.xlu0 %2404
  %2406 = vrot.lane.b32.xlu0 %v152, 80
  %v2407 = vpop.permute.xlu0 %2406
  %2408 = vrot.lane.b32.xlu0 %v158, 80
  %v2409 = vpop.permute.xlu0 %2408
  %2410 = vrot.lane.b32.xlu0 %v164, 80
  %v2411 = vpop.permute.xlu0 %2410
  %2412 = vrot.lane.b32.xlu0 %v170, 80
  %v2413 = vpop.permute.xlu0 %2412
  %vm2414 = vcmp.lt.s32.totalorder %v189, 80
  %v2415 = vsel %vm2414, %v2399, %v2407
  %v2416 = vsel %vm2414, %v2401, %v2409
  %v2417 = vsel %vm2414, %v2403, %v2411
  %v2418 = vsel %vm2414, %v2405, %v2413
  %v2419 = vsel %vm2414, %v2407, %v2399
  %v2420 = vsel %vm2414, %v2409, %v2401
  %v2421 = vsel %vm2414, %v2411, %v2403
  %v2422 = vsel %vm2414, %v2413, %v2405
  %s2423 = scalar_lea.vmem %s3, 2880
  %v2424 = vld [vmem:[%s2423] sm:$0xff]
  %v2425 = vld [vmem:[%s2423 + $0x8] sm:$0xff]
  %v2426 = vld [vmem:[%s2423 + $0x10] sm:$0xff]
  %v2427 = vld [vmem:[%s2423 + $0x18] sm:$0xff]
  %v2428 = vld [vmem:[%s2423 + $0x20] sm:$0xff]
  %v2429 = vld [vmem:[%s2423 + $0x28] sm:$0xff]
  %v2430 = vld [vmem:[%s2423 + $0x30] sm:$0xff]
  %v2431 = vld [vmem:[%s2423 + $0x38] sm:$0xff]
  %v2432 = vmul.f32 %v2424, %v2415
  %v2433 = vmul.f32 %v2425, %v2419
  %v2434 = vmul.f32 %v2426, %v2416
  %v2435 = vmul.f32 %v2427, %v2420
  %v2436 = vmul.f32 %v2428, %v2417
  %v2437 = vmul.f32 %v2429, %v2421
  %v2438 = vmul.f32 %v2430, %v2418
  %v2439 = vmul.f32 %v2431, %v2422
  %v2440 = vadd.f32 %v2240, %v2432
  %v2441 = vadd.f32 %v2241, %v2433
  %v2442 = vadd.f32 %v2242, %v2434
  %v2443 = vadd.f32 %v2243, %v2435
  %v2444 = vadd.f32 %v2244, %v2436
  %v2445 = vadd.f32 %v2245, %v2437
  %v2446 = vadd.f32 %v2246, %v2438
  %v2447 = vadd.f32 %v2247, %v2439
  %2448 = vrot.lane.b32.xlu0 %v150, 79
  %v2449 = vpop.permute.xlu0 %2448
  %2450 = vrot.lane.b32.xlu0 %v156, 79
  %v2451 = vpop.permute.xlu0 %2450
  %2452 = vrot.lane.b32.xlu0 %v162, 79
  %v2453 = vpop.permute.xlu0 %2452
  %2454 = vrot.lane.b32.xlu0 %v168, 79
  %v2455 = vpop.permute.xlu0 %2454
  %2456 = vrot.lane.b32.xlu0 %v152, 79
  %v2457 = vpop.permute.xlu0 %2456
  %2458 = vrot.lane.b32.xlu0 %v158, 79
  %v2459 = vpop.permute.xlu0 %2458
  %2460 = vrot.lane.b32.xlu0 %v164, 79
  %v2461 = vpop.permute.xlu0 %2460
  %2462 = vrot.lane.b32.xlu0 %v170, 79
  %v2463 = vpop.permute.xlu0 %2462
  %vm2464 = vcmp.lt.s32.totalorder %v189, 79
  %v2465 = vsel %vm2464, %v2449, %v2457
  %v2466 = vsel %vm2464, %v2451, %v2459
  %v2467 = vsel %vm2464, %v2453, %v2461
  %v2468 = vsel %vm2464, %v2455, %v2463
  %v2469 = vsel %vm2464, %v2457, %v2449
  %v2470 = vsel %vm2464, %v2459, %v2451
  %v2471 = vsel %vm2464, %v2461, %v2453
  %v2472 = vsel %vm2464, %v2463, %v2455
  %s2473 = scalar_lea.vmem %s3, 2944
  %v2474 = vld [vmem:[%s2473] sm:$0xff]
  %v2475 = vld [vmem:[%s2473 + $0x8] sm:$0xff]
  %v2476 = vld [vmem:[%s2473 + $0x10] sm:$0xff]
  %v2477 = vld [vmem:[%s2473 + $0x18] sm:$0xff]
  %v2478 = vld [vmem:[%s2473 + $0x20] sm:$0xff]
  %v2479 = vld [vmem:[%s2473 + $0x28] sm:$0xff]
  %v2480 = vld [vmem:[%s2473 + $0x30] sm:$0xff]
  %v2481 = vld [vmem:[%s2473 + $0x38] sm:$0xff]
  %v2482 = vmul.f32 %v2474, %v2465
  %v2483 = vmul.f32 %v2475, %v2469
  %v2484 = vmul.f32 %v2476, %v2466
  %v2485 = vmul.f32 %v2477, %v2470
  %v2486 = vmul.f32 %v2478, %v2467
  %v2487 = vmul.f32 %v2479, %v2471
  %v2488 = vmul.f32 %v2480, %v2468
  %v2489 = vmul.f32 %v2481, %v2472
  %v2490 = vadd.f32 %v2290, %v2482
  %v2491 = vadd.f32 %v2291, %v2483
  %v2492 = vadd.f32 %v2292, %v2484
  %v2493 = vadd.f32 %v2293, %v2485
  %v2494 = vadd.f32 %v2294, %v2486
  %v2495 = vadd.f32 %v2295, %v2487
  %v2496 = vadd.f32 %v2296, %v2488
  %v2497 = vadd.f32 %v2297, %v2489
  %2498 = vrot.lane.b32.xlu0 %v150, 78
  %v2499 = vpop.permute.xlu0 %2498
  %2500 = vrot.lane.b32.xlu0 %v156, 78
  %v2501 = vpop.permute.xlu0 %2500
  %2502 = vrot.lane.b32.xlu0 %v162, 78
  %v2503 = vpop.permute.xlu0 %2502
  %2504 = vrot.lane.b32.xlu0 %v168, 78
  %v2505 = vpop.permute.xlu0 %2504
  %2506 = vrot.lane.b32.xlu0 %v152, 78
  %v2507 = vpop.permute.xlu0 %2506
  %2508 = vrot.lane.b32.xlu0 %v158, 78
  %v2509 = vpop.permute.xlu0 %2508
  %2510 = vrot.lane.b32.xlu0 %v164, 78
  %v2511 = vpop.permute.xlu0 %2510
  %2512 = vrot.lane.b32.xlu0 %v170, 78
  %v2513 = vpop.permute.xlu0 %2512
  %vm2514 = vcmp.lt.s32.totalorder %v189, 78
  %v2515 = vsel %vm2514, %v2499, %v2507
  %v2516 = vsel %vm2514, %v2501, %v2509
  %v2517 = vsel %vm2514, %v2503, %v2511
  %v2518 = vsel %vm2514, %v2505, %v2513
  %v2519 = vsel %vm2514, %v2507, %v2499
  %v2520 = vsel %vm2514, %v2509, %v2501
  %v2521 = vsel %vm2514, %v2511, %v2503
  %v2522 = vsel %vm2514, %v2513, %v2505
  %s2523 = scalar_lea.vmem %s3, 3008
  %v2524 = vld [vmem:[%s2523] sm:$0xff]
  %v2525 = vld [vmem:[%s2523 + $0x8] sm:$0xff]
  %v2526 = vld [vmem:[%s2523 + $0x10] sm:$0xff]
  %v2527 = vld [vmem:[%s2523 + $0x18] sm:$0xff]
  %v2528 = vld [vmem:[%s2523 + $0x20] sm:$0xff]
  %v2529 = vld [vmem:[%s2523 + $0x28] sm:$0xff]
  %v2530 = vld [vmem:[%s2523 + $0x30] sm:$0xff]
  %v2531 = vld [vmem:[%s2523 + $0x38] sm:$0xff]
  %v2532 = vmul.f32 %v2524, %v2515
  %v2533 = vmul.f32 %v2525, %v2519
  %v2534 = vmul.f32 %v2526, %v2516
  %v2535 = vmul.f32 %v2527, %v2520
  %v2536 = vmul.f32 %v2528, %v2517
  %v2537 = vmul.f32 %v2529, %v2521
  %v2538 = vmul.f32 %v2530, %v2518
  %v2539 = vmul.f32 %v2531, %v2522
  %v2540 = vadd.f32 %v2340, %v2532
  %v2541 = vadd.f32 %v2341, %v2533
  %v2542 = vadd.f32 %v2342, %v2534
  %v2543 = vadd.f32 %v2343, %v2535
  %v2544 = vadd.f32 %v2344, %v2536
  %v2545 = vadd.f32 %v2345, %v2537
  %v2546 = vadd.f32 %v2346, %v2538
  %v2547 = vadd.f32 %v2347, %v2539
  %2548 = vrot.lane.b32.xlu0 %v150, 77
  %v2549 = vpop.permute.xlu0 %2548
  %2550 = vrot.lane.b32.xlu0 %v156, 77
  %v2551 = vpop.permute.xlu0 %2550
  %2552 = vrot.lane.b32.xlu0 %v162, 77
  %v2553 = vpop.permute.xlu0 %2552
  %2554 = vrot.lane.b32.xlu0 %v168, 77
  %v2555 = vpop.permute.xlu0 %2554
  %2556 = vrot.lane.b32.xlu0 %v152, 77
  %v2557 = vpop.permute.xlu0 %2556
  %2558 = vrot.lane.b32.xlu0 %v158, 77
  %v2559 = vpop.permute.xlu0 %2558
  %2560 = vrot.lane.b32.xlu0 %v164, 77
  %v2561 = vpop.permute.xlu0 %2560
  %2562 = vrot.lane.b32.xlu0 %v170, 77
  %v2563 = vpop.permute.xlu0 %2562
  %vm2564 = vcmp.lt.s32.totalorder %v189, 77
  %v2565 = vsel %vm2564, %v2549, %v2557
  %v2566 = vsel %vm2564, %v2551, %v2559
  %v2567 = vsel %vm2564, %v2553, %v2561
  %v2568 = vsel %vm2564, %v2555, %v2563
  %v2569 = vsel %vm2564, %v2557, %v2549
  %v2570 = vsel %vm2564, %v2559, %v2551
  %v2571 = vsel %vm2564, %v2561, %v2553
  %v2572 = vsel %vm2564, %v2563, %v2555
  %s2573 = scalar_lea.vmem %s3, 3072
  %v2574 = vld [vmem:[%s2573] sm:$0xff]
  %v2575 = vld [vmem:[%s2573 + $0x8] sm:$0xff]
  %v2576 = vld [vmem:[%s2573 + $0x10] sm:$0xff]
  %v2577 = vld [vmem:[%s2573 + $0x18] sm:$0xff]
  %v2578 = vld [vmem:[%s2573 + $0x20] sm:$0xff]
  %v2579 = vld [vmem:[%s2573 + $0x28] sm:$0xff]
  %v2580 = vld [vmem:[%s2573 + $0x30] sm:$0xff]
  %v2581 = vld [vmem:[%s2573 + $0x38] sm:$0xff]
  %v2582 = vmul.f32 %v2574, %v2565
  %v2583 = vmul.f32 %v2575, %v2569
  %v2584 = vmul.f32 %v2576, %v2566
  %v2585 = vmul.f32 %v2577, %v2570
  %v2586 = vmul.f32 %v2578, %v2567
  %v2587 = vmul.f32 %v2579, %v2571
  %v2588 = vmul.f32 %v2580, %v2568
  %v2589 = vmul.f32 %v2581, %v2572
  %v2590 = vadd.f32 %v2390, %v2582
  %v2591 = vadd.f32 %v2391, %v2583
  %v2592 = vadd.f32 %v2392, %v2584
  %v2593 = vadd.f32 %v2393, %v2585
  %v2594 = vadd.f32 %v2394, %v2586
  %v2595 = vadd.f32 %v2395, %v2587
  %v2596 = vadd.f32 %v2396, %v2588
  %v2597 = vadd.f32 %v2397, %v2589
  %v2598 = vadd.f32 %v2590, %v2440
  %v2599 = vadd.f32 %v2591, %v2441
  %v2600 = vadd.f32 %v2592, %v2442
  %v2601 = vadd.f32 %v2593, %v2443
  %v2602 = vadd.f32 %v2594, %v2444
  %v2603 = vadd.f32 %v2595, %v2445
  %v2604 = vadd.f32 %v2596, %v2446
  %v2605 = vadd.f32 %v2597, %v2447
  %v2606 = vadd.f32 %v2598, %v2490
  %v2607 = vadd.f32 %v2599, %v2491
  %v2608 = vadd.f32 %v2600, %v2492
  %v2609 = vadd.f32 %v2601, %v2493
  %v2610 = vadd.f32 %v2602, %v2494
  %v2611 = vadd.f32 %v2603, %v2495
  %v2612 = vadd.f32 %v2604, %v2496
  %v2613 = vadd.f32 %v2605, %v2497
  %v2614 = vadd.f32 %v2606, %v2540
  %v2615 = vadd.f32 %v2607, %v2541
  %v2616 = vadd.f32 %v2608, %v2542
  %v2617 = vadd.f32 %v2609, %v2543
  %v2618 = vadd.f32 %v2610, %v2544
  %v2619 = vadd.f32 %v2611, %v2545
  %v2620 = vadd.f32 %v2612, %v2546
  %v2621 = vadd.f32 %v2613, %v2547
  %2623 = vset.pattern.permute.xlu0 0
  %2624 = vperm.xlu0 %2623, %v34
  %v2625 = vpop.permute.xlu0 %2624
  %2628 = vset.pattern.permute.xlu0 0
  %2629 = vperm.xlu0 %2628, %v35
  %v2630 = vpop.permute.xlu0 %2629
  %2633 = vset.pattern.permute.xlu0 0
  %2634 = vperm.xlu0 %2633, %v36
  %v2635 = vpop.permute.xlu0 %2634
  %2638 = vset.pattern.permute.xlu0 0
  %2639 = vperm.xlu0 %2638, %v37
  %v2640 = vpop.permute.xlu0 %2639
  %v2642 = vadd.f32 %v2614, %v2625
  %v2643 = vadd.f32 %v2615, %v2625
  %v2644 = vadd.f32 %v2616, %v2630
  %v2645 = vadd.f32 %v2617, %v2630
  %v2646 = vadd.f32 %v2618, %v2635
  %v2647 = vadd.f32 %v2619, %v2635
  %v2648 = vadd.f32 %v2620, %v2640
  %v2649 = vadd.f32 %v2621, %v2640
  %v2650 = vmul.f32 %v2642, 0.5
  %v2651 = vmul.f32 %v2643, 0.5
  %v2652 = vmul.f32 %v2644, 0.5
  %v2653 = vmul.f32 %v2645, 0.5
  %v2654 = vmul.f32 %v2646, 0.5
  %v2655 = vmul.f32 %v2647, 0.5
  %v2656 = vmul.f32 %v2648, 0.5
  %v2657 = vmul.f32 %v2649, 0.5
  %v2658 = vmul.f32 %v2642, 0.044715
  %v2659 = vmul.f32 %v2643, 0.044715
  %v2660 = vmul.f32 %v2644, 0.044715
  %v2661 = vmul.f32 %v2645, 0.044715
  %v2662 = vmul.f32 %v2646, 0.044715
  %v2663 = vmul.f32 %v2647, 0.044715
  %v2664 = vmul.f32 %v2648, 0.044715
  %v2665 = vmul.f32 %v2649, 0.044715
  %v2666 = vmul.f32 %v2658, %v2642
  %v2667 = vmul.f32 %v2659, %v2643
  %v2668 = vmul.f32 %v2660, %v2644
  %v2669 = vmul.f32 %v2661, %v2645
  %v2670 = vmul.f32 %v2662, %v2646
  %v2671 = vmul.f32 %v2663, %v2647
  %v2672 = vmul.f32 %v2664, %v2648
  %v2673 = vmul.f32 %v2665, %v2649
  %v2674 = vmul.f32 %v2666, %v2642
  %v2675 = vmul.f32 %v2667, %v2643
  %v2676 = vmul.f32 %v2668, %v2644
  %v2677 = vmul.f32 %v2669, %v2645
  %v2678 = vmul.f32 %v2670, %v2646
  %v2679 = vmul.f32 %v2671, %v2647
  %v2680 = vmul.f32 %v2672, %v2648
  %v2681 = vmul.f32 %v2673, %v2649
  %v2682 = vadd.f32 %v2642, %v2674
  %v2683 = vadd.f32 %v2643, %v2675
  %v2684 = vadd.f32 %v2644, %v2676
  %v2685 = vadd.f32 %v2645, %v2677
  %v2686 = vadd.f32 %v2646, %v2678
  %v2687 = vadd.f32 %v2647, %v2679
  %v2688 = vadd.f32 %v2648, %v2680
  %v2689 = vadd.f32 %v2649, %v2681
  %v2690 = vmul.f32 %v2682, 0.7978846
  %v2691 = vmul.f32 %v2683, 0.7978846
  %v2692 = vmul.f32 %v2684, 0.7978846
  %v2693 = vmul.f32 %v2685, 0.7978846
  %v2694 = vmul.f32 %v2686, 0.7978846
  %v2695 = vmul.f32 %v2687, 0.7978846
  %v2696 = vmul.f32 %v2688, 0.7978846
  %v2697 = vmul.f32 %v2689, 0.7978846
  %v2698 = vtanh.pop %v2690
  %v2699 = vtanh.pop %v2691
  %v2700 = vtanh.pop %v2692
  %v2701 = vtanh.pop %v2693
  %v2702 = vtanh.pop %v2694
  %v2703 = vtanh.pop %v2695
  %v2704 = vtanh.pop %v2696
  %v2705 = vtanh.pop %v2697
  %v2706 = vadd.f32 %v2698, 1.0
  %v2707 = vadd.f32 %v2699, 1.0
  %v2708 = vadd.f32 %v2700, 1.0
  %v2709 = vadd.f32 %v2701, 1.0
  %v2710 = vadd.f32 %v2702, 1.0
  %v2711 = vadd.f32 %v2703, 1.0
  %v2712 = vadd.f32 %v2704, 1.0
  %v2713 = vadd.f32 %v2705, 1.0
  %v2714 = vmul.f32 %v2650, %v2706
  %v2715 = vmul.f32 %v2651, %v2707
  %v2716 = vmul.f32 %v2652, %v2708
  %v2717 = vmul.f32 %v2653, %v2709
  %v2718 = vmul.f32 %v2654, %v2710
  %v2719 = vmul.f32 %v2655, %v2711
  %v2720 = vmul.f32 %v2656, %v2712
  %v2721 = vmul.f32 %v2657, %v2713
  %2722 = vrot.lane.b32.xlu0 %v2714, 17
  %v2723 = vpop.permute.xlu0 %2722
  %2724 = vrot.lane.b32.xlu0 %v2716, 17
  %v2725 = vpop.permute.xlu0 %2724
  %2726 = vrot.lane.b32.xlu0 %v2718, 17
  %v2727 = vpop.permute.xlu0 %2726
  %2728 = vrot.lane.b32.xlu0 %v2720, 17
  %v2729 = vpop.permute.xlu0 %2728
  %2730 = vrot.lane.b32.xlu0 %v2715, 17
  %v2731 = vpop.permute.xlu0 %2730
  %2732 = vrot.lane.b32.xlu0 %v2717, 17
  %v2733 = vpop.permute.xlu0 %2732
  %2734 = vrot.lane.b32.xlu0 %v2719, 17
  %v2735 = vpop.permute.xlu0 %2734
  %2736 = vrot.lane.b32.xlu0 %v2721, 17
  %v2737 = vpop.permute.xlu0 %2736
  %v2738 = vsel %vm989, %v2723, %v2731
  %v2739 = vsel %vm989, %v2725, %v2733
  %v2740 = vsel %vm989, %v2727, %v2735
  %v2741 = vsel %vm989, %v2729, %v2737
  %v2742 = vsel %vm989, %v2731, %v2723
  %v2743 = vsel %vm989, %v2733, %v2725
  %v2744 = vsel %vm989, %v2735, %v2727
  %v2745 = vsel %vm989, %v2737, %v2729
  %v2746 = vld [vmem:[%s5] sm:$0xff]
  %v2747 = vld [vmem:[%s5 + $0x8] sm:$0xff]
  %v2748 = vld [vmem:[%s5 + $0x10] sm:$0xff]
  %v2749 = vld [vmem:[%s5 + $0x18] sm:$0xff]
  %v2750 = vld [vmem:[%s5 + $0x20] sm:$0xff]
  %v2751 = vld [vmem:[%s5 + $0x28] sm:$0xff]
  %v2752 = vld [vmem:[%s5 + $0x30] sm:$0xff]
  %v2753 = vld [vmem:[%s5 + $0x38] sm:$0xff]
  %v2754 = vmul.f32 %v2746, %v2742
  %v2755 = vmul.f32 %v2747, %v2738
  %v2756 = vmul.f32 %v2748, %v2743
  %v2757 = vmul.f32 %v2749, %v2739
  %v2758 = vmul.f32 %v2750, %v2744
  %v2759 = vmul.f32 %v2751, %v2740
  %v2760 = vmul.f32 %v2752, %v2745
  %v2761 = vmul.f32 %v2753, %v2741
  %v2762 = vadd.f32 %v2754, 0.0
  %v2763 = vadd.f32 %v2755, 0.0
  %v2764 = vadd.f32 %v2756, 0.0
  %v2765 = vadd.f32 %v2757, 0.0
  %v2766 = vadd.f32 %v2758, 0.0
  %v2767 = vadd.f32 %v2759, 0.0
  %v2768 = vadd.f32 %v2760, 0.0
  %v2769 = vadd.f32 %v2761, 0.0
  %2770 = vrot.lane.b32.xlu0 %v2714, 16
  %v2771 = vpop.permute.xlu0 %2770
  %2772 = vrot.lane.b32.xlu0 %v2716, 16
  %v2773 = vpop.permute.xlu0 %2772
  %2774 = vrot.lane.b32.xlu0 %v2718, 16
  %v2775 = vpop.permute.xlu0 %2774
  %2776 = vrot.lane.b32.xlu0 %v2720, 16
  %v2777 = vpop.permute.xlu0 %2776
  %2778 = vrot.lane.b32.xlu0 %v2715, 16
  %v2779 = vpop.permute.xlu0 %2778
  %2780 = vrot.lane.b32.xlu0 %v2717, 16
  %v2781 = vpop.permute.xlu0 %2780
  %2782 = vrot.lane.b32.xlu0 %v2719, 16
  %v2783 = vpop.permute.xlu0 %2782
  %2784 = vrot.lane.b32.xlu0 %v2721, 16
  %v2785 = vpop.permute.xlu0 %2784
  %v2786 = vsel %vm1039, %v2771, %v2779
  %v2787 = vsel %vm1039, %v2773, %v2781
  %v2788 = vsel %vm1039, %v2775, %v2783
  %v2789 = vsel %vm1039, %v2777, %v2785
  %v2790 = vsel %vm1039, %v2779, %v2771
  %v2791 = vsel %vm1039, %v2781, %v2773
  %v2792 = vsel %vm1039, %v2783, %v2775
  %v2793 = vsel %vm1039, %v2785, %v2777
  %s2794 = scalar_lea.vmem %s5, 64
  %v2795 = vld [vmem:[%s2794] sm:$0xff]
  %v2796 = vld [vmem:[%s2794 + $0x8] sm:$0xff]
  %v2797 = vld [vmem:[%s2794 + $0x10] sm:$0xff]
  %v2798 = vld [vmem:[%s2794 + $0x18] sm:$0xff]
  %v2799 = vld [vmem:[%s2794 + $0x20] sm:$0xff]
  %v2800 = vld [vmem:[%s2794 + $0x28] sm:$0xff]
  %v2801 = vld [vmem:[%s2794 + $0x30] sm:$0xff]
  %v2802 = vld [vmem:[%s2794 + $0x38] sm:$0xff]
  %v2803 = vmul.f32 %v2795, %v2790
  %v2804 = vmul.f32 %v2796, %v2786
  %v2805 = vmul.f32 %v2797, %v2791
  %v2806 = vmul.f32 %v2798, %v2787
  %v2807 = vmul.f32 %v2799, %v2792
  %v2808 = vmul.f32 %v2800, %v2788
  %v2809 = vmul.f32 %v2801, %v2793
  %v2810 = vmul.f32 %v2802, %v2789
  %v2811 = vadd.f32 %v2803, 0.0
  %v2812 = vadd.f32 %v2804, 0.0
  %v2813 = vadd.f32 %v2805, 0.0
  %v2814 = vadd.f32 %v2806, 0.0
  %v2815 = vadd.f32 %v2807, 0.0
  %v2816 = vadd.f32 %v2808, 0.0
  %v2817 = vadd.f32 %v2809, 0.0
  %v2818 = vadd.f32 %v2810, 0.0
  %2819 = vrot.lane.b32.xlu0 %v2714, 15
  %v2820 = vpop.permute.xlu0 %2819
  %2821 = vrot.lane.b32.xlu0 %v2716, 15
  %v2822 = vpop.permute.xlu0 %2821
  %2823 = vrot.lane.b32.xlu0 %v2718, 15
  %v2824 = vpop.permute.xlu0 %2823
  %2825 = vrot.lane.b32.xlu0 %v2720, 15
  %v2826 = vpop.permute.xlu0 %2825
  %2827 = vrot.lane.b32.xlu0 %v2715, 15
  %v2828 = vpop.permute.xlu0 %2827
  %2829 = vrot.lane.b32.xlu0 %v2717, 15
  %v2830 = vpop.permute.xlu0 %2829
  %2831 = vrot.lane.b32.xlu0 %v2719, 15
  %v2832 = vpop.permute.xlu0 %2831
  %2833 = vrot.lane.b32.xlu0 %v2721, 15
  %v2834 = vpop.permute.xlu0 %2833
  %v2835 = vsel %vm1089, %v2820, %v2828
  %v2836 = vsel %vm1089, %v2822, %v2830
  %v2837 = vsel %vm1089, %v2824, %v2832
  %v2838 = vsel %vm1089, %v2826, %v2834
  %v2839 = vsel %vm1089, %v2828, %v2820
  %v2840 = vsel %vm1089, %v2830, %v2822
  %v2841 = vsel %vm1089, %v2832, %v2824
  %v2842 = vsel %vm1089, %v2834, %v2826
  %s2843 = scalar_lea.vmem %s5, 128
  %v2844 = vld [vmem:[%s2843] sm:$0xff]
  %v2845 = vld [vmem:[%s2843 + $0x8] sm:$0xff]
  %v2846 = vld [vmem:[%s2843 + $0x10] sm:$0xff]
  %v2847 = vld [vmem:[%s2843 + $0x18] sm:$0xff]
  %v2848 = vld [vmem:[%s2843 + $0x20] sm:$0xff]
  %v2849 = vld [vmem:[%s2843 + $0x28] sm:$0xff]
  %v2850 = vld [vmem:[%s2843 + $0x30] sm:$0xff]
  %v2851 = vld [vmem:[%s2843 + $0x38] sm:$0xff]
  %v2852 = vmul.f32 %v2844, %v2839
  %v2853 = vmul.f32 %v2845, %v2835
  %v2854 = vmul.f32 %v2846, %v2840
  %v2855 = vmul.f32 %v2847, %v2836
  %v2856 = vmul.f32 %v2848, %v2841
  %v2857 = vmul.f32 %v2849, %v2837
  %v2858 = vmul.f32 %v2850, %v2842
  %v2859 = vmul.f32 %v2851, %v2838
  %v2860 = vadd.f32 %v2762, %v2852
  %v2861 = vadd.f32 %v2763, %v2853
  %v2862 = vadd.f32 %v2764, %v2854
  %v2863 = vadd.f32 %v2765, %v2855
  %v2864 = vadd.f32 %v2766, %v2856
  %v2865 = vadd.f32 %v2767, %v2857
  %v2866 = vadd.f32 %v2768, %v2858
  %v2867 = vadd.f32 %v2769, %v2859
  %2868 = vrot.lane.b32.xlu0 %v2714, 1
  %v2869 = vpop.permute.xlu0 %2868
  %2870 = vrot.lane.b32.xlu0 %v2716, 1
  %v2871 = vpop.permute.xlu0 %2870
  %2872 = vrot.lane.b32.xlu0 %v2718, 1
  %v2873 = vpop.permute.xlu0 %2872
  %2874 = vrot.lane.b32.xlu0 %v2720, 1
  %v2875 = vpop.permute.xlu0 %2874
  %2876 = vrot.lane.b32.xlu0 %v2715, 1
  %v2877 = vpop.permute.xlu0 %2876
  %2878 = vrot.lane.b32.xlu0 %v2717, 1
  %v2879 = vpop.permute.xlu0 %2878
  %2880 = vrot.lane.b32.xlu0 %v2719, 1
  %v2881 = vpop.permute.xlu0 %2880
  %2882 = vrot.lane.b32.xlu0 %v2721, 1
  %v2883 = vpop.permute.xlu0 %2882
  %v2884 = vsel %vm1339, %v2869, %v2877
  %v2885 = vsel %vm1339, %v2871, %v2879
  %v2886 = vsel %vm1339, %v2873, %v2881
  %v2887 = vsel %vm1339, %v2875, %v2883
  %v2888 = vsel %vm1339, %v2877, %v2869
  %v2889 = vsel %vm1339, %v2879, %v2871
  %v2890 = vsel %vm1339, %v2881, %v2873
  %v2891 = vsel %vm1339, %v2883, %v2875
  %s2892 = scalar_lea.vmem %s5, 192
  %v2893 = vld [vmem:[%s2892] sm:$0xff]
  %v2894 = vld [vmem:[%s2892 + $0x8] sm:$0xff]
  %v2895 = vld [vmem:[%s2892 + $0x10] sm:$0xff]
  %v2896 = vld [vmem:[%s2892 + $0x18] sm:$0xff]
  %v2897 = vld [vmem:[%s2892 + $0x20] sm:$0xff]
  %v2898 = vld [vmem:[%s2892 + $0x28] sm:$0xff]
  %v2899 = vld [vmem:[%s2892 + $0x30] sm:$0xff]
  %v2900 = vld [vmem:[%s2892 + $0x38] sm:$0xff]
  %v2901 = vmul.f32 %v2893, %v2888
  %v2902 = vmul.f32 %v2894, %v2884
  %v2903 = vmul.f32 %v2895, %v2889
  %v2904 = vmul.f32 %v2896, %v2885
  %v2905 = vmul.f32 %v2897, %v2890
  %v2906 = vmul.f32 %v2898, %v2886
  %v2907 = vmul.f32 %v2899, %v2891
  %v2908 = vmul.f32 %v2900, %v2887
  %v2909 = vadd.f32 %v2811, %v2901
  %v2910 = vadd.f32 %v2812, %v2902
  %v2911 = vadd.f32 %v2813, %v2903
  %v2912 = vadd.f32 %v2814, %v2904
  %v2913 = vadd.f32 %v2815, %v2905
  %v2914 = vadd.f32 %v2816, %v2906
  %v2915 = vadd.f32 %v2817, %v2907
  %v2916 = vadd.f32 %v2818, %v2908
  %s2917 = scalar_lea.vmem %s5, 256
  %v2918 = vld [vmem:[%s2917] sm:$0xff]
  %v2919 = vld [vmem:[%s2917 + $0x8] sm:$0xff]
  %v2920 = vld [vmem:[%s2917 + $0x10] sm:$0xff]
  %v2921 = vld [vmem:[%s2917 + $0x18] sm:$0xff]
  %v2922 = vld [vmem:[%s2917 + $0x20] sm:$0xff]
  %v2923 = vld [vmem:[%s2917 + $0x28] sm:$0xff]
  %v2924 = vld [vmem:[%s2917 + $0x30] sm:$0xff]
  %v2925 = vld [vmem:[%s2917 + $0x38] sm:$0xff]
  %v2926 = vmul.f32 %v2918, %v2714
  %v2927 = vmul.f32 %v2919, %v2715
  %v2928 = vmul.f32 %v2920, %v2716
  %v2929 = vmul.f32 %v2921, %v2717
  %v2930 = vmul.f32 %v2922, %v2718
  %v2931 = vmul.f32 %v2923, %v2719
  %v2932 = vmul.f32 %v2924, %v2720
  %v2933 = vmul.f32 %v2925, %v2721
  %v2934 = vadd.f32 %v2860, %v2926
  %v2935 = vadd.f32 %v2861, %v2927
  %v2936 = vadd.f32 %v2862, %v2928
  %v2937 = vadd.f32 %v2863, %v2929
  %v2938 = vadd.f32 %v2864, %v2930
  %v2939 = vadd.f32 %v2865, %v2931
  %v2940 = vadd.f32 %v2866, %v2932
  %v2941 = vadd.f32 %v2867, %v2933
  %2942 = vrot.lane.b32.xlu0 %v2714, 127
  %v2943 = vpop.permute.xlu0 %2942
  %2944 = vrot.lane.b32.xlu0 %v2716, 127
  %v2945 = vpop.permute.xlu0 %2944
  %2946 = vrot.lane.b32.xlu0 %v2718, 127
  %v2947 = vpop.permute.xlu0 %2946
  %2948 = vrot.lane.b32.xlu0 %v2720, 127
  %v2949 = vpop.permute.xlu0 %2948
  %2950 = vrot.lane.b32.xlu0 %v2715, 127
  %v2951 = vpop.permute.xlu0 %2950
  %2952 = vrot.lane.b32.xlu0 %v2717, 127
  %v2953 = vpop.permute.xlu0 %2952
  %2954 = vrot.lane.b32.xlu0 %v2719, 127
  %v2955 = vpop.permute.xlu0 %2954
  %2956 = vrot.lane.b32.xlu0 %v2721, 127
  %v2957 = vpop.permute.xlu0 %2956
  %v2958 = vsel %vm1414, %v2943, %v2951
  %v2959 = vsel %vm1414, %v2945, %v2953
  %v2960 = vsel %vm1414, %v2947, %v2955
  %v2961 = vsel %vm1414, %v2949, %v2957
  %v2962 = vsel %vm1414, %v2951, %v2943
  %v2963 = vsel %vm1414, %v2953, %v2945
  %v2964 = vsel %vm1414, %v2955, %v2947
  %v2965 = vsel %vm1414, %v2957, %v2949
  %s2966 = scalar_lea.vmem %s5, 320
  %v2967 = vld [vmem:[%s2966] sm:$0xff]
  %v2968 = vld [vmem:[%s2966 + $0x8] sm:$0xff]
  %v2969 = vld [vmem:[%s2966 + $0x10] sm:$0xff]
  %v2970 = vld [vmem:[%s2966 + $0x18] sm:$0xff]
  %v2971 = vld [vmem:[%s2966 + $0x20] sm:$0xff]
  %v2972 = vld [vmem:[%s2966 + $0x28] sm:$0xff]
  %v2973 = vld [vmem:[%s2966 + $0x30] sm:$0xff]
  %v2974 = vld [vmem:[%s2966 + $0x38] sm:$0xff]
  %v2975 = vmul.f32 %v2967, %v2958
  %v2976 = vmul.f32 %v2968, %v2962
  %v2977 = vmul.f32 %v2969, %v2959
  %v2978 = vmul.f32 %v2970, %v2963
  %v2979 = vmul.f32 %v2971, %v2960
  %v2980 = vmul.f32 %v2972, %v2964
  %v2981 = vmul.f32 %v2973, %v2961
  %v2982 = vmul.f32 %v2974, %v2965
  %v2983 = vadd.f32 %v2909, %v2975
  %v2984 = vadd.f32 %v2910, %v2976
  %v2985 = vadd.f32 %v2911, %v2977
  %v2986 = vadd.f32 %v2912, %v2978
  %v2987 = vadd.f32 %v2913, %v2979
  %v2988 = vadd.f32 %v2914, %v2980
  %v2989 = vadd.f32 %v2915, %v2981
  %v2990 = vadd.f32 %v2916, %v2982
  %2991 = vrot.lane.b32.xlu0 %v2714, 113
  %v2992 = vpop.permute.xlu0 %2991
  %2993 = vrot.lane.b32.xlu0 %v2716, 113
  %v2994 = vpop.permute.xlu0 %2993
  %2995 = vrot.lane.b32.xlu0 %v2718, 113
  %v2996 = vpop.permute.xlu0 %2995
  %2997 = vrot.lane.b32.xlu0 %v2720, 113
  %v2998 = vpop.permute.xlu0 %2997
  %2999 = vrot.lane.b32.xlu0 %v2715, 113
  %v3000 = vpop.permute.xlu0 %2999
  %3001 = vrot.lane.b32.xlu0 %v2717, 113
  %v3002 = vpop.permute.xlu0 %3001
  %3003 = vrot.lane.b32.xlu0 %v2719, 113
  %v3004 = vpop.permute.xlu0 %3003
  %3005 = vrot.lane.b32.xlu0 %v2721, 113
  %v3006 = vpop.permute.xlu0 %3005
  %v3007 = vsel %vm1664, %v2992, %v3000
  %v3008 = vsel %vm1664, %v2994, %v3002
  %v3009 = vsel %vm1664, %v2996, %v3004
  %v3010 = vsel %vm1664, %v2998, %v3006
  %v3011 = vsel %vm1664, %v3000, %v2992
  %v3012 = vsel %vm1664, %v3002, %v2994
  %v3013 = vsel %vm1664, %v3004, %v2996
  %v3014 = vsel %vm1664, %v3006, %v2998
  %s3015 = scalar_lea.vmem %s5, 384
  %v3016 = vld [vmem:[%s3015] sm:$0xff]
  %v3017 = vld [vmem:[%s3015 + $0x8] sm:$0xff]
  %v3018 = vld [vmem:[%s3015 + $0x10] sm:$0xff]
  %v3019 = vld [vmem:[%s3015 + $0x18] sm:$0xff]
  %v3020 = vld [vmem:[%s3015 + $0x20] sm:$0xff]
  %v3021 = vld [vmem:[%s3015 + $0x28] sm:$0xff]
  %v3022 = vld [vmem:[%s3015 + $0x30] sm:$0xff]
  %v3023 = vld [vmem:[%s3015 + $0x38] sm:$0xff]
  %v3024 = vmul.f32 %v3016, %v3007
  %v3025 = vmul.f32 %v3017, %v3011
  %v3026 = vmul.f32 %v3018, %v3008
  %v3027 = vmul.f32 %v3019, %v3012
  %v3028 = vmul.f32 %v3020, %v3009
  %v3029 = vmul.f32 %v3021, %v3013
  %v3030 = vmul.f32 %v3022, %v3010
  %v3031 = vmul.f32 %v3023, %v3014
  %v3032 = vadd.f32 %v2934, %v3024
  %v3033 = vadd.f32 %v2935, %v3025
  %v3034 = vadd.f32 %v2936, %v3026
  %v3035 = vadd.f32 %v2937, %v3027
  %v3036 = vadd.f32 %v2938, %v3028
  %v3037 = vadd.f32 %v2939, %v3029
  %v3038 = vadd.f32 %v2940, %v3030
  %v3039 = vadd.f32 %v2941, %v3031
  %3040 = vrot.lane.b32.xlu0 %v2714, 112
  %v3041 = vpop.permute.xlu0 %3040
  %3042 = vrot.lane.b32.xlu0 %v2716, 112
  %v3043 = vpop.permute.xlu0 %3042
  %3044 = vrot.lane.b32.xlu0 %v2718, 112
  %v3045 = vpop.permute.xlu0 %3044
  %3046 = vrot.lane.b32.xlu0 %v2720, 112
  %v3047 = vpop.permute.xlu0 %3046
  %3048 = vrot.lane.b32.xlu0 %v2715, 112
  %v3049 = vpop.permute.xlu0 %3048
  %3050 = vrot.lane.b32.xlu0 %v2717, 112
  %v3051 = vpop.permute.xlu0 %3050
  %3052 = vrot.lane.b32.xlu0 %v2719, 112
  %v3053 = vpop.permute.xlu0 %3052
  %3054 = vrot.lane.b32.xlu0 %v2721, 112
  %v3055 = vpop.permute.xlu0 %3054
  %v3056 = vsel %vm1714, %v3041, %v3049
  %v3057 = vsel %vm1714, %v3043, %v3051
  %v3058 = vsel %vm1714, %v3045, %v3053
  %v3059 = vsel %vm1714, %v3047, %v3055
  %v3060 = vsel %vm1714, %v3049, %v3041
  %v3061 = vsel %vm1714, %v3051, %v3043
  %v3062 = vsel %vm1714, %v3053, %v3045
  %v3063 = vsel %vm1714, %v3055, %v3047
  %s3064 = scalar_lea.vmem %s5, 448
  %v3065 = vld [vmem:[%s3064] sm:$0xff]
  %v3066 = vld [vmem:[%s3064 + $0x8] sm:$0xff]
  %v3067 = vld [vmem:[%s3064 + $0x10] sm:$0xff]
  %v3068 = vld [vmem:[%s3064 + $0x18] sm:$0xff]
  %v3069 = vld [vmem:[%s3064 + $0x20] sm:$0xff]
  %v3070 = vld [vmem:[%s3064 + $0x28] sm:$0xff]
  %v3071 = vld [vmem:[%s3064 + $0x30] sm:$0xff]
  %v3072 = vld [vmem:[%s3064 + $0x38] sm:$0xff]
  %v3073 = vmul.f32 %v3065, %v3056
  %v3074 = vmul.f32 %v3066, %v3060
  %v3075 = vmul.f32 %v3067, %v3057
  %v3076 = vmul.f32 %v3068, %v3061
  %v3077 = vmul.f32 %v3069, %v3058
  %v3078 = vmul.f32 %v3070, %v3062
  %v3079 = vmul.f32 %v3071, %v3059
  %v3080 = vmul.f32 %v3072, %v3063
  %v3081 = vadd.f32 %v2983, %v3073
  %v3082 = vadd.f32 %v2984, %v3074
  %v3083 = vadd.f32 %v2985, %v3075
  %v3084 = vadd.f32 %v2986, %v3076
  %v3085 = vadd.f32 %v2987, %v3077
  %v3086 = vadd.f32 %v2988, %v3078
  %v3087 = vadd.f32 %v2989, %v3079
  %v3088 = vadd.f32 %v2990, %v3080
  %3089 = vrot.lane.b32.xlu0 %v2714, 111
  %v3090 = vpop.permute.xlu0 %3089
  %3091 = vrot.lane.b32.xlu0 %v2716, 111
  %v3092 = vpop.permute.xlu0 %3091
  %3093 = vrot.lane.b32.xlu0 %v2718, 111
  %v3094 = vpop.permute.xlu0 %3093
  %3095 = vrot.lane.b32.xlu0 %v2720, 111
  %v3096 = vpop.permute.xlu0 %3095
  %3097 = vrot.lane.b32.xlu0 %v2715, 111
  %v3098 = vpop.permute.xlu0 %3097
  %3099 = vrot.lane.b32.xlu0 %v2717, 111
  %v3100 = vpop.permute.xlu0 %3099
  %3101 = vrot.lane.b32.xlu0 %v2719, 111
  %v3102 = vpop.permute.xlu0 %3101
  %3103 = vrot.lane.b32.xlu0 %v2721, 111
  %v3104 = vpop.permute.xlu0 %3103
  %v3105 = vsel %vm1764, %v3090, %v3098
  %v3106 = vsel %vm1764, %v3092, %v3100
  %v3107 = vsel %vm1764, %v3094, %v3102
  %v3108 = vsel %vm1764, %v3096, %v3104
  %v3109 = vsel %vm1764, %v3098, %v3090
  %v3110 = vsel %vm1764, %v3100, %v3092
  %v3111 = vsel %vm1764, %v3102, %v3094
  %v3112 = vsel %vm1764, %v3104, %v3096
  %s3113 = scalar_lea.vmem %s5, 512
  %v3114 = vld [vmem:[%s3113] sm:$0xff]
  %v3115 = vld [vmem:[%s3113 + $0x8] sm:$0xff]
  %v3116 = vld [vmem:[%s3113 + $0x10] sm:$0xff]
  %v3117 = vld [vmem:[%s3113 + $0x18] sm:$0xff]
  %v3118 = vld [vmem:[%s3113 + $0x20] sm:$0xff]
  %v3119 = vld [vmem:[%s3113 + $0x28] sm:$0xff]
  %v3120 = vld [vmem:[%s3113 + $0x30] sm:$0xff]
  %v3121 = vld [vmem:[%s3113 + $0x38] sm:$0xff]
  %v3122 = vmul.f32 %v3114, %v3105
  %v3123 = vmul.f32 %v3115, %v3109
  %v3124 = vmul.f32 %v3116, %v3106
  %v3125 = vmul.f32 %v3117, %v3110
  %v3126 = vmul.f32 %v3118, %v3107
  %v3127 = vmul.f32 %v3119, %v3111
  %v3128 = vmul.f32 %v3120, %v3108
  %v3129 = vmul.f32 %v3121, %v3112
  %v3130 = vadd.f32 %v3032, %v3122
  %v3131 = vadd.f32 %v3033, %v3123
  %v3132 = vadd.f32 %v3034, %v3124
  %v3133 = vadd.f32 %v3035, %v3125
  %v3134 = vadd.f32 %v3036, %v3126
  %v3135 = vadd.f32 %v3037, %v3127
  %v3136 = vadd.f32 %v3038, %v3128
  %v3137 = vadd.f32 %v3039, %v3129
  %v3138 = vadd.f32 %v3130, %v3081
  %v3139 = vadd.f32 %v3131, %v3082
  %v3140 = vadd.f32 %v3132, %v3083
  %v3141 = vadd.f32 %v3133, %v3084
  %v3142 = vadd.f32 %v3134, %v3085
  %v3143 = vadd.f32 %v3135, %v3086
  %v3144 = vadd.f32 %v3136, %v3087
  %v3145 = vadd.f32 %v3137, %v3088
  %3147 = vset.pattern.permute.xlu0 0
  %3148 = vperm.xlu0 %3147, %v38
  %v3149 = vpop.permute.xlu0 %3148
  %3152 = vset.pattern.permute.xlu0 0
  %3153 = vperm.xlu0 %3152, %v39
  %v3154 = vpop.permute.xlu0 %3153
  %3157 = vset.pattern.permute.xlu0 0
  %3158 = vperm.xlu0 %3157, %v40
  %v3159 = vpop.permute.xlu0 %3158
  %3162 = vset.pattern.permute.xlu0 0
  %3163 = vperm.xlu0 %3162, %v41
  %v3164 = vpop.permute.xlu0 %3163
  %v3166 = vadd.f32 %v3138, %v3149
  %v3167 = vadd.f32 %v3139, %v3149
  %v3168 = vadd.f32 %v3140, %v3154
  %v3169 = vadd.f32 %v3141, %v3154
  %v3170 = vadd.f32 %v3142, %v3159
  %v3171 = vadd.f32 %v3143, %v3159
  %v3172 = vadd.f32 %v3144, %v3164
  %v3173 = vadd.f32 %v3145, %v3164
  %3174 = vst [vmem:[%s7] sm:$0xff] %v3166
  %3175 = vst [vmem:[%s7 + $0x8] sm:$0xff] %v3167
  %3176 = vst [vmem:[%s7 + $0x10] sm:$0xff] %v3168
  %3177 = vst [vmem:[%s7 + $0x18] sm:$0xff] %v3169
  %3178 = vst [vmem:[%s7 + $0x20] sm:$0xff] %v3170
  %3179 = vst [vmem:[%s7 + $0x28] sm:$0xff] %v3171
  %3180 = vst [vmem:[%s7 + $0x30] sm:$0xff] %v3172
  %3181 = vst [vmem:[%s7 + $0x38] sm:$0xff] %v3173
  %s3182 = scalar_lea.vmem %s0, 64
  %v3183 = vld [vmem:[%s3182] sm:$0xff]
  %v3184 = vld [vmem:[%s3182 + $0x8] sm:$0xff]
  %v3185 = vld [vmem:[%s3182 + $0x10] sm:$0xff]
  %v3186 = vld [vmem:[%s3182 + $0x18] sm:$0xff]
  %v3187 = vld [vmem:[%s3182 + $0x20] sm:$0xff]
  %v3188 = vld [vmem:[%s3182 + $0x28] sm:$0xff]
  %v3189 = vld [vmem:[%s3182 + $0x30] sm:$0xff]
  %v3190 = vld [vmem:[%s3182 + $0x38] sm:$0xff]
  %3191 = vmatprep.subr.mxu0 0.0
  %3192 = vmatpush1.msra.mxu0 0.0
  %3193 = vmatprep.subr.mxu0 0.0
  %3194 = vmatpush1.msra.mxu0 0.0
  %3195 = vmatprep.subr.mxu0 0.0
  %3196 = vmatpush1.msra.mxu0 0.0
  %3197 = vmatprep.subr.mxu0 0.0
  %3198 = vmatpush1.msra.mxu0 0.0
  %3199 = vmatprep.subr.mxu0 0.0
  %3200 = vmatpush1.msra.mxu0 0.0
  %3201 = vmatprep.subr.mxu0 0.0
  %3202 = vmatpush1.msra.mxu0 0.0
  %3203 = vmatprep.subr.mxu0 0.0
  %3204 = vmatpush1.msra.mxu0 0.0
  %3205 = vmatprep.subr.mxu0 0.0
  %3206 = vmatpush1.msra.mxu0 0.0
  %3207 = vmatprep.subr.mxu0 0.0
  %3208 = vmatpush1.msra.mxu0 0.0
  %3209 = vmatprep.subr.mxu0 0.0
  %3210 = vmatpush1.msra.mxu0 0.0
  %3211 = vmatprep.subr.mxu0 0.0
  %3212 = vmatpush1.msra.mxu0 0.0
  %3213 = vmatprep.subr.mxu0 0.0
  %3214 = vmatpush1.msra.mxu0 0.0
  %3215 = vmatprep.subr.mxu0 %v3190
  %3216 = vmatpush1.msra.mxu0 %v3189
  %3217 = vmatprep.subr.mxu0 %v3188
  %3218 = vmatpush1.msra.mxu0 %v3187
  %3219 = vmatprep.subr.mxu0 %v3186
  %3220 = vmatpush1.msra.mxu0 %v3185
  %3221 = vmatprep.subr.mxu0 %v3184
  %3222 = vmatpush1.msra.mxu0 %v3183
  %3223 = vmatprep.subr.mxu0 0.0
  %3224 = vmatpush2.msra.mxu0 0.0
  %3225 = vmatprep.subr.mxu0 0.0
  %3226 = vmatpush2.msra.mxu0 0.0
  %3227 = vmatprep.subr.mxu0 0.0
  %3228 = vmatpush2.msra.mxu0 0.0
  %3229 = vmatprep.subr.mxu0 0.0
  %3230 = vmatpush2.msra.mxu0 0.0
  %3231 = vmatprep.subr.mxu0 0.0
  %3232 = vmatpush2.msra.mxu0 0.0
  %3233 = vmatprep.subr.mxu0 0.0
  %3234 = vmatpush2.msra.mxu0 0.0
  %3235 = vmatprep.subr.mxu0 0.0
  %3236 = vmatpush2.msra.mxu0 0.0
  %3237 = vmatprep.subr.mxu0 0.0
  %3238 = vmatpush2.msra.mxu0 0.0
  %3239 = vmatprep.subr.mxu0 0.0
  %3240 = vmatpush2.msra.mxu0 0.0
  %3241 = vmatprep.subr.mxu0 0.0
  %3242 = vmatpush2.msra.mxu0 0.0
  %3243 = vmatprep.subr.mxu0 0.0
  %3244 = vmatpush2.msra.mxu0 0.0
  %3245 = vmatprep.subr.mxu0 0.0
  %3246 = vmatpush2.msra.mxu0 0.0
  %3247 = vmatprep.subr.mxu0 0.0
  %3248 = vmatpush2.msra.mxu0 0.0
  %3249 = vmatprep.subr.mxu0 0.0
  %3250 = vmatpush2.msra.mxu0 0.0
  %3251 = vmatprep.subr.mxu0 0.0
  %3252 = vmatpush2.msra.mxu0 0.0
  %3253 = vmatprep.subr.mxu0 0.0
  %3254 = vmatpush2.msra.mxu0 0.0
  %3255 = vmatprep.mubr.f32.mxu0 0.0
  %3256 = vmatmul.mubr.f32.gmra.mxu0 %v72
  %v3257 = vpop.f32.mrf.mxu0
  %v3258 = vadd.f32 %v53, %v3257
  %v3259 = vpop.f32.mrf.mxu0
  %v3260 = vadd.f32 %v53, %v3259
  %3261 = vmatprep.mubr.f32.mxu0 0.0
  %3262 = vmatmul.mubr.f32.gmra.mxu0 %v75
  %v3263 = vpop.f32.mrf.mxu0
  %v3264 = vadd.f32 %v58, %v3263
  %v3265 = vpop.f32.mrf.mxu0
  %v3266 = vadd.f32 %v58, %v3265
  %3267 = vmatprep.mubr.f32.mxu0 0.0
  %3268 = vmatmul.mubr.f32.gmra.mxu0 %v78
  %v3269 = vpop.f32.mrf.mxu0
  %v3270 = vadd.f32 %v63, %v3269
  %v3271 = vpop.f32.mrf.mxu0
  %v3272 = vadd.f32 %v63, %v3271
  %3273 = vmatprep.mubr.f32.mxu0 0.0
  %3274 = vmatmul.mubr.f32.gmra.mxu0 %v81
  %v3275 = vpop.f32.mrf.mxu0
  %v3276 = vadd.f32 %v68, %v3275
  %v3277 = vpop.f32.mrf.mxu0
  %v3278 = vadd.f32 %v68, %v3277
  %3279 = vdwg.mxu0
  %3280 = vrot.lane.b32.xlu0 %v3258, 51
  %v3281 = vpop.permute.xlu0 %3280
  %3282 = vrot.lane.b32.xlu0 %v3264, 51
  %v3283 = vpop.permute.xlu0 %3282
  %3284 = vrot.lane.b32.xlu0 %v3270, 51
  %v3285 = vpop.permute.xlu0 %3284
  %3286 = vrot.lane.b32.xlu0 %v3276, 51
  %v3287 = vpop.permute.xlu0 %3286
  %3288 = vrot.lane.b32.xlu0 %v3260, 51
  %v3289 = vpop.permute.xlu0 %3288
  %3290 = vrot.lane.b32.xlu0 %v3266, 51
  %v3291 = vpop.permute.xlu0 %3290
  %3292 = vrot.lane.b32.xlu0 %v3272, 51
  %v3293 = vpop.permute.xlu0 %3292
  %3294 = vrot.lane.b32.xlu0 %v3278, 51
  %v3295 = vpop.permute.xlu0 %3294
  %v3296 = vsel %vm190, %v3281, %v3289
  %v3297 = vsel %vm190, %v3283, %v3291
  %v3298 = vsel %vm190, %v3285, %v3293
  %v3299 = vsel %vm190, %v3287, %v3295
  %v3300 = vsel %vm190, %v3289, %v3281
  %v3301 = vsel %vm190, %v3291, %v3283
  %v3302 = vsel %vm190, %v3293, %v3285
  %v3303 = vsel %vm190, %v3295, %v3287
  %v3304 = vld [vmem:[%s3] sm:$0xff]
  %v3305 = vld [vmem:[%s3 + $0x8] sm:$0xff]
  %v3306 = vld [vmem:[%s3 + $0x10] sm:$0xff]
  %v3307 = vld [vmem:[%s3 + $0x18] sm:$0xff]
  %v3308 = vld [vmem:[%s3 + $0x20] sm:$0xff]
  %v3309 = vld [vmem:[%s3 + $0x28] sm:$0xff]
  %v3310 = vld [vmem:[%s3 + $0x30] sm:$0xff]
  %v3311 = vld [vmem:[%s3 + $0x38] sm:$0xff]
  %v3312 = vmul.f32 %v3304, %v3300
  %v3313 = vmul.f32 %v3305, %v3296
  %v3314 = vmul.f32 %v3306, %v3301
  %v3315 = vmul.f32 %v3307, %v3297
  %v3316 = vmul.f32 %v3308, %v3302
  %v3317 = vmul.f32 %v3309, %v3298
  %v3318 = vmul.f32 %v3310, %v3303
  %v3319 = vmul.f32 %v3311, %v3299
  %v3320 = vadd.f32 %v3312, 0.0
  %v3321 = vadd.f32 %v3313, 0.0
  %v3322 = vadd.f32 %v3314, 0.0
  %v3323 = vadd.f32 %v3315, 0.0
  %v3324 = vadd.f32 %v3316, 0.0
  %v3325 = vadd.f32 %v3317, 0.0
  %v3326 = vadd.f32 %v3318, 0.0
  %v3327 = vadd.f32 %v3319, 0.0
  %3328 = vrot.lane.b32.xlu0 %v3258, 50
  %v3329 = vpop.permute.xlu0 %3328
  %3330 = vrot.lane.b32.xlu0 %v3264, 50
  %v3331 = vpop.permute.xlu0 %3330
  %3332 = vrot.lane.b32.xlu0 %v3270, 50
  %v3333 = vpop.permute.xlu0 %3332
  %3334 = vrot.lane.b32.xlu0 %v3276, 50
  %v3335 = vpop.permute.xlu0 %3334
  %3336 = vrot.lane.b32.xlu0 %v3260, 50
  %v3337 = vpop.permute.xlu0 %3336
  %3338 = vrot.lane.b32.xlu0 %v3266, 50
  %v3339 = vpop.permute.xlu0 %3338
  %3340 = vrot.lane.b32.xlu0 %v3272, 50
  %v3341 = vpop.permute.xlu0 %3340
  %3342 = vrot.lane.b32.xlu0 %v3278, 50
  %v3343 = vpop.permute.xlu0 %3342
  %v3344 = vsel %vm239, %v3329, %v3337
  %v3345 = vsel %vm239, %v3331, %v3339
  %v3346 = vsel %vm239, %v3333, %v3341
  %v3347 = vsel %vm239, %v3335, %v3343
  %v3348 = vsel %vm239, %v3337, %v3329
  %v3349 = vsel %vm239, %v3339, %v3331
  %v3350 = vsel %vm239, %v3341, %v3333
  %v3351 = vsel %vm239, %v3343, %v3335
  %v3352 = vld [vmem:[%s248] sm:$0xff]
  %v3353 = vld [vmem:[%s248 + $0x8] sm:$0xff]
  %v3354 = vld [vmem:[%s248 + $0x10] sm:$0xff]
  %v3355 = vld [vmem:[%s248 + $0x18] sm:$0xff]
  %v3356 = vld [vmem:[%s248 + $0x20] sm:$0xff]
  %v3357 = vld [vmem:[%s248 + $0x28] sm:$0xff]
  %v3358 = vld [vmem:[%s248 + $0x30] sm:$0xff]
  %v3359 = vld [vmem:[%s248 + $0x38] sm:$0xff]
  %v3360 = vmul.f32 %v3352, %v3348
  %v3361 = vmul.f32 %v3353, %v3344
  %v3362 = vmul.f32 %v3354, %v3349
  %v3363 = vmul.f32 %v3355, %v3345
  %v3364 = vmul.f32 %v3356, %v3350
  %v3365 = vmul.f32 %v3357, %v3346
  %v3366 = vmul.f32 %v3358, %v3351
  %v3367 = vmul.f32 %v3359, %v3347
  %v3368 = vadd.f32 %v3360, 0.0
  %v3369 = vadd.f32 %v3361, 0.0
  %v3370 = vadd.f32 %v3362, 0.0
  %v3371 = vadd.f32 %v3363, 0.0
  %v3372 = vadd.f32 %v3364, 0.0
  %v3373 = vadd.f32 %v3365, 0.0
  %v3374 = vadd.f32 %v3366, 0.0
  %v3375 = vadd.f32 %v3367, 0.0
  %3376 = vrot.lane.b32.xlu0 %v3258, 49
  %v3377 = vpop.permute.xlu0 %3376
  %3378 = vrot.lane.b32.xlu0 %v3264, 49
  %v3379 = vpop.permute.xlu0 %3378
  %3380 = vrot.lane.b32.xlu0 %v3270, 49
  %v3381 = vpop.permute.xlu0 %3380
  %3382 = vrot.lane.b32.xlu0 %v3276, 49
  %v3383 = vpop.permute.xlu0 %3382
  %3384 = vrot.lane.b32.xlu0 %v3260, 49
  %v3385 = vpop.permute.xlu0 %3384
  %3386 = vrot.lane.b32.xlu0 %v3266, 49
  %v3387 = vpop.permute.xlu0 %3386
  %3388 = vrot.lane.b32.xlu0 %v3272, 49
  %v3389 = vpop.permute.xlu0 %3388
  %3390 = vrot.lane.b32.xlu0 %v3278, 49
  %v3391 = vpop.permute.xlu0 %3390
  %v3392 = vsel %vm289, %v3377, %v3385
  %v3393 = vsel %vm289, %v3379, %v3387
  %v3394 = vsel %vm289, %v3381, %v3389
  %v3395 = vsel %vm289, %v3383, %v3391
  %v3396 = vsel %vm289, %v3385, %v3377
  %v3397 = vsel %vm289, %v3387, %v3379
  %v3398 = vsel %vm289, %v3389, %v3381
  %v3399 = vsel %vm289, %v3391, %v3383
  %v3400 = vld [vmem:[%s298] sm:$0xff]
  %v3401 = vld [vmem:[%s298 + $0x8] sm:$0xff]
  %v3402 = vld [vmem:[%s298 + $0x10] sm:$0xff]
  %v3403 = vld [vmem:[%s298 + $0x18] sm:$0xff]
  %v3404 = vld [vmem:[%s298 + $0x20] sm:$0xff]
  %v3405 = vld [vmem:[%s298 + $0x28] sm:$0xff]
  %v3406 = vld [vmem:[%s298 + $0x30] sm:$0xff]
  %v3407 = vld [vmem:[%s298 + $0x38] sm:$0xff]
  %v3408 = vmul.f32 %v3400, %v3396
  %v3409 = vmul.f32 %v3401, %v3392
  %v3410 = vmul.f32 %v3402, %v3397
  %v3411 = vmul.f32 %v3403, %v3393
  %v3412 = vmul.f32 %v3404, %v3398
  %v3413 = vmul.f32 %v3405, %v3394
  %v3414 = vmul.f32 %v3406, %v3399
  %v3415 = vmul.f32 %v3407, %v3395
  %v3416 = vadd.f32 %v3408, 0.0
  %v3417 = vadd.f32 %v3409, 0.0
  %v3418 = vadd.f32 %v3410, 0.0
  %v3419 = vadd.f32 %v3411, 0.0
  %v3420 = vadd.f32 %v3412, 0.0
  %v3421 = vadd.f32 %v3413, 0.0
  %v3422 = vadd.f32 %v3414, 0.0
  %v3423 = vadd.f32 %v3415, 0.0
  %3424 = vrot.lane.b32.xlu0 %v3258, 48
  %v3425 = vpop.permute.xlu0 %3424
  %3426 = vrot.lane.b32.xlu0 %v3264, 48
  %v3427 = vpop.permute.xlu0 %3426
  %3428 = vrot.lane.b32.xlu0 %v3270, 48
  %v3429 = vpop.permute.xlu0 %3428
  %3430 = vrot.lane.b32.xlu0 %v3276, 48
  %v3431 = vpop.permute.xlu0 %3430
  %3432 = vrot.lane.b32.xlu0 %v3260, 48
  %v3433 = vpop.permute.xlu0 %3432
  %3434 = vrot.lane.b32.xlu0 %v3266, 48
  %v3435 = vpop.permute.xlu0 %3434
  %3436 = vrot.lane.b32.xlu0 %v3272, 48
  %v3437 = vpop.permute.xlu0 %3436
  %3438 = vrot.lane.b32.xlu0 %v3278, 48
  %v3439 = vpop.permute.xlu0 %3438
  %v3440 = vsel %vm339, %v3425, %v3433
  %v3441 = vsel %vm339, %v3427, %v3435
  %v3442 = vsel %vm339, %v3429, %v3437
  %v3443 = vsel %vm339, %v3431, %v3439
  %v3444 = vsel %vm339, %v3433, %v3425
  %v3445 = vsel %vm339, %v3435, %v3427
  %v3446 = vsel %vm339, %v3437, %v3429
  %v3447 = vsel %vm339, %v3439, %v3431
  %v3448 = vld [vmem:[%s348] sm:$0xff]
  %v3449 = vld [vmem:[%s348 + $0x8] sm:$0xff]
  %v3450 = vld [vmem:[%s348 + $0x10] sm:$0xff]
  %v3451 = vld [vmem:[%s348 + $0x18] sm:$0xff]
  %v3452 = vld [vmem:[%s348 + $0x20] sm:$0xff]
  %v3453 = vld [vmem:[%s348 + $0x28] sm:$0xff]
  %v3454 = vld [vmem:[%s348 + $0x30] sm:$0xff]
  %v3455 = vld [vmem:[%s348 + $0x38] sm:$0xff]
  %v3456 = vmul.f32 %v3448, %v3444
  %v3457 = vmul.f32 %v3449, %v3440
  %v3458 = vmul.f32 %v3450, %v3445
  %v3459 = vmul.f32 %v3451, %v3441
  %v3460 = vmul.f32 %v3452, %v3446
  %v3461 = vmul.f32 %v3453, %v3442
  %v3462 = vmul.f32 %v3454, %v3447
  %v3463 = vmul.f32 %v3455, %v3443
  %v3464 = vadd.f32 %v3456, 0.0
  %v3465 = vadd.f32 %v3457, 0.0
  %v3466 = vadd.f32 %v3458, 0.0
  %v3467 = vadd.f32 %v3459, 0.0
  %v3468 = vadd.f32 %v3460, 0.0
  %v3469 = vadd.f32 %v3461, 0.0
  %v3470 = vadd.f32 %v3462, 0.0
  %v3471 = vadd.f32 %v3463, 0.0
  %3472 = vrot.lane.b32.xlu0 %v3258, 47
  %v3473 = vpop.permute.xlu0 %3472
  %3474 = vrot.lane.b32.xlu0 %v3264, 47
  %v3475 = vpop.permute.xlu0 %3474
  %3476 = vrot.lane.b32.xlu0 %v3270, 47
  %v3477 = vpop.permute.xlu0 %3476
  %3478 = vrot.lane.b32.xlu0 %v3276, 47
  %v3479 = vpop.permute.xlu0 %3478
  %3480 = vrot.lane.b32.xlu0 %v3260, 47
  %v3481 = vpop.permute.xlu0 %3480
  %3482 = vrot.lane.b32.xlu0 %v3266, 47
  %v3483 = vpop.permute.xlu0 %3482
  %3484 = vrot.lane.b32.xlu0 %v3272, 47
  %v3485 = vpop.permute.xlu0 %3484
  %3486 = vrot.lane.b32.xlu0 %v3278, 47
  %v3487 = vpop.permute.xlu0 %3486
  %v3488 = vsel %vm389, %v3473, %v3481
  %v3489 = vsel %vm389, %v3475, %v3483
  %v3490 = vsel %vm389, %v3477, %v3485
  %v3491 = vsel %vm389, %v3479, %v3487
  %v3492 = vsel %vm389, %v3481, %v3473
  %v3493 = vsel %vm389, %v3483, %v3475
  %v3494 = vsel %vm389, %v3485, %v3477
  %v3495 = vsel %vm389, %v3487, %v3479
  %v3496 = vld [vmem:[%s398] sm:$0xff]
  %v3497 = vld [vmem:[%s398 + $0x8] sm:$0xff]
  %v3498 = vld [vmem:[%s398 + $0x10] sm:$0xff]
  %v3499 = vld [vmem:[%s398 + $0x18] sm:$0xff]
  %v3500 = vld [vmem:[%s398 + $0x20] sm:$0xff]
  %v3501 = vld [vmem:[%s398 + $0x28] sm:$0xff]
  %v3502 = vld [vmem:[%s398 + $0x30] sm:$0xff]
  %v3503 = vld [vmem:[%s398 + $0x38] sm:$0xff]
  %v3504 = vmul.f32 %v3496, %v3492
  %v3505 = vmul.f32 %v3497, %v3488
  %v3506 = vmul.f32 %v3498, %v3493
  %v3507 = vmul.f32 %v3499, %v3489
  %v3508 = vmul.f32 %v3500, %v3494
  %v3509 = vmul.f32 %v3501, %v3490
  %v3510 = vmul.f32 %v3502, %v3495
  %v3511 = vmul.f32 %v3503, %v3491
  %v3512 = vadd.f32 %v3320, %v3504
  %v3513 = vadd.f32 %v3321, %v3505
  %v3514 = vadd.f32 %v3322, %v3506
  %v3515 = vadd.f32 %v3323, %v3507
  %v3516 = vadd.f32 %v3324, %v3508
  %v3517 = vadd.f32 %v3325, %v3509
  %v3518 = vadd.f32 %v3326, %v3510
  %v3519 = vadd.f32 %v3327, %v3511
  %3520 = vrot.lane.b32.xlu0 %v3258, 46
  %v3521 = vpop.permute.xlu0 %3520
  %3522 = vrot.lane.b32.xlu0 %v3264, 46
  %v3523 = vpop.permute.xlu0 %3522
  %3524 = vrot.lane.b32.xlu0 %v3270, 46
  %v3525 = vpop.permute.xlu0 %3524
  %3526 = vrot.lane.b32.xlu0 %v3276, 46
  %v3527 = vpop.permute.xlu0 %3526
  %3528 = vrot.lane.b32.xlu0 %v3260, 46
  %v3529 = vpop.permute.xlu0 %3528
  %3530 = vrot.lane.b32.xlu0 %v3266, 46
  %v3531 = vpop.permute.xlu0 %3530
  %3532 = vrot.lane.b32.xlu0 %v3272, 46
  %v3533 = vpop.permute.xlu0 %3532
  %3534 = vrot.lane.b32.xlu0 %v3278, 46
  %v3535 = vpop.permute.xlu0 %3534
  %v3536 = vsel %vm439, %v3521, %v3529
  %v3537 = vsel %vm439, %v3523, %v3531
  %v3538 = vsel %vm439, %v3525, %v3533
  %v3539 = vsel %vm439, %v3527, %v3535
  %v3540 = vsel %vm439, %v3529, %v3521
  %v3541 = vsel %vm439, %v3531, %v3523
  %v3542 = vsel %vm439, %v3533, %v3525
  %v3543 = vsel %vm439, %v3535, %v3527
  %v3544 = vld [vmem:[%s448] sm:$0xff]
  %v3545 = vld [vmem:[%s448 + $0x8] sm:$0xff]
  %v3546 = vld [vmem:[%s448 + $0x10] sm:$0xff]
  %v3547 = vld [vmem:[%s448 + $0x18] sm:$0xff]
  %v3548 = vld [vmem:[%s448 + $0x20] sm:$0xff]
  %v3549 = vld [vmem:[%s448 + $0x28] sm:$0xff]
  %v3550 = vld [vmem:[%s448 + $0x30] sm:$0xff]
  %v3551 = vld [vmem:[%s448 + $0x38] sm:$0xff]
  %v3552 = vmul.f32 %v3544, %v3540
  %v3553 = vmul.f32 %v3545, %v3536
  %v3554 = vmul.f32 %v3546, %v3541
  %v3555 = vmul.f32 %v3547, %v3537
  %v3556 = vmul.f32 %v3548, %v3542
  %v3557 = vmul.f32 %v3549, %v3538
  %v3558 = vmul.f32 %v3550, %v3543
  %v3559 = vmul.f32 %v3551, %v3539
  %v3560 = vadd.f32 %v3368, %v3552
  %v3561 = vadd.f32 %v3369, %v3553
  %v3562 = vadd.f32 %v3370, %v3554
  %v3563 = vadd.f32 %v3371, %v3555
  %v3564 = vadd.f32 %v3372, %v3556
  %v3565 = vadd.f32 %v3373, %v3557
  %v3566 = vadd.f32 %v3374, %v3558
  %v3567 = vadd.f32 %v3375, %v3559
  %3568 = vrot.lane.b32.xlu0 %v3258, 45
  %v3569 = vpop.permute.xlu0 %3568
  %3570 = vrot.lane.b32.xlu0 %v3264, 45
  %v3571 = vpop.permute.xlu0 %3570
  %3572 = vrot.lane.b32.xlu0 %v3270, 45
  %v3573 = vpop.permute.xlu0 %3572
  %3574 = vrot.lane.b32.xlu0 %v3276, 45
  %v3575 = vpop.permute.xlu0 %3574
  %3576 = vrot.lane.b32.xlu0 %v3260, 45
  %v3577 = vpop.permute.xlu0 %3576
  %3578 = vrot.lane.b32.xlu0 %v3266, 45
  %v3579 = vpop.permute.xlu0 %3578
  %3580 = vrot.lane.b32.xlu0 %v3272, 45
  %v3581 = vpop.permute.xlu0 %3580
  %3582 = vrot.lane.b32.xlu0 %v3278, 45
  %v3583 = vpop.permute.xlu0 %3582
  %v3584 = vsel %vm489, %v3569, %v3577
  %v3585 = vsel %vm489, %v3571, %v3579
  %v3586 = vsel %vm489, %v3573, %v3581
  %v3587 = vsel %vm489, %v3575, %v3583
  %v3588 = vsel %vm489, %v3577, %v3569
  %v3589 = vsel %vm489, %v3579, %v3571
  %v3590 = vsel %vm489, %v3581, %v3573
  %v3591 = vsel %vm489, %v3583, %v3575
  %v3592 = vld [vmem:[%s498] sm:$0xff]
  %v3593 = vld [vmem:[%s498 + $0x8] sm:$0xff]
  %v3594 = vld [vmem:[%s498 + $0x10] sm:$0xff]
  %v3595 = vld [vmem:[%s498 + $0x18] sm:$0xff]
  %v3596 = vld [vmem:[%s498 + $0x20] sm:$0xff]
  %v3597 = vld [vmem:[%s498 + $0x28] sm:$0xff]
  %v3598 = vld [vmem:[%s498 + $0x30] sm:$0xff]
  %v3599 = vld [vmem:[%s498 + $0x38] sm:$0xff]
  %v3600 = vmul.f32 %v3592, %v3588
  %v3601 = vmul.f32 %v3593, %v3584
  %v3602 = vmul.f32 %v3594, %v3589
  %v3603 = vmul.f32 %v3595, %v3585
  %v3604 = vmul.f32 %v3596, %v3590
  %v3605 = vmul.f32 %v3597, %v3586
  %v3606 = vmul.f32 %v3598, %v3591
  %v3607 = vmul.f32 %v3599, %v3587
  %v3608 = vadd.f32 %v3416, %v3600
  %v3609 = vadd.f32 %v3417, %v3601
  %v3610 = vadd.f32 %v3418, %v3602
  %v3611 = vadd.f32 %v3419, %v3603
  %v3612 = vadd.f32 %v3420, %v3604
  %v3613 = vadd.f32 %v3421, %v3605
  %v3614 = vadd.f32 %v3422, %v3606
  %v3615 = vadd.f32 %v3423, %v3607
  %3616 = vrot.lane.b32.xlu0 %v3258, 35
  %v3617 = vpop.permute.xlu0 %3616
  %3618 = vrot.lane.b32.xlu0 %v3264, 35
  %v3619 = vpop.permute.xlu0 %3618
  %3620 = vrot.lane.b32.xlu0 %v3270, 35
  %v3621 = vpop.permute.xlu0 %3620
  %3622 = vrot.lane.b32.xlu0 %v3276, 35
  %v3623 = vpop.permute.xlu0 %3622
  %3624 = vrot.lane.b32.xlu0 %v3260, 35
  %v3625 = vpop.permute.xlu0 %3624
  %3626 = vrot.lane.b32.xlu0 %v3266, 35
  %v3627 = vpop.permute.xlu0 %3626
  %3628 = vrot.lane.b32.xlu0 %v3272, 35
  %v3629 = vpop.permute.xlu0 %3628
  %3630 = vrot.lane.b32.xlu0 %v3278, 35
  %v3631 = vpop.permute.xlu0 %3630
  %v3632 = vsel %vm539, %v3617, %v3625
  %v3633 = vsel %vm539, %v3619, %v3627
  %v3634 = vsel %vm539, %v3621, %v3629
  %v3635 = vsel %vm539, %v3623, %v3631
  %v3636 = vsel %vm539, %v3625, %v3617
  %v3637 = vsel %vm539, %v3627, %v3619
  %v3638 = vsel %vm539, %v3629, %v3621
  %v3639 = vsel %vm539, %v3631, %v3623
  %v3640 = vld [vmem:[%s548] sm:$0xff]
  %v3641 = vld [vmem:[%s548 + $0x8] sm:$0xff]
  %v3642 = vld [vmem:[%s548 + $0x10] sm:$0xff]
  %v3643 = vld [vmem:[%s548 + $0x18] sm:$0xff]
  %v3644 = vld [vmem:[%s548 + $0x20] sm:$0xff]
  %v3645 = vld [vmem:[%s548 + $0x28] sm:$0xff]
  %v3646 = vld [vmem:[%s548 + $0x30] sm:$0xff]
  %v3647 = vld [vmem:[%s548 + $0x38] sm:$0xff]
  %v3648 = vmul.f32 %v3640, %v3636
  %v3649 = vmul.f32 %v3641, %v3632
  %v3650 = vmul.f32 %v3642, %v3637
  %v3651 = vmul.f32 %v3643, %v3633
  %v3652 = vmul.f32 %v3644, %v3638
  %v3653 = vmul.f32 %v3645, %v3634
  %v3654 = vmul.f32 %v3646, %v3639
  %v3655 = vmul.f32 %v3647, %v3635
  %v3656 = vadd.f32 %v3464, %v3648
  %v3657 = vadd.f32 %v3465, %v3649
  %v3658 = vadd.f32 %v3466, %v3650
  %v3659 = vadd.f32 %v3467, %v3651
  %v3660 = vadd.f32 %v3468, %v3652
  %v3661 = vadd.f32 %v3469, %v3653
  %v3662 = vadd.f32 %v3470, %v3654
  %v3663 = vadd.f32 %v3471, %v3655
  %3664 = vrot.lane.b32.xlu0 %v3258, 34
  %v3665 = vpop.permute.xlu0 %3664
  %3666 = vrot.lane.b32.xlu0 %v3264, 34
  %v3667 = vpop.permute.xlu0 %3666
  %3668 = vrot.lane.b32.xlu0 %v3270, 34
  %v3669 = vpop.permute.xlu0 %3668
  %3670 = vrot.lane.b32.xlu0 %v3276, 34
  %v3671 = vpop.permute.xlu0 %3670
  %3672 = vrot.lane.b32.xlu0 %v3260, 34
  %v3673 = vpop.permute.xlu0 %3672
  %3674 = vrot.lane.b32.xlu0 %v3266, 34
  %v3675 = vpop.permute.xlu0 %3674
  %3676 = vrot.lane.b32.xlu0 %v3272, 34
  %v3677 = vpop.permute.xlu0 %3676
  %3678 = vrot.lane.b32.xlu0 %v3278, 34
  %v3679 = vpop.permute.xlu0 %3678
  %v3680 = vsel %vm589, %v3665, %v3673
  %v3681 = vsel %vm589, %v3667, %v3675
  %v3682 = vsel %vm589, %v3669, %v3677
  %v3683 = vsel %vm589, %v3671, %v3679
  %v3684 = vsel %vm589, %v3673, %v3665
  %v3685 = vsel %vm589, %v3675, %v3667
  %v3686 = vsel %vm589, %v3677, %v3669
  %v3687 = vsel %vm589, %v3679, %v3671
  %v3688 = vld [vmem:[%s598] sm:$0xff]
  %v3689 = vld [vmem:[%s598 + $0x8] sm:$0xff]
  %v3690 = vld [vmem:[%s598 + $0x10] sm:$0xff]
  %v3691 = vld [vmem:[%s598 + $0x18] sm:$0xff]
  %v3692 = vld [vmem:[%s598 + $0x20] sm:$0xff]
  %v3693 = vld [vmem:[%s598 + $0x28] sm:$0xff]
  %v3694 = vld [vmem:[%s598 + $0x30] sm:$0xff]
  %v3695 = vld [vmem:[%s598 + $0x38] sm:$0xff]
  %v3696 = vmul.f32 %v3688, %v3684
  %v3697 = vmul.f32 %v3689, %v3680
  %v3698 = vmul.f32 %v3690, %v3685
  %v3699 = vmul.f32 %v3691, %v3681
  %v3700 = vmul.f32 %v3692, %v3686
  %v3701 = vmul.f32 %v3693, %v3682
  %v3702 = vmul.f32 %v3694, %v3687
  %v3703 = vmul.f32 %v3695, %v3683
  %v3704 = vadd.f32 %v3512, %v3696
  %v3705 = vadd.f32 %v3513, %v3697
  %v3706 = vadd.f32 %v3514, %v3698
  %v3707 = vadd.f32 %v3515, %v3699
  %v3708 = vadd.f32 %v3516, %v3700
  %v3709 = vadd.f32 %v3517, %v3701
  %v3710 = vadd.f32 %v3518, %v3702
  %v3711 = vadd.f32 %v3519, %v3703
  %3712 = vrot.lane.b32.xlu0 %v3258, 33
  %v3713 = vpop.permute.xlu0 %3712
  %3714 = vrot.lane.b32.xlu0 %v3264, 33
  %v3715 = vpop.permute.xlu0 %3714
  %3716 = vrot.lane.b32.xlu0 %v3270, 33
  %v3717 = vpop.permute.xlu0 %3716
  %3718 = vrot.lane.b32.xlu0 %v3276, 33
  %v3719 = vpop.permute.xlu0 %3718
  %3720 = vrot.lane.b32.xlu0 %v3260, 33
  %v3721 = vpop.permute.xlu0 %3720
  %3722 = vrot.lane.b32.xlu0 %v3266, 33
  %v3723 = vpop.permute.xlu0 %3722
  %3724 = vrot.lane.b32.xlu0 %v3272, 33
  %v3725 = vpop.permute.xlu0 %3724
  %3726 = vrot.lane.b32.xlu0 %v3278, 33
  %v3727 = vpop.permute.xlu0 %3726
  %v3728 = vsel %vm639, %v3713, %v3721
  %v3729 = vsel %vm639, %v3715, %v3723
  %v3730 = vsel %vm639, %v3717, %v3725
  %v3731 = vsel %vm639, %v3719, %v3727
  %v3732 = vsel %vm639, %v3721, %v3713
  %v3733 = vsel %vm639, %v3723, %v3715
  %v3734 = vsel %vm639, %v3725, %v3717
  %v3735 = vsel %vm639, %v3727, %v3719
  %v3736 = vld [vmem:[%s648] sm:$0xff]
  %v3737 = vld [vmem:[%s648 + $0x8] sm:$0xff]
  %v3738 = vld [vmem:[%s648 + $0x10] sm:$0xff]
  %v3739 = vld [vmem:[%s648 + $0x18] sm:$0xff]
  %v3740 = vld [vmem:[%s648 + $0x20] sm:$0xff]
  %v3741 = vld [vmem:[%s648 + $0x28] sm:$0xff]
  %v3742 = vld [vmem:[%s648 + $0x30] sm:$0xff]
  %v3743 = vld [vmem:[%s648 + $0x38] sm:$0xff]
  %v3744 = vmul.f32 %v3736, %v3732
  %v3745 = vmul.f32 %v3737, %v3728
  %v3746 = vmul.f32 %v3738, %v3733
  %v3747 = vmul.f32 %v3739, %v3729
  %v3748 = vmul.f32 %v3740, %v3734
  %v3749 = vmul.f32 %v3741, %v3730
  %v3750 = vmul.f32 %v3742, %v3735
  %v3751 = vmul.f32 %v3743, %v3731
  %v3752 = vadd.f32 %v3560, %v3744
  %v3753 = vadd.f32 %v3561, %v3745
  %v3754 = vadd.f32 %v3562, %v3746
  %v3755 = vadd.f32 %v3563, %v3747
  %v3756 = vadd.f32 %v3564, %v3748
  %v3757 = vadd.f32 %v3565, %v3749
  %v3758 = vadd.f32 %v3566, %v3750
  %v3759 = vadd.f32 %v3567, %v3751
  %3760 = vrot.lane.b32.xlu0 %v3258, 32
  %v3761 = vpop.permute.xlu0 %3760
  %3762 = vrot.lane.b32.xlu0 %v3264, 32
  %v3763 = vpop.permute.xlu0 %3762
  %3764 = vrot.lane.b32.xlu0 %v3270, 32
  %v3765 = vpop.permute.xlu0 %3764
  %3766 = vrot.lane.b32.xlu0 %v3276, 32
  %v3767 = vpop.permute.xlu0 %3766
  %3768 = vrot.lane.b32.xlu0 %v3260, 32
  %v3769 = vpop.permute.xlu0 %3768
  %3770 = vrot.lane.b32.xlu0 %v3266, 32
  %v3771 = vpop.permute.xlu0 %3770
  %3772 = vrot.lane.b32.xlu0 %v3272, 32
  %v3773 = vpop.permute.xlu0 %3772
  %3774 = vrot.lane.b32.xlu0 %v3278, 32
  %v3775 = vpop.permute.xlu0 %3774
  %v3776 = vsel %vm689, %v3761, %v3769
  %v3777 = vsel %vm689, %v3763, %v3771
  %v3778 = vsel %vm689, %v3765, %v3773
  %v3779 = vsel %vm689, %v3767, %v3775
  %v3780 = vsel %vm689, %v3769, %v3761
  %v3781 = vsel %vm689, %v3771, %v3763
  %v3782 = vsel %vm689, %v3773, %v3765
  %v3783 = vsel %vm689, %v3775, %v3767
  %v3784 = vld [vmem:[%s698] sm:$0xff]
  %v3785 = vld [vmem:[%s698 + $0x8] sm:$0xff]
  %v3786 = vld [vmem:[%s698 + $0x10] sm:$0xff]
  %v3787 = vld [vmem:[%s698 + $0x18] sm:$0xff]
  %v3788 = vld [vmem:[%s698 + $0x20] sm:$0xff]
  %v3789 = vld [vmem:[%s698 + $0x28] sm:$0xff]
  %v3790 = vld [vmem:[%s698 + $0x30] sm:$0xff]
  %v3791 = vld [vmem:[%s698 + $0x38] sm:$0xff]
  %v3792 = vmul.f32 %v3784, %v3780
  %v3793 = vmul.f32 %v3785, %v3776
  %v3794 = vmul.f32 %v3786, %v3781
  %v3795 = vmul.f32 %v3787, %v3777
  %v3796 = vmul.f32 %v3788, %v3782
  %v3797 = vmul.f32 %v3789, %v3778
  %v3798 = vmul.f32 %v3790, %v3783
  %v3799 = vmul.f32 %v3791, %v3779
  %v3800 = vadd.f32 %v3608, %v3792
  %v3801 = vadd.f32 %v3609, %v3793
  %v3802 = vadd.f32 %v3610, %v3794
  %v3803 = vadd.f32 %v3611, %v3795
  %v3804 = vadd.f32 %v3612, %v3796
  %v3805 = vadd.f32 %v3613, %v3797
  %v3806 = vadd.f32 %v3614, %v3798
  %v3807 = vadd.f32 %v3615, %v3799
  %3808 = vrot.lane.b32.xlu0 %v3258, 31
  %v3809 = vpop.permute.xlu0 %3808
  %3810 = vrot.lane.b32.xlu0 %v3264, 31
  %v3811 = vpop.permute.xlu0 %3810
  %3812 = vrot.lane.b32.xlu0 %v3270, 31
  %v3813 = vpop.permute.xlu0 %3812
  %3814 = vrot.lane.b32.xlu0 %v3276, 31
  %v3815 = vpop.permute.xlu0 %3814
  %3816 = vrot.lane.b32.xlu0 %v3260, 31
  %v3817 = vpop.permute.xlu0 %3816
  %3818 = vrot.lane.b32.xlu0 %v3266, 31
  %v3819 = vpop.permute.xlu0 %3818
  %3820 = vrot.lane.b32.xlu0 %v3272, 31
  %v3821 = vpop.permute.xlu0 %3820
  %3822 = vrot.lane.b32.xlu0 %v3278, 31
  %v3823 = vpop.permute.xlu0 %3822
  %v3824 = vsel %vm739, %v3809, %v3817
  %v3825 = vsel %vm739, %v3811, %v3819
  %v3826 = vsel %vm739, %v3813, %v3821
  %v3827 = vsel %vm739, %v3815, %v3823
  %v3828 = vsel %vm739, %v3817, %v3809
  %v3829 = vsel %vm739, %v3819, %v3811
  %v3830 = vsel %vm739, %v3821, %v3813
  %v3831 = vsel %vm739, %v3823, %v3815
  %v3832 = vld [vmem:[%s748] sm:$0xff]
  %v3833 = vld [vmem:[%s748 + $0x8] sm:$0xff]
  %v3834 = vld [vmem:[%s748 + $0x10] sm:$0xff]
  %v3835 = vld [vmem:[%s748 + $0x18] sm:$0xff]
  %v3836 = vld [vmem:[%s748 + $0x20] sm:$0xff]
  %v3837 = vld [vmem:[%s748 + $0x28] sm:$0xff]
  %v3838 = vld [vmem:[%s748 + $0x30] sm:$0xff]
  %v3839 = vld [vmem:[%s748 + $0x38] sm:$0xff]
  %v3840 = vmul.f32 %v3832, %v3828
  %v3841 = vmul.f32 %v3833, %v3824
  %v3842 = vmul.f32 %v3834, %v3829
  %v3843 = vmul.f32 %v3835, %v3825
  %v3844 = vmul.f32 %v3836, %v3830
  %v3845 = vmul.f32 %v3837, %v3826
  %v3846 = vmul.f32 %v3838, %v3831
  %v3847 = vmul.f32 %v3839, %v3827
  %v3848 = vadd.f32 %v3656, %v3840
  %v3849 = vadd.f32 %v3657, %v3841
  %v3850 = vadd.f32 %v3658, %v3842
  %v3851 = vadd.f32 %v3659, %v3843
  %v3852 = vadd.f32 %v3660, %v3844
  %v3853 = vadd.f32 %v3661, %v3845
  %v3854 = vadd.f32 %v3662, %v3846
  %v3855 = vadd.f32 %v3663, %v3847
  %3856 = vrot.lane.b32.xlu0 %v3258, 30
  %v3857 = vpop.permute.xlu0 %3856
  %3858 = vrot.lane.b32.xlu0 %v3264, 30
  %v3859 = vpop.permute.xlu0 %3858
  %3860 = vrot.lane.b32.xlu0 %v3270, 30
  %v3861 = vpop.permute.xlu0 %3860
  %3862 = vrot.lane.b32.xlu0 %v3276, 30
  %v3863 = vpop.permute.xlu0 %3862
  %3864 = vrot.lane.b32.xlu0 %v3260, 30
  %v3865 = vpop.permute.xlu0 %3864
  %3866 = vrot.lane.b32.xlu0 %v3266, 30
  %v3867 = vpop.permute.xlu0 %3866
  %3868 = vrot.lane.b32.xlu0 %v3272, 30
  %v3869 = vpop.permute.xlu0 %3868
  %3870 = vrot.lane.b32.xlu0 %v3278, 30
  %v3871 = vpop.permute.xlu0 %3870
  %v3872 = vsel %vm789, %v3857, %v3865
  %v3873 = vsel %vm789, %v3859, %v3867
  %v3874 = vsel %vm789, %v3861, %v3869
  %v3875 = vsel %vm789, %v3863, %v3871
  %v3876 = vsel %vm789, %v3865, %v3857
  %v3877 = vsel %vm789, %v3867, %v3859
  %v3878 = vsel %vm789, %v3869, %v3861
  %v3879 = vsel %vm789, %v3871, %v3863
  %v3880 = vld [vmem:[%s798] sm:$0xff]
  %v3881 = vld [vmem:[%s798 + $0x8] sm:$0xff]
  %v3882 = vld [vmem:[%s798 + $0x10] sm:$0xff]
  %v3883 = vld [vmem:[%s798 + $0x18] sm:$0xff]
  %v3884 = vld [vmem:[%s798 + $0x20] sm:$0xff]
  %v3885 = vld [vmem:[%s798 + $0x28] sm:$0xff]
  %v3886 = vld [vmem:[%s798 + $0x30] sm:$0xff]
  %v3887 = vld [vmem:[%s798 + $0x38] sm:$0xff]
  %v3888 = vmul.f32 %v3880, %v3876
  %v3889 = vmul.f32 %v3881, %v3872
  %v3890 = vmul.f32 %v3882, %v3877
  %v3891 = vmul.f32 %v3883, %v3873
  %v3892 = vmul.f32 %v3884, %v3878
  %v3893 = vmul.f32 %v3885, %v3874
  %v3894 = vmul.f32 %v3886, %v3879
  %v3895 = vmul.f32 %v3887, %v3875
  %v3896 = vadd.f32 %v3704, %v3888
  %v3897 = vadd.f32 %v3705, %v3889
  %v3898 = vadd.f32 %v3706, %v3890
  %v3899 = vadd.f32 %v3707, %v3891
  %v3900 = vadd.f32 %v3708, %v3892
  %v3901 = vadd.f32 %v3709, %v3893
  %v3902 = vadd.f32 %v3710, %v3894
  %v3903 = vadd.f32 %v3711, %v3895
  %3904 = vrot.lane.b32.xlu0 %v3258, 29
  %v3905 = vpop.permute.xlu0 %3904
  %3906 = vrot.lane.b32.xlu0 %v3264, 29
  %v3907 = vpop.permute.xlu0 %3906
  %3908 = vrot.lane.b32.xlu0 %v3270, 29
  %v3909 = vpop.permute.xlu0 %3908
  %3910 = vrot.lane.b32.xlu0 %v3276, 29
  %v3911 = vpop.permute.xlu0 %3910
  %3912 = vrot.lane.b32.xlu0 %v3260, 29
  %v3913 = vpop.permute.xlu0 %3912
  %3914 = vrot.lane.b32.xlu0 %v3266, 29
  %v3915 = vpop.permute.xlu0 %3914
  %3916 = vrot.lane.b32.xlu0 %v3272, 29
  %v3917 = vpop.permute.xlu0 %3916
  %3918 = vrot.lane.b32.xlu0 %v3278, 29
  %v3919 = vpop.permute.xlu0 %3918
  %v3920 = vsel %vm839, %v3905, %v3913
  %v3921 = vsel %vm839, %v3907, %v3915
  %v3922 = vsel %vm839, %v3909, %v3917
  %v3923 = vsel %vm839, %v3911, %v3919
  %v3924 = vsel %vm839, %v3913, %v3905
  %v3925 = vsel %vm839, %v3915, %v3907
  %v3926 = vsel %vm839, %v3917, %v3909
  %v3927 = vsel %vm839, %v3919, %v3911
  %v3928 = vld [vmem:[%s848] sm:$0xff]
  %v3929 = vld [vmem:[%s848 + $0x8] sm:$0xff]
  %v3930 = vld [vmem:[%s848 + $0x10] sm:$0xff]
  %v3931 = vld [vmem:[%s848 + $0x18] sm:$0xff]
  %v3932 = vld [vmem:[%s848 + $0x20] sm:$0xff]
  %v3933 = vld [vmem:[%s848 + $0x28] sm:$0xff]
  %v3934 = vld [vmem:[%s848 + $0x30] sm:$0xff]
  %v3935 = vld [vmem:[%s848 + $0x38] sm:$0xff]
  %v3936 = vmul.f32 %v3928, %v3924
  %v3937 = vmul.f32 %v3929, %v3920
  %v3938 = vmul.f32 %v3930, %v3925
  %v3939 = vmul.f32 %v3931, %v3921
  %v3940 = vmul.f32 %v3932, %v3926
  %v3941 = vmul.f32 %v3933, %v3922
  %v3942 = vmul.f32 %v3934, %v3927
  %v3943 = vmul.f32 %v3935, %v3923
  %v3944 = vadd.f32 %v3752, %v3936
  %v3945 = vadd.f32 %v3753, %v3937
  %v3946 = vadd.f32 %v3754, %v3938
  %v3947 = vadd.f32 %v3755, %v3939
  %v3948 = vadd.f32 %v3756, %v3940
  %v3949 = vadd.f32 %v3757, %v3941
  %v3950 = vadd.f32 %v3758, %v3942
  %v3951 = vadd.f32 %v3759, %v3943
  %3952 = vrot.lane.b32.xlu0 %v3258, 19
  %v3953 = vpop.permute.xlu0 %3952
  %3954 = vrot.lane.b32.xlu0 %v3264, 19
  %v3955 = vpop.permute.xlu0 %3954
  %3956 = vrot.lane.b32.xlu0 %v3270, 19
  %v3957 = vpop.permute.xlu0 %3956
  %3958 = vrot.lane.b32.xlu0 %v3276, 19
  %v3959 = vpop.permute.xlu0 %3958
  %3960 = vrot.lane.b32.xlu0 %v3260, 19
  %v3961 = vpop.permute.xlu0 %3960
  %3962 = vrot.lane.b32.xlu0 %v3266, 19
  %v3963 = vpop.permute.xlu0 %3962
  %3964 = vrot.lane.b32.xlu0 %v3272, 19
  %v3965 = vpop.permute.xlu0 %3964
  %3966 = vrot.lane.b32.xlu0 %v3278, 19
  %v3967 = vpop.permute.xlu0 %3966
  %v3968 = vsel %vm889, %v3953, %v3961
  %v3969 = vsel %vm889, %v3955, %v3963
  %v3970 = vsel %vm889, %v3957, %v3965
  %v3971 = vsel %vm889, %v3959, %v3967
  %v3972 = vsel %vm889, %v3961, %v3953
  %v3973 = vsel %vm889, %v3963, %v3955
  %v3974 = vsel %vm889, %v3965, %v3957
  %v3975 = vsel %vm889, %v3967, %v3959
  %v3976 = vld [vmem:[%s898] sm:$0xff]
  %v3977 = vld [vmem:[%s898 + $0x8] sm:$0xff]
  %v3978 = vld [vmem:[%s898 + $0x10] sm:$0xff]
  %v3979 = vld [vmem:[%s898 + $0x18] sm:$0xff]
  %v3980 = vld [vmem:[%s898 + $0x20] sm:$0xff]
  %v3981 = vld [vmem:[%s898 + $0x28] sm:$0xff]
  %v3982 = vld [vmem:[%s898 + $0x30] sm:$0xff]
  %v3983 = vld [vmem:[%s898 + $0x38] sm:$0xff]
  %v3984 = vmul.f32 %v3976, %v3972
  %v3985 = vmul.f32 %v3977, %v3968
  %v3986 = vmul.f32 %v3978, %v3973
  %v3987 = vmul.f32 %v3979, %v3969
  %v3988 = vmul.f32 %v3980, %v3974
  %v3989 = vmul.f32 %v3981, %v3970
  %v3990 = vmul.f32 %v3982, %v3975
  %v3991 = vmul.f32 %v3983, %v3971
  %v3992 = vadd.f32 %v3800, %v3984
  %v3993 = vadd.f32 %v3801, %v3985
  %v3994 = vadd.f32 %v3802, %v3986
  %v3995 = vadd.f32 %v3803, %v3987
  %v3996 = vadd.f32 %v3804, %v3988
  %v3997 = vadd.f32 %v3805, %v3989
  %v3998 = vadd.f32 %v3806, %v3990
  %v3999 = vadd.f32 %v3807, %v3991
  %4000 = vrot.lane.b32.xlu0 %v3258, 18
  %v4001 = vpop.permute.xlu0 %4000
  %4002 = vrot.lane.b32.xlu0 %v3264, 18
  %v4003 = vpop.permute.xlu0 %4002
  %4004 = vrot.lane.b32.xlu0 %v3270, 18
  %v4005 = vpop.permute.xlu0 %4004
  %4006 = vrot.lane.b32.xlu0 %v3276, 18
  %v4007 = vpop.permute.xlu0 %4006
  %4008 = vrot.lane.b32.xlu0 %v3260, 18
  %v4009 = vpop.permute.xlu0 %4008
  %4010 = vrot.lane.b32.xlu0 %v3266, 18
  %v4011 = vpop.permute.xlu0 %4010
  %4012 = vrot.lane.b32.xlu0 %v3272, 18
  %v4013 = vpop.permute.xlu0 %4012
  %4014 = vrot.lane.b32.xlu0 %v3278, 18
  %v4015 = vpop.permute.xlu0 %4014
  %v4016 = vsel %vm939, %v4001, %v4009
  %v4017 = vsel %vm939, %v4003, %v4011
  %v4018 = vsel %vm939, %v4005, %v4013
  %v4019 = vsel %vm939, %v4007, %v4015
  %v4020 = vsel %vm939, %v4009, %v4001
  %v4021 = vsel %vm939, %v4011, %v4003
  %v4022 = vsel %vm939, %v4013, %v4005
  %v4023 = vsel %vm939, %v4015, %v4007
  %v4024 = vld [vmem:[%s948] sm:$0xff]
  %v4025 = vld [vmem:[%s948 + $0x8] sm:$0xff]
  %v4026 = vld [vmem:[%s948 + $0x10] sm:$0xff]
  %v4027 = vld [vmem:[%s948 + $0x18] sm:$0xff]
  %v4028 = vld [vmem:[%s948 + $0x20] sm:$0xff]
  %v4029 = vld [vmem:[%s948 + $0x28] sm:$0xff]
  %v4030 = vld [vmem:[%s948 + $0x30] sm:$0xff]
  %v4031 = vld [vmem:[%s948 + $0x38] sm:$0xff]
  %v4032 = vmul.f32 %v4024, %v4020
  %v4033 = vmul.f32 %v4025, %v4016
  %v4034 = vmul.f32 %v4026, %v4021
  %v4035 = vmul.f32 %v4027, %v4017
  %v4036 = vmul.f32 %v4028, %v4022
  %v4037 = vmul.f32 %v4029, %v4018
  %v4038 = vmul.f32 %v4030, %v4023
  %v4039 = vmul.f32 %v4031, %v4019
  %v4040 = vadd.f32 %v3848, %v4032
  %v4041 = vadd.f32 %v3849, %v4033
  %v4042 = vadd.f32 %v3850, %v4034
  %v4043 = vadd.f32 %v3851, %v4035
  %v4044 = vadd.f32 %v3852, %v4036
  %v4045 = vadd.f32 %v3853, %v4037
  %v4046 = vadd.f32 %v3854, %v4038
  %v4047 = vadd.f32 %v3855, %v4039
  %4048 = vrot.lane.b32.xlu0 %v3258, 17
  %v4049 = vpop.permute.xlu0 %4048
  %4050 = vrot.lane.b32.xlu0 %v3264, 17
  %v4051 = vpop.permute.xlu0 %4050
  %4052 = vrot.lane.b32.xlu0 %v3270, 17
  %v4053 = vpop.permute.xlu0 %4052
  %4054 = vrot.lane.b32.xlu0 %v3276, 17
  %v4055 = vpop.permute.xlu0 %4054
  %4056 = vrot.lane.b32.xlu0 %v3260, 17
  %v4057 = vpop.permute.xlu0 %4056
  %4058 = vrot.lane.b32.xlu0 %v3266, 17
  %v4059 = vpop.permute.xlu0 %4058
  %4060 = vrot.lane.b32.xlu0 %v3272, 17
  %v4061 = vpop.permute.xlu0 %4060
  %4062 = vrot.lane.b32.xlu0 %v3278, 17
  %v4063 = vpop.permute.xlu0 %4062
  %v4064 = vsel %vm989, %v4049, %v4057
  %v4065 = vsel %vm989, %v4051, %v4059
  %v4066 = vsel %vm989, %v4053, %v4061
  %v4067 = vsel %vm989, %v4055, %v4063
  %v4068 = vsel %vm989, %v4057, %v4049
  %v4069 = vsel %vm989, %v4059, %v4051
  %v4070 = vsel %vm989, %v4061, %v4053
  %v4071 = vsel %vm989, %v4063, %v4055
  %v4072 = vld [vmem:[%s998] sm:$0xff]
  %v4073 = vld [vmem:[%s998 + $0x8] sm:$0xff]
  %v4074 = vld [vmem:[%s998 + $0x10] sm:$0xff]
  %v4075 = vld [vmem:[%s998 + $0x18] sm:$0xff]
  %v4076 = vld [vmem:[%s998 + $0x20] sm:$0xff]
  %v4077 = vld [vmem:[%s998 + $0x28] sm:$0xff]
  %v4078 = vld [vmem:[%s998 + $0x30] sm:$0xff]
  %v4079 = vld [vmem:[%s998 + $0x38] sm:$0xff]
  %v4080 = vmul.f32 %v4072, %v4068
  %v4081 = vmul.f32 %v4073, %v4064
  %v4082 = vmul.f32 %v4074, %v4069
  %v4083 = vmul.f32 %v4075, %v4065
  %v4084 = vmul.f32 %v4076, %v4070
  %v4085 = vmul.f32 %v4077, %v4066
  %v4086 = vmul.f32 %v4078, %v4071
  %v4087 = vmul.f32 %v4079, %v4067
  %v4088 = vadd.f32 %v3896, %v4080
  %v4089 = vadd.f32 %v3897, %v4081
  %v4090 = vadd.f32 %v3898, %v4082
  %v4091 = vadd.f32 %v3899, %v4083
  %v4092 = vadd.f32 %v3900, %v4084
  %v4093 = vadd.f32 %v3901, %v4085
  %v4094 = vadd.f32 %v3902, %v4086
  %v4095 = vadd.f32 %v3903, %v4087
  %4096 = vrot.lane.b32.xlu0 %v3258, 16
  %v4097 = vpop.permute.xlu0 %4096
  %4098 = vrot.lane.b32.xlu0 %v3264, 16
  %v4099 = vpop.permute.xlu0 %4098
  %4100 = vrot.lane.b32.xlu0 %v3270, 16
  %v4101 = vpop.permute.xlu0 %4100
  %4102 = vrot.lane.b32.xlu0 %v3276, 16
  %v4103 = vpop.permute.xlu0 %4102
  %4104 = vrot.lane.b32.xlu0 %v3260, 16
  %v4105 = vpop.permute.xlu0 %4104
  %4106 = vrot.lane.b32.xlu0 %v3266, 16
  %v4107 = vpop.permute.xlu0 %4106
  %4108 = vrot.lane.b32.xlu0 %v3272, 16
  %v4109 = vpop.permute.xlu0 %4108
  %4110 = vrot.lane.b32.xlu0 %v3278, 16
  %v4111 = vpop.permute.xlu0 %4110
  %v4112 = vsel %vm1039, %v4097, %v4105
  %v4113 = vsel %vm1039, %v4099, %v4107
  %v4114 = vsel %vm1039, %v4101, %v4109
  %v4115 = vsel %vm1039, %v4103, %v4111
  %v4116 = vsel %vm1039, %v4105, %v4097
  %v4117 = vsel %vm1039, %v4107, %v4099
  %v4118 = vsel %vm1039, %v4109, %v4101
  %v4119 = vsel %vm1039, %v4111, %v4103
  %v4120 = vld [vmem:[%s1048] sm:$0xff]
  %v4121 = vld [vmem:[%s1048 + $0x8] sm:$0xff]
  %v4122 = vld [vmem:[%s1048 + $0x10] sm:$0xff]
  %v4123 = vld [vmem:[%s1048 + $0x18] sm:$0xff]
  %v4124 = vld [vmem:[%s1048 + $0x20] sm:$0xff]
  %v4125 = vld [vmem:[%s1048 + $0x28] sm:$0xff]
  %v4126 = vld [vmem:[%s1048 + $0x30] sm:$0xff]
  %v4127 = vld [vmem:[%s1048 + $0x38] sm:$0xff]
  %v4128 = vmul.f32 %v4120, %v4116
  %v4129 = vmul.f32 %v4121, %v4112
  %v4130 = vmul.f32 %v4122, %v4117
  %v4131 = vmul.f32 %v4123, %v4113
  %v4132 = vmul.f32 %v4124, %v4118
  %v4133 = vmul.f32 %v4125, %v4114
  %v4134 = vmul.f32 %v4126, %v4119
  %v4135 = vmul.f32 %v4127, %v4115
  %v4136 = vadd.f32 %v3944, %v4128
  %v4137 = vadd.f32 %v3945, %v4129
  %v4138 = vadd.f32 %v3946, %v4130
  %v4139 = vadd.f32 %v3947, %v4131
  %v4140 = vadd.f32 %v3948, %v4132
  %v4141 = vadd.f32 %v3949, %v4133
  %v4142 = vadd.f32 %v3950, %v4134
  %v4143 = vadd.f32 %v3951, %v4135
  %4144 = vrot.lane.b32.xlu0 %v3258, 15
  %v4145 = vpop.permute.xlu0 %4144
  %4146 = vrot.lane.b32.xlu0 %v3264, 15
  %v4147 = vpop.permute.xlu0 %4146
  %4148 = vrot.lane.b32.xlu0 %v3270, 15
  %v4149 = vpop.permute.xlu0 %4148
  %4150 = vrot.lane.b32.xlu0 %v3276, 15
  %v4151 = vpop.permute.xlu0 %4150
  %4152 = vrot.lane.b32.xlu0 %v3260, 15
  %v4153 = vpop.permute.xlu0 %4152
  %4154 = vrot.lane.b32.xlu0 %v3266, 15
  %v4155 = vpop.permute.xlu0 %4154
  %4156 = vrot.lane.b32.xlu0 %v3272, 15
  %v4157 = vpop.permute.xlu0 %4156
  %4158 = vrot.lane.b32.xlu0 %v3278, 15
  %v4159 = vpop.permute.xlu0 %4158
  %v4160 = vsel %vm1089, %v4145, %v4153
  %v4161 = vsel %vm1089, %v4147, %v4155
  %v4162 = vsel %vm1089, %v4149, %v4157
  %v4163 = vsel %vm1089, %v4151, %v4159
  %v4164 = vsel %vm1089, %v4153, %v4145
  %v4165 = vsel %vm1089, %v4155, %v4147
  %v4166 = vsel %vm1089, %v4157, %v4149
  %v4167 = vsel %vm1089, %v4159, %v4151
  %v4168 = vld [vmem:[%s1098] sm:$0xff]
  %v4169 = vld [vmem:[%s1098 + $0x8] sm:$0xff]
  %v4170 = vld [vmem:[%s1098 + $0x10] sm:$0xff]
  %v4171 = vld [vmem:[%s1098 + $0x18] sm:$0xff]
  %v4172 = vld [vmem:[%s1098 + $0x20] sm:$0xff]
  %v4173 = vld [vmem:[%s1098 + $0x28] sm:$0xff]
  %v4174 = vld [vmem:[%s1098 + $0x30] sm:$0xff]
  %v4175 = vld [vmem:[%s1098 + $0x38] sm:$0xff]
  %v4176 = vmul.f32 %v4168, %v4164
  %v4177 = vmul.f32 %v4169, %v4160
  %v4178 = vmul.f32 %v4170, %v4165
  %v4179 = vmul.f32 %v4171, %v4161
  %v4180 = vmul.f32 %v4172, %v4166
  %v4181 = vmul.f32 %v4173, %v4162
  %v4182 = vmul.f32 %v4174, %v4167
  %v4183 = vmul.f32 %v4175, %v4163
  %v4184 = vadd.f32 %v3992, %v4176
  %v4185 = vadd.f32 %v3993, %v4177
  %v4186 = vadd.f32 %v3994, %v4178
  %v4187 = vadd.f32 %v3995, %v4179
  %v4188 = vadd.f32 %v3996, %v4180
  %v4189 = vadd.f32 %v3997, %v4181
  %v4190 = vadd.f32 %v3998, %v4182
  %v4191 = vadd.f32 %v3999, %v4183
  %4192 = vrot.lane.b32.xlu0 %v3258, 14
  %v4193 = vpop.permute.xlu0 %4192
  %4194 = vrot.lane.b32.xlu0 %v3264, 14
  %v4195 = vpop.permute.xlu0 %4194
  %4196 = vrot.lane.b32.xlu0 %v3270, 14
  %v4197 = vpop.permute.xlu0 %4196
  %4198 = vrot.lane.b32.xlu0 %v3276, 14
  %v4199 = vpop.permute.xlu0 %4198
  %4200 = vrot.lane.b32.xlu0 %v3260, 14
  %v4201 = vpop.permute.xlu0 %4200
  %4202 = vrot.lane.b32.xlu0 %v3266, 14
  %v4203 = vpop.permute.xlu0 %4202
  %4204 = vrot.lane.b32.xlu0 %v3272, 14
  %v4205 = vpop.permute.xlu0 %4204
  %4206 = vrot.lane.b32.xlu0 %v3278, 14
  %v4207 = vpop.permute.xlu0 %4206
  %v4208 = vsel %vm1139, %v4193, %v4201
  %v4209 = vsel %vm1139, %v4195, %v4203
  %v4210 = vsel %vm1139, %v4197, %v4205
  %v4211 = vsel %vm1139, %v4199, %v4207
  %v4212 = vsel %vm1139, %v4201, %v4193
  %v4213 = vsel %vm1139, %v4203, %v4195
  %v4214 = vsel %vm1139, %v4205, %v4197
  %v4215 = vsel %vm1139, %v4207, %v4199
  %v4216 = vld [vmem:[%s1148] sm:$0xff]
  %v4217 = vld [vmem:[%s1148 + $0x8] sm:$0xff]
  %v4218 = vld [vmem:[%s1148 + $0x10] sm:$0xff]
  %v4219 = vld [vmem:[%s1148 + $0x18] sm:$0xff]
  %v4220 = vld [vmem:[%s1148 + $0x20] sm:$0xff]
  %v4221 = vld [vmem:[%s1148 + $0x28] sm:$0xff]
  %v4222 = vld [vmem:[%s1148 + $0x30] sm:$0xff]
  %v4223 = vld [vmem:[%s1148 + $0x38] sm:$0xff]
  %v4224 = vmul.f32 %v4216, %v4212
  %v4225 = vmul.f32 %v4217, %v4208
  %v4226 = vmul.f32 %v4218, %v4213
  %v4227 = vmul.f32 %v4219, %v4209
  %v4228 = vmul.f32 %v4220, %v4214
  %v4229 = vmul.f32 %v4221, %v4210
  %v4230 = vmul.f32 %v4222, %v4215
  %v4231 = vmul.f32 %v4223, %v4211
  %v4232 = vadd.f32 %v4040, %v4224
  %v4233 = vadd.f32 %v4041, %v4225
  %v4234 = vadd.f32 %v4042, %v4226
  %v4235 = vadd.f32 %v4043, %v4227
  %v4236 = vadd.f32 %v4044, %v4228
  %v4237 = vadd.f32 %v4045, %v4229
  %v4238 = vadd.f32 %v4046, %v4230
  %v4239 = vadd.f32 %v4047, %v4231
  %4240 = vrot.lane.b32.xlu0 %v3258, 13
  %v4241 = vpop.permute.xlu0 %4240
  %4242 = vrot.lane.b32.xlu0 %v3264, 13
  %v4243 = vpop.permute.xlu0 %4242
  %4244 = vrot.lane.b32.xlu0 %v3270, 13
  %v4245 = vpop.permute.xlu0 %4244
  %4246 = vrot.lane.b32.xlu0 %v3276, 13
  %v4247 = vpop.permute.xlu0 %4246
  %4248 = vrot.lane.b32.xlu0 %v3260, 13
  %v4249 = vpop.permute.xlu0 %4248
  %4250 = vrot.lane.b32.xlu0 %v3266, 13
  %v4251 = vpop.permute.xlu0 %4250
  %4252 = vrot.lane.b32.xlu0 %v3272, 13
  %v4253 = vpop.permute.xlu0 %4252
  %4254 = vrot.lane.b32.xlu0 %v3278, 13
  %v4255 = vpop.permute.xlu0 %4254
  %v4256 = vsel %vm1189, %v4241, %v4249
  %v4257 = vsel %vm1189, %v4243, %v4251
  %v4258 = vsel %vm1189, %v4245, %v4253
  %v4259 = vsel %vm1189, %v4247, %v4255
  %v4260 = vsel %vm1189, %v4249, %v4241
  %v4261 = vsel %vm1189, %v4251, %v4243
  %v4262 = vsel %vm1189, %v4253, %v4245
  %v4263 = vsel %vm1189, %v4255, %v4247
  %v4264 = vld [vmem:[%s1198] sm:$0xff]
  %v4265 = vld [vmem:[%s1198 + $0x8] sm:$0xff]
  %v4266 = vld [vmem:[%s1198 + $0x10] sm:$0xff]
  %v4267 = vld [vmem:[%s1198 + $0x18] sm:$0xff]
  %v4268 = vld [vmem:[%s1198 + $0x20] sm:$0xff]
  %v4269 = vld [vmem:[%s1198 + $0x28] sm:$0xff]
  %v4270 = vld [vmem:[%s1198 + $0x30] sm:$0xff]
  %v4271 = vld [vmem:[%s1198 + $0x38] sm:$0xff]
  %v4272 = vmul.f32 %v4264, %v4260
  %v4273 = vmul.f32 %v4265, %v4256
  %v4274 = vmul.f32 %v4266, %v4261
  %v4275 = vmul.f32 %v4267, %v4257
  %v4276 = vmul.f32 %v4268, %v4262
  %v4277 = vmul.f32 %v4269, %v4258
  %v4278 = vmul.f32 %v4270, %v4263
  %v4279 = vmul.f32 %v4271, %v4259
  %v4280 = vadd.f32 %v4088, %v4272
  %v4281 = vadd.f32 %v4089, %v4273
  %v4282 = vadd.f32 %v4090, %v4274
  %v4283 = vadd.f32 %v4091, %v4275
  %v4284 = vadd.f32 %v4092, %v4276
  %v4285 = vadd.f32 %v4093, %v4277
  %v4286 = vadd.f32 %v4094, %v4278
  %v4287 = vadd.f32 %v4095, %v4279
  %4288 = vrot.lane.b32.xlu0 %v3258, 3
  %v4289 = vpop.permute.xlu0 %4288
  %4290 = vrot.lane.b32.xlu0 %v3264, 3
  %v4291 = vpop.permute.xlu0 %4290
  %4292 = vrot.lane.b32.xlu0 %v3270, 3
  %v4293 = vpop.permute.xlu0 %4292
  %4294 = vrot.lane.b32.xlu0 %v3276, 3
  %v4295 = vpop.permute.xlu0 %4294
  %4296 = vrot.lane.b32.xlu0 %v3260, 3
  %v4297 = vpop.permute.xlu0 %4296
  %4298 = vrot.lane.b32.xlu0 %v3266, 3
  %v4299 = vpop.permute.xlu0 %4298
  %4300 = vrot.lane.b32.xlu0 %v3272, 3
  %v4301 = vpop.permute.xlu0 %4300
  %4302 = vrot.lane.b32.xlu0 %v3278, 3
  %v4303 = vpop.permute.xlu0 %4302
  %v4304 = vsel %vm1239, %v4289, %v4297
  %v4305 = vsel %vm1239, %v4291, %v4299
  %v4306 = vsel %vm1239, %v4293, %v4301
  %v4307 = vsel %vm1239, %v4295, %v4303
  %v4308 = vsel %vm1239, %v4297, %v4289
  %v4309 = vsel %vm1239, %v4299, %v4291
  %v4310 = vsel %vm1239, %v4301, %v4293
  %v4311 = vsel %vm1239, %v4303, %v4295
  %v4312 = vld [vmem:[%s1248] sm:$0xff]
  %v4313 = vld [vmem:[%s1248 + $0x8] sm:$0xff]
  %v4314 = vld [vmem:[%s1248 + $0x10] sm:$0xff]
  %v4315 = vld [vmem:[%s1248 + $0x18] sm:$0xff]
  %v4316 = vld [vmem:[%s1248 + $0x20] sm:$0xff]
  %v4317 = vld [vmem:[%s1248 + $0x28] sm:$0xff]
  %v4318 = vld [vmem:[%s1248 + $0x30] sm:$0xff]
  %v4319 = vld [vmem:[%s1248 + $0x38] sm:$0xff]
  %v4320 = vmul.f32 %v4312, %v4308
  %v4321 = vmul.f32 %v4313, %v4304
  %v4322 = vmul.f32 %v4314, %v4309
  %v4323 = vmul.f32 %v4315, %v4305
  %v4324 = vmul.f32 %v4316, %v4310
  %v4325 = vmul.f32 %v4317, %v4306
  %v4326 = vmul.f32 %v4318, %v4311
  %v4327 = vmul.f32 %v4319, %v4307
  %v4328 = vadd.f32 %v4136, %v4320
  %v4329 = vadd.f32 %v4137, %v4321
  %v4330 = vadd.f32 %v4138, %v4322
  %v4331 = vadd.f32 %v4139, %v4323
  %v4332 = vadd.f32 %v4140, %v4324
  %v4333 = vadd.f32 %v4141, %v4325
  %v4334 = vadd.f32 %v4142, %v4326
  %v4335 = vadd.f32 %v4143, %v4327
  %4336 = vrot.lane.b32.xlu0 %v3258, 2
  %v4337 = vpop.permute.xlu0 %4336
  %4338 = vrot.lane.b32.xlu0 %v3264, 2
  %v4339 = vpop.permute.xlu0 %4338
  %4340 = vrot.lane.b32.xlu0 %v3270, 2
  %v4341 = vpop.permute.xlu0 %4340
  %4342 = vrot.lane.b32.xlu0 %v3276, 2
  %v4343 = vpop.permute.xlu0 %4342
  %4344 = vrot.lane.b32.xlu0 %v3260, 2
  %v4345 = vpop.permute.xlu0 %4344
  %4346 = vrot.lane.b32.xlu0 %v3266, 2
  %v4347 = vpop.permute.xlu0 %4346
  %4348 = vrot.lane.b32.xlu0 %v3272, 2
  %v4349 = vpop.permute.xlu0 %4348
  %4350 = vrot.lane.b32.xlu0 %v3278, 2
  %v4351 = vpop.permute.xlu0 %4350
  %v4352 = vsel %vm1289, %v4337, %v4345
  %v4353 = vsel %vm1289, %v4339, %v4347
  %v4354 = vsel %vm1289, %v4341, %v4349
  %v4355 = vsel %vm1289, %v4343, %v4351
  %v4356 = vsel %vm1289, %v4345, %v4337
  %v4357 = vsel %vm1289, %v4347, %v4339
  %v4358 = vsel %vm1289, %v4349, %v4341
  %v4359 = vsel %vm1289, %v4351, %v4343
  %v4360 = vld [vmem:[%s1298] sm:$0xff]
  %v4361 = vld [vmem:[%s1298 + $0x8] sm:$0xff]
  %v4362 = vld [vmem:[%s1298 + $0x10] sm:$0xff]
  %v4363 = vld [vmem:[%s1298 + $0x18] sm:$0xff]
  %v4364 = vld [vmem:[%s1298 + $0x20] sm:$0xff]
  %v4365 = vld [vmem:[%s1298 + $0x28] sm:$0xff]
  %v4366 = vld [vmem:[%s1298 + $0x30] sm:$0xff]
  %v4367 = vld [vmem:[%s1298 + $0x38] sm:$0xff]
  %v4368 = vmul.f32 %v4360, %v4356
  %v4369 = vmul.f32 %v4361, %v4352
  %v4370 = vmul.f32 %v4362, %v4357
  %v4371 = vmul.f32 %v4363, %v4353
  %v4372 = vmul.f32 %v4364, %v4358
  %v4373 = vmul.f32 %v4365, %v4354
  %v4374 = vmul.f32 %v4366, %v4359
  %v4375 = vmul.f32 %v4367, %v4355
  %v4376 = vadd.f32 %v4184, %v4368
  %v4377 = vadd.f32 %v4185, %v4369
  %v4378 = vadd.f32 %v4186, %v4370
  %v4379 = vadd.f32 %v4187, %v4371
  %v4380 = vadd.f32 %v4188, %v4372
  %v4381 = vadd.f32 %v4189, %v4373
  %v4382 = vadd.f32 %v4190, %v4374
  %v4383 = vadd.f32 %v4191, %v4375
  %4384 = vrot.lane.b32.xlu0 %v3258, 1
  %v4385 = vpop.permute.xlu0 %4384
  %4386 = vrot.lane.b32.xlu0 %v3264, 1
  %v4387 = vpop.permute.xlu0 %4386
  %4388 = vrot.lane.b32.xlu0 %v3270, 1
  %v4389 = vpop.permute.xlu0 %4388
  %4390 = vrot.lane.b32.xlu0 %v3276, 1
  %v4391 = vpop.permute.xlu0 %4390
  %4392 = vrot.lane.b32.xlu0 %v3260, 1
  %v4393 = vpop.permute.xlu0 %4392
  %4394 = vrot.lane.b32.xlu0 %v3266, 1
  %v4395 = vpop.permute.xlu0 %4394
  %4396 = vrot.lane.b32.xlu0 %v3272, 1
  %v4397 = vpop.permute.xlu0 %4396
  %4398 = vrot.lane.b32.xlu0 %v3278, 1
  %v4399 = vpop.permute.xlu0 %4398
  %v4400 = vsel %vm1339, %v4385, %v4393
  %v4401 = vsel %vm1339, %v4387, %v4395
  %v4402 = vsel %vm1339, %v4389, %v4397
  %v4403 = vsel %vm1339, %v4391, %v4399
  %v4404 = vsel %vm1339, %v4393, %v4385
  %v4405 = vsel %vm1339, %v4395, %v4387
  %v4406 = vsel %vm1339, %v4397, %v4389
  %v4407 = vsel %vm1339, %v4399, %v4391
  %v4408 = vld [vmem:[%s1348] sm:$0xff]
  %v4409 = vld [vmem:[%s1348 + $0x8] sm:$0xff]
  %v4410 = vld [vmem:[%s1348 + $0x10] sm:$0xff]
  %v4411 = vld [vmem:[%s1348 + $0x18] sm:$0xff]
  %v4412 = vld [vmem:[%s1348 + $0x20] sm:$0xff]
  %v4413 = vld [vmem:[%s1348 + $0x28] sm:$0xff]
  %v4414 = vld [vmem:[%s1348 + $0x30] sm:$0xff]
  %v4415 = vld [vmem:[%s1348 + $0x38] sm:$0xff]
  %v4416 = vmul.f32 %v4408, %v4404
  %v4417 = vmul.f32 %v4409, %v4400
  %v4418 = vmul.f32 %v4410, %v4405
  %v4419 = vmul.f32 %v4411, %v4401
  %v4420 = vmul.f32 %v4412, %v4406
  %v4421 = vmul.f32 %v4413, %v4402
  %v4422 = vmul.f32 %v4414, %v4407
  %v4423 = vmul.f32 %v4415, %v4403
  %v4424 = vadd.f32 %v4232, %v4416
  %v4425 = vadd.f32 %v4233, %v4417
  %v4426 = vadd.f32 %v4234, %v4418
  %v4427 = vadd.f32 %v4235, %v4419
  %v4428 = vadd.f32 %v4236, %v4420
  %v4429 = vadd.f32 %v4237, %v4421
  %v4430 = vadd.f32 %v4238, %v4422
  %v4431 = vadd.f32 %v4239, %v4423
  %v4432 = vld [vmem:[%s1373] sm:$0xff]
  %v4433 = vld [vmem:[%s1373 + $0x8] sm:$0xff]
  %v4434 = vld [vmem:[%s1373 + $0x10] sm:$0xff]
  %v4435 = vld [vmem:[%s1373 + $0x18] sm:$0xff]
  %v4436 = vld [vmem:[%s1373 + $0x20] sm:$0xff]
  %v4437 = vld [vmem:[%s1373 + $0x28] sm:$0xff]
  %v4438 = vld [vmem:[%s1373 + $0x30] sm:$0xff]
  %v4439 = vld [vmem:[%s1373 + $0x38] sm:$0xff]
  %v4440 = vmul.f32 %v4432, %v3258
  %v4441 = vmul.f32 %v4433, %v3260
  %v4442 = vmul.f32 %v4434, %v3264
  %v4443 = vmul.f32 %v4435, %v3266
  %v4444 = vmul.f32 %v4436, %v3270
  %v4445 = vmul.f32 %v4437, %v3272
  %v4446 = vmul.f32 %v4438, %v3276
  %v4447 = vmul.f32 %v4439, %v3278
  %v4448 = vadd.f32 %v4280, %v4440
  %v4449 = vadd.f32 %v4281, %v4441
  %v4450 = vadd.f32 %v4282, %v4442
  %v4451 = vadd.f32 %v4283, %v4443
  %v4452 = vadd.f32 %v4284, %v4444
  %v4453 = vadd.f32 %v4285, %v4445
  %v4454 = vadd.f32 %v4286, %v4446
  %v4455 = vadd.f32 %v4287, %v4447
  %4456 = vrot.lane.b32.xlu0 %v3258, 127
  %v4457 = vpop.permute.xlu0 %4456
  %4458 = vrot.lane.b32.xlu0 %v3264, 127
  %v4459 = vpop.permute.xlu0 %4458
  %4460 = vrot.lane.b32.xlu0 %v3270, 127
  %v4461 = vpop.permute.xlu0 %4460
  %4462 = vrot.lane.b32.xlu0 %v3276, 127
  %v4463 = vpop.permute.xlu0 %4462
  %4464 = vrot.lane.b32.xlu0 %v3260, 127
  %v4465 = vpop.permute.xlu0 %4464
  %4466 = vrot.lane.b32.xlu0 %v3266, 127
  %v4467 = vpop.permute.xlu0 %4466
  %4468 = vrot.lane.b32.xlu0 %v3272, 127
  %v4469 = vpop.permute.xlu0 %4468
  %4470 = vrot.lane.b32.xlu0 %v3278, 127
  %v4471 = vpop.permute.xlu0 %4470
  %v4472 = vsel %vm1414, %v4457, %v4465
  %v4473 = vsel %vm1414, %v4459, %v4467
  %v4474 = vsel %vm1414, %v4461, %v4469
  %v4475 = vsel %vm1414, %v4463, %v4471
  %v4476 = vsel %vm1414, %v4465, %v4457
  %v4477 = vsel %vm1414, %v4467, %v4459
  %v4478 = vsel %vm1414, %v4469, %v4461
  %v4479 = vsel %vm1414, %v4471, %v4463
  %v4480 = vld [vmem:[%s1423] sm:$0xff]
  %v4481 = vld [vmem:[%s1423 + $0x8] sm:$0xff]
  %v4482 = vld [vmem:[%s1423 + $0x10] sm:$0xff]
  %v4483 = vld [vmem:[%s1423 + $0x18] sm:$0xff]
  %v4484 = vld [vmem:[%s1423 + $0x20] sm:$0xff]
  %v4485 = vld [vmem:[%s1423 + $0x28] sm:$0xff]
  %v4486 = vld [vmem:[%s1423 + $0x30] sm:$0xff]
  %v4487 = vld [vmem:[%s1423 + $0x38] sm:$0xff]
  %v4488 = vmul.f32 %v4480, %v4472
  %v4489 = vmul.f32 %v4481, %v4476
  %v4490 = vmul.f32 %v4482, %v4473
  %v4491 = vmul.f32 %v4483, %v4477
  %v4492 = vmul.f32 %v4484, %v4474
  %v4493 = vmul.f32 %v4485, %v4478
  %v4494 = vmul.f32 %v4486, %v4475
  %v4495 = vmul.f32 %v4487, %v4479
  %v4496 = vadd.f32 %v4328, %v4488
  %v4497 = vadd.f32 %v4329, %v4489
  %v4498 = vadd.f32 %v4330, %v4490
  %v4499 = vadd.f32 %v4331, %v4491
  %v4500 = vadd.f32 %v4332, %v4492
  %v4501 = vadd.f32 %v4333, %v4493
  %v4502 = vadd.f32 %v4334, %v4494
  %v4503 = vadd.f32 %v4335, %v4495
  %4504 = vrot.lane.b32.xlu0 %v3258, 126
  %v4505 = vpop.permute.xlu0 %4504
  %4506 = vrot.lane.b32.xlu0 %v3264, 126
  %v4507 = vpop.permute.xlu0 %4506
  %4508 = vrot.lane.b32.xlu0 %v3270, 126
  %v4509 = vpop.permute.xlu0 %4508
  %4510 = vrot.lane.b32.xlu0 %v3276, 126
  %v4511 = vpop.permute.xlu0 %4510
  %4512 = vrot.lane.b32.xlu0 %v3260, 126
  %v4513 = vpop.permute.xlu0 %4512
  %4514 = vrot.lane.b32.xlu0 %v3266, 126
  %v4515 = vpop.permute.xlu0 %4514
  %4516 = vrot.lane.b32.xlu0 %v3272, 126
  %v4517 = vpop.permute.xlu0 %4516
  %4518 = vrot.lane.b32.xlu0 %v3278, 126
  %v4519 = vpop.permute.xlu0 %4518
  %v4520 = vsel %vm1464, %v4505, %v4513
  %v4521 = vsel %vm1464, %v4507, %v4515
  %v4522 = vsel %vm1464, %v4509, %v4517
  %v4523 = vsel %vm1464, %v4511, %v4519
  %v4524 = vsel %vm1464, %v4513, %v4505
  %v4525 = vsel %vm1464, %v4515, %v4507
  %v4526 = vsel %vm1464, %v4517, %v4509
  %v4527 = vsel %vm1464, %v4519, %v4511
  %v4528 = vld [vmem:[%s1473] sm:$0xff]
  %v4529 = vld [vmem:[%s1473 + $0x8] sm:$0xff]
  %v4530 = vld [vmem:[%s1473 + $0x10] sm:$0xff]
  %v4531 = vld [vmem:[%s1473 + $0x18] sm:$0xff]
  %v4532 = vld [vmem:[%s1473 + $0x20] sm:$0xff]
  %v4533 = vld [vmem:[%s1473 + $0x28] sm:$0xff]
  %v4534 = vld [vmem:[%s1473 + $0x30] sm:$0xff]
  %v4535 = vld [vmem:[%s1473 + $0x38] sm:$0xff]
  %v4536 = vmul.f32 %v4528, %v4520
  %v4537 = vmul.f32 %v4529, %v4524
  %v4538 = vmul.f32 %v4530, %v4521
  %v4539 = vmul.f32 %v4531, %v4525
  %v4540 = vmul.f32 %v4532, %v4522
  %v4541 = vmul.f32 %v4533, %v4526
  %v4542 = vmul.f32 %v4534, %v4523
  %v4543 = vmul.f32 %v4535, %v4527
  %v4544 = vadd.f32 %v4376, %v4536
  %v4545 = vadd.f32 %v4377, %v4537
  %v4546 = vadd.f32 %v4378, %v4538
  %v4547 = vadd.f32 %v4379, %v4539
  %v4548 = vadd.f32 %v4380, %v4540
  %v4549 = vadd.f32 %v4381, %v4541
  %v4550 = vadd.f32 %v4382, %v4542
  %v4551 = vadd.f32 %v4383, %v4543
  %4552 = vrot.lane.b32.xlu0 %v3258, 125
  %v4553 = vpop.permute.xlu0 %4552
  %4554 = vrot.lane.b32.xlu0 %v3264, 125
  %v4555 = vpop.permute.xlu0 %4554
  %4556 = vrot.lane.b32.xlu0 %v3270, 125
  %v4557 = vpop.permute.xlu0 %4556
  %4558 = vrot.lane.b32.xlu0 %v3276, 125
  %v4559 = vpop.permute.xlu0 %4558
  %4560 = vrot.lane.b32.xlu0 %v3260, 125
  %v4561 = vpop.permute.xlu0 %4560
  %4562 = vrot.lane.b32.xlu0 %v3266, 125
  %v4563 = vpop.permute.xlu0 %4562
  %4564 = vrot.lane.b32.xlu0 %v3272, 125
  %v4565 = vpop.permute.xlu0 %4564
  %4566 = vrot.lane.b32.xlu0 %v3278, 125
  %v4567 = vpop.permute.xlu0 %4566
  %v4568 = vsel %vm1514, %v4553, %v4561
  %v4569 = vsel %vm1514, %v4555, %v4563
  %v4570 = vsel %vm1514, %v4557, %v4565
  %v4571 = vsel %vm1514, %v4559, %v4567
  %v4572 = vsel %vm1514, %v4561, %v4553
  %v4573 = vsel %vm1514, %v4563, %v4555
  %v4574 = vsel %vm1514, %v4565, %v4557
  %v4575 = vsel %vm1514, %v4567, %v4559
  %v4576 = vld [vmem:[%s1523] sm:$0xff]
  %v4577 = vld [vmem:[%s1523 + $0x8] sm:$0xff]
  %v4578 = vld [vmem:[%s1523 + $0x10] sm:$0xff]
  %v4579 = vld [vmem:[%s1523 + $0x18] sm:$0xff]
  %v4580 = vld [vmem:[%s1523 + $0x20] sm:$0xff]
  %v4581 = vld [vmem:[%s1523 + $0x28] sm:$0xff]
  %v4582 = vld [vmem:[%s1523 + $0x30] sm:$0xff]
  %v4583 = vld [vmem:[%s1523 + $0x38] sm:$0xff]
  %v4584 = vmul.f32 %v4576, %v4568
  %v4585 = vmul.f32 %v4577, %v4572
  %v4586 = vmul.f32 %v4578, %v4569
  %v4587 = vmul.f32 %v4579, %v4573
  %v4588 = vmul.f32 %v4580, %v4570
  %v4589 = vmul.f32 %v4581, %v4574
  %v4590 = vmul.f32 %v4582, %v4571
  %v4591 = vmul.f32 %v4583, %v4575
  %v4592 = vadd.f32 %v4424, %v4584
  %v4593 = vadd.f32 %v4425, %v4585
  %v4594 = vadd.f32 %v4426, %v4586
  %v4595 = vadd.f32 %v4427, %v4587
  %v4596 = vadd.f32 %v4428, %v4588
  %v4597 = vadd.f32 %v4429, %v4589
  %v4598 = vadd.f32 %v4430, %v4590
  %v4599 = vadd.f32 %v4431, %v4591
  %4600 = vrot.lane.b32.xlu0 %v3258, 115
  %v4601 = vpop.permute.xlu0 %4600
  %4602 = vrot.lane.b32.xlu0 %v3264, 115
  %v4603 = vpop.permute.xlu0 %4602
  %4604 = vrot.lane.b32.xlu0 %v3270, 115
  %v4605 = vpop.permute.xlu0 %4604
  %4606 = vrot.lane.b32.xlu0 %v3276, 115
  %v4607 = vpop.permute.xlu0 %4606
  %4608 = vrot.lane.b32.xlu0 %v3260, 115
  %v4609 = vpop.permute.xlu0 %4608
  %4610 = vrot.lane.b32.xlu0 %v3266, 115
  %v4611 = vpop.permute.xlu0 %4610
  %4612 = vrot.lane.b32.xlu0 %v3272, 115
  %v4613 = vpop.permute.xlu0 %4612
  %4614 = vrot.lane.b32.xlu0 %v3278, 115
  %v4615 = vpop.permute.xlu0 %4614
  %v4616 = vsel %vm1564, %v4601, %v4609
  %v4617 = vsel %vm1564, %v4603, %v4611
  %v4618 = vsel %vm1564, %v4605, %v4613
  %v4619 = vsel %vm1564, %v4607, %v4615
  %v4620 = vsel %vm1564, %v4609, %v4601
  %v4621 = vsel %vm1564, %v4611, %v4603
  %v4622 = vsel %vm1564, %v4613, %v4605
  %v4623 = vsel %vm1564, %v4615, %v4607
  %v4624 = vld [vmem:[%s1573] sm:$0xff]
  %v4625 = vld [vmem:[%s1573 + $0x8] sm:$0xff]
  %v4626 = vld [vmem:[%s1573 + $0x10] sm:$0xff]
  %v4627 = vld [vmem:[%s1573 + $0x18] sm:$0xff]
  %v4628 = vld [vmem:[%s1573 + $0x20] sm:$0xff]
  %v4629 = vld [vmem:[%s1573 + $0x28] sm:$0xff]
  %v4630 = vld [vmem:[%s1573 + $0x30] sm:$0xff]
  %v4631 = vld [vmem:[%s1573 + $0x38] sm:$0xff]
  %v4632 = vmul.f32 %v4624, %v4616
  %v4633 = vmul.f32 %v4625, %v4620
  %v4634 = vmul.f32 %v4626, %v4617
  %v4635 = vmul.f32 %v4627, %v4621
  %v4636 = vmul.f32 %v4628, %v4618
  %v4637 = vmul.f32 %v4629, %v4622
  %v4638 = vmul.f32 %v4630, %v4619
  %v4639 = vmul.f32 %v4631, %v4623
  %v4640 = vadd.f32 %v4448, %v4632
  %v4641 = vadd.f32 %v4449, %v4633
  %v4642 = vadd.f32 %v4450, %v4634
  %v4643 = vadd.f32 %v4451, %v4635
  %v4644 = vadd.f32 %v4452, %v4636
  %v4645 = vadd.f32 %v4453, %v4637
  %v4646 = vadd.f32 %v4454, %v4638
  %v4647 = vadd.f32 %v4455, %v4639
  %4648 = vrot.lane.b32.xlu0 %v3258, 114
  %v4649 = vpop.permute.xlu0 %4648
  %4650 = vrot.lane.b32.xlu0 %v3264, 114
  %v4651 = vpop.permute.xlu0 %4650
  %4652 = vrot.lane.b32.xlu0 %v3270, 114
  %v4653 = vpop.permute.xlu0 %4652
  %4654 = vrot.lane.b32.xlu0 %v3276, 114
  %v4655 = vpop.permute.xlu0 %4654
  %4656 = vrot.lane.b32.xlu0 %v3260, 114
  %v4657 = vpop.permute.xlu0 %4656
  %4658 = vrot.lane.b32.xlu0 %v3266, 114
  %v4659 = vpop.permute.xlu0 %4658
  %4660 = vrot.lane.b32.xlu0 %v3272, 114
  %v4661 = vpop.permute.xlu0 %4660
  %4662 = vrot.lane.b32.xlu0 %v3278, 114
  %v4663 = vpop.permute.xlu0 %4662
  %v4664 = vsel %vm1614, %v4649, %v4657
  %v4665 = vsel %vm1614, %v4651, %v4659
  %v4666 = vsel %vm1614, %v4653, %v4661
  %v4667 = vsel %vm1614, %v4655, %v4663
  %v4668 = vsel %vm1614, %v4657, %v4649
  %v4669 = vsel %vm1614, %v4659, %v4651
  %v4670 = vsel %vm1614, %v4661, %v4653
  %v4671 = vsel %vm1614, %v4663, %v4655
  %v4672 = vld [vmem:[%s1623] sm:$0xff]
  %v4673 = vld [vmem:[%s1623 + $0x8] sm:$0xff]
  %v4674 = vld [vmem:[%s1623 + $0x10] sm:$0xff]
  %v4675 = vld [vmem:[%s1623 + $0x18] sm:$0xff]
  %v4676 = vld [vmem:[%s1623 + $0x20] sm:$0xff]
  %v4677 = vld [vmem:[%s1623 + $0x28] sm:$0xff]
  %v4678 = vld [vmem:[%s1623 + $0x30] sm:$0xff]
  %v4679 = vld [vmem:[%s1623 + $0x38] sm:$0xff]
  %v4680 = vmul.f32 %v4672, %v4664
  %v4681 = vmul.f32 %v4673, %v4668
  %v4682 = vmul.f32 %v4674, %v4665
  %v4683 = vmul.f32 %v4675, %v4669
  %v4684 = vmul.f32 %v4676, %v4666
  %v4685 = vmul.f32 %v4677, %v4670
  %v4686 = vmul.f32 %v4678, %v4667
  %v4687 = vmul.f32 %v4679, %v4671
  %v4688 = vadd.f32 %v4496, %v4680
  %v4689 = vadd.f32 %v4497, %v4681
  %v4690 = vadd.f32 %v4498, %v4682
  %v4691 = vadd.f32 %v4499, %v4683
  %v4692 = vadd.f32 %v4500, %v4684
  %v4693 = vadd.f32 %v4501, %v4685
  %v4694 = vadd.f32 %v4502, %v4686
  %v4695 = vadd.f32 %v4503, %v4687
  %4696 = vrot.lane.b32.xlu0 %v3258, 113
  %v4697 = vpop.permute.xlu0 %4696
  %4698 = vrot.lane.b32.xlu0 %v3264, 113
  %v4699 = vpop.permute.xlu0 %4698
  %4700 = vrot.lane.b32.xlu0 %v3270, 113
  %v4701 = vpop.permute.xlu0 %4700
  %4702 = vrot.lane.b32.xlu0 %v3276, 113
  %v4703 = vpop.permute.xlu0 %4702
  %4704 = vrot.lane.b32.xlu0 %v3260, 113
  %v4705 = vpop.permute.xlu0 %4704
  %4706 = vrot.lane.b32.xlu0 %v3266, 113
  %v4707 = vpop.permute.xlu0 %4706
  %4708 = vrot.lane.b32.xlu0 %v3272, 113
  %v4709 = vpop.permute.xlu0 %4708
  %4710 = vrot.lane.b32.xlu0 %v3278, 113
  %v4711 = vpop.permute.xlu0 %4710
  %v4712 = vsel %vm1664, %v4697, %v4705
  %v4713 = vsel %vm1664, %v4699, %v4707
  %v4714 = vsel %vm1664, %v4701, %v4709
  %v4715 = vsel %vm1664, %v4703, %v4711
  %v4716 = vsel %vm1664, %v4705, %v4697
  %v4717 = vsel %vm1664, %v4707, %v4699
  %v4718 = vsel %vm1664, %v4709, %v4701
  %v4719 = vsel %vm1664, %v4711, %v4703
  %v4720 = vld [vmem:[%s1673] sm:$0xff]
  %v4721 = vld [vmem:[%s1673 + $0x8] sm:$0xff]
  %v4722 = vld [vmem:[%s1673 + $0x10] sm:$0xff]
  %v4723 = vld [vmem:[%s1673 + $0x18] sm:$0xff]
  %v4724 = vld [vmem:[%s1673 + $0x20] sm:$0xff]
  %v4725 = vld [vmem:[%s1673 + $0x28] sm:$0xff]
  %v4726 = vld [vmem:[%s1673 + $0x30] sm:$0xff]
  %v4727 = vld [vmem:[%s1673 + $0x38] sm:$0xff]
  %v4728 = vmul.f32 %v4720, %v4712
  %v4729 = vmul.f32 %v4721, %v4716
  %v4730 = vmul.f32 %v4722, %v4713
  %v4731 = vmul.f32 %v4723, %v4717
  %v4732 = vmul.f32 %v4724, %v4714
  %v4733 = vmul.f32 %v4725, %v4718
  %v4734 = vmul.f32 %v4726, %v4715
  %v4735 = vmul.f32 %v4727, %v4719
  %v4736 = vadd.f32 %v4544, %v4728
  %v4737 = vadd.f32 %v4545, %v4729
  %v4738 = vadd.f32 %v4546, %v4730
  %v4739 = vadd.f32 %v4547, %v4731
  %v4740 = vadd.f32 %v4548, %v4732
  %v4741 = vadd.f32 %v4549, %v4733
  %v4742 = vadd.f32 %v4550, %v4734
  %v4743 = vadd.f32 %v4551, %v4735
  %4744 = vrot.lane.b32.xlu0 %v3258, 112
  %v4745 = vpop.permute.xlu0 %4744
  %4746 = vrot.lane.b32.xlu0 %v3264, 112
  %v4747 = vpop.permute.xlu0 %4746
  %4748 = vrot.lane.b32.xlu0 %v3270, 112
  %v4749 = vpop.permute.xlu0 %4748
  %4750 = vrot.lane.b32.xlu0 %v3276, 112
  %v4751 = vpop.permute.xlu0 %4750
  %4752 = vrot.lane.b32.xlu0 %v3260, 112
  %v4753 = vpop.permute.xlu0 %4752
  %4754 = vrot.lane.b32.xlu0 %v3266, 112
  %v4755 = vpop.permute.xlu0 %4754
  %4756 = vrot.lane.b32.xlu0 %v3272, 112
  %v4757 = vpop.permute.xlu0 %4756
  %4758 = vrot.lane.b32.xlu0 %v3278, 112
  %v4759 = vpop.permute.xlu0 %4758
  %v4760 = vsel %vm1714, %v4745, %v4753
  %v4761 = vsel %vm1714, %v4747, %v4755
  %v4762 = vsel %vm1714, %v4749, %v4757
  %v4763 = vsel %vm1714, %v4751, %v4759
  %v4764 = vsel %vm1714, %v4753, %v4745
  %v4765 = vsel %vm1714, %v4755, %v4747
  %v4766 = vsel %vm1714, %v4757, %v4749
  %v4767 = vsel %vm1714, %v4759, %v4751
  %v4768 = vld [vmem:[%s1723] sm:$0xff]
  %v4769 = vld [vmem:[%s1723 + $0x8] sm:$0xff]
  %v4770 = vld [vmem:[%s1723 + $0x10] sm:$0xff]
  %v4771 = vld [vmem:[%s1723 + $0x18] sm:$0xff]
  %v4772 = vld [vmem:[%s1723 + $0x20] sm:$0xff]
  %v4773 = vld [vmem:[%s1723 + $0x28] sm:$0xff]
  %v4774 = vld [vmem:[%s1723 + $0x30] sm:$0xff]
  %v4775 = vld [vmem:[%s1723 + $0x38] sm:$0xff]
  %v4776 = vmul.f32 %v4768, %v4760
  %v4777 = vmul.f32 %v4769, %v4764
  %v4778 = vmul.f32 %v4770, %v4761
  %v4779 = vmul.f32 %v4771, %v4765
  %v4780 = vmul.f32 %v4772, %v4762
  %v4781 = vmul.f32 %v4773, %v4766
  %v4782 = vmul.f32 %v4774, %v4763
  %v4783 = vmul.f32 %v4775, %v4767
  %v4784 = vadd.f32 %v4592, %v4776
  %v4785 = vadd.f32 %v4593, %v4777
  %v4786 = vadd.f32 %v4594, %v4778
  %v4787 = vadd.f32 %v4595, %v4779
  %v4788 = vadd.f32 %v4596, %v4780
  %v4789 = vadd.f32 %v4597, %v4781
  %v4790 = vadd.f32 %v4598, %v4782
  %v4791 = vadd.f32 %v4599, %v4783
  %4792 = vrot.lane.b32.xlu0 %v3258, 111
  %v4793 = vpop.permute.xlu0 %4792
  %4794 = vrot.lane.b32.xlu0 %v3264, 111
  %v4795 = vpop.permute.xlu0 %4794
  %4796 = vrot.lane.b32.xlu0 %v3270, 111
  %v4797 = vpop.permute.xlu0 %4796
  %4798 = vrot.lane.b32.xlu0 %v3276, 111
  %v4799 = vpop.permute.xlu0 %4798
  %4800 = vrot.lane.b32.xlu0 %v3260, 111
  %v4801 = vpop.permute.xlu0 %4800
  %4802 = vrot.lane.b32.xlu0 %v3266, 111
  %v4803 = vpop.permute.xlu0 %4802
  %4804 = vrot.lane.b32.xlu0 %v3272, 111
  %v4805 = vpop.permute.xlu0 %4804
  %4806 = vrot.lane.b32.xlu0 %v3278, 111
  %v4807 = vpop.permute.xlu0 %4806
  %v4808 = vsel %vm1764, %v4793, %v4801
  %v4809 = vsel %vm1764, %v4795, %v4803
  %v4810 = vsel %vm1764, %v4797, %v4805
  %v4811 = vsel %vm1764, %v4799, %v4807
  %v4812 = vsel %vm1764, %v4801, %v4793
  %v4813 = vsel %vm1764, %v4803, %v4795
  %v4814 = vsel %vm1764, %v4805, %v4797
  %v4815 = vsel %vm1764, %v4807, %v4799
  %v4816 = vld [vmem:[%s1773] sm:$0xff]
  %v4817 = vld [vmem:[%s1773 + $0x8] sm:$0xff]
  %v4818 = vld [vmem:[%s1773 + $0x10] sm:$0xff]
  %v4819 = vld [vmem:[%s1773 + $0x18] sm:$0xff]
  %v4820 = vld [vmem:[%s1773 + $0x20] sm:$0xff]
  %v4821 = vld [vmem:[%s1773 + $0x28] sm:$0xff]
  %v4822 = vld [vmem:[%s1773 + $0x30] sm:$0xff]
  %v4823 = vld [vmem:[%s1773 + $0x38] sm:$0xff]
  %v4824 = vmul.f32 %v4816, %v4808
  %v4825 = vmul.f32 %v4817, %v4812
  %v4826 = vmul.f32 %v4818, %v4809
  %v4827 = vmul.f32 %v4819, %v4813
  %v4828 = vmul.f32 %v4820, %v4810
  %v4829 = vmul.f32 %v4821, %v4814
  %v4830 = vmul.f32 %v4822, %v4811
  %v4831 = vmul.f32 %v4823, %v4815
  %v4832 = vadd.f32 %v4640, %v4824
  %v4833 = vadd.f32 %v4641, %v4825
  %v4834 = vadd.f32 %v4642, %v4826
  %v4835 = vadd.f32 %v4643, %v4827
  %v4836 = vadd.f32 %v4644, %v4828
  %v4837 = vadd.f32 %v4645, %v4829
  %v4838 = vadd.f32 %v4646, %v4830
  %v4839 = vadd.f32 %v4647, %v4831
  %4840 = vrot.lane.b32.xlu0 %v3258, 110
  %v4841 = vpop.permute.xlu0 %4840
  %4842 = vrot.lane.b32.xlu0 %v3264, 110
  %v4843 = vpop.permute.xlu0 %4842
  %4844 = vrot.lane.b32.xlu0 %v3270, 110
  %v4845 = vpop.permute.xlu0 %4844
  %4846 = vrot.lane.b32.xlu0 %v3276, 110
  %v4847 = vpop.permute.xlu0 %4846
  %4848 = vrot.lane.b32.xlu0 %v3260, 110
  %v4849 = vpop.permute.xlu0 %4848
  %4850 = vrot.lane.b32.xlu0 %v3266, 110
  %v4851 = vpop.permute.xlu0 %4850
  %4852 = vrot.lane.b32.xlu0 %v3272, 110
  %v4853 = vpop.permute.xlu0 %4852
  %4854 = vrot.lane.b32.xlu0 %v3278, 110
  %v4855 = vpop.permute.xlu0 %4854
  %v4856 = vsel %vm1814, %v4841, %v4849
  %v4857 = vsel %vm1814, %v4843, %v4851
  %v4858 = vsel %vm1814, %v4845, %v4853
  %v4859 = vsel %vm1814, %v4847, %v4855
  %v4860 = vsel %vm1814, %v4849, %v4841
  %v4861 = vsel %vm1814, %v4851, %v4843
  %v4862 = vsel %vm1814, %v4853, %v4845
  %v4863 = vsel %vm1814, %v4855, %v4847
  %v4864 = vld [vmem:[%s1823] sm:$0xff]
  %v4865 = vld [vmem:[%s1823 + $0x8] sm:$0xff]
  %v4866 = vld [vmem:[%s1823 + $0x10] sm:$0xff]
  %v4867 = vld [vmem:[%s1823 + $0x18] sm:$0xff]
  %v4868 = vld [vmem:[%s1823 + $0x20] sm:$0xff]
  %v4869 = vld [vmem:[%s1823 + $0x28] sm:$0xff]
  %v4870 = vld [vmem:[%s1823 + $0x30] sm:$0xff]
  %v4871 = vld [vmem:[%s1823 + $0x38] sm:$0xff]
  %v4872 = vmul.f32 %v4864, %v4856
  %v4873 = vmul.f32 %v4865, %v4860
  %v4874 = vmul.f32 %v4866, %v4857
  %v4875 = vmul.f32 %v4867, %v4861
  %v4876 = vmul.f32 %v4868, %v4858
  %v4877 = vmul.f32 %v4869, %v4862
  %v4878 = vmul.f32 %v4870, %v4859
  %v4879 = vmul.f32 %v4871, %v4863
  %v4880 = vadd.f32 %v4688, %v4872
  %v4881 = vadd.f32 %v4689, %v4873
  %v4882 = vadd.f32 %v4690, %v4874
  %v4883 = vadd.f32 %v4691, %v4875
  %v4884 = vadd.f32 %v4692, %v4876
  %v4885 = vadd.f32 %v4693, %v4877
  %v4886 = vadd.f32 %v4694, %v4878
  %v4887 = vadd.f32 %v4695, %v4879
  %4888 = vrot.lane.b32.xlu0 %v3258, 109
  %v4889 = vpop.permute.xlu0 %4888
  %4890 = vrot.lane.b32.xlu0 %v3264, 109
  %v4891 = vpop.permute.xlu0 %4890
  %4892 = vrot.lane.b32.xlu0 %v3270, 109
  %v4893 = vpop.permute.xlu0 %4892
  %4894 = vrot.lane.b32.xlu0 %v3276, 109
  %v4895 = vpop.permute.xlu0 %4894
  %4896 = vrot.lane.b32.xlu0 %v3260, 109
  %v4897 = vpop.permute.xlu0 %4896
  %4898 = vrot.lane.b32.xlu0 %v3266, 109
  %v4899 = vpop.permute.xlu0 %4898
  %4900 = vrot.lane.b32.xlu0 %v3272, 109
  %v4901 = vpop.permute.xlu0 %4900
  %4902 = vrot.lane.b32.xlu0 %v3278, 109
  %v4903 = vpop.permute.xlu0 %4902
  %v4904 = vsel %vm1864, %v4889, %v4897
  %v4905 = vsel %vm1864, %v4891, %v4899
  %v4906 = vsel %vm1864, %v4893, %v4901
  %v4907 = vsel %vm1864, %v4895, %v4903
  %v4908 = vsel %vm1864, %v4897, %v4889
  %v4909 = vsel %vm1864, %v4899, %v4891
  %v4910 = vsel %vm1864, %v4901, %v4893
  %v4911 = vsel %vm1864, %v4903, %v4895
  %v4912 = vld [vmem:[%s1873] sm:$0xff]
  %v4913 = vld [vmem:[%s1873 + $0x8] sm:$0xff]
  %v4914 = vld [vmem:[%s1873 + $0x10] sm:$0xff]
  %v4915 = vld [vmem:[%s1873 + $0x18] sm:$0xff]
  %v4916 = vld [vmem:[%s1873 + $0x20] sm:$0xff]
  %v4917 = vld [vmem:[%s1873 + $0x28] sm:$0xff]
  %v4918 = vld [vmem:[%s1873 + $0x30] sm:$0xff]
  %v4919 = vld [vmem:[%s1873 + $0x38] sm:$0xff]
  %v4920 = vmul.f32 %v4912, %v4904
  %v4921 = vmul.f32 %v4913, %v4908
  %v4922 = vmul.f32 %v4914, %v4905
  %v4923 = vmul.f32 %v4915, %v4909
  %v4924 = vmul.f32 %v4916, %v4906
  %v4925 = vmul.f32 %v4917, %v4910
  %v4926 = vmul.f32 %v4918, %v4907
  %v4927 = vmul.f32 %v4919, %v4911
  %v4928 = vadd.f32 %v4736, %v4920
  %v4929 = vadd.f32 %v4737, %v4921
  %v4930 = vadd.f32 %v4738, %v4922
  %v4931 = vadd.f32 %v4739, %v4923
  %v4932 = vadd.f32 %v4740, %v4924
  %v4933 = vadd.f32 %v4741, %v4925
  %v4934 = vadd.f32 %v4742, %v4926
  %v4935 = vadd.f32 %v4743, %v4927
  %4936 = vrot.lane.b32.xlu0 %v3258, 99
  %v4937 = vpop.permute.xlu0 %4936
  %4938 = vrot.lane.b32.xlu0 %v3264, 99
  %v4939 = vpop.permute.xlu0 %4938
  %4940 = vrot.lane.b32.xlu0 %v3270, 99
  %v4941 = vpop.permute.xlu0 %4940
  %4942 = vrot.lane.b32.xlu0 %v3276, 99
  %v4943 = vpop.permute.xlu0 %4942
  %4944 = vrot.lane.b32.xlu0 %v3260, 99
  %v4945 = vpop.permute.xlu0 %4944
  %4946 = vrot.lane.b32.xlu0 %v3266, 99
  %v4947 = vpop.permute.xlu0 %4946
  %4948 = vrot.lane.b32.xlu0 %v3272, 99
  %v4949 = vpop.permute.xlu0 %4948
  %4950 = vrot.lane.b32.xlu0 %v3278, 99
  %v4951 = vpop.permute.xlu0 %4950
  %v4952 = vsel %vm1914, %v4937, %v4945
  %v4953 = vsel %vm1914, %v4939, %v4947
  %v4954 = vsel %vm1914, %v4941, %v4949
  %v4955 = vsel %vm1914, %v4943, %v4951
  %v4956 = vsel %vm1914, %v4945, %v4937
  %v4957 = vsel %vm1914, %v4947, %v4939
  %v4958 = vsel %vm1914, %v4949, %v4941
  %v4959 = vsel %vm1914, %v4951, %v4943
  %v4960 = vld [vmem:[%s1923] sm:$0xff]
  %v4961 = vld [vmem:[%s1923 + $0x8] sm:$0xff]
  %v4962 = vld [vmem:[%s1923 + $0x10] sm:$0xff]
  %v4963 = vld [vmem:[%s1923 + $0x18] sm:$0xff]
  %v4964 = vld [vmem:[%s1923 + $0x20] sm:$0xff]
  %v4965 = vld [vmem:[%s1923 + $0x28] sm:$0xff]
  %v4966 = vld [vmem:[%s1923 + $0x30] sm:$0xff]
  %v4967 = vld [vmem:[%s1923 + $0x38] sm:$0xff]
  %v4968 = vmul.f32 %v4960, %v4952
  %v4969 = vmul.f32 %v4961, %v4956
  %v4970 = vmul.f32 %v4962, %v4953
  %v4971 = vmul.f32 %v4963, %v4957
  %v4972 = vmul.f32 %v4964, %v4954
  %v4973 = vmul.f32 %v4965, %v4958
  %v4974 = vmul.f32 %v4966, %v4955
  %v4975 = vmul.f32 %v4967, %v4959
  %v4976 = vadd.f32 %v4784, %v4968
  %v4977 = vadd.f32 %v4785, %v4969
  %v4978 = vadd.f32 %v4786, %v4970
  %v4979 = vadd.f32 %v4787, %v4971
  %v4980 = vadd.f32 %v4788, %v4972
  %v4981 = vadd.f32 %v4789, %v4973
  %v4982 = vadd.f32 %v4790, %v4974
  %v4983 = vadd.f32 %v4791, %v4975
  %4984 = vrot.lane.b32.xlu0 %v3258, 98
  %v4985 = vpop.permute.xlu0 %4984
  %4986 = vrot.lane.b32.xlu0 %v3264, 98
  %v4987 = vpop.permute.xlu0 %4986
  %4988 = vrot.lane.b32.xlu0 %v3270, 98
  %v4989 = vpop.permute.xlu0 %4988
  %4990 = vrot.lane.b32.xlu0 %v3276, 98
  %v4991 = vpop.permute.xlu0 %4990
  %4992 = vrot.lane.b32.xlu0 %v3260, 98
  %v4993 = vpop.permute.xlu0 %4992
  %4994 = vrot.lane.b32.xlu0 %v3266, 98
  %v4995 = vpop.permute.xlu0 %4994
  %4996 = vrot.lane.b32.xlu0 %v3272, 98
  %v4997 = vpop.permute.xlu0 %4996
  %4998 = vrot.lane.b32.xlu0 %v3278, 98
  %v4999 = vpop.permute.xlu0 %4998
  %v5000 = vsel %vm1964, %v4985, %v4993
  %v5001 = vsel %vm1964, %v4987, %v4995
  %v5002 = vsel %vm1964, %v4989, %v4997
  %v5003 = vsel %vm1964, %v4991, %v4999
  %v5004 = vsel %vm1964, %v4993, %v4985
  %v5005 = vsel %vm1964, %v4995, %v4987
  %v5006 = vsel %vm1964, %v4997, %v4989
  %v5007 = vsel %vm1964, %v4999, %v4991
  %v5008 = vld [vmem:[%s1973] sm:$0xff]
  %v5009 = vld [vmem:[%s1973 + $0x8] sm:$0xff]
  %v5010 = vld [vmem:[%s1973 + $0x10] sm:$0xff]
  %v5011 = vld [vmem:[%s1973 + $0x18] sm:$0xff]
  %v5012 = vld [vmem:[%s1973 + $0x20] sm:$0xff]
  %v5013 = vld [vmem:[%s1973 + $0x28] sm:$0xff]
  %v5014 = vld [vmem:[%s1973 + $0x30] sm:$0xff]
  %v5015 = vld [vmem:[%s1973 + $0x38] sm:$0xff]
  %v5016 = vmul.f32 %v5008, %v5000
  %v5017 = vmul.f32 %v5009, %v5004
  %v5018 = vmul.f32 %v5010, %v5001
  %v5019 = vmul.f32 %v5011, %v5005
  %v5020 = vmul.f32 %v5012, %v5002
  %v5021 = vmul.f32 %v5013, %v5006
  %v5022 = vmul.f32 %v5014, %v5003
  %v5023 = vmul.f32 %v5015, %v5007
  %v5024 = vadd.f32 %v4832, %v5016
  %v5025 = vadd.f32 %v4833, %v5017
  %v5026 = vadd.f32 %v4834, %v5018
  %v5027 = vadd.f32 %v4835, %v5019
  %v5028 = vadd.f32 %v4836, %v5020
  %v5029 = vadd.f32 %v4837, %v5021
  %v5030 = vadd.f32 %v4838, %v5022
  %v5031 = vadd.f32 %v4839, %v5023
  %5032 = vrot.lane.b32.xlu0 %v3258, 97
  %v5033 = vpop.permute.xlu0 %5032
  %5034 = vrot.lane.b32.xlu0 %v3264, 97
  %v5035 = vpop.permute.xlu0 %5034
  %5036 = vrot.lane.b32.xlu0 %v3270, 97
  %v5037 = vpop.permute.xlu0 %5036
  %5038 = vrot.lane.b32.xlu0 %v3276, 97
  %v5039 = vpop.permute.xlu0 %5038
  %5040 = vrot.lane.b32.xlu0 %v3260, 97
  %v5041 = vpop.permute.xlu0 %5040
  %5042 = vrot.lane.b32.xlu0 %v3266, 97
  %v5043 = vpop.permute.xlu0 %5042
  %5044 = vrot.lane.b32.xlu0 %v3272, 97
  %v5045 = vpop.permute.xlu0 %5044
  %5046 = vrot.lane.b32.xlu0 %v3278, 97
  %v5047 = vpop.permute.xlu0 %5046
  %v5048 = vsel %vm2014, %v5033, %v5041
  %v5049 = vsel %vm2014, %v5035, %v5043
  %v5050 = vsel %vm2014, %v5037, %v5045
  %v5051 = vsel %vm2014, %v5039, %v5047
  %v5052 = vsel %vm2014, %v5041, %v5033
  %v5053 = vsel %vm2014, %v5043, %v5035
  %v5054 = vsel %vm2014, %v5045, %v5037
  %v5055 = vsel %vm2014, %v5047, %v5039
  %v5056 = vld [vmem:[%s2023] sm:$0xff]
  %v5057 = vld [vmem:[%s2023 + $0x8] sm:$0xff]
  %v5058 = vld [vmem:[%s2023 + $0x10] sm:$0xff]
  %v5059 = vld [vmem:[%s2023 + $0x18] sm:$0xff]
  %v5060 = vld [vmem:[%s2023 + $0x20] sm:$0xff]
  %v5061 = vld [vmem:[%s2023 + $0x28] sm:$0xff]
  %v5062 = vld [vmem:[%s2023 + $0x30] sm:$0xff]
  %v5063 = vld [vmem:[%s2023 + $0x38] sm:$0xff]
  %v5064 = vmul.f32 %v5056, %v5048
  %v5065 = vmul.f32 %v5057, %v5052
  %v5066 = vmul.f32 %v5058, %v5049
  %v5067 = vmul.f32 %v5059, %v5053
  %v5068 = vmul.f32 %v5060, %v5050
  %v5069 = vmul.f32 %v5061, %v5054
  %v5070 = vmul.f32 %v5062, %v5051
  %v5071 = vmul.f32 %v5063, %v5055
  %v5072 = vadd.f32 %v4880, %v5064
  %v5073 = vadd.f32 %v4881, %v5065
  %v5074 = vadd.f32 %v4882, %v5066
  %v5075 = vadd.f32 %v4883, %v5067
  %v5076 = vadd.f32 %v4884, %v5068
  %v5077 = vadd.f32 %v4885, %v5069
  %v5078 = vadd.f32 %v4886, %v5070
  %v5079 = vadd.f32 %v4887, %v5071
  %5080 = vrot.lane.b32.xlu0 %v3258, 96
  %v5081 = vpop.permute.xlu0 %5080
  %5082 = vrot.lane.b32.xlu0 %v3264, 96
  %v5083 = vpop.permute.xlu0 %5082
  %5084 = vrot.lane.b32.xlu0 %v3270, 96
  %v5085 = vpop.permute.xlu0 %5084
  %5086 = vrot.lane.b32.xlu0 %v3276, 96
  %v5087 = vpop.permute.xlu0 %5086
  %5088 = vrot.lane.b32.xlu0 %v3260, 96
  %v5089 = vpop.permute.xlu0 %5088
  %5090 = vrot.lane.b32.xlu0 %v3266, 96
  %v5091 = vpop.permute.xlu0 %5090
  %5092 = vrot.lane.b32.xlu0 %v3272, 96
  %v5093 = vpop.permute.xlu0 %5092
  %5094 = vrot.lane.b32.xlu0 %v3278, 96
  %v5095 = vpop.permute.xlu0 %5094
  %v5096 = vsel %vm2064, %v5081, %v5089
  %v5097 = vsel %vm2064, %v5083, %v5091
  %v5098 = vsel %vm2064, %v5085, %v5093
  %v5099 = vsel %vm2064, %v5087, %v5095
  %v5100 = vsel %vm2064, %v5089, %v5081
  %v5101 = vsel %vm2064, %v5091, %v5083
  %v5102 = vsel %vm2064, %v5093, %v5085
  %v5103 = vsel %vm2064, %v5095, %v5087
  %v5104 = vld [vmem:[%s2073] sm:$0xff]
  %v5105 = vld [vmem:[%s2073 + $0x8] sm:$0xff]
  %v5106 = vld [vmem:[%s2073 + $0x10] sm:$0xff]
  %v5107 = vld [vmem:[%s2073 + $0x18] sm:$0xff]
  %v5108 = vld [vmem:[%s2073 + $0x20] sm:$0xff]
  %v5109 = vld [vmem:[%s2073 + $0x28] sm:$0xff]
  %v5110 = vld [vmem:[%s2073 + $0x30] sm:$0xff]
  %v5111 = vld [vmem:[%s2073 + $0x38] sm:$0xff]
  %v5112 = vmul.f32 %v5104, %v5096
  %v5113 = vmul.f32 %v5105, %v5100
  %v5114 = vmul.f32 %v5106, %v5097
  %v5115 = vmul.f32 %v5107, %v5101
  %v5116 = vmul.f32 %v5108, %v5098
  %v5117 = vmul.f32 %v5109, %v5102
  %v5118 = vmul.f32 %v5110, %v5099
  %v5119 = vmul.f32 %v5111, %v5103
  %v5120 = vadd.f32 %v4928, %v5112
  %v5121 = vadd.f32 %v4929, %v5113
  %v5122 = vadd.f32 %v4930, %v5114
  %v5123 = vadd.f32 %v4931, %v5115
  %v5124 = vadd.f32 %v4932, %v5116
  %v5125 = vadd.f32 %v4933, %v5117
  %v5126 = vadd.f32 %v4934, %v5118
  %v5127 = vadd.f32 %v4935, %v5119
  %5128 = vrot.lane.b32.xlu0 %v3258, 95
  %v5129 = vpop.permute.xlu0 %5128
  %5130 = vrot.lane.b32.xlu0 %v3264, 95
  %v5131 = vpop.permute.xlu0 %5130
  %5132 = vrot.lane.b32.xlu0 %v3270, 95
  %v5133 = vpop.permute.xlu0 %5132
  %5134 = vrot.lane.b32.xlu0 %v3276, 95
  %v5135 = vpop.permute.xlu0 %5134
  %5136 = vrot.lane.b32.xlu0 %v3260, 95
  %v5137 = vpop.permute.xlu0 %5136
  %5138 = vrot.lane.b32.xlu0 %v3266, 95
  %v5139 = vpop.permute.xlu0 %5138
  %5140 = vrot.lane.b32.xlu0 %v3272, 95
  %v5141 = vpop.permute.xlu0 %5140
  %5142 = vrot.lane.b32.xlu0 %v3278, 95
  %v5143 = vpop.permute.xlu0 %5142
  %v5144 = vsel %vm2114, %v5129, %v5137
  %v5145 = vsel %vm2114, %v5131, %v5139
  %v5146 = vsel %vm2114, %v5133, %v5141
  %v5147 = vsel %vm2114, %v5135, %v5143
  %v5148 = vsel %vm2114, %v5137, %v5129
  %v5149 = vsel %vm2114, %v5139, %v5131
  %v5150 = vsel %vm2114, %v5141, %v5133
  %v5151 = vsel %vm2114, %v5143, %v5135
  %v5152 = vld [vmem:[%s2123] sm:$0xff]
  %v5153 = vld [vmem:[%s2123 + $0x8] sm:$0xff]
  %v5154 = vld [vmem:[%s2123 + $0x10] sm:$0xff]
  %v5155 = vld [vmem:[%s2123 + $0x18] sm:$0xff]
  %v5156 = vld [vmem:[%s2123 + $0x20] sm:$0xff]
  %v5157 = vld [vmem:[%s2123 + $0x28] sm:$0xff]
  %v5158 = vld [vmem:[%s2123 + $0x30] sm:$0xff]
  %v5159 = vld [vmem:[%s2123 + $0x38] sm:$0xff]
  %v5160 = vmul.f32 %v5152, %v5144
  %v5161 = vmul.f32 %v5153, %v5148
  %v5162 = vmul.f32 %v5154, %v5145
  %v5163 = vmul.f32 %v5155, %v5149
  %v5164 = vmul.f32 %v5156, %v5146
  %v5165 = vmul.f32 %v5157, %v5150
  %v5166 = vmul.f32 %v5158, %v5147
  %v5167 = vmul.f32 %v5159, %v5151
  %v5168 = vadd.f32 %v4976, %v5160
  %v5169 = vadd.f32 %v4977, %v5161
  %v5170 = vadd.f32 %v4978, %v5162
  %v5171 = vadd.f32 %v4979, %v5163
  %v5172 = vadd.f32 %v4980, %v5164
  %v5173 = vadd.f32 %v4981, %v5165
  %v5174 = vadd.f32 %v4982, %v5166
  %v5175 = vadd.f32 %v4983, %v5167
  %5176 = vrot.lane.b32.xlu0 %v3258, 94
  %v5177 = vpop.permute.xlu0 %5176
  %5178 = vrot.lane.b32.xlu0 %v3264, 94
  %v5179 = vpop.permute.xlu0 %5178
  %5180 = vrot.lane.b32.xlu0 %v3270, 94
  %v5181 = vpop.permute.xlu0 %5180
  %5182 = vrot.lane.b32.xlu0 %v3276, 94
  %v5183 = vpop.permute.xlu0 %5182
  %5184 = vrot.lane.b32.xlu0 %v3260, 94
  %v5185 = vpop.permute.xlu0 %5184
  %5186 = vrot.lane.b32.xlu0 %v3266, 94
  %v5187 = vpop.permute.xlu0 %5186
  %5188 = vrot.lane.b32.xlu0 %v3272, 94
  %v5189 = vpop.permute.xlu0 %5188
  %5190 = vrot.lane.b32.xlu0 %v3278, 94
  %v5191 = vpop.permute.xlu0 %5190
  %v5192 = vsel %vm2164, %v5177, %v5185
  %v5193 = vsel %vm2164, %v5179, %v5187
  %v5194 = vsel %vm2164, %v5181, %v5189
  %v5195 = vsel %vm2164, %v5183, %v5191
  %v5196 = vsel %vm2164, %v5185, %v5177
  %v5197 = vsel %vm2164, %v5187, %v5179
  %v5198 = vsel %vm2164, %v5189, %v5181
  %v5199 = vsel %vm2164, %v5191, %v5183
  %v5200 = vld [vmem:[%s2173] sm:$0xff]
  %v5201 = vld [vmem:[%s2173 + $0x8] sm:$0xff]
  %v5202 = vld [vmem:[%s2173 + $0x10] sm:$0xff]
  %v5203 = vld [vmem:[%s2173 + $0x18] sm:$0xff]
  %v5204 = vld [vmem:[%s2173 + $0x20] sm:$0xff]
  %v5205 = vld [vmem:[%s2173 + $0x28] sm:$0xff]
  %v5206 = vld [vmem:[%s2173 + $0x30] sm:$0xff]
  %v5207 = vld [vmem:[%s2173 + $0x38] sm:$0xff]
  %v5208 = vmul.f32 %v5200, %v5192
  %v5209 = vmul.f32 %v5201, %v5196
  %v5210 = vmul.f32 %v5202, %v5193
  %v5211 = vmul.f32 %v5203, %v5197
  %v5212 = vmul.f32 %v5204, %v5194
  %v5213 = vmul.f32 %v5205, %v5198
  %v5214 = vmul.f32 %v5206, %v5195
  %v5215 = vmul.f32 %v5207, %v5199
  %v5216 = vadd.f32 %v5024, %v5208
  %v5217 = vadd.f32 %v5025, %v5209
  %v5218 = vadd.f32 %v5026, %v5210
  %v5219 = vadd.f32 %v5027, %v5211
  %v5220 = vadd.f32 %v5028, %v5212
  %v5221 = vadd.f32 %v5029, %v5213
  %v5222 = vadd.f32 %v5030, %v5214
  %v5223 = vadd.f32 %v5031, %v5215
  %5224 = vrot.lane.b32.xlu0 %v3258, 93
  %v5225 = vpop.permute.xlu0 %5224
  %5226 = vrot.lane.b32.xlu0 %v3264, 93
  %v5227 = vpop.permute.xlu0 %5226
  %5228 = vrot.lane.b32.xlu0 %v3270, 93
  %v5229 = vpop.permute.xlu0 %5228
  %5230 = vrot.lane.b32.xlu0 %v3276, 93
  %v5231 = vpop.permute.xlu0 %5230
  %5232 = vrot.lane.b32.xlu0 %v3260, 93
  %v5233 = vpop.permute.xlu0 %5232
  %5234 = vrot.lane.b32.xlu0 %v3266, 93
  %v5235 = vpop.permute.xlu0 %5234
  %5236 = vrot.lane.b32.xlu0 %v3272, 93
  %v5237 = vpop.permute.xlu0 %5236
  %5238 = vrot.lane.b32.xlu0 %v3278, 93
  %v5239 = vpop.permute.xlu0 %5238
  %v5240 = vsel %vm2214, %v5225, %v5233
  %v5241 = vsel %vm2214, %v5227, %v5235
  %v5242 = vsel %vm2214, %v5229, %v5237
  %v5243 = vsel %vm2214, %v5231, %v5239
  %v5244 = vsel %vm2214, %v5233, %v5225
  %v5245 = vsel %vm2214, %v5235, %v5227
  %v5246 = vsel %vm2214, %v5237, %v5229
  %v5247 = vsel %vm2214, %v5239, %v5231
  %v5248 = vld [vmem:[%s2223] sm:$0xff]
  %v5249 = vld [vmem:[%s2223 + $0x8] sm:$0xff]
  %v5250 = vld [vmem:[%s2223 + $0x10] sm:$0xff]
  %v5251 = vld [vmem:[%s2223 + $0x18] sm:$0xff]
  %v5252 = vld [vmem:[%s2223 + $0x20] sm:$0xff]
  %v5253 = vld [vmem:[%s2223 + $0x28] sm:$0xff]
  %v5254 = vld [vmem:[%s2223 + $0x30] sm:$0xff]
  %v5255 = vld [vmem:[%s2223 + $0x38] sm:$0xff]
  %v5256 = vmul.f32 %v5248, %v5240
  %v5257 = vmul.f32 %v5249, %v5244
  %v5258 = vmul.f32 %v5250, %v5241
  %v5259 = vmul.f32 %v5251, %v5245
  %v5260 = vmul.f32 %v5252, %v5242
  %v5261 = vmul.f32 %v5253, %v5246
  %v5262 = vmul.f32 %v5254, %v5243
  %v5263 = vmul.f32 %v5255, %v5247
  %v5264 = vadd.f32 %v5072, %v5256
  %v5265 = vadd.f32 %v5073, %v5257
  %v5266 = vadd.f32 %v5074, %v5258
  %v5267 = vadd.f32 %v5075, %v5259
  %v5268 = vadd.f32 %v5076, %v5260
  %v5269 = vadd.f32 %v5077, %v5261
  %v5270 = vadd.f32 %v5078, %v5262
  %v5271 = vadd.f32 %v5079, %v5263
  %5272 = vrot.lane.b32.xlu0 %v3258, 83
  %v5273 = vpop.permute.xlu0 %5272
  %5274 = vrot.lane.b32.xlu0 %v3264, 83
  %v5275 = vpop.permute.xlu0 %5274
  %5276 = vrot.lane.b32.xlu0 %v3270, 83
  %v5277 = vpop.permute.xlu0 %5276
  %5278 = vrot.lane.b32.xlu0 %v3276, 83
  %v5279 = vpop.permute.xlu0 %5278
  %5280 = vrot.lane.b32.xlu0 %v3260, 83
  %v5281 = vpop.permute.xlu0 %5280
  %5282 = vrot.lane.b32.xlu0 %v3266, 83
  %v5283 = vpop.permute.xlu0 %5282
  %5284 = vrot.lane.b32.xlu0 %v3272, 83
  %v5285 = vpop.permute.xlu0 %5284
  %5286 = vrot.lane.b32.xlu0 %v3278, 83
  %v5287 = vpop.permute.xlu0 %5286
  %v5288 = vsel %vm2264, %v5273, %v5281
  %v5289 = vsel %vm2264, %v5275, %v5283
  %v5290 = vsel %vm2264, %v5277, %v5285
  %v5291 = vsel %vm2264, %v5279, %v5287
  %v5292 = vsel %vm2264, %v5281, %v5273
  %v5293 = vsel %vm2264, %v5283, %v5275
  %v5294 = vsel %vm2264, %v5285, %v5277
  %v5295 = vsel %vm2264, %v5287, %v5279
  %v5296 = vld [vmem:[%s2273] sm:$0xff]
  %v5297 = vld [vmem:[%s2273 + $0x8] sm:$0xff]
  %v5298 = vld [vmem:[%s2273 + $0x10] sm:$0xff]
  %v5299 = vld [vmem:[%s2273 + $0x18] sm:$0xff]
  %v5300 = vld [vmem:[%s2273 + $0x20] sm:$0xff]
  %v5301 = vld [vmem:[%s2273 + $0x28] sm:$0xff]
  %v5302 = vld [vmem:[%s2273 + $0x30] sm:$0xff]
  %v5303 = vld [vmem:[%s2273 + $0x38] sm:$0xff]
  %v5304 = vmul.f32 %v5296, %v5288
  %v5305 = vmul.f32 %v5297, %v5292
  %v5306 = vmul.f32 %v5298, %v5289
  %v5307 = vmul.f32 %v5299, %v5293
  %v5308 = vmul.f32 %v5300, %v5290
  %v5309 = vmul.f32 %v5301, %v5294
  %v5310 = vmul.f32 %v5302, %v5291
  %v5311 = vmul.f32 %v5303, %v5295
  %v5312 = vadd.f32 %v5120, %v5304
  %v5313 = vadd.f32 %v5121, %v5305
  %v5314 = vadd.f32 %v5122, %v5306
  %v5315 = vadd.f32 %v5123, %v5307
  %v5316 = vadd.f32 %v5124, %v5308
  %v5317 = vadd.f32 %v5125, %v5309
  %v5318 = vadd.f32 %v5126, %v5310
  %v5319 = vadd.f32 %v5127, %v5311
  %5320 = vrot.lane.b32.xlu0 %v3258, 82
  %v5321 = vpop.permute.xlu0 %5320
  %5322 = vrot.lane.b32.xlu0 %v3264, 82
  %v5323 = vpop.permute.xlu0 %5322
  %5324 = vrot.lane.b32.xlu0 %v3270, 82
  %v5325 = vpop.permute.xlu0 %5324
  %5326 = vrot.lane.b32.xlu0 %v3276, 82
  %v5327 = vpop.permute.xlu0 %5326
  %5328 = vrot.lane.b32.xlu0 %v3260, 82
  %v5329 = vpop.permute.xlu0 %5328
  %5330 = vrot.lane.b32.xlu0 %v3266, 82
  %v5331 = vpop.permute.xlu0 %5330
  %5332 = vrot.lane.b32.xlu0 %v3272, 82
  %v5333 = vpop.permute.xlu0 %5332
  %5334 = vrot.lane.b32.xlu0 %v3278, 82
  %v5335 = vpop.permute.xlu0 %5334
  %v5336 = vsel %vm2314, %v5321, %v5329
  %v5337 = vsel %vm2314, %v5323, %v5331
  %v5338 = vsel %vm2314, %v5325, %v5333
  %v5339 = vsel %vm2314, %v5327, %v5335
  %v5340 = vsel %vm2314, %v5329, %v5321
  %v5341 = vsel %vm2314, %v5331, %v5323
  %v5342 = vsel %vm2314, %v5333, %v5325
  %v5343 = vsel %vm2314, %v5335, %v5327
  %v5344 = vld [vmem:[%s2323] sm:$0xff]
  %v5345 = vld [vmem:[%s2323 + $0x8] sm:$0xff]
  %v5346 = vld [vmem:[%s2323 + $0x10] sm:$0xff]
  %v5347 = vld [vmem:[%s2323 + $0x18] sm:$0xff]
  %v5348 = vld [vmem:[%s2323 + $0x20] sm:$0xff]
  %v5349 = vld [vmem:[%s2323 + $0x28] sm:$0xff]
  %v5350 = vld [vmem:[%s2323 + $0x30] sm:$0xff]
  %v5351 = vld [vmem:[%s2323 + $0x38] sm:$0xff]
  %v5352 = vmul.f32 %v5344, %v5336
  %v5353 = vmul.f32 %v5345, %v5340
  %v5354 = vmul.f32 %v5346, %v5337
  %v5355 = vmul.f32 %v5347, %v5341
  %v5356 = vmul.f32 %v5348, %v5338
  %v5357 = vmul.f32 %v5349, %v5342
  %v5358 = vmul.f32 %v5350, %v5339
  %v5359 = vmul.f32 %v5351, %v5343
  %v5360 = vadd.f32 %v5168, %v5352
  %v5361 = vadd.f32 %v5169, %v5353
  %v5362 = vadd.f32 %v5170, %v5354
  %v5363 = vadd.f32 %v5171, %v5355
  %v5364 = vadd.f32 %v5172, %v5356
  %v5365 = vadd.f32 %v5173, %v5357
  %v5366 = vadd.f32 %v5174, %v5358
  %v5367 = vadd.f32 %v5175, %v5359
  %5368 = vrot.lane.b32.xlu0 %v3258, 81
  %v5369 = vpop.permute.xlu0 %5368
  %5370 = vrot.lane.b32.xlu0 %v3264, 81
  %v5371 = vpop.permute.xlu0 %5370
  %5372 = vrot.lane.b32.xlu0 %v3270, 81
  %v5373 = vpop.permute.xlu0 %5372
  %5374 = vrot.lane.b32.xlu0 %v3276, 81
  %v5375 = vpop.permute.xlu0 %5374
  %5376 = vrot.lane.b32.xlu0 %v3260, 81
  %v5377 = vpop.permute.xlu0 %5376
  %5378 = vrot.lane.b32.xlu0 %v3266, 81
  %v5379 = vpop.permute.xlu0 %5378
  %5380 = vrot.lane.b32.xlu0 %v3272, 81
  %v5381 = vpop.permute.xlu0 %5380
  %5382 = vrot.lane.b32.xlu0 %v3278, 81
  %v5383 = vpop.permute.xlu0 %5382
  %v5384 = vsel %vm2364, %v5369, %v5377
  %v5385 = vsel %vm2364, %v5371, %v5379
  %v5386 = vsel %vm2364, %v5373, %v5381
  %v5387 = vsel %vm2364, %v5375, %v5383
  %v5388 = vsel %vm2364, %v5377, %v5369
  %v5389 = vsel %vm2364, %v5379, %v5371
  %v5390 = vsel %vm2364, %v5381, %v5373
  %v5391 = vsel %vm2364, %v5383, %v5375
  %v5392 = vld [vmem:[%s2373] sm:$0xff]
  %v5393 = vld [vmem:[%s2373 + $0x8] sm:$0xff]
  %v5394 = vld [vmem:[%s2373 + $0x10] sm:$0xff]
  %v5395 = vld [vmem:[%s2373 + $0x18] sm:$0xff]
  %v5396 = vld [vmem:[%s2373 + $0x20] sm:$0xff]
  %v5397 = vld [vmem:[%s2373 + $0x28] sm:$0xff]
  %v5398 = vld [vmem:[%s2373 + $0x30] sm:$0xff]
  %v5399 = vld [vmem:[%s2373 + $0x38] sm:$0xff]
  %v5400 = vmul.f32 %v5392, %v5384
  %v5401 = vmul.f32 %v5393, %v5388
  %v5402 = vmul.f32 %v5394, %v5385
  %v5403 = vmul.f32 %v5395, %v5389
  %v5404 = vmul.f32 %v5396, %v5386
  %v5405 = vmul.f32 %v5397, %v5390
  %v5406 = vmul.f32 %v5398, %v5387
  %v5407 = vmul.f32 %v5399, %v5391
  %v5408 = vadd.f32 %v5216, %v5400
  %v5409 = vadd.f32 %v5217, %v5401
  %v5410 = vadd.f32 %v5218, %v5402
  %v5411 = vadd.f32 %v5219, %v5403
  %v5412 = vadd.f32 %v5220, %v5404
  %v5413 = vadd.f32 %v5221, %v5405
  %v5414 = vadd.f32 %v5222, %v5406
  %v5415 = vadd.f32 %v5223, %v5407
  %5416 = vrot.lane.b32.xlu0 %v3258, 80
  %v5417 = vpop.permute.xlu0 %5416
  %5418 = vrot.lane.b32.xlu0 %v3264, 80
  %v5419 = vpop.permute.xlu0 %5418
  %5420 = vrot.lane.b32.xlu0 %v3270, 80
  %v5421 = vpop.permute.xlu0 %5420
  %5422 = vrot.lane.b32.xlu0 %v3276, 80
  %v5423 = vpop.permute.xlu0 %5422
  %5424 = vrot.lane.b32.xlu0 %v3260, 80
  %v5425 = vpop.permute.xlu0 %5424
  %5426 = vrot.lane.b32.xlu0 %v3266, 80
  %v5427 = vpop.permute.xlu0 %5426
  %5428 = vrot.lane.b32.xlu0 %v3272, 80
  %v5429 = vpop.permute.xlu0 %5428
  %5430 = vrot.lane.b32.xlu0 %v3278, 80
  %v5431 = vpop.permute.xlu0 %5430
  %v5432 = vsel %vm2414, %v5417, %v5425
  %v5433 = vsel %vm2414, %v5419, %v5427
  %v5434 = vsel %vm2414, %v5421, %v5429
  %v5435 = vsel %vm2414, %v5423, %v5431
  %v5436 = vsel %vm2414, %v5425, %v5417
  %v5437 = vsel %vm2414, %v5427, %v5419
  %v5438 = vsel %vm2414, %v5429, %v5421
  %v5439 = vsel %vm2414, %v5431, %v5423
  %v5440 = vld [vmem:[%s2423] sm:$0xff]
  %v5441 = vld [vmem:[%s2423 + $0x8] sm:$0xff]
  %v5442 = vld [vmem:[%s2423 + $0x10] sm:$0xff]
  %v5443 = vld [vmem:[%s2423 + $0x18] sm:$0xff]
  %v5444 = vld [vmem:[%s2423 + $0x20] sm:$0xff]
  %v5445 = vld [vmem:[%s2423 + $0x28] sm:$0xff]
  %v5446 = vld [vmem:[%s2423 + $0x30] sm:$0xff]
  %v5447 = vld [vmem:[%s2423 + $0x38] sm:$0xff]
  %v5448 = vmul.f32 %v5440, %v5432
  %v5449 = vmul.f32 %v5441, %v5436
  %v5450 = vmul.f32 %v5442, %v5433
  %v5451 = vmul.f32 %v5443, %v5437
  %v5452 = vmul.f32 %v5444, %v5434
  %v5453 = vmul.f32 %v5445, %v5438
  %v5454 = vmul.f32 %v5446, %v5435
  %v5455 = vmul.f32 %v5447, %v5439
  %v5456 = vadd.f32 %v5264, %v5448
  %v5457 = vadd.f32 %v5265, %v5449
  %v5458 = vadd.f32 %v5266, %v5450
  %v5459 = vadd.f32 %v5267, %v5451
  %v5460 = vadd.f32 %v5268, %v5452
  %v5461 = vadd.f32 %v5269, %v5453
  %v5462 = vadd.f32 %v5270, %v5454
  %v5463 = vadd.f32 %v5271, %v5455
  %5464 = vrot.lane.b32.xlu0 %v3258, 79
  %v5465 = vpop.permute.xlu0 %5464
  %5466 = vrot.lane.b32.xlu0 %v3264, 79
  %v5467 = vpop.permute.xlu0 %5466
  %5468 = vrot.lane.b32.xlu0 %v3270, 79
  %v5469 = vpop.permute.xlu0 %5468
  %5470 = vrot.lane.b32.xlu0 %v3276, 79
  %v5471 = vpop.permute.xlu0 %5470
  %5472 = vrot.lane.b32.xlu0 %v3260, 79
  %v5473 = vpop.permute.xlu0 %5472
  %5474 = vrot.lane.b32.xlu0 %v3266, 79
  %v5475 = vpop.permute.xlu0 %5474
  %5476 = vrot.lane.b32.xlu0 %v3272, 79
  %v5477 = vpop.permute.xlu0 %5476
  %5478 = vrot.lane.b32.xlu0 %v3278, 79
  %v5479 = vpop.permute.xlu0 %5478
  %v5480 = vsel %vm2464, %v5465, %v5473
  %v5481 = vsel %vm2464, %v5467, %v5475
  %v5482 = vsel %vm2464, %v5469, %v5477
  %v5483 = vsel %vm2464, %v5471, %v5479
  %v5484 = vsel %vm2464, %v5473, %v5465
  %v5485 = vsel %vm2464, %v5475, %v5467
  %v5486 = vsel %vm2464, %v5477, %v5469
  %v5487 = vsel %vm2464, %v5479, %v5471
  %v5488 = vld [vmem:[%s2473] sm:$0xff]
  %v5489 = vld [vmem:[%s2473 + $0x8] sm:$0xff]
  %v5490 = vld [vmem:[%s2473 + $0x10] sm:$0xff]
  %v5491 = vld [vmem:[%s2473 + $0x18] sm:$0xff]
  %v5492 = vld [vmem:[%s2473 + $0x20] sm:$0xff]
  %v5493 = vld [vmem:[%s2473 + $0x28] sm:$0xff]
  %v5494 = vld [vmem:[%s2473 + $0x30] sm:$0xff]
  %v5495 = vld [vmem:[%s2473 + $0x38] sm:$0xff]
  %v5496 = vmul.f32 %v5488, %v5480
  %v5497 = vmul.f32 %v5489, %v5484
  %v5498 = vmul.f32 %v5490, %v5481
  %v5499 = vmul.f32 %v5491, %v5485
  %v5500 = vmul.f32 %v5492, %v5482
  %v5501 = vmul.f32 %v5493, %v5486
  %v5502 = vmul.f32 %v5494, %v5483
  %v5503 = vmul.f32 %v5495, %v5487
  %v5504 = vadd.f32 %v5312, %v5496
  %v5505 = vadd.f32 %v5313, %v5497
  %v5506 = vadd.f32 %v5314, %v5498
  %v5507 = vadd.f32 %v5315, %v5499
  %v5508 = vadd.f32 %v5316, %v5500
  %v5509 = vadd.f32 %v5317, %v5501
  %v5510 = vadd.f32 %v5318, %v5502
  %v5511 = vadd.f32 %v5319, %v5503
  %5512 = vrot.lane.b32.xlu0 %v3258, 78
  %v5513 = vpop.permute.xlu0 %5512
  %5514 = vrot.lane.b32.xlu0 %v3264, 78
  %v5515 = vpop.permute.xlu0 %5514
  %5516 = vrot.lane.b32.xlu0 %v3270, 78
  %v5517 = vpop.permute.xlu0 %5516
  %5518 = vrot.lane.b32.xlu0 %v3276, 78
  %v5519 = vpop.permute.xlu0 %5518
  %5520 = vrot.lane.b32.xlu0 %v3260, 78
  %v5521 = vpop.permute.xlu0 %5520
  %5522 = vrot.lane.b32.xlu0 %v3266, 78
  %v5523 = vpop.permute.xlu0 %5522
  %5524 = vrot.lane.b32.xlu0 %v3272, 78
  %v5525 = vpop.permute.xlu0 %5524
  %5526 = vrot.lane.b32.xlu0 %v3278, 78
  %v5527 = vpop.permute.xlu0 %5526
  %v5528 = vsel %vm2514, %v5513, %v5521
  %v5529 = vsel %vm2514, %v5515, %v5523
  %v5530 = vsel %vm2514, %v5517, %v5525
  %v5531 = vsel %vm2514, %v5519, %v5527
  %v5532 = vsel %vm2514, %v5521, %v5513
  %v5533 = vsel %vm2514, %v5523, %v5515
  %v5534 = vsel %vm2514, %v5525, %v5517
  %v5535 = vsel %vm2514, %v5527, %v5519
  %v5536 = vld [vmem:[%s2523] sm:$0xff]
  %v5537 = vld [vmem:[%s2523 + $0x8] sm:$0xff]
  %v5538 = vld [vmem:[%s2523 + $0x10] sm:$0xff]
  %v5539 = vld [vmem:[%s2523 + $0x18] sm:$0xff]
  %v5540 = vld [vmem:[%s2523 + $0x20] sm:$0xff]
  %v5541 = vld [vmem:[%s2523 + $0x28] sm:$0xff]
  %v5542 = vld [vmem:[%s2523 + $0x30] sm:$0xff]
  %v5543 = vld [vmem:[%s2523 + $0x38] sm:$0xff]
  %v5544 = vmul.f32 %v5536, %v5528
  %v5545 = vmul.f32 %v5537, %v5532
  %v5546 = vmul.f32 %v5538, %v5529
  %v5547 = vmul.f32 %v5539, %v5533
  %v5548 = vmul.f32 %v5540, %v5530
  %v5549 = vmul.f32 %v5541, %v5534
  %v5550 = vmul.f32 %v5542, %v5531
  %v5551 = vmul.f32 %v5543, %v5535
  %v5552 = vadd.f32 %v5360, %v5544
  %v5553 = vadd.f32 %v5361, %v5545
  %v5554 = vadd.f32 %v5362, %v5546
  %v5555 = vadd.f32 %v5363, %v5547
  %v5556 = vadd.f32 %v5364, %v5548
  %v5557 = vadd.f32 %v5365, %v5549
  %v5558 = vadd.f32 %v5366, %v5550
  %v5559 = vadd.f32 %v5367, %v5551
  %5560 = vrot.lane.b32.xlu0 %v3258, 77
  %v5561 = vpop.permute.xlu0 %5560
  %5562 = vrot.lane.b32.xlu0 %v3264, 77
  %v5563 = vpop.permute.xlu0 %5562
  %5564 = vrot.lane.b32.xlu0 %v3270, 77
  %v5565 = vpop.permute.xlu0 %5564
  %5566 = vrot.lane.b32.xlu0 %v3276, 77
  %v5567 = vpop.permute.xlu0 %5566
  %5568 = vrot.lane.b32.xlu0 %v3260, 77
  %v5569 = vpop.permute.xlu0 %5568
  %5570 = vrot.lane.b32.xlu0 %v3266, 77
  %v5571 = vpop.permute.xlu0 %5570
  %5572 = vrot.lane.b32.xlu0 %v3272, 77
  %v5573 = vpop.permute.xlu0 %5572
  %5574 = vrot.lane.b32.xlu0 %v3278, 77
  %v5575 = vpop.permute.xlu0 %5574
  %v5576 = vsel %vm2564, %v5561, %v5569
  %v5577 = vsel %vm2564, %v5563, %v5571
  %v5578 = vsel %vm2564, %v5565, %v5573
  %v5579 = vsel %vm2564, %v5567, %v5575
  %v5580 = vsel %vm2564, %v5569, %v5561
  %v5581 = vsel %vm2564, %v5571, %v5563
  %v5582 = vsel %vm2564, %v5573, %v5565
  %v5583 = vsel %vm2564, %v5575, %v5567
  %v5584 = vld [vmem:[%s2573] sm:$0xff]
  %v5585 = vld [vmem:[%s2573 + $0x8] sm:$0xff]
  %v5586 = vld [vmem:[%s2573 + $0x10] sm:$0xff]
  %v5587 = vld [vmem:[%s2573 + $0x18] sm:$0xff]
  %v5588 = vld [vmem:[%s2573 + $0x20] sm:$0xff]
  %v5589 = vld [vmem:[%s2573 + $0x28] sm:$0xff]
  %v5590 = vld [vmem:[%s2573 + $0x30] sm:$0xff]
  %v5591 = vld [vmem:[%s2573 + $0x38] sm:$0xff]
  %v5592 = vmul.f32 %v5584, %v5576
  %v5593 = vmul.f32 %v5585, %v5580
  %v5594 = vmul.f32 %v5586, %v5577
  %v5595 = vmul.f32 %v5587, %v5581
  %v5596 = vmul.f32 %v5588, %v5578
  %v5597 = vmul.f32 %v5589, %v5582
  %v5598 = vmul.f32 %v5590, %v5579
  %v5599 = vmul.f32 %v5591, %v5583
  %v5600 = vadd.f32 %v5408, %v5592
  %v5601 = vadd.f32 %v5409, %v5593
  %v5602 = vadd.f32 %v5410, %v5594
  %v5603 = vadd.f32 %v5411, %v5595
  %v5604 = vadd.f32 %v5412, %v5596
  %v5605 = vadd.f32 %v5413, %v5597
  %v5606 = vadd.f32 %v5414, %v5598
  %v5607 = vadd.f32 %v5415, %v5599
  %v5608 = vadd.f32 %v5600, %v5456
  %v5609 = vadd.f32 %v5601, %v5457
  %v5610 = vadd.f32 %v5602, %v5458
  %v5611 = vadd.f32 %v5603, %v5459
  %v5612 = vadd.f32 %v5604, %v5460
  %v5613 = vadd.f32 %v5605, %v5461
  %v5614 = vadd.f32 %v5606, %v5462
  %v5615 = vadd.f32 %v5607, %v5463
  %v5616 = vadd.f32 %v5608, %v5504
  %v5617 = vadd.f32 %v5609, %v5505
  %v5618 = vadd.f32 %v5610, %v5506
  %v5619 = vadd.f32 %v5611, %v5507
  %v5620 = vadd.f32 %v5612, %v5508
  %v5621 = vadd.f32 %v5613, %v5509
  %v5622 = vadd.f32 %v5614, %v5510
  %v5623 = vadd.f32 %v5615, %v5511
  %v5624 = vadd.f32 %v5616, %v5552
  %v5625 = vadd.f32 %v5617, %v5553
  %v5626 = vadd.f32 %v5618, %v5554
  %v5627 = vadd.f32 %v5619, %v5555
  %v5628 = vadd.f32 %v5620, %v5556
  %v5629 = vadd.f32 %v5621, %v5557
  %v5630 = vadd.f32 %v5622, %v5558
  %v5631 = vadd.f32 %v5623, %v5559
  %v5632 = vadd.f32 %v5624, %v2625
  %v5633 = vadd.f32 %v5625, %v2625
  %v5634 = vadd.f32 %v5626, %v2630
  %v5635 = vadd.f32 %v5627, %v2630
  %v5636 = vadd.f32 %v5628, %v2635
  %v5637 = vadd.f32 %v5629, %v2635
  %v5638 = vadd.f32 %v5630, %v2640
  %v5639 = vadd.f32 %v5631, %v2640
  %v5640 = vmul.f32 %v5632, 0.5
  %v5641 = vmul.f32 %v5633, 0.5
  %v5642 = vmul.f32 %v5634, 0.5
  %v5643 = vmul.f32 %v5635, 0.5
  %v5644 = vmul.f32 %v5636, 0.5
  %v5645 = vmul.f32 %v5637, 0.5
  %v5646 = vmul.f32 %v5638, 0.5
  %v5647 = vmul.f32 %v5639, 0.5
  %v5648 = vmul.f32 %v5632, 0.044715
  %v5649 = vmul.f32 %v5633, 0.044715
  %v5650 = vmul.f32 %v5634, 0.044715
  %v5651 = vmul.f32 %v5635, 0.044715
  %v5652 = vmul.f32 %v5636, 0.044715
  %v5653 = vmul.f32 %v5637, 0.044715
  %v5654 = vmul.f32 %v5638, 0.044715
  %v5655 = vmul.f32 %v5639, 0.044715
  %v5656 = vmul.f32 %v5648, %v5632
  %v5657 = vmul.f32 %v5649, %v5633
  %v5658 = vmul.f32 %v5650, %v5634
  %v5659 = vmul.f32 %v5651, %v5635
  %v5660 = vmul.f32 %v5652, %v5636
  %v5661 = vmul.f32 %v5653, %v5637
  %v5662 = vmul.f32 %v5654, %v5638
  %v5663 = vmul.f32 %v5655, %v5639
  %v5664 = vmul.f32 %v5656, %v5632
  %v5665 = vmul.f32 %v5657, %v5633
  %v5666 = vmul.f32 %v5658, %v5634
  %v5667 = vmul.f32 %v5659, %v5635
  %v5668 = vmul.f32 %v5660, %v5636
  %v5669 = vmul.f32 %v5661, %v5637
  %v5670 = vmul.f32 %v5662, %v5638
  %v5671 = vmul.f32 %v5663, %v5639
  %v5672 = vadd.f32 %v5632, %v5664
  %v5673 = vadd.f32 %v5633, %v5665
  %v5674 = vadd.f32 %v5634, %v5666
  %v5675 = vadd.f32 %v5635, %v5667
  %v5676 = vadd.f32 %v5636, %v5668
  %v5677 = vadd.f32 %v5637, %v5669
  %v5678 = vadd.f32 %v5638, %v5670
  %v5679 = vadd.f32 %v5639, %v5671
  %v5680 = vmul.f32 %v5672, 0.7978846
  %v5681 = vmul.f32 %v5673, 0.7978846
  %v5682 = vmul.f32 %v5674, 0.7978846
  %v5683 = vmul.f32 %v5675, 0.7978846
  %v5684 = vmul.f32 %v5676, 0.7978846
  %v5685 = vmul.f32 %v5677, 0.7978846
  %v5686 = vmul.f32 %v5678, 0.7978846
  %v5687 = vmul.f32 %v5679, 0.7978846
  %v5688 = vtanh.pop %v5680
  %v5689 = vtanh.pop %v5681
  %v5690 = vtanh.pop %v5682
  %v5691 = vtanh.pop %v5683
  %v5692 = vtanh.pop %v5684
  %v5693 = vtanh.pop %v5685
  %v5694 = vtanh.pop %v5686
  %v5695 = vtanh.pop %v5687
  %v5696 = vadd.f32 %v5688, 1.0
  %v5697 = vadd.f32 %v5689, 1.0
  %v5698 = vadd.f32 %v5690, 1.0
  %v5699 = vadd.f32 %v5691, 1.0
  %v5700 = vadd.f32 %v5692, 1.0
  %v5701 = vadd.f32 %v5693, 1.0
  %v5702 = vadd.f32 %v5694, 1.0
  %v5703 = vadd.f32 %v5695, 1.0
  %v5704 = vmul.f32 %v5640, %v5696
  %v5705 = vmul.f32 %v5641, %v5697
  %v5706 = vmul.f32 %v5642, %v5698
  %v5707 = vmul.f32 %v5643, %v5699
  %v5708 = vmul.f32 %v5644, %v5700
  %v5709 = vmul.f32 %v5645, %v5701
  %v5710 = vmul.f32 %v5646, %v5702
  %v5711 = vmul.f32 %v5647, %v5703
  %5712 = vrot.lane.b32.xlu0 %v5704, 17
  %v5713 = vpop.permute.xlu0 %5712
  %5714 = vrot.lane.b32.xlu0 %v5706, 17
  %v5715 = vpop.permute.xlu0 %5714
  %5716 = vrot.lane.b32.xlu0 %v5708, 17
  %v5717 = vpop.permute.xlu0 %5716
  %5718 = vrot.lane.b32.xlu0 %v5710, 17
  %v5719 = vpop.permute.xlu0 %5718
  %5720 = vrot.lane.b32.xlu0 %v5705, 17
  %v5721 = vpop.permute.xlu0 %5720
  %5722 = vrot.lane.b32.xlu0 %v5707, 17
  %v5723 = vpop.permute.xlu0 %5722
  %5724 = vrot.lane.b32.xlu0 %v5709, 17
  %v5725 = vpop.permute.xlu0 %5724
  %5726 = vrot.lane.b32.xlu0 %v5711, 17
  %v5727 = vpop.permute.xlu0 %5726
  %v5728 = vsel %vm989, %v5713, %v5721
  %v5729 = vsel %vm989, %v5715, %v5723
  %v5730 = vsel %vm989, %v5717, %v5725
  %v5731 = vsel %vm989, %v5719, %v5727
  %v5732 = vsel %vm989, %v5721, %v5713
  %v5733 = vsel %vm989, %v5723, %v5715
  %v5734 = vsel %vm989, %v5725, %v5717
  %v5735 = vsel %vm989, %v5727, %v5719
  %v5736 = vld [vmem:[%s5] sm:$0xff]
  %v5737 = vld [vmem:[%s5 + $0x8] sm:$0xff]
  %v5738 = vld [vmem:[%s5 + $0x10] sm:$0xff]
  %v5739 = vld [vmem:[%s5 + $0x18] sm:$0xff]
  %v5740 = vld [vmem:[%s5 + $0x20] sm:$0xff]
  %v5741 = vld [vmem:[%s5 + $0x28] sm:$0xff]
  %v5742 = vld [vmem:[%s5 + $0x30] sm:$0xff]
  %v5743 = vld [vmem:[%s5 + $0x38] sm:$0xff]
  %v5744 = vmul.f32 %v5736, %v5732
  %v5745 = vmul.f32 %v5737, %v5728
  %v5746 = vmul.f32 %v5738, %v5733
  %v5747 = vmul.f32 %v5739, %v5729
  %v5748 = vmul.f32 %v5740, %v5734
  %v5749 = vmul.f32 %v5741, %v5730
  %v5750 = vmul.f32 %v5742, %v5735
  %v5751 = vmul.f32 %v5743, %v5731
  %v5752 = vadd.f32 %v5744, 0.0
  %v5753 = vadd.f32 %v5745, 0.0
  %v5754 = vadd.f32 %v5746, 0.0
  %v5755 = vadd.f32 %v5747, 0.0
  %v5756 = vadd.f32 %v5748, 0.0
  %v5757 = vadd.f32 %v5749, 0.0
  %v5758 = vadd.f32 %v5750, 0.0
  %v5759 = vadd.f32 %v5751, 0.0
  %5760 = vrot.lane.b32.xlu0 %v5704, 16
  %v5761 = vpop.permute.xlu0 %5760
  %5762 = vrot.lane.b32.xlu0 %v5706, 16
  %v5763 = vpop.permute.xlu0 %5762
  %5764 = vrot.lane.b32.xlu0 %v5708, 16
  %v5765 = vpop.permute.xlu0 %5764
  %5766 = vrot.lane.b32.xlu0 %v5710, 16
  %v5767 = vpop.permute.xlu0 %5766
  %5768 = vrot.lane.b32.xlu0 %v5705, 16
  %v5769 = vpop.permute.xlu0 %5768
  %5770 = vrot.lane.b32.xlu0 %v5707, 16
  %v5771 = vpop.permute.xlu0 %5770
  %5772 = vrot.lane.b32.xlu0 %v5709, 16
  %v5773 = vpop.permute.xlu0 %5772
  %5774 = vrot.lane.b32.xlu0 %v5711, 16
  %v5775 = vpop.permute.xlu0 %5774
  %v5776 = vsel %vm1039, %v5761, %v5769
  %v5777 = vsel %vm1039, %v5763, %v5771
  %v5778 = vsel %vm1039, %v5765, %v5773
  %v5779 = vsel %vm1039, %v5767, %v5775
  %v5780 = vsel %vm1039, %v5769, %v5761
  %v5781 = vsel %vm1039, %v5771, %v5763
  %v5782 = vsel %vm1039, %v5773, %v5765
  %v5783 = vsel %vm1039, %v5775, %v5767
  %v5784 = vld [vmem:[%s2794] sm:$0xff]
  %v5785 = vld [vmem:[%s2794 + $0x8] sm:$0xff]
  %v5786 = vld [vmem:[%s2794 + $0x10] sm:$0xff]
  %v5787 = vld [vmem:[%s2794 + $0x18] sm:$0xff]
  %v5788 = vld [vmem:[%s2794 + $0x20] sm:$0xff]
  %v5789 = vld [vmem:[%s2794 + $0x28] sm:$0xff]
  %v5790 = vld [vmem:[%s2794 + $0x30] sm:$0xff]
  %v5791 = vld [vmem:[%s2794 + $0x38] sm:$0xff]
  %v5792 = vmul.f32 %v5784, %v5780
  %v5793 = vmul.f32 %v5785, %v5776
  %v5794 = vmul.f32 %v5786, %v5781
  %v5795 = vmul.f32 %v5787, %v5777
  %v5796 = vmul.f32 %v5788, %v5782
  %v5797 = vmul.f32 %v5789, %v5778
  %v5798 = vmul.f32 %v5790, %v5783
  %v5799 = vmul.f32 %v5791, %v5779
  %v5800 = vadd.f32 %v5792, 0.0
  %v5801 = vadd.f32 %v5793, 0.0
  %v5802 = vadd.f32 %v5794, 0.0
  %v5803 = vadd.f32 %v5795, 0.0
  %v5804 = vadd.f32 %v5796, 0.0
  %v5805 = vadd.f32 %v5797, 0.0
  %v5806 = vadd.f32 %v5798, 0.0
  %v5807 = vadd.f32 %v5799, 0.0
  %5808 = vrot.lane.b32.xlu0 %v5704, 15
  %v5809 = vpop.permute.xlu0 %5808
  %5810 = vrot.lane.b32.xlu0 %v5706, 15
  %v5811 = vpop.permute.xlu0 %5810
  %5812 = vrot.lane.b32.xlu0 %v5708, 15
  %v5813 = vpop.permute.xlu0 %5812
  %5814 = vrot.lane.b32.xlu0 %v5710, 15
  %v5815 = vpop.permute.xlu0 %5814
  %5816 = vrot.lane.b32.xlu0 %v5705, 15
  %v5817 = vpop.permute.xlu0 %5816
  %5818 = vrot.lane.b32.xlu0 %v5707, 15
  %v5819 = vpop.permute.xlu0 %5818
  %5820 = vrot.lane.b32.xlu0 %v5709, 15
  %v5821 = vpop.permute.xlu0 %5820
  %5822 = vrot.lane.b32.xlu0 %v5711, 15
  %v5823 = vpop.permute.xlu0 %5822
  %v5824 = vsel %vm1089, %v5809, %v5817
  %v5825 = vsel %vm1089, %v5811, %v5819
  %v5826 = vsel %vm1089, %v5813, %v5821
  %v5827 = vsel %vm1089, %v5815, %v5823
  %v5828 = vsel %vm1089, %v5817, %v5809
  %v5829 = vsel %vm1089, %v5819, %v5811
  %v5830 = vsel %vm1089, %v5821, %v5813
  %v5831 = vsel %vm1089, %v5823, %v5815
  %v5832 = vld [vmem:[%s2843] sm:$0xff]
  %v5833 = vld [vmem:[%s2843 + $0x8] sm:$0xff]
  %v5834 = vld [vmem:[%s2843 + $0x10] sm:$0xff]
  %v5835 = vld [vmem:[%s2843 + $0x18] sm:$0xff]
  %v5836 = vld [vmem:[%s2843 + $0x20] sm:$0xff]
  %v5837 = vld [vmem:[%s2843 + $0x28] sm:$0xff]
  %v5838 = vld [vmem:[%s2843 + $0x30] sm:$0xff]
  %v5839 = vld [vmem:[%s2843 + $0x38] sm:$0xff]
  %v5840 = vmul.f32 %v5832, %v5828
  %v5841 = vmul.f32 %v5833, %v5824
  %v5842 = vmul.f32 %v5834, %v5829
  %v5843 = vmul.f32 %v5835, %v5825
  %v5844 = vmul.f32 %v5836, %v5830
  %v5845 = vmul.f32 %v5837, %v5826
  %v5846 = vmul.f32 %v5838, %v5831
  %v5847 = vmul.f32 %v5839, %v5827
  %v5848 = vadd.f32 %v5752, %v5840
  %v5849 = vadd.f32 %v5753, %v5841
  %v5850 = vadd.f32 %v5754, %v5842
  %v5851 = vadd.f32 %v5755, %v5843
  %v5852 = vadd.f32 %v5756, %v5844
  %v5853 = vadd.f32 %v5757, %v5845
  %v5854 = vadd.f32 %v5758, %v5846
  %v5855 = vadd.f32 %v5759, %v5847
  %5856 = vrot.lane.b32.xlu0 %v5704, 1
  %v5857 = vpop.permute.xlu0 %5856
  %5858 = vrot.lane.b32.xlu0 %v5706, 1
  %v5859 = vpop.permute.xlu0 %5858
  %5860 = vrot.lane.b32.xlu0 %v5708, 1
  %v5861 = vpop.permute.xlu0 %5860
  %5862 = vrot.lane.b32.xlu0 %v5710, 1
  %v5863 = vpop.permute.xlu0 %5862
  %5864 = vrot.lane.b32.xlu0 %v5705, 1
  %v5865 = vpop.permute.xlu0 %5864
  %5866 = vrot.lane.b32.xlu0 %v5707, 1
  %v5867 = vpop.permute.xlu0 %5866
  %5868 = vrot.lane.b32.xlu0 %v5709, 1
  %v5869 = vpop.permute.xlu0 %5868
  %5870 = vrot.lane.b32.xlu0 %v5711, 1
  %v5871 = vpop.permute.xlu0 %5870
  %v5872 = vsel %vm1339, %v5857, %v5865
  %v5873 = vsel %vm1339, %v5859, %v5867
  %v5874 = vsel %vm1339, %v5861, %v5869
  %v5875 = vsel %vm1339, %v5863, %v5871
  %v5876 = vsel %vm1339, %v5865, %v5857
  %v5877 = vsel %vm1339, %v5867, %v5859
  %v5878 = vsel %vm1339, %v5869, %v5861
  %v5879 = vsel %vm1339, %v5871, %v5863
  %v5880 = vld [vmem:[%s2892] sm:$0xff]
  %v5881 = vld [vmem:[%s2892 + $0x8] sm:$0xff]
  %v5882 = vld [vmem:[%s2892 + $0x10] sm:$0xff]
  %v5883 = vld [vmem:[%s2892 + $0x18] sm:$0xff]
  %v5884 = vld [vmem:[%s2892 + $0x20] sm:$0xff]
  %v5885 = vld [vmem:[%s2892 + $0x28] sm:$0xff]
  %v5886 = vld [vmem:[%s2892 + $0x30] sm:$0xff]
  %v5887 = vld [vmem:[%s2892 + $0x38] sm:$0xff]
  %v5888 = vmul.f32 %v5880, %v5876
  %v5889 = vmul.f32 %v5881, %v5872
  %v5890 = vmul.f32 %v5882, %v5877
  %v5891 = vmul.f32 %v5883, %v5873
  %v5892 = vmul.f32 %v5884, %v5878
  %v5893 = vmul.f32 %v5885, %v5874
  %v5894 = vmul.f32 %v5886, %v5879
  %v5895 = vmul.f32 %v5887, %v5875
  %v5896 = vadd.f32 %v5800, %v5888
  %v5897 = vadd.f32 %v5801, %v5889
  %v5898 = vadd.f32 %v5802, %v5890
  %v5899 = vadd.f32 %v5803, %v5891
  %v5900 = vadd.f32 %v5804, %v5892
  %v5901 = vadd.f32 %v5805, %v5893
  %v5902 = vadd.f32 %v5806, %v5894
  %v5903 = vadd.f32 %v5807, %v5895
  %v5904 = vld [vmem:[%s2917] sm:$0xff]
  %v5905 = vld [vmem:[%s2917 + $0x8] sm:$0xff]
  %v5906 = vld [vmem:[%s2917 + $0x10] sm:$0xff]
  %v5907 = vld [vmem:[%s2917 + $0x18] sm:$0xff]
  %v5908 = vld [vmem:[%s2917 + $0x20] sm:$0xff]
  %v5909 = vld [vmem:[%s2917 + $0x28] sm:$0xff]
  %v5910 = vld [vmem:[%s2917 + $0x30] sm:$0xff]
  %v5911 = vld [vmem:[%s2917 + $0x38] sm:$0xff]
  %v5912 = vmul.f32 %v5904, %v5704
  %v5913 = vmul.f32 %v5905, %v5705
  %v5914 = vmul.f32 %v5906, %v5706
  %v5915 = vmul.f32 %v5907, %v5707
  %v5916 = vmul.f32 %v5908, %v5708
  %v5917 = vmul.f32 %v5909, %v5709
  %v5918 = vmul.f32 %v5910, %v5710
  %v5919 = vmul.f32 %v5911, %v5711
  %v5920 = vadd.f32 %v5848, %v5912
  %v5921 = vadd.f32 %v5849, %v5913
  %v5922 = vadd.f32 %v5850, %v5914
  %v5923 = vadd.f32 %v5851, %v5915
  %v5924 = vadd.f32 %v5852, %v5916
  %v5925 = vadd.f32 %v5853, %v5917
  %v5926 = vadd.f32 %v5854, %v5918
  %v5927 = vadd.f32 %v5855, %v5919
  %5928 = vrot.lane.b32.xlu0 %v5704, 127
  %v5929 = vpop.permute.xlu0 %5928
  %5930 = vrot.lane.b32.xlu0 %v5706, 127
  %v5931 = vpop.permute.xlu0 %5930
  %5932 = vrot.lane.b32.xlu0 %v5708, 127
  %v5933 = vpop.permute.xlu0 %5932
  %5934 = vrot.lane.b32.xlu0 %v5710, 127
  %v5935 = vpop.permute.xlu0 %5934
  %5936 = vrot.lane.b32.xlu0 %v5705, 127
  %v5937 = vpop.permute.xlu0 %5936
  %5938 = vrot.lane.b32.xlu0 %v5707, 127
  %v5939 = vpop.permute.xlu0 %5938
  %5940 = vrot.lane.b32.xlu0 %v5709, 127
  %v5941 = vpop.permute.xlu0 %5940
  %5942 = vrot.lane.b32.xlu0 %v5711, 127
  %v5943 = vpop.permute.xlu0 %5942
  %v5944 = vsel %vm1414, %v5929, %v5937
  %v5945 = vsel %vm1414, %v5931, %v5939
  %v5946 = vsel %vm1414, %v5933, %v5941
  %v5947 = vsel %vm1414, %v5935, %v5943
  %v5948 = vsel %vm1414, %v5937, %v5929
  %v5949 = vsel %vm1414, %v5939, %v5931
  %v5950 = vsel %vm1414, %v5941, %v5933
  %v5951 = vsel %vm1414, %v5943, %v5935
  %v5952 = vld [vmem:[%s2966] sm:$0xff]
  %v5953 = vld [vmem:[%s2966 + $0x8] sm:$0xff]
  %v5954 = vld [vmem:[%s2966 + $0x10] sm:$0xff]
  %v5955 = vld [vmem:[%s2966 + $0x18] sm:$0xff]
  %v5956 = vld [vmem:[%s2966 + $0x20] sm:$0xff]
  %v5957 = vld [vmem:[%s2966 + $0x28] sm:$0xff]
  %v5958 = vld [vmem:[%s2966 + $0x30] sm:$0xff]
  %v5959 = vld [vmem:[%s2966 + $0x38] sm:$0xff]
  %v5960 = vmul.f32 %v5952, %v5944
  %v5961 = vmul.f32 %v5953, %v5948
  %v5962 = vmul.f32 %v5954, %v5945
  %v5963 = vmul.f32 %v5955, %v5949
  %v5964 = vmul.f32 %v5956, %v5946
  %v5965 = vmul.f32 %v5957, %v5950
  %v5966 = vmul.f32 %v5958, %v5947
  %v5967 = vmul.f32 %v5959, %v5951
  %v5968 = vadd.f32 %v5896, %v5960
  %v5969 = vadd.f32 %v5897, %v5961
  %v5970 = vadd.f32 %v5898, %v5962
  %v5971 = vadd.f32 %v5899, %v5963
  %v5972 = vadd.f32 %v5900, %v5964
  %v5973 = vadd.f32 %v5901, %v5965
  %v5974 = vadd.f32 %v5902, %v5966
  %v5975 = vadd.f32 %v5903, %v5967
  %5976 = vrot.lane.b32.xlu0 %v5704, 113
  %v5977 = vpop.permute.xlu0 %5976
  %5978 = vrot.lane.b32.xlu0 %v5706, 113
  %v5979 = vpop.permute.xlu0 %5978
  %5980 = vrot.lane.b32.xlu0 %v5708, 113
  %v5981 = vpop.permute.xlu0 %5980
  %5982 = vrot.lane.b32.xlu0 %v5710, 113
  %v5983 = vpop.permute.xlu0 %5982
  %5984 = vrot.lane.b32.xlu0 %v5705, 113
  %v5985 = vpop.permute.xlu0 %5984
  %5986 = vrot.lane.b32.xlu0 %v5707, 113
  %v5987 = vpop.permute.xlu0 %5986
  %5988 = vrot.lane.b32.xlu0 %v5709, 113
  %v5989 = vpop.permute.xlu0 %5988
  %5990 = vrot.lane.b32.xlu0 %v5711, 113
  %v5991 = vpop.permute.xlu0 %5990
  %v5992 = vsel %vm1664, %v5977, %v5985
  %v5993 = vsel %vm1664, %v5979, %v5987
  %v5994 = vsel %vm1664, %v5981, %v5989
  %v5995 = vsel %vm1664, %v5983, %v5991
  %v5996 = vsel %vm1664, %v5985, %v5977
  %v5997 = vsel %vm1664, %v5987, %v5979
  %v5998 = vsel %vm1664, %v5989, %v5981
  %v5999 = vsel %vm1664, %v5991, %v5983
  %v6000 = vld [vmem:[%s3015] sm:$0xff]
  %v6001 = vld [vmem:[%s3015 + $0x8] sm:$0xff]
  %v6002 = vld [vmem:[%s3015 + $0x10] sm:$0xff]
  %v6003 = vld [vmem:[%s3015 + $0x18] sm:$0xff]
  %v6004 = vld [vmem:[%s3015 + $0x20] sm:$0xff]
  %v6005 = vld [vmem:[%s3015 + $0x28] sm:$0xff]
  %v6006 = vld [vmem:[%s3015 + $0x30] sm:$0xff]
  %v6007 = vld [vmem:[%s3015 + $0x38] sm:$0xff]
  %v6008 = vmul.f32 %v6000, %v5992
  %v6009 = vmul.f32 %v6001, %v5996
  %v6010 = vmul.f32 %v6002, %v5993
  %v6011 = vmul.f32 %v6003, %v5997
  %v6012 = vmul.f32 %v6004, %v5994
  %v6013 = vmul.f32 %v6005, %v5998
  %v6014 = vmul.f32 %v6006, %v5995
  %v6015 = vmul.f32 %v6007, %v5999
  %v6016 = vadd.f32 %v5920, %v6008
  %v6017 = vadd.f32 %v5921, %v6009
  %v6018 = vadd.f32 %v5922, %v6010
  %v6019 = vadd.f32 %v5923, %v6011
  %v6020 = vadd.f32 %v5924, %v6012
  %v6021 = vadd.f32 %v5925, %v6013
  %v6022 = vadd.f32 %v5926, %v6014
  %v6023 = vadd.f32 %v5927, %v6015
  %6024 = vrot.lane.b32.xlu0 %v5704, 112
  %v6025 = vpop.permute.xlu0 %6024
  %6026 = vrot.lane.b32.xlu0 %v5706, 112
  %v6027 = vpop.permute.xlu0 %6026
  %6028 = vrot.lane.b32.xlu0 %v5708, 112
  %v6029 = vpop.permute.xlu0 %6028
  %6030 = vrot.lane.b32.xlu0 %v5710, 112
  %v6031 = vpop.permute.xlu0 %6030
  %6032 = vrot.lane.b32.xlu0 %v5705, 112
  %v6033 = vpop.permute.xlu0 %6032
  %6034 = vrot.lane.b32.xlu0 %v5707, 112
  %v6035 = vpop.permute.xlu0 %6034
  %6036 = vrot.lane.b32.xlu0 %v5709, 112
  %v6037 = vpop.permute.xlu0 %6036
  %6038 = vrot.lane.b32.xlu0 %v5711, 112
  %v6039 = vpop.permute.xlu0 %6038
  %v6040 = vsel %vm1714, %v6025, %v6033
  %v6041 = vsel %vm1714, %v6027, %v6035
  %v6042 = vsel %vm1714, %v6029, %v6037
  %v6043 = vsel %vm1714, %v6031, %v6039
  %v6044 = vsel %vm1714, %v6033, %v6025
  %v6045 = vsel %vm1714, %v6035, %v6027
  %v6046 = vsel %vm1714, %v6037, %v6029
  %v6047 = vsel %vm1714, %v6039, %v6031
  %v6048 = vld [vmem:[%s3064] sm:$0xff]
  %v6049 = vld [vmem:[%s3064 + $0x8] sm:$0xff]
  %v6050 = vld [vmem:[%s3064 + $0x10] sm:$0xff]
  %v6051 = vld [vmem:[%s3064 + $0x18] sm:$0xff]
  %v6052 = vld [vmem:[%s3064 + $0x20] sm:$0xff]
  %v6053 = vld [vmem:[%s3064 + $0x28] sm:$0xff]
  %v6054 = vld [vmem:[%s3064 + $0x30] sm:$0xff]
  %v6055 = vld [vmem:[%s3064 + $0x38] sm:$0xff]
  %v6056 = vmul.f32 %v6048, %v6040
  %v6057 = vmul.f32 %v6049, %v6044
  %v6058 = vmul.f32 %v6050, %v6041
  %v6059 = vmul.f32 %v6051, %v6045
  %v6060 = vmul.f32 %v6052, %v6042
  %v6061 = vmul.f32 %v6053, %v6046
  %v6062 = vmul.f32 %v6054, %v6043
  %v6063 = vmul.f32 %v6055, %v6047
  %v6064 = vadd.f32 %v5968, %v6056
  %v6065 = vadd.f32 %v5969, %v6057
  %v6066 = vadd.f32 %v5970, %v6058
  %v6067 = vadd.f32 %v5971, %v6059
  %v6068 = vadd.f32 %v5972, %v6060
  %v6069 = vadd.f32 %v5973, %v6061
  %v6070 = vadd.f32 %v5974, %v6062
  %v6071 = vadd.f32 %v5975, %v6063
  %6072 = vrot.lane.b32.xlu0 %v5704, 111
  %v6073 = vpop.permute.xlu0 %6072
  %6074 = vrot.lane.b32.xlu0 %v5706, 111
  %v6075 = vpop.permute.xlu0 %6074
  %6076 = vrot.lane.b32.xlu0 %v5708, 111
  %v6077 = vpop.permute.xlu0 %6076
  %6078 = vrot.lane.b32.xlu0 %v5710, 111
  %v6079 = vpop.permute.xlu0 %6078
  %6080 = vrot.lane.b32.xlu0 %v5705, 111
  %v6081 = vpop.permute.xlu0 %6080
  %6082 = vrot.lane.b32.xlu0 %v5707, 111
  %v6083 = vpop.permute.xlu0 %6082
  %6084 = vrot.lane.b32.xlu0 %v5709, 111
  %v6085 = vpop.permute.xlu0 %6084
  %6086 = vrot.lane.b32.xlu0 %v5711, 111
  %v6087 = vpop.permute.xlu0 %6086
  %v6088 = vsel %vm1764, %v6073, %v6081
  %v6089 = vsel %vm1764, %v6075, %v6083
  %v6090 = vsel %vm1764, %v6077, %v6085
  %v6091 = vsel %vm1764, %v6079, %v6087
  %v6092 = vsel %vm1764, %v6081, %v6073
  %v6093 = vsel %vm1764, %v6083, %v6075
  %v6094 = vsel %vm1764, %v6085, %v6077
  %v6095 = vsel %vm1764, %v6087, %v6079
  %v6096 = vld [vmem:[%s3113] sm:$0xff]
  %v6097 = vld [vmem:[%s3113 + $0x8] sm:$0xff]
  %v6098 = vld [vmem:[%s3113 + $0x10] sm:$0xff]
  %v6099 = vld [vmem:[%s3113 + $0x18] sm:$0xff]
  %v6100 = vld [vmem:[%s3113 + $0x20] sm:$0xff]
  %v6101 = vld [vmem:[%s3113 + $0x28] sm:$0xff]
  %v6102 = vld [vmem:[%s3113 + $0x30] sm:$0xff]
  %v6103 = vld [vmem:[%s3113 + $0x38] sm:$0xff]
  %v6104 = vmul.f32 %v6096, %v6088
  %v6105 = vmul.f32 %v6097, %v6092
  %v6106 = vmul.f32 %v6098, %v6089
  %v6107 = vmul.f32 %v6099, %v6093
  %v6108 = vmul.f32 %v6100, %v6090
  %v6109 = vmul.f32 %v6101, %v6094
  %v6110 = vmul.f32 %v6102, %v6091
  %v6111 = vmul.f32 %v6103, %v6095
  %v6112 = vadd.f32 %v6016, %v6104
  %v6113 = vadd.f32 %v6017, %v6105
  %v6114 = vadd.f32 %v6018, %v6106
  %v6115 = vadd.f32 %v6019, %v6107
  %v6116 = vadd.f32 %v6020, %v6108
  %v6117 = vadd.f32 %v6021, %v6109
  %v6118 = vadd.f32 %v6022, %v6110
  %v6119 = vadd.f32 %v6023, %v6111
  %v6120 = vadd.f32 %v6112, %v6064
  %v6121 = vadd.f32 %v6113, %v6065
  %v6122 = vadd.f32 %v6114, %v6066
  %v6123 = vadd.f32 %v6115, %v6067
  %v6124 = vadd.f32 %v6116, %v6068
  %v6125 = vadd.f32 %v6117, %v6069
  %v6126 = vadd.f32 %v6118, %v6070
  %v6127 = vadd.f32 %v6119, %v6071
  %v6128 = vadd.f32 %v6120, %v3149
  %v6129 = vadd.f32 %v6121, %v3149
  %v6130 = vadd.f32 %v6122, %v3154
  %v6131 = vadd.f32 %v6123, %v3154
  %v6132 = vadd.f32 %v6124, %v3159
  %v6133 = vadd.f32 %v6125, %v3159
  %v6134 = vadd.f32 %v6126, %v3164
  %v6135 = vadd.f32 %v6127, %v3164
  %s6136 = scalar_lea.vmem %s7, 64
  %6137 = vst [vmem:[%s6136] sm:$0xff] %v6128
  %6138 = vst [vmem:[%s6136 + $0x8] sm:$0xff] %v6129
  %6139 = vst [vmem:[%s6136 + $0x10] sm:$0xff] %v6130
  %6140 = vst [vmem:[%s6136 + $0x18] sm:$0xff] %v6131
  %6141 = vst [vmem:[%s6136 + $0x20] sm:$0xff] %v6132
  %6142 = vst [vmem:[%s6136 + $0x28] sm:$0xff] %v6133
  %6143 = vst [vmem:[%s6136 + $0x30] sm:$0xff] %v6134
  %6144 = vst [vmem:[%s6136 + $0x38] sm:$0xff] %v6135
  // Predicated region
  $region30: #{token_mixer_pallas.1} parent=0 // pred_check
    _
  $region31: #{token_mixer_pallas.1} parent=0 // pred_check_branch
    %6146 = sbr.rel (0) target = $region33
  $region32: #{token_mixer_pallas.1} parent=0 // pred_region
    _
  $region33: #{token_mixer_pallas.1} parent=0 // pred_fallthru
    _
  // Predicated region
  $region34: #{token_mixer_pallas.1} parent=0 // pred_check
    _
  $region35: #{token_mixer_pallas.1} parent=0 // pred_check_branch
    %6148 = sbr.rel (0) target = $region37
  $region36: #{token_mixer_pallas.1} parent=0 // pred_region
    _
  $region37: #{token_mixer_pallas.1} parent=0 // pred_fallthru
    _

</llo_original>
